<compile_context>
chip_gen: v5e
topology: v5e:2x2
jax: 0.10.0
libtpu: 0.0.40
codegen_flags: <defaults>
</compile_context>

<pallas_src>
import jax
import jax.numpy as jnp
from jax.experimental import pallas as pl
from jax.experimental.pallas import tpu as pltpu

EMBED_DIM = 384          # vit_small
NUM_HEADS = 6
HEAD_DIM = EMBED_DIM // NUM_HEADS
DEPTH = 12
MLP_HIDDEN = EMBED_DIM * 4
PATCH = 14
NUM_REG = 4              # num_register_tokens=4
LN_EPS = 1e-6
LS_INIT = 1.0            # init_values=1.0 (LayerScale)
PATCH_VEC = 3 * PATCH * PATCH      # 588
PATCH_VEC_PAD = 640                # next multiple of 128


# -------------------- per-generation tuning (VMEM / batch block) ------------

def _vmem_capacity_bytes():
    try:
        cap = int(getattr(pltpu.get_tpu_info(), "vmem_capacity_bytes"))
        if cap > 0:
            return cap
    except Exception:
        pass
    return 64 * 1024 * 1024          # conservative default (v7x per-core VMEM)


_VMEM_CAP = _vmem_capacity_bytes()
# 48 MiB limit on 64 MiB chips (v7x), 96 MiB on 128 MiB chips (v5e/v6e).
_VMEM_LIMIT = min(_VMEM_CAP * 3 // 4, 100 * 1024 * 1024)

_COMPILER_PARAMS_1D = pltpu.CompilerParams(
    dimension_semantics=("parallel",),
    vmem_limit_bytes=_VMEM_LIMIT,
)
_COMPILER_PARAMS_2D = pltpu.CompilerParams(
    dimension_semantics=("parallel", "arbitrary"),
    vmem_limit_bytes=_VMEM_LIMIT,
)


def _pick_batch_block(batch):
    """Images per grid step: amortizes per-layer weight streaming over G images."""
    g_cap = 8 if _VMEM_CAP >= 128 * 1024 * 1024 else 4     # v5e/v6e vs v7x
    g = max(1, min(g_cap, batch))
    # Keep >= 2 grid steps along the parallel batch axis so both TensorCores
    # (v7x) / megacore halves get work.
    while g > 1 and pl.cdiv(batch, g) < 2:
        g //= 2
    return g


# ----------------------------- kernel helpers -------------------------------

def _layer_norm(x, w, b):
    mu = jnp.mean(x, axis=-1, keepdims=True)
    var = jnp.mean(jnp.square(x - mu), axis=-1, keepdims=True)
    return (x - mu) * jax.lax.rsqrt(var + LN_EPS) * w + b


def _gelu_exact(x):
    # nn.GELU default = exact erf GELU (computed in f32)
    return 0.5 * x * (1.0 + jax.lax.erf(x * 0.7071067811865476))


# ------------------------------- kernels -------------------------------------

def _patch_embed_kernel(patches_ref, w_ref, b_ref, o_ref):
    # patches: (1, N, 640) bf16, w: (640, D) bf16 (zero-padded K), b: (1, D) f32
    o_ref[0] = (
        jnp.dot(patches_ref[0], w_ref[...], preferred_element_type=jnp.float32)
        + b_ref[...]
    )


def _fused_blocks_kernel(x_ref, bias_ref,
                         ln1w, ln1b, qkvw, qkvb, projw, projb,
                         ln2w, ln2b, fc1w, fc1b, fc2w, fc2b,
                         normw, normb, o_ref):
    l = pl.program_id(1)
    g, t_pad, d = o_ref.shape
    m = g * t_pad

    # Load the batch-block into the VMEM-resident output (acts as the carry).
    @pl.when(l == 0)
    def _():
        o_ref[...] = x_ref[...]

    x = o_ref[...].reshape(m, d)                              # (G*T_pad, D) f32

    # ---- attention branch: x + proj(attn(norm1(x)))  (LayerScale folded) ----
    h = _layer_norm(x, ln1w[0], ln1b[0]).astype(jnp.bfloat16)
    qkv = (jnp.dot(h, qkvw[0], preferred_element_type=jnp.float32)
           + qkvb[0]).astype(jnp.bfloat16)                    # (M, 3D) bf16
    # attention 1/sqrt(head_dim) scale is pre-folded into the Q part of qkv_w/b.
    key_bias = bias_ref[...]                                  # (1, T_pad) f32 additive mask

    attn_rows = []
    for gg in range(g):                                       # per-image attention
        qkv_g = qkv[gg * t_pad:(gg + 1) * t_pad]              # (T_pad, 3D) bf16
        head_outs = []
        for hh in range(NUM_HEADS):
            lo = hh * HEAD_DIM
            qh = qkv_g[:, lo:lo + HEAD_DIM]
            kh = qkv_g[:, EMBED_DIM + lo:EMBED_DIM + lo + HEAD_DIM]
            vh = qkv_g[:, 2 * EMBED_DIM + lo:2 * EMBED_DIM + lo + HEAD_DIM]
            s = jax.lax.dot_general(qh, kh, (((1,), (1,)), ((), ())),
                                    preferred_element_type=jnp.float32)  # (T, T) f32
            s = s + key_bias                                  # mask padded keys
            s = s - jnp.max(s, axis=-1, keepdims=True)
            p = jnp.exp(s)
            p = p * pl.reciprocal(jnp.sum(p, axis=-1, keepdims=True), approx=True)
            head_outs.append(
                jnp.dot(p.astype(jnp.bfloat16), vh,
                        preferred_element_type=jnp.float32).astype(jnp.bfloat16))
        # lane-axis concat of the 6 heads -> one lane-dense (T_pad, D) operand
        attn_rows.append(jnp.concatenate(head_outs, axis=-1))
    attn = attn_rows[0] if g == 1 else jnp.concatenate(attn_rows, axis=0)  # (M, D) bf16

    x = x + (jnp.dot(attn, projw[0], preferred_element_type=jnp.float32)
             + projb[0])

    # ---- MLP branch: x + fc2(gelu(fc1(norm2(x))))  (LayerScale folded) ----
    h2 = _layer_norm(x, ln2w[0], ln2b[0]).astype(jnp.bfloat16)
    mm = jnp.dot(h2, fc1w[0], preferred_element_type=jnp.float32) + fc1b[0]
    mm = _gelu_exact(mm).astype(jnp.bfloat16)
    x = x + (jnp.dot(mm, fc2w[0], preferred_element_type=jnp.float32)
             + fc2b[0])

    # Carry for the next layer (skipped on the last layer: final LN writes instead).
    @pl.when(l < pl.num_programs(1) - 1)
    def _():
        o_ref[...] = x.reshape(g, t_pad, d)

    # Final LayerNorm fused into the last layer iteration.
    @pl.when(l == pl.num_programs(1) - 1)
    def _():
        o_ref[...] = _layer_norm(x, normw[...], normb[...]).reshape(g, t_pad, d)


# ------------------------------ wrappers --------------------------------------

def patch_embed(patches, w, b):
    B, N, P = patches.shape
    return pl.pallas_call(
        _patch_embed_kernel,
        out_shape=jax.ShapeDtypeStruct((B, N, EMBED_DIM), jnp.float32),
        grid=(B,),
        in_specs=[pl.BlockSpec((1, N, P), lambda i: (i, 0, 0)),
                  pl.BlockSpec(w.shape, lambda i: (0, 0)),
                  pl.BlockSpec(b.shape, lambda i: (0, 0))],
        out_specs=pl.BlockSpec((1, N, EMBED_DIM), lambda i: (i, 0, 0)),
        compiler_params=_COMPILER_PARAMS_1D,
    )(patches, w, b)


_LAYER_PARAM_NAMES = ["ln1_w", "ln1_b", "qkv_w", "qkv_b", "proj_w", "proj_b",
                      "ln2_w", "ln2_b", "fc1_w", "fc1_b", "fc2_w", "fc2_b"]


def fused_blocks(x, key_bias, blocks, norm_w, norm_b, *, g):
    """All DEPTH transformer blocks + final LayerNorm in one weight-streaming kernel.

    x: (B_pad, T_pad, D) f32 with B_pad % g == 0.  Per grid step a block of g
    images stays VMEM-resident in the output across the depth axis while the
    per-layer weights stream (double-buffered) along it.
    """
    B_pad, T_pad, D = x.shape
    assert B_pad % g == 0
    stacked = [blocks[n] for n in _LAYER_PARAM_NAMES]   # each (DEPTH, r, c)

    def _layer_spec(a):
        return pl.BlockSpec((1,) + a.shape[1:], lambda b, l: (l, 0, 0))

    def _shared_spec(a):
        return pl.BlockSpec(a.shape, lambda b, l: (0, 0))

    # TODO(synk): the x input block is only read at l==0 but is held in VMEM
    # for all DEPTH iterations; a manual one-shot DMA (memory_space=pl.ANY)
    # would reclaim that footprint if VMEM ever gets tight.
    return pl.pallas_call(
        _fused_blocks_kernel,
        out_shape=jax.ShapeDtypeStruct((B_pad, T_pad, D), jnp.float32),
        grid=(B_pad // g, DEPTH),
        in_specs=[pl.BlockSpec((g, T_pad, D), lambda b, l: (b, 0, 0)),
                  _shared_spec(key_bias)]
                + [_layer_spec(a) for a in stacked]
                + [_shared_spec(norm_w), _shared_spec(norm_b)],
        out_specs=pl.BlockSpec((g, T_pad, D), lambda b, l: (b, 0, 0)),
        compiler_params=_COMPILER_PARAMS_2D,
    )(x, key_bias, *stacked, norm_w, norm_b)


# --------------------------- parameter init -----------------------------------

def init_params(key, num_patches):
    """Raw (PyTorch-shaped) synthetic parameters, all f32."""
    keys = jax.random.split(key, 6 + DEPTH)

    def trunc(k, shape, std=0.02):
        return (std * jax.random.normal(k, shape)).astype(jnp.float32)

    ones = lambda s: jnp.ones(s, jnp.float32)
    zeros = lambda s: jnp.zeros(s, jnp.float32)

    params = {
        # Conv2d(3, 384, k=14, s=14) weight flattened as (C*kh*kw, D); bias (1, D).
        "patch_w": trunc(keys[0], (PATCH_VEC, EMBED_DIM)),
        "patch_b": zeros((1, EMBED_DIM)),
        "cls_token": trunc(keys[1], (1, 1, EMBED_DIM)),
        "reg_tokens": trunc(keys[2], (1, NUM_REG, EMBED_DIM)),
        "pos_embed": trunc(keys[3], (1, 1 + num_patches, EMBED_DIM)),
        "norm_w": ones((1, EMBED_DIM)),
        "norm_b": zeros((1, EMBED_DIM)),
        "blocks": [],
    }
    for li in range(DEPTH):
        bk = jax.random.split(keys[6 + li], 4)
        params["blocks"].append(dict(
            ln1_w=ones((EMBED_DIM,)), ln1_b=zeros((EMBED_DIM,)),
            qkv_w=trunc(bk[0], (EMBED_DIM, 3 * EMBED_DIM)),
            qkv_b=zeros((3 * EMBED_DIM,)),
            proj_w=trunc(bk[1], (EMBED_DIM, EMBED_DIM)),
            proj_b=zeros((EMBED_DIM,)),
            ls1=jnp.full((EMBED_DIM,), LS_INIT, jnp.float32),
            ln2_w=ones((EMBED_DIM,)), ln2_b=zeros((EMBED_DIM,)),
            fc1_w=trunc(bk[2], (EMBED_DIM, MLP_HIDDEN)),
            fc1_b=zeros((MLP_HIDDEN,)),
            fc2_w=trunc(bk[3], (MLP_HIDDEN, EMBED_DIM)),
            fc2_b=zeros((EMBED_DIM,)),
            ls2=jnp.full((EMBED_DIM,), LS_INIT, jnp.float32),
        ))
    return params


def prepare_params(params):
    """Fold LayerScale + attention scale into weights, pad patch_w K to 640,
    stack per-layer tensors along a leading DEPTH axis, cast matmul weights to bf16."""
    scale = jnp.float32(HEAD_DIM ** -0.5)

    def per_layer(bp):
        qkv_w = bp["qkv_w"].at[:, :EMBED_DIM].multiply(scale)      # fold 1/sqrt(d) into Q
        qkv_b = bp["qkv_b"].at[:EMBED_DIM].multiply(scale)
        proj_w = bp["proj_w"] * bp["ls1"][None, :]                 # fold LayerScale 1
        proj_b = bp["proj_b"] * bp["ls1"]
        fc2_w = bp["fc2_w"] * bp["ls2"][None, :]                   # fold LayerScale 2
        fc2_b = bp["fc2_b"] * bp["ls2"]
        return dict(
            ln1_w=bp["ln1_w"].reshape(1, EMBED_DIM),
            ln1_b=bp["ln1_b"].reshape(1, EMBED_DIM),
            qkv_w=qkv_w.astype(jnp.bfloat16),
            qkv_b=qkv_b.reshape(1, 3 * EMBED_DIM),
            proj_w=proj_w.astype(jnp.bfloat16),
            proj_b=proj_b.reshape(1, EMBED_DIM),
            ln2_w=bp["ln2_w"].reshape(1, EMBED_DIM),
            ln2_b=bp["ln2_b"].reshape(1, EMBED_DIM),
            fc1_w=bp["fc1_w"].astype(jnp.bfloat16),
            fc1_b=bp["fc1_b"].reshape(1, MLP_HIDDEN),
            fc2_w=fc2_w.astype(jnp.bfloat16),
            fc2_b=fc2_b.reshape(1, EMBED_DIM),
        )

    layers = [per_layer(bp) for bp in params["blocks"]]
    stacked = {k: jnp.stack([lyr[k] for lyr in layers], axis=0)
               for k in _LAYER_PARAM_NAMES}

    patch_w = jnp.pad(params["patch_w"],
                      ((0, PATCH_VEC_PAD - PATCH_VEC), (0, 0)))
    return dict(
        patch_w=patch_w.astype(jnp.bfloat16),
        patch_b=params["patch_b"],
        cls_token=params["cls_token"],
        reg_tokens=params["reg_tokens"],
        pos_embed=params["pos_embed"],
        norm_w=params["norm_w"],
        norm_b=params["norm_b"],
        blocks=stacked,
    )


# ------------------------------ forward ---------------------------------------

def dinov2_forward(x, params):
    B, C, H, W = x.shape
    assert W % PATCH == 0 and H % PATCH == 0, "image must be divisible by patch size"
    nh, nw = H // PATCH, W // PATCH
    N = nh * nw

    # patchify (glue): NCHW -> (B, N, C*14*14), row-major (h, w) patch order,
    # channel-major within a patch (matches Conv2d(k=14, s=14) + flatten).
    patches = x.reshape(B, C, nh, PATCH, nw, PATCH)
    patches = patches.transpose(0, 2, 4, 1, 3, 5).reshape(B, N, C * PATCH * PATCH)
    patches = jnp.pad(patches, ((0, 0), (0, 0), (0, PATCH_VEC_PAD - PATCH_VEC)))
    tok = patch_embed(patches.astype(jnp.bfloat16),
                      params["patch_w"], params["patch_b"])        # (B, N, D) f32

    # prepare_tokens_with_masks: [cls | patches] + pos_embed, then insert registers.
    cls = jnp.broadcast_to(params["cls_token"], (B, 1, EMBED_DIM))
    seq = jnp.concatenate([cls, tok], axis=1) + params["pos_embed"]
    # TODO(synk): bicubic pos-embed interpolation is not implemented; synthetic
    # pos_embed is built at the input resolution, where interpolation is identity.
    reg = jnp.broadcast_to(params["reg_tokens"], (B, NUM_REG, EMBED_DIM))
    seq = jnp.concatenate([seq[:, :1], reg, seq[:, 1:]], axis=1)    # (B, 1+4+N, D)

    T = seq.shape[1]
    T_pad = ((T + 15) // 16) * 16            # sublane/bf16-friendly token count
    if T_pad != T:
        seq = jnp.pad(seq, ((0, 0), (0, T_pad - T), (0, 0)))

    # Additive key-padding bias: 0 for real keys, -1e30 for padded keys.
    key_bias = jnp.where(jnp.arange(T_pad) < T, 0.0, -1e30)
    key_bias = key_bias.astype(jnp.float32).reshape(1, T_pad)

    # Batch-block G images per grid step; pad the batch to a multiple of G.
    G = _pick_batch_block(B)
    B_pad = pl.cdiv(B, G) * G
    if B_pad != B:
        seq = jnp.pad(seq, ((0, B_pad - B), (0, 0), (0, 0)))

    # TODO(synk): for high-resolution inputs (T_pad >~ 768 on v7x), query-tile
    # the attention (flash-style online softmax) instead of materializing (T, T).
    seq = fused_blocks(seq, key_bias, params["blocks"],
                       params["norm_w"], params["norm_b"], g=G)     # (B_pad, T_pad, D)

    patch_tok = seq[:B, 1 + NUM_REG:T]                              # x_norm_patchtokens
    # einops 'b (h w) d -> b d h w'
    features = patch_tok.transpose(0, 2, 1).reshape(B, EMBED_DIM, nh, nw)
    return features


# -------------------------------- main ----------------------------------------

if __name__ == "__main__":
    key = jax.random.PRNGKey(0)
    kx, kp = jax.random.split(key)

    B, C, H, W = 2, 3, 28, 28          # 28/14 = 2x2 patch grid
    x = jax.random.normal(kx, (B, C, H, W), dtype=jnp.float32)
    params = prepare_params(init_params(kp, (H // PATCH) * (W // PATCH)))

    feats = jax.jit(dinov2_forward)(x, params)
    feats = jax.block_until_ready(feats)

    assert feats.shape == (B, EMBED_DIM, H // PATCH, W // PATCH)
    assert feats.dtype == jnp.float32
    assert bool(jnp.all(jnp.isfinite(feats)))
    print("KERNEL_OK")
</pallas_src>

<mosaic_0001>
module attributes {stable_mosaic.version = 11 : i64} {
  func.func @_fused_blocks_kernel(%arg0: i32, %arg1: i32, %arg2: memref<1x16x384xf32, #tpu.memory_space<vmem>>, %arg3: memref<1x16xf32, #tpu.memory_space<vmem>>, %arg4: memref<1x1x384xf32, #tpu.memory_space<vmem>>, %arg5: memref<1x1x384xf32, #tpu.memory_space<vmem>>, %arg6: memref<1x384x1152xbf16, #tpu.memory_space<vmem>>, %arg7: memref<1x1x1152xf32, #tpu.memory_space<vmem>>, %arg8: memref<1x384x384xbf16, #tpu.memory_space<vmem>>, %arg9: memref<1x1x384xf32, #tpu.memory_space<vmem>>, %arg10: memref<1x1x384xf32, #tpu.memory_space<vmem>>, %arg11: memref<1x1x384xf32, #tpu.memory_space<vmem>>, %arg12: memref<1x384x1536xbf16, #tpu.memory_space<vmem>>, %arg13: memref<1x1x1536xf32, #tpu.memory_space<vmem>>, %arg14: memref<1x1536x384xbf16, #tpu.memory_space<vmem>>, %arg15: memref<1x1x384xf32, #tpu.memory_space<vmem>>, %arg16: memref<1x384xf32, #tpu.memory_space<vmem>>, %arg17: memref<1x384xf32, #tpu.memory_space<vmem>>, %arg18: memref<1x16x384xf32, #tpu.memory_space<vmem>>) attributes {dimension_semantics = [#tpu.dimension_semantics<parallel>, #tpu.dimension_semantics<arbitrary>], iteration_bounds = array<i64: 2, 12>, scalar_prefetch = 0 : i64, scratch_operands = 0 : i64, tpu.core_type = #tpu.core_type<tc>, window_params = [{transform_indices = @transform_0, window_bounds = array<i64: 1, 16, 384>}, {pipeline_mode = #tpu.pipeline_mode<synchronous>, transform_indices = @transform_1, window_bounds = array<i64: 1, 16>}, {transform_indices = @transform_2, window_bounds = array<i64: 1, 1, 384>}, {transform_indices = @transform_3, window_bounds = array<i64: 1, 1, 384>}, {transform_indices = @transform_4, window_bounds = array<i64: 1, 384, 1152>}, {transform_indices = @transform_5, window_bounds = array<i64: 1, 1, 1152>}, {transform_indices = @transform_6, window_bounds = array<i64: 1, 384, 384>}, {transform_indices = @transform_7, window_bounds = array<i64: 1, 1, 384>}, {transform_indices = @transform_8, window_bounds = array<i64: 1, 1, 384>}, {transform_indices = @transform_9, window_bounds = array<i64: 1, 1, 384>}, {transform_indices = @transform_10, window_bounds = array<i64: 1, 384, 1536>}, {transform_indices = @transform_11, window_bounds = array<i64: 1, 1, 1536>}, {transform_indices = @transform_12, window_bounds = array<i64: 1, 1536, 384>}, {transform_indices = @transform_13, window_bounds = array<i64: 1, 1, 384>}, {pipeline_mode = #tpu.pipeline_mode<synchronous>, transform_indices = @transform_14, window_bounds = array<i64: 1, 384>}, {pipeline_mode = #tpu.pipeline_mode<synchronous>, transform_indices = @transform_15, window_bounds = array<i64: 1, 384>}, {transform_indices = @transform_16, window_bounds = array<i64: 1, 16, 384>}]} {
    %c0_i32 = arith.constant 0 : i32
    %0 = arith.cmpi eq, %arg1, %c0_i32 : i32
    %1 = arith.extui %0 : i1 to i32
    %c0_i32_0 = arith.constant 0 : i32
    %2 = arith.cmpi ne, %1, %c0_i32_0 : i32
    scf.if %2 {
      %c0_84 = arith.constant 0 : index
      %c0_85 = arith.constant 0 : index
      %c0_86 = arith.constant 0 : index
      %221 = vector.load %arg2[%c0_84, %c0_85, %c0_86] : memref<1x16x384xf32, #tpu.memory_space<vmem>>, vector<1x16x384xf32>
      %c0_87 = arith.constant 0 : index
      %c0_88 = arith.constant 0 : index
      %c0_89 = arith.constant 0 : index
      %222 = vector.load %arg18[%c0_87, %c0_88, %c0_89] : memref<1x16x384xf32, #tpu.memory_space<vmem>>, vector<1x16x384xf32>
      tpu.vector_store %arg18[%c0_87, %c0_88, %c0_89], %221 {strides = array<i32>} : memref<1x16x384xf32, #tpu.memory_space<vmem>>, vector<1x16x384xf32>,
    } else {
    }
    %c0 = arith.constant 0 : index
    %c0_1 = arith.constant 0 : index
    %c0_2 = arith.constant 0 : index
    %3 = vector.load %arg18[%c0, %c0_1, %c0_2] : memref<1x16x384xf32, #tpu.memory_space<vmem>>, vector<1x16x384xf32>
    %4 = vector.shape_cast %3 : vector<1x16x384xf32> to vector<16x384xf32>
    %c0_3 = arith.constant 0 : index
    %c0_4 = arith.constant 0 : index
    %c0_5 = arith.constant 0 : index
    %5 = vector.load %arg4[%c0_3, %c0_4, %c0_5] : memref<1x1x384xf32, #tpu.memory_space<vmem>>, vector<1x1x384xf32>
    %6 = vector.shape_cast %5 : vector<1x1x384xf32> to vector<1x384xf32>
    %c0_6 = arith.constant 0 : index
    %c0_7 = arith.constant 0 : index
    %c0_8 = arith.constant 0 : index
    %7 = vector.load %arg5[%c0_6, %c0_7, %c0_8] : memref<1x1x384xf32, #tpu.memory_space<vmem>>, vector<1x1x384xf32>
    %8 = vector.shape_cast %7 : vector<1x1x384xf32> to vector<1x384xf32>
    %cst = arith.constant dense<0.000000e+00> : vector<16xf32>
    %9 = vector.multi_reduction <add>, %4, %cst [1] : vector<16x384xf32> to vector<16xf32>
    %10 = vector.shape_cast %9 : vector<16xf32> to vector<16x1xf32>
    %cst_9 = arith.constant 3.840000e+02 : f32
    %11 = vector.broadcast %cst_9 : f32 to vector<16x1xf32>
    %12 = arith.divf %10, %11 : vector<16x1xf32>
    %13 = vector.broadcast %12 : vector<16x1xf32> to vector<16x384xf32>
    %14 = arith.subf %4, %13 : vector<16x384xf32>
    %15 = arith.mulf %14, %14 : vector<16x384xf32>
    %cst_10 = arith.constant dense<0.000000e+00> : vector<16xf32>
    %16 = vector.multi_reduction <add>, %15, %cst_10 [1] : vector<16x384xf32> to vector<16xf32>
    %17 = vector.shape_cast %16 : vector<16xf32> to vector<16x1xf32>
    %cst_11 = arith.constant 3.840000e+02 : f32
    %18 = vector.broadcast %cst_11 : f32 to vector<16x1xf32>
    %19 = arith.divf %17, %18 : vector<16x1xf32>
    %20 = vector.broadcast %12 : vector<16x1xf32> to vector<16x384xf32>
    %21 = arith.subf %4, %20 : vector<16x384xf32>
    %cst_12 = arith.constant 9.99999997E-7 : f32
    %22 = vector.broadcast %cst_12 : f32 to vector<16x1xf32>
    %23 = arith.addf %19, %22 : vector<16x1xf32>
    %24 = math.rsqrt %23 : vector<16x1xf32>
    %25 = vector.broadcast %24 : vector<16x1xf32> to vector<16x384xf32>
    %26 = arith.mulf %21, %25 : vector<16x384xf32>
    %27 = vector.broadcast %6 : vector<1x384xf32> to vector<16x384xf32>
    %28 = arith.mulf %26, %27 : vector<16x384xf32>
    %29 = vector.broadcast %8 : vector<1x384xf32> to vector<16x384xf32>
    %30 = arith.addf %28, %29 : vector<16x384xf32>
    %31 = arith.truncf %30 : vector<16x384xf32> to vector<16x384xbf16>
    %c0_13 = arith.constant 0 : index
    %c0_14 = arith.constant 0 : index
    %c0_15 = arith.constant 0 : index
    %32 = vector.load %arg6[%c0_13, %c0_14, %c0_15] : memref<1x384x1152xbf16, #tpu.memory_space<vmem>>, vector<1x384x1152xbf16>
    %33 = vector.shape_cast %32 : vector<1x384x1152xbf16> to vector<384x1152xbf16>
    %cst_16 = arith.constant dense<0.000000e+00> : vector<16x1152xf32>
    %34 = tpu.matmul %31, %33, %cst_16 {dimension_numbers = #tpu.dot_dimension_numbers<[1], [0], [0], [1], [0, 0, 1, 1], [], []>} : vector<16x384xbf16>, vector<384x1152xbf16>, vector<16x1152xf32> -> vector<16x1152xf32>
    %c0_17 = arith.constant 0 : index
    %c0_18 = arith.constant 0 : index
    %c0_19 = arith.constant 0 : index
    %35 = vector.load %arg7[%c0_17, %c0_18, %c0_19] : memref<1x1x1152xf32, #tpu.memory_space<vmem>>, vector<1x1x1152xf32>
    %36 = vector.shape_cast %35 : vector<1x1x1152xf32> to vector<1x1152xf32>
    %37 = vector.broadcast %36 : vector<1x1152xf32> to vector<16x1152xf32>
    %38 = arith.addf %34, %37 : vector<16x1152xf32>
    %39 = arith.truncf %38 : vector<16x1152xf32> to vector<16x1152xbf16>
    %c0_20 = arith.constant 0 : index
    %c0_21 = arith.constant 0 : index
    %40 = vector.load %arg3[%c0_20, %c0_21] : memref<1x16xf32, #tpu.memory_space<vmem>>, vector<1x16xf32>
    %41 = vector.extract_strided_slice %39 {offsets = [0, 0], sizes = [16, 64], strides = [1, 1]} : vector<16x1152xbf16> to vector<16x64xbf16>
    %42 = vector.extract_strided_slice %39 {offsets = [0, 384], sizes = [16, 64], strides = [1, 1]} : vector<16x1152xbf16> to vector<16x64xbf16>
    %43 = vector.extract_strided_slice %39 {offsets = [0, 768], sizes = [16, 64], strides = [1, 1]} : vector<16x1152xbf16> to vector<16x64xbf16>
    %cst_22 = arith.constant dense<0.000000e+00> : vector<16x16xf32>
    %44 = tpu.matmul %41, %42, %cst_22 {dimension_numbers = #tpu.dot_dimension_numbers<[1], [1], [0], [0], [0, 0, 1, 0], [], []>} : vector<16x64xbf16>, vector<16x64xbf16>, vector<16x16xf32> -> vector<16x16xf32>
    %45 = vector.broadcast %40 : vector<1x16xf32> to vector<16x16xf32>
    %46 = arith.addf %44, %45 : vector<16x16xf32>
    %cst_23 = arith.constant dense<0xFF800000> : vector<16xf32>
    %47 = vector.multi_reduction <maximumf>, %46, %cst_23 [1] : vector<16x16xf32> to vector<16xf32>
    %48 = vector.shape_cast %47 : vector<16xf32> to vector<16x1xf32>
    %49 = vector.broadcast %48 : vector<16x1xf32> to vector<16x16xf32>
    %50 = arith.subf %46, %49 : vector<16x16xf32>
    %51 = math.exp %50 : vector<16x16xf32>
    %cst_24 = arith.constant dense<0.000000e+00> : vector<16xf32>
    %52 = vector.multi_reduction <add>, %51, %cst_24 [1] : vector<16x16xf32> to vector<16xf32>
    %53 = vector.shape_cast %52 : vector<16xf32> to vector<16x1xf32>
    %54 = tpu.reciprocal %53 {approx = true} : vector<16x1xf32> -> vector<16x1xf32>
    %55 = vector.broadcast %54 : vector<16x1xf32> to vector<16x16xf32>
    %56 = arith.mulf %51, %55 : vector<16x16xf32>
    %57 = arith.truncf %56 : vector<16x16xf32> to vector<16x16xbf16>
    %cst_25 = arith.constant dense<0.000000e+00> : vector<16x64xf32>
    %58 = tpu.matmul %57, %43, %cst_25 {dimension_numbers = #tpu.dot_dimension_numbers<[1], [0], [0], [1], [0, 0, 1, 1], [], []>} : vector<16x16xbf16>, vector<16x64xbf16>, vector<16x64xf32> -> vector<16x64xf32>
    %59 = arith.truncf %58 : vector<16x64xf32> to vector<16x64xbf16>
    %60 = vector.extract_strided_slice %39 {offsets = [0, 64], sizes = [16, 64], strides = [1, 1]} : vector<16x1152xbf16> to vector<16x64xbf16>
    %61 = vector.extract_strided_slice %39 {offsets = [0, 448], sizes = [16, 64], strides = [1, 1]} : vector<16x1152xbf16> to vector<16x64xbf16>
    %62 = vector.extract_strided_slice %39 {offsets = [0, 832], sizes = [16, 64], strides = [1, 1]} : vector<16x1152xbf16> to vector<16x64xbf16>
    %cst_26 = arith.constant dense<0.000000e+00> : vector<16x16xf32>
    %63 = tpu.matmul %60, %61, %cst_26 {dimension_numbers = #tpu.dot_dimension_numbers<[1], [1], [0], [0], [0, 0, 1, 0], [], []>} : vector<16x64xbf16>, vector<16x64xbf16>, vector<16x16xf32> -> vector<16x16xf32>
    %64 = vector.broadcast %40 : vector<1x16xf32> to vector<16x16xf32>
    %65 = arith.addf %63, %64 : vector<16x16xf32>
    %cst_27 = arith.constant dense<0xFF800000> : vector<16xf32>
    %66 = vector.multi_reduction <maximumf>, %65, %cst_27 [1] : vector<16x16xf32> to vector<16xf32>
    %67 = vector.shape_cast %66 : vector<16xf32> to vector<16x1xf32>
    %68 = vector.broadcast %67 : vector<16x1xf32> to vector<16x16xf32>
    %69 = arith.subf %65, %68 : vector<16x16xf32>
    %70 = math.exp %69 : vector<16x16xf32>
    %cst_28 = arith.constant dense<0.000000e+00> : vector<16xf32>
    %71 = vector.multi_reduction <add>, %70, %cst_28 [1] : vector<16x16xf32> to vector<16xf32>
    %72 = vector.shape_cast %71 : vector<16xf32> to vector<16x1xf32>
    %73 = tpu.reciprocal %72 {approx = true} : vector<16x1xf32> -> vector<16x1xf32>
    %74 = vector.broadcast %73 : vector<16x1xf32> to vector<16x16xf32>
    %75 = arith.mulf %70, %74 : vector<16x16xf32>
    %76 = arith.truncf %75 : vector<16x16xf32> to vector<16x16xbf16>
    %cst_29 = arith.constant dense<0.000000e+00> : vector<16x64xf32>
    %77 = tpu.matmul %76, %62, %cst_29 {dimension_numbers = #tpu.dot_dimension_numbers<[1], [0], [0], [1], [0, 0, 1, 1], [], []>} : vector<16x16xbf16>, vector<16x64xbf16>, vector<16x64xf32> -> vector<16x64xf32>
    %78 = arith.truncf %77 : vector<16x64xf32> to vector<16x64xbf16>
    %79 = vector.extract_strided_slice %39 {offsets = [0, 128], sizes = [16, 64], strides = [1, 1]} : vector<16x1152xbf16> to vector<16x64xbf16>
    %80 = vector.extract_strided_slice %39 {offsets = [0, 512], sizes = [16, 64], strides = [1, 1]} : vector<16x1152xbf16> to vector<16x64xbf16>
    %81 = vector.extract_strided_slice %39 {offsets = [0, 896], sizes = [16, 64], strides = [1, 1]} : vector<16x1152xbf16> to vector<16x64xbf16>
    %cst_30 = arith.constant dense<0.000000e+00> : vector<16x16xf32>
    %82 = tpu.matmul %79, %80, %cst_30 {dimension_numbers = #tpu.dot_dimension_numbers<[1], [1], [0], [0], [0, 0, 1, 0], [], []>} : vector<16x64xbf16>, vector<16x64xbf16>, vector<16x16xf32> -> vector<16x16xf32>
    %83 = vector.broadcast %40 : vector<1x16xf32> to vector<16x16xf32>
    %84 = arith.addf %82, %83 : vector<16x16xf32>
    %cst_31 = arith.constant dense<0xFF800000> : vector<16xf32>
    %85 = vector.multi_reduction <maximumf>, %84, %cst_31 [1] : vector<16x16xf32> to vector<16xf32>
    %86 = vector.shape_cast %85 : vector<16xf32> to vector<16x1xf32>
    %87 = vector.broadcast %86 : vector<16x1xf32> to vector<16x16xf32>
    %88 = arith.subf %84, %87 : vector<16x16xf32>
    %89 = math.exp %88 : vector<16x16xf32>
    %cst_32 = arith.constant dense<0.000000e+00> : vector<16xf32>
    %90 = vector.multi_reduction <add>, %89, %cst_32 [1] : vector<16x16xf32> to vector<16xf32>
    %91 = vector.shape_cast %90 : vector<16xf32> to vector<16x1xf32>
    %92 = tpu.reciprocal %91 {approx = true} : vector<16x1xf32> -> vector<16x1xf32>
    %93 = vector.broadcast %92 : vector<16x1xf32> to vector<16x16xf32>
    %94 = arith.mulf %89, %93 : vector<16x16xf32>
    %95 = arith.truncf %94 : vector<16x16xf32> to vector<16x16xbf16>
    %cst_33 = arith.constant dense<0.000000e+00> : vector<16x64xf32>
    %96 = tpu.matmul %95, %81, %cst_33 {dimension_numbers = #tpu.dot_dimension_numbers<[1], [0], [0], [1], [0, 0, 1, 1], [], []>} : vector<16x16xbf16>, vector<16x64xbf16>, vector<16x64xf32> -> vector<16x64xf32>
    %97 = arith.truncf %96 : vector<16x64xf32> to vector<16x64xbf16>
    %98 = vector.extract_strided_slice %39 {offsets = [0, 192], sizes = [16, 64], strides = [1, 1]} : vector<16x1152xbf16> to vector<16x64xbf16>
    %99 = vector.extract_strided_slice %39 {offsets = [0, 576], sizes = [16, 64], strides = [1, 1]} : vector<16x1152xbf16> to vector<16x64xbf16>
    %100 = vector.extract_strided_slice %39 {offsets = [0, 960], sizes = [16, 64], strides = [1, 1]} : vector<16x1152xbf16> to vector<16x64xbf16>
    %cst_34 = arith.constant dense<0.000000e+00> : vector<16x16xf32>
    %101 = tpu.matmul %98, %99, %cst_34 {dimension_numbers = #tpu.dot_dimension_numbers<[1], [1], [0], [0], [0, 0, 1, 0], [], []>} : vector<16x64xbf16>, vector<16x64xbf16>, vector<16x16xf32> -> vector<16x16xf32>
    %102 = vector.broadcast %40 : vector<1x16xf32> to vector<16x16xf32>
    %103 = arith.addf %101, %102 : vector<16x16xf32>
    %cst_35 = arith.constant dense<0xFF800000> : vector<16xf32>
    %104 = vector.multi_reduction <maximumf>, %103, %cst_35 [1] : vector<16x16xf32> to vector<16xf32>
    %105 = vector.shape_cast %104 : vector<16xf32> to vector<16x1xf32>
    %106 = vector.broadcast %105 : vector<16x1xf32> to vector<16x16xf32>
    %107 = arith.subf %103, %106 : vector<16x16xf32>
    %108 = math.exp %107 : vector<16x16xf32>
    %cst_36 = arith.constant dense<0.000000e+00> : vector<16xf32>
    %109 = vector.multi_reduction <add>, %108, %cst_36 [1] : vector<16x16xf32> to vector<16xf32>
    %110 = vector.shape_cast %109 : vector<16xf32> to vector<16x1xf32>
    %111 = tpu.reciprocal %110 {approx = true} : vector<16x1xf32> -> vector<16x1xf32>
    %112 = vector.broadcast %111 : vector<16x1xf32> to vector<16x16xf32>
    %113 = arith.mulf %108, %112 : vector<16x16xf32>
    %114 = arith.truncf %113 : vector<16x16xf32> to vector<16x16xbf16>
    %cst_37 = arith.constant dense<0.000000e+00> : vector<16x64xf32>
    %115 = tpu.matmul %114, %100, %cst_37 {dimension_numbers = #tpu.dot_dimension_numbers<[1], [0], [0], [1], [0, 0, 1, 1], [], []>} : vector<16x16xbf16>, vector<16x64xbf16>, vector<16x64xf32> -> vector<16x64xf32>
    %116 = arith.truncf %115 : vector<16x64xf32> to vector<16x64xbf16>
    %117 = vector.extract_strided_slice %39 {offsets = [0, 256], sizes = [16, 64], strides = [1, 1]} : vector<16x1152xbf16> to vector<16x64xbf16>
    %118 = vector.extract_strided_slice %39 {offsets = [0, 640], sizes = [16, 64], strides = [1, 1]} : vector<16x1152xbf16> to vector<16x64xbf16>
    %119 = vector.extract_strided_slice %39 {offsets = [0, 1024], sizes = [16, 64], strides = [1, 1]} : vector<16x1152xbf16> to vector<16x64xbf16>
    %cst_38 = arith.constant dense<0.000000e+00> : vector<16x16xf32>
    %120 = tpu.matmul %117, %118, %cst_38 {dimension_numbers = #tpu.dot_dimension_numbers<[1], [1], [0], [0], [0, 0, 1, 0], [], []>} : vector<16x64xbf16>, vector<16x64xbf16>, vector<16x16xf32> -> vector<16x16xf32>
    %121 = vector.broadcast %40 : vector<1x16xf32> to vector<16x16xf32>
    %122 = arith.addf %120, %121 : vector<16x16xf32>
    %cst_39 = arith.constant dense<0xFF800000> : vector<16xf32>
    %123 = vector.multi_reduction <maximumf>, %122, %cst_39 [1] : vector<16x16xf32> to vector<16xf32>
    %124 = vector.shape_cast %123 : vector<16xf32> to vector<16x1xf32>
    %125 = vector.broadcast %124 : vector<16x1xf32> to vector<16x16xf32>
    %126 = arith.subf %122, %125 : vector<16x16xf32>
    %127 = math.exp %126 : vector<16x16xf32>
    %cst_40 = arith.constant dense<0.000000e+00> : vector<16xf32>
    %128 = vector.multi_reduction <add>, %127, %cst_40 [1] : vector<16x16xf32> to vector<16xf32>
    %129 = vector.shape_cast %128 : vector<16xf32> to vector<16x1xf32>
    %130 = tpu.reciprocal %129 {approx = true} : vector<16x1xf32> -> vector<16x1xf32>
    %131 = vector.broadcast %130 : vector<16x1xf32> to vector<16x16xf32>
    %132 = arith.mulf %127, %131 : vector<16x16xf32>
    %133 = arith.truncf %132 : vector<16x16xf32> to vector<16x16xbf16>
    %cst_41 = arith.constant dense<0.000000e+00> : vector<16x64xf32>
    %134 = tpu.matmul %133, %119, %cst_41 {dimension_numbers = #tpu.dot_dimension_numbers<[1], [0], [0], [1], [0, 0, 1, 1], [], []>} : vector<16x16xbf16>, vector<16x64xbf16>, vector<16x64xf32> -> vector<16x64xf32>
    %135 = arith.truncf %134 : vector<16x64xf32> to vector<16x64xbf16>
    %136 = vector.extract_strided_slice %39 {offsets = [0, 320], sizes = [16, 64], strides = [1, 1]} : vector<16x1152xbf16> to vector<16x64xbf16>
    %137 = vector.extract_strided_slice %39 {offsets = [0, 704], sizes = [16, 64], strides = [1, 1]} : vector<16x1152xbf16> to vector<16x64xbf16>
    %138 = vector.extract_strided_slice %39 {offsets = [0, 1088], sizes = [16, 64], strides = [1, 1]} : vector<16x1152xbf16> to vector<16x64xbf16>
    %cst_42 = arith.constant dense<0.000000e+00> : vector<16x16xf32>
    %139 = tpu.matmul %136, %137, %cst_42 {dimension_numbers = #tpu.dot_dimension_numbers<[1], [1], [0], [0], [0, 0, 1, 0], [], []>} : vector<16x64xbf16>, vector<16x64xbf16>, vector<16x16xf32> -> vector<16x16xf32>
    %140 = vector.broadcast %40 : vector<1x16xf32> to vector<16x16xf32>
    %141 = arith.addf %139, %140 : vector<16x16xf32>
    %cst_43 = arith.constant dense<0xFF800000> : vector<16xf32>
    %142 = vector.multi_reduction <maximumf>, %141, %cst_43 [1] : vector<16x16xf32> to vector<16xf32>
    %143 = vector.shape_cast %142 : vector<16xf32> to vector<16x1xf32>
    %144 = vector.broadcast %143 : vector<16x1xf32> to vector<16x16xf32>
    %145 = arith.subf %141, %144 : vector<16x16xf32>
    %146 = math.exp %145 : vector<16x16xf32>
    %cst_44 = arith.constant dense<0.000000e+00> : vector<16xf32>
    %147 = vector.multi_reduction <add>, %146, %cst_44 [1] : vector<16x16xf32> to vector<16xf32>
    %148 = vector.shape_cast %147 : vector<16xf32> to vector<16x1xf32>
    %149 = tpu.reciprocal %148 {approx = true} : vector<16x1xf32> -> vector<16x1xf32>
    %150 = vector.broadcast %149 : vector<16x1xf32> to vector<16x16xf32>
    %151 = arith.mulf %146, %150 : vector<16x16xf32>
    %152 = arith.truncf %151 : vector<16x16xf32> to vector<16x16xbf16>
    %cst_45 = arith.constant dense<0.000000e+00> : vector<16x64xf32>
    %153 = tpu.matmul %152, %138, %cst_45 {dimension_numbers = #tpu.dot_dimension_numbers<[1], [0], [0], [1], [0, 0, 1, 1], [], []>} : vector<16x16xbf16>, vector<16x64xbf16>, vector<16x64xf32> -> vector<16x64xf32>
    %154 = arith.truncf %153 : vector<16x64xf32> to vector<16x64xbf16>
    %155 = tpu.concatenate %59, %78, %97, %116, %135, %154 in 1 : vector<16x64xbf16>, vector<16x64xbf16>, vector<16x64xbf16>, vector<16x64xbf16>, vector<16x64xbf16>, vector<16x64xbf16> -> vector<16x384xbf16>
    %c0_46 = arith.constant 0 : index
    %c0_47 = arith.constant 0 : index
    %c0_48 = arith.constant 0 : index
    %156 = vector.load %arg8[%c0_46, %c0_47, %c0_48] : memref<1x384x384xbf16, #tpu.memory_space<vmem>>, vector<1x384x384xbf16>
    %157 = vector.shape_cast %156 : vector<1x384x384xbf16> to vector<384x384xbf16>
    %cst_49 = arith.constant dense<0.000000e+00> : vector<16x384xf32>
    %158 = tpu.matmul %155, %157, %cst_49 {dimension_numbers = #tpu.dot_dimension_numbers<[1], [0], [0], [1], [0, 0, 1, 1], [], []>} : vector<16x384xbf16>, vector<384x384xbf16>, vector<16x384xf32> -> vector<16x384xf32>
    %c0_50 = arith.constant 0 : index
    %c0_51 = arith.constant 0 : index
    %c0_52 = arith.constant 0 : index
    %159 = vector.load %arg9[%c0_50, %c0_51, %c0_52] : memref<1x1x384xf32, #tpu.memory_space<vmem>>, vector<1x1x384xf32>
    %160 = vector.shape_cast %159 : vector<1x1x384xf32> to vector<1x384xf32>
    %161 = vector.broadcast %160 : vector<1x384xf32> to vector<16x384xf32>
    %162 = arith.addf %158, %161 : vector<16x384xf32>
    %163 = arith.addf %4, %162 : vector<16x384xf32>
    %c0_53 = arith.constant 0 : index
    %c0_54 = arith.constant 0 : index
    %c0_55 = arith.constant 0 : index
    %164 = vector.load %arg10[%c0_53, %c0_54, %c0_55] : memref<1x1x384xf32, #tpu.memory_space<vmem>>, vector<1x1x384xf32>
    %165 = vector.shape_cast %164 : vector<1x1x384xf32> to vector<1x384xf32>
    %c0_56 = arith.constant 0 : index
    %c0_57 = arith.constant 0 : index
    %c0_58 = arith.constant 0 : index
    %166 = vector.load %arg11[%c0_56, %c0_57, %c0_58] : memref<1x1x384xf32, #tpu.memory_space<vmem>>, vector<1x1x384xf32>
    %167 = vector.shape_cast %166 : vector<1x1x384xf32> to vector<1x384xf32>
    %cst_59 = arith.constant dense<0.000000e+00> : vector<16xf32>
    %168 = vector.multi_reduction <add>, %163, %cst_59 [1] : vector<16x384xf32> to vector<16xf32>
    %169 = vector.shape_cast %168 : vector<16xf32> to vector<16x1xf32>
    %cst_60 = arith.constant 3.840000e+02 : f32
    %170 = vector.broadcast %cst_60 : f32 to vector<16x1xf32>
    %171 = arith.divf %169, %170 : vector<16x1xf32>
    %172 = vector.broadcast %171 : vector<16x1xf32> to vector<16x384xf32>
    %173 = arith.subf %163, %172 : vector<16x384xf32>
    %174 = arith.mulf %173, %173 : vector<16x384xf32>
    %cst_61 = arith.constant dense<0.000000e+00> : vector<16xf32>
    %175 = vector.multi_reduction <add>, %174, %cst_61 [1] : vector<16x384xf32> to vector<16xf32>
    %176 = vector.shape_cast %175 : vector<16xf32> to vector<16x1xf32>
    %cst_62 = arith.constant 3.840000e+02 : f32
    %177 = vector.broadcast %cst_62 : f32 to vector<16x1xf32>
    %178 = arith.divf %176, %177 : vector<16x1xf32>
    %179 = vector.broadcast %171 : vector<16x1xf32> to vector<16x384xf32>
    %180 = arith.subf %163, %179 : vector<16x384xf32>
    %cst_63 = arith.constant 9.99999997E-7 : f32
    %181 = vector.broadcast %cst_63 : f32 to vector<16x1xf32>
    %182 = arith.addf %178, %181 : vector<16x1xf32>
    %183 = math.rsqrt %182 : vector<16x1xf32>
    %184 = vector.broadcast %183 : vector<16x1xf32> to vector<16x384xf32>
    %185 = arith.mulf %180, %184 : vector<16x384xf32>
    %186 = vector.broadcast %165 : vector<1x384xf32> to vector<16x384xf32>
    %187 = arith.mulf %185, %186 : vector<16x384xf32>
    %188 = vector.broadcast %167 : vector<1x384xf32> to vector<16x384xf32>
    %189 = arith.addf %187, %188 : vector<16x384xf32>
    %190 = arith.truncf %189 : vector<16x384xf32> to vector<16x384xbf16>
    %c0_64 = arith.constant 0 : index
    %c0_65 = arith.constant 0 : index
    %c0_66 = arith.constant 0 : index
    %191 = vector.load %arg12[%c0_64, %c0_65, %c0_66] : memref<1x384x1536xbf16, #tpu.memory_space<vmem>>, vector<1x384x1536xbf16>
    %192 = vector.shape_cast %191 : vector<1x384x1536xbf16> to vector<384x1536xbf16>
    %cst_67 = arith.constant dense<0.000000e+00> : vector<16x1536xf32>
    %193 = tpu.matmul %190, %192, %cst_67 {dimension_numbers = #tpu.dot_dimension_numbers<[1], [0], [0], [1], [0, 0, 1, 1], [], []>} : vector<16x384xbf16>, vector<384x1536xbf16>, vector<16x1536xf32> -> vector<16x1536xf32>
    %c0_68 = arith.constant 0 : index
    %c0_69 = arith.constant 0 : index
    %c0_70 = arith.constant 0 : index
    %194 = vector.load %arg13[%c0_68, %c0_69, %c0_70] : memref<1x1x1536xf32, #tpu.memory_space<vmem>>, vector<1x1x1536xf32>
    %195 = vector.shape_cast %194 : vector<1x1x1536xf32> to vector<1x1536xf32>
    %196 = vector.broadcast %195 : vector<1x1536xf32> to vector<16x1536xf32>
    %197 = arith.addf %193, %196 : vector<16x1536xf32>
    %cst_71 = arith.constant 5.000000e-01 : f32
    %198 = vector.broadcast %cst_71 : f32 to vector<16x1536xf32>
    %199 = arith.mulf %198, %197 : vector<16x1536xf32>
    %cst_72 = arith.constant 0.707106769 : f32
    %200 = vector.broadcast %cst_72 : f32 to vector<16x1536xf32>
    %201 = arith.mulf %197, %200 : vector<16x1536xf32>
    %202 = math.erf %201 : vector<16x1536xf32>
    %cst_73 = arith.constant 1.000000e+00 : f32
    %203 = vector.broadcast %cst_73 : f32 to vector<16x1536xf32>
    %204 = arith.addf %203, %202 : vector<16x1536xf32>
    %205 = arith.mulf %199, %204 : vector<16x1536xf32>
    %206 = arith.truncf %205 : vector<16x1536xf32> to vector<16x1536xbf16>
    %c0_74 = arith.constant 0 : index
    %c0_75 = arith.constant 0 : index
    %c0_76 = arith.constant 0 : index
    %207 = vector.load %arg14[%c0_74, %c0_75, %c0_76] : memref<1x1536x384xbf16, #tpu.memory_space<vmem>>, vector<1x1536x384xbf16>
    %208 = vector.shape_cast %207 : vector<1x1536x384xbf16> to vector<1536x384xbf16>
    %cst_77 = arith.constant dense<0.000000e+00> : vector<16x384xf32>
    %209 = tpu.matmul %206, %208, %cst_77 {dimension_numbers = #tpu.dot_dimension_numbers<[1], [0], [0], [1], [0, 0, 1, 1], [], []>} : vector<16x1536xbf16>, vector<1536x384xbf16>, vector<16x384xf32> -> vector<16x384xf32>
    %c0_78 = arith.constant 0 : index
    %c0_79 = arith.constant 0 : index
    %c0_80 = arith.constant 0 : index
    %210 = vector.load %arg15[%c0_78, %c0_79, %c0_80] : memref<1x1x384xf32, #tpu.memory_space<vmem>>, vector<1x1x384xf32>
    %211 = vector.shape_cast %210 : vector<1x1x384xf32> to vector<1x384xf32>
    %212 = vector.broadcast %211 : vector<1x384xf32> to vector<16x384xf32>
    %213 = arith.addf %209, %212 : vector<16x384xf32>
    %214 = arith.addf %163, %213 : vector<16x384xf32>
    %c11_i32 = arith.constant 11 : i32
    %215 = arith.cmpi slt, %arg1, %c11_i32 : i32
    %216 = arith.extui %215 : i1 to i32
    %c0_i32_81 = arith.constant 0 : i32
    %217 = arith.cmpi ne, %216, %c0_i32_81 : i32
    scf.if %217 {
      %221 = vector.shape_cast %214 : vector<16x384xf32> to vector<1x16x384xf32>
      %c0_84 = arith.constant 0 : index
      %c0_85 = arith.constant 0 : index
      %c0_86 = arith.constant 0 : index
      %222 = vector.load %arg18[%c0_84, %c0_85, %c0_86] : memref<1x16x384xf32, #tpu.memory_space<vmem>>, vector<1x16x384xf32>
      tpu.vector_store %arg18[%c0_84, %c0_85, %c0_86], %221 {strides = array<i32>} : memref<1x16x384xf32, #tpu.memory_space<vmem>>, vector<1x16x384xf32>,
    } else {
    }
    %c11_i32_82 = arith.constant 11 : i32
    %218 = arith.cmpi eq, %arg1, %c11_i32_82 : i32
    %219 = arith.extui %218 : i1 to i32
    %c0_i32_83 = arith.constant 0 : i32
    %220 = arith.cmpi ne, %219, %c0_i32_83 : i32
    scf.if %220 {
      %c0_84 = arith.constant 0 : index
      %c0_85 = arith.constant 0 : index
      %221 = vector.load %arg16[%c0_84, %c0_85] : memref<1x384xf32, #tpu.memory_space<vmem>>, vector<1x384xf32>
      %c0_86 = arith.constant 0 : index
      %c0_87 = arith.constant 0 : index
      %222 = vector.load %arg17[%c0_86, %c0_87] : memref<1x384xf32, #tpu.memory_space<vmem>>, vector<1x384xf32>
      %cst_88 = arith.constant dense<0.000000e+00> : vector<16xf32>
      %223 = vector.multi_reduction <add>, %214, %cst_88 [1] : vector<16x384xf32> to vector<16xf32>
      %224 = vector.shape_cast %223 : vector<16xf32> to vector<16x1xf32>
      %cst_89 = arith.constant 3.840000e+02 : f32
      %225 = vector.broadcast %cst_89 : f32 to vector<16x1xf32>
      %226 = arith.divf %224, %225 : vector<16x1xf32>
      %227 = vector.broadcast %226 : vector<16x1xf32> to vector<16x384xf32>
      %228 = arith.subf %214, %227 : vector<16x384xf32>
      %229 = arith.mulf %228, %228 : vector<16x384xf32>
      %cst_90 = arith.constant dense<0.000000e+00> : vector<16xf32>
      %230 = vector.multi_reduction <add>, %229, %cst_90 [1] : vector<16x384xf32> to vector<16xf32>
      %231 = vector.shape_cast %230 : vector<16xf32> to vector<16x1xf32>
      %cst_91 = arith.constant 3.840000e+02 : f32
      %232 = vector.broadcast %cst_91 : f32 to vector<16x1xf32>
      %233 = arith.divf %231, %232 : vector<16x1xf32>
      %234 = vector.broadcast %226 : vector<16x1xf32> to vector<16x384xf32>
      %235 = arith.subf %214, %234 : vector<16x384xf32>
      %cst_92 = arith.constant 9.99999997E-7 : f32
      %236 = vector.broadcast %cst_92 : f32 to vector<16x1xf32>
      %237 = arith.addf %233, %236 : vector<16x1xf32>
      %238 = math.rsqrt %237 : vector<16x1xf32>
      %239 = vector.broadcast %238 : vector<16x1xf32> to vector<16x384xf32>
      %240 = arith.mulf %235, %239 : vector<16x384xf32>
      %241 = vector.broadcast %221 : vector<1x384xf32> to vector<16x384xf32>
      %242 = arith.mulf %240, %241 : vector<16x384xf32>
      %243 = vector.broadcast %222 : vector<1x384xf32> to vector<16x384xf32>
      %244 = arith.addf %242, %243 : vector<16x384xf32>
      %245 = vector.shape_cast %244 : vector<16x384xf32> to vector<1x16x384xf32>
      %c0_93 = arith.constant 0 : index
      %c0_94 = arith.constant 0 : index
      %c0_95 = arith.constant 0 : index
      %246 = vector.load %arg18[%c0_93, %c0_94, %c0_95] : memref<1x16x384xf32, #tpu.memory_space<vmem>>, vector<1x16x384xf32>
      tpu.vector_store %arg18[%c0_93, %c0_94, %c0_95], %245 {strides = array<i32>} : memref<1x16x384xf32, #tpu.memory_space<vmem>>, vector<1x16x384xf32>,
    } else {
    }
    return
  }
  func.func @transform_0(%arg0: i32, %arg1: i32) -> (i32, i32, i32) {
    %c0_i32 = arith.constant 0 : i32
    %c0_i32_0 = arith.constant 0 : i32
    %c0_i32_1 = arith.constant 0 : i32
    return %arg0, %c0_i32, %c0_i32_0 : i32, i32, i32
  }
  func.func @transform_1(%arg0: i32, %arg1: i32) -> (i32, i32) {
    %c0_i32 = arith.constant 0 : i32
    %c0_i32_0 = arith.constant 0 : i32
    %c0_i32_1 = arith.constant 0 : i32
    return %c0_i32, %c0_i32_0 : i32, i32
  }
  func.func @transform_2(%arg0: i32, %arg1: i32) -> (i32, i32, i32) {
    %c0_i32 = arith.constant 0 : i32
    %c0_i32_0 = arith.constant 0 : i32
    %c0_i32_1 = arith.constant 0 : i32
    return %arg1, %c0_i32, %c0_i32_0 : i32, i32, i32
  }
  func.func @transform_3(%arg0: i32, %arg1: i32) -> (i32, i32, i32) {
    %c0_i32 = arith.constant 0 : i32
    %c0_i32_0 = arith.constant 0 : i32
    %c0_i32_1 = arith.constant 0 : i32
    return %arg1, %c0_i32, %c0_i32_0 : i32, i32, i32
  }
  func.func @transform_4(%arg0: i32, %arg1: i32) -> (i32, i32, i32) {
    %c0_i32 = arith.constant 0 : i32
    %c0_i32_0 = arith.constant 0 : i32
    %c0_i32_1 = arith.constant 0 : i32
    return %arg1, %c0_i32, %c0_i32_0 : i32, i32, i32
  }
  func.func @transform_5(%arg0: i32, %arg1: i32) -> (i32, i32, i32) {
    %c0_i32 = arith.constant 0 : i32
    %c0_i32_0 = arith.constant 0 : i32
    %c0_i32_1 = arith.constant 0 : i32
    return %arg1, %c0_i32, %c0_i32_0 : i32, i32, i32
  }
  func.func @transform_6(%arg0: i32, %arg1: i32) -> (i32, i32, i32) {
    %c0_i32 = arith.constant 0 : i32
    %c0_i32_0 = arith.constant 0 : i32
    %c0_i32_1 = arith.constant 0 : i32
    return %arg1, %c0_i32, %c0_i32_0 : i32, i32, i32
  }
  func.func @transform_7(%arg0: i32, %arg1: i32) -> (i32, i32, i32) {
    %c0_i32 = arith.constant 0 : i32
    %c0_i32_0 = arith.constant 0 : i32
    %c0_i32_1 = arith.constant 0 : i32
    return %arg1, %c0_i32, %c0_i32_0 : i32, i32, i32
  }
  func.func @transform_8(%arg0: i32, %arg1: i32) -> (i32, i32, i32) {
    %c0_i32 = arith.constant 0 : i32
    %c0_i32_0 = arith.constant 0 : i32
    %c0_i32_1 = arith.constant 0 : i32
    return %arg1, %c0_i32, %c0_i32_0 : i32, i32, i32
  }
  func.func @transform_9(%arg0: i32, %arg1: i32) -> (i32, i32, i32) {
    %c0_i32 = arith.constant 0 : i32
    %c0_i32_0 = arith.constant 0 : i32
    %c0_i32_1 = arith.constant 0 : i32
    return %arg1, %c0_i32, %c0_i32_0 : i32, i32, i32
  }
  func.func @transform_10(%arg0: i32, %arg1: i32) -> (i32, i32, i32) {
    %c0_i32 = arith.constant 0 : i32
    %c0_i32_0 = arith.constant 0 : i32
    %c0_i32_1 = arith.constant 0 : i32
    return %arg1, %c0_i32, %c0_i32_0 : i32, i32, i32
  }
  func.func @transform_11(%arg0: i32, %arg1: i32) -> (i32, i32, i32) {
    %c0_i32 = arith.constant 0 : i32
    %c0_i32_0 = arith.constant 0 : i32
    %c0_i32_1 = arith.constant 0 : i32
    return %arg1, %c0_i32, %c0_i32_0 : i32, i32, i32
  }
  func.func @transform_12(%arg0: i32, %arg1: i32) -> (i32, i32, i32) {
    %c0_i32 = arith.constant 0 : i32
    %c0_i32_0 = arith.constant 0 : i32
    %c0_i32_1 = arith.constant 0 : i32
    return %arg1, %c0_i32, %c0_i32_0 : i32, i32, i32
  }
  func.func @transform_13(%arg0: i32, %arg1: i32) -> (i32, i32, i32) {
    %c0_i32 = arith.constant 0 : i32
    %c0_i32_0 = arith.constant 0 : i32
    %c0_i32_1 = arith.constant 0 : i32
    return %arg1, %c0_i32, %c0_i32_0 : i32, i32, i32
  }
  func.func @transform_14(%arg0: i32, %arg1: i32) -> (i32, i32) {
    %c0_i32 = arith.constant 0 : i32
    %c0_i32_0 = arith.constant 0 : i32
    %c0_i32_1 = arith.constant 0 : i32
    return %c0_i32, %c0_i32_0 : i32, i32
  }
  func.func @transform_15(%arg0: i32, %arg1: i32) -> (i32, i32) {
    %c0_i32 = arith.constant 0 : i32
    %c0_i32_0 = arith.constant 0 : i32
    %c0_i32_1 = arith.constant 0 : i32
    return %c0_i32, %c0_i32_0 : i32, i32
  }
  func.func @transform_16(%arg0: i32, %arg1: i32) -> (i32, i32, i32) {
    %c0_i32 = arith.constant 0 : i32
    %c0_i32_0 = arith.constant 0 : i32
    %c0_i32_1 = arith.constant 0 : i32
    return %arg0, %c0_i32, %c0_i32_0 : i32, i32, i32
  }
}

module attributes {stable_mosaic.version = 11 : i64} {
  func.func @_patch_embed_kernel(%arg0: i32, %arg1: memref<1x4x640xbf16, #tpu.memory_space<vmem>>, %arg2: memref<640x384xbf16, #tpu.memory_space<vmem>>, %arg3: memref<1x384xf32, #tpu.memory_space<vmem>>, %arg4: memref<1x4x384xf32, #tpu.memory_space<vmem>>) attributes {dimension_semantics = [#tpu.dimension_semantics<parallel>], iteration_bounds = array<i64: 2>, scalar_prefetch = 0 : i64, scratch_operands = 0 : i64, tpu.core_type = #tpu.core_type<tc>, window_params = [{transform_indices = @transform_0, window_bounds = array<i64: 1, 4, 640>}, {pipeline_mode = #tpu.pipeline_mode<synchronous>, transform_indices = @transform_1, window_bounds = array<i64: 640, 384>}, {pipeline_mode = #tpu.pipeline_mode<synchronous>, transform_indices = @transform_2, window_bounds = array<i64: 1, 384>}, {transform_indices = @transform_3, window_bounds = array<i64: 1, 4, 384>}]} {
    %c0 = arith.constant 0 : index
    %c0_0 = arith.constant 0 : index
    %c0_1 = arith.constant 0 : index
    %0 = vector.load %arg1[%c0, %c0_0, %c0_1] : memref<1x4x640xbf16, #tpu.memory_space<vmem>>, vector<1x4x640xbf16>
    %1 = vector.shape_cast %0 : vector<1x4x640xbf16> to vector<4x640xbf16>
    %c0_2 = arith.constant 0 : index
    %c0_3 = arith.constant 0 : index
    %2 = vector.load %arg2[%c0_2, %c0_3] : memref<640x384xbf16, #tpu.memory_space<vmem>>, vector<640x384xbf16>
    %cst = arith.constant dense<0.000000e+00> : vector<4x384xf32>
    %3 = tpu.matmul %1, %2, %cst {dimension_numbers = #tpu.dot_dimension_numbers<[1], [0], [0], [1], [0, 0, 1, 1], [], []>} : vector<4x640xbf16>, vector<640x384xbf16>, vector<4x384xf32> -> vector<4x384xf32>
    %c0_4 = arith.constant 0 : index
    %c0_5 = arith.constant 0 : index
    %4 = vector.load %arg3[%c0_4, %c0_5] : memref<1x384xf32, #tpu.memory_space<vmem>>, vector<1x384xf32>
    %5 = vector.broadcast %4 : vector<1x384xf32> to vector<4x384xf32>
    %6 = arith.addf %3, %5 : vector<4x384xf32>
    %c0_6 = arith.constant 0 : index
    %c0_7 = arith.constant 0 : index
    %c0_8 = arith.constant 0 : index
    %7 = vector.load %arg4[%c0_6, %c0_7, %c0_8] : memref<1x4x384xf32, #tpu.memory_space<vmem>>, vector<1x4x384xf32>
    %8 = vector.shape_cast %7 : vector<1x4x384xf32> to vector<4x384xf32>
    %9 = vector.shape_cast %6 : vector<4x384xf32> to vector<1x4x384xf32>
    tpu.vector_store %arg4[%c0_6, %c0_7, %c0_8], %9 {strides = array<i32>} : memref<1x4x384xf32, #tpu.memory_space<vmem>>, vector<1x4x384xf32>,
    return
  }
  func.func @transform_0(%arg0: i32) -> (i32, i32, i32) {
    %c0_i32 = arith.constant 0 : i32
    %c0_i32_0 = arith.constant 0 : i32
    %c0_i32_1 = arith.constant 0 : i32
    return %arg0, %c0_i32, %c0_i32_0 : i32, i32, i32
  }
  func.func @transform_1(%arg0: i32) -> (i32, i32) {
    %c0_i32 = arith.constant 0 : i32
    %c0_i32_0 = arith.constant 0 : i32
    %c0_i32_1 = arith.constant 0 : i32
    return %c0_i32, %c0_i32_0 : i32, i32
  }
  func.func @transform_2(%arg0: i32) -> (i32, i32) {
    %c0_i32 = arith.constant 0 : i32
    %c0_i32_0 = arith.constant 0 : i32
    %c0_i32_1 = arith.constant 0 : i32
    return %c0_i32, %c0_i32_0 : i32, i32
  }
  func.func @transform_3(%arg0: i32) -> (i32, i32, i32) {
    %c0_i32 = arith.constant 0 : i32
    %c0_i32_0 = arith.constant 0 : i32
    %c0_i32_1 = arith.constant 0 : i32
    return %arg0, %c0_i32, %c0_i32_0 : i32, i32, i32
  }
}

</mosaic_0001>

<llo_original>
// kernel: dinov2_forward.2
$region0: #{dinov2_forward.2}
  #allocation0 [shape = 'u32[]', space=smem, size = 0x4, offset = 0x4, fixed_abs, tag = 'smem constant byte address 0x4 - core index']
  #allocation1 [shape = 'u32[72,128]{1,0:T(1,128)}', space=vmem, size = 0x9000, scoped, tag = 'internal scratch']
  %s0 = inlined_call_operand.vmem [shape: bf16[2,4,640], index: 0, kind: input, shape index: {}]
  %s1 = inlined_call_operand.hbm [shape: bf16[640,384], index: 1, kind: input, shape index: {}]
  %s2 = inlined_call_operand.hbm [shape: f32[1,384], index: 2, kind: input, shape index: {}]
  %s3 = inlined_call_operand.vmem [shape: f32[2,4,384], index: 3, kind: output, shape index: {}]
  %s4 = sld [smem:[#allocation0]]
  $region53: #{dinov2_forward.2} parent=0
    _
  %s6 = ssub.s32 1, %s4
  %s7 = scalar_select 0, %s6, %s4
  $region1: #{dinov2_forward.2} parent=0
    #allocation2 [shape = 'u8[491520]{0}', space=vmem, size = 0x78000, scoped, tag = 'input window, operand 1, single buffered']
    #allocation3 [shape = 's32[2]{0}', space=sflag, size = 0x8, scoped, tag = 'scoped memory for dinov2_forward.2']
    #allocation4 [shape = 'u8[1536]{0}', space=vmem, size = 0x800, scoped, tag = 'input window, operand 2, single buffered']
    #allocation5 [shape = 's32[1]{0}', space=sflag, size = 0x4, scoped, tag = 'scoped memory for dinov2_forward.2']
    %8 = vsyncpa [#allocation3], 0
    %9 = vsyncpa [#allocation5], 0
    loop: start=0, step=1, limit=4
    $region2: #{dinov2_forward.2} parent=1 // loop_pre_header
      _
    $region3: #{dinov2_forward.2} parent=1 // loop_header
      %s11 = sphi 0, %s15
      %p12 = scmp.ge.s32.totalorder %s11, 4
      %s21 = sphi 0, %s23
      %s24 = sphi 0, %s21
      %s25 = sphi 0, %s24
      %s41 = sphi 0, %s25
      %s45 = sphi 0, %s45
      %s47 = sphi 0, %s45
      %s48 = sphi 0, %s47
      %s62 = sphi 0, %s48
      %s66 = sphi 0, %s66
      %s68 = sphi 0, %s66
      %s69 = sphi 0, %s68
      %s83 = sphi 0, %s69
      %s89 = sphi 0, %s91
      %s92 = sphi 0, %s89
      %s93 = sphi 0, %s92
      %s109 = sphi 0, %s93
    $region4: #{dinov2_forward.2} parent=1 // loop_header_branch
      %14 = sbr.rel (%p12) target = $region8
    $region5: #{dinov2_forward.2} parent=1 // loop_body
      %s16 = ssub.s32 %s11, 1
      %s17 = ssub.s32 %s11, 2
      %s18 = sadd.s32 %s11, 1
      %s19 = ssub.s32 %s11, %s18
      %p20 = scmp.eq.s32.totalorder %s19, 0
      %s22 = sadd.s32 %s21, 1
      %s23 = scalar_select %p20, %s21, %s22
      %p26 = pneg %p20
      %p27 = scmp.eq.s32.totalorder %s11, 1
      %p28 = por %p26, %p27
      %p29 = scmp.ne.s32.totalorder %s21, %s24
      %p30 = scmp.eq.s32.totalorder %s11, 0
      %p31 = por %p29, %p30
      %p32 = scmp.ne.s32.totalorder %s21, %s24
      %p33 = scmp.eq.s32.totalorder %s16, 1
      %p34 = por %p32, %p33
      %p35 = scmp.ne.s32.totalorder %s24, %s25
      %p36 = scmp.eq.s32.totalorder %s16, 0
      %p37 = por %p35, %p36
      %p38 = scmp.ne.s32.totalorder %s24, %s25
      %p39 = scmp.eq.s32.totalorder %s17, 1
      %p40 = por %p38, %p39
      %p42 = scmp.ne.s32.totalorder %s25, %s41
      %p43 = scmp.eq.s32.totalorder %s17, 0
      %p44 = por %p42, %p43
      %s46 = sadd.s32 %s45, 1
      %p49 = scmp.eq.s32.totalorder %s11, 1
      %p50 = scmp.ne.s32.totalorder %s45, %s47
      %p51 = scmp.eq.s32.totalorder %s11, 0
      %p52 = por %p50, %p51
      %p53 = scmp.ne.s32.totalorder %s45, %s47
      %p54 = scmp.eq.s32.totalorder %s16, 1
      %p55 = por %p53, %p54
      %p56 = scmp.ne.s32.totalorder %s47, %s48
      %p57 = scmp.eq.s32.totalorder %s16, 0
      %p58 = por %p56, %p57
      %p59 = scmp.ne.s32.totalorder %s47, %s48
      %p60 = scmp.eq.s32.totalorder %s17, 1
      %p61 = por %p59, %p60
      %p63 = scmp.ne.s32.totalorder %s48, %s62
      %p64 = scmp.eq.s32.totalorder %s17, 0
      %p65 = por %p63, %p64
      %s67 = sadd.s32 %s66, 1
      %p70 = scmp.eq.s32.totalorder %s11, 1
      %p71 = scmp.ne.s32.totalorder %s66, %s68
      %p72 = scmp.eq.s32.totalorder %s11, 0
      %p73 = por %p71, %p72
      %p74 = scmp.ne.s32.totalorder %s66, %s68
      %p75 = scmp.eq.s32.totalorder %s16, 1
      %p76 = por %p74, %p75
      %p77 = scmp.ne.s32.totalorder %s68, %s69
      %p78 = scmp.eq.s32.totalorder %s16, 0
      %p79 = por %p77, %p78
      %p80 = scmp.ne.s32.totalorder %s68, %s69
      %p81 = scmp.eq.s32.totalorder %s17, 1
      %p82 = por %p80, %p81
      %p84 = scmp.ne.s32.totalorder %s69, %s83
      %p85 = scmp.eq.s32.totalorder %s17, 0
      %p86 = por %p84, %p85
      %s87 = ssub.s32 %s11, %s18
      %p88 = scmp.eq.s32.totalorder %s87, 0
      %s90 = sadd.s32 %s89, 1
      %s91 = scalar_select %p88, %s89, %s90
      %p94 = pneg %p88
      %p95 = scmp.eq.s32.totalorder %s11, 1
      %p96 = por %p94, %p95
      %p97 = scmp.ne.s32.totalorder %s89, %s92
      %p98 = scmp.eq.s32.totalorder %s11, 0
      %p99 = por %p97, %p98
      %p100 = scmp.ne.s32.totalorder %s89, %s92
      %p101 = scmp.eq.s32.totalorder %s16, 1
      %p102 = por %p100, %p101
      %p103 = scmp.ne.s32.totalorder %s92, %s93
      %p104 = scmp.eq.s32.totalorder %s16, 0
      %p105 = por %p103, %p104
      %p106 = scmp.ne.s32.totalorder %s92, %s93
      %p107 = scmp.eq.s32.totalorder %s17, 1
      %p108 = por %p106, %p107
      %p110 = scmp.ne.s32.totalorder %s93, %s109
      %p111 = scmp.eq.s32.totalorder %s17, 0
      %p112 = por %p110, %p111
      %p113 = scmp.le.s32.totalorder 1, %s11
      %p114 = scmp.lt.s32.totalorder %s11, 3
      %p115 = pnand %p113, %p114
      %p116 = pneg %p115
      // Predicated region
      $region9: #{dinov2_forward.2} parent=5 // pred_check
        _
      $region10: #{dinov2_forward.2} parent=5 // pred_check_branch
        %118 = sbr.rel (%p115) target = $region12
      $region11: #{dinov2_forward.2} parent=5 // pred_region
        %s119 = ssub.s32 %s11, 1
        // Predicated region
        $region13: #{dinov2_forward.2} parent=11 // pred_check
          %p120 = pneg %p58
        $region14: #{dinov2_forward.2} parent=11 // pred_check_branch
          %122 = sbr.rel (%p120) target = $region16
        $region15: #{dinov2_forward.2} parent=11 // pred_region
          %124 = vsyncadd [#allocation3], 0
          %s125 = sshll.u32 %s1, 4
          %s126 = int_to_ptr.hbm [resolvable:$true] %s125
          %s127 = sshll.u32 [#allocation2], 4
          %s128 = int_to_ptr.vmem [resolvable:$true] %s127
          %133 = dma.hbm_to_vmem [thread:$0]  %s126, 15360, %s128, [#allocation3], 192, 192, 12
        $region16: #{dinov2_forward.2} parent=11 // pred_fallthru
          _
        // Predicated region
        $region17: #{dinov2_forward.2} parent=11 // pred_check
          %p134 = pneg %p79
        $region18: #{dinov2_forward.2} parent=11 // pred_check_branch
          %136 = sbr.rel (%p134) target = $region20
        $region19: #{dinov2_forward.2} parent=11 // pred_region
          %138 = vsyncadd [#allocation5], 0
          %s140 = sshll.u32 %s2, 4
          %s141 = int_to_ptr.hbm [resolvable:$true] %s140
          %s142 = sshll.u32 [#allocation4], 4
          %s143 = int_to_ptr.vmem [resolvable:$true] %s142
          %145 = dma.hbm_to_vmem [thread:$0]  %s141, 48, %s143, [#allocation5]
        $region20: #{dinov2_forward.2} parent=11 // pred_fallthru
          _
      $region12: #{dinov2_forward.2} parent=5 // pred_fallthru
        _
      %p146 = scmp.lt.s32.totalorder %s11, 2
      // Predicated region
      $region21: #{dinov2_forward.2} parent=5 // pred_check
        %p147 = pneg %p146
      $region22: #{dinov2_forward.2} parent=5 // pred_check_branch
        %149 = sbr.rel (%p147) target = $region24
      $region23: #{dinov2_forward.2} parent=5 // pred_region
        // Predicated region
        $region25: #{dinov2_forward.2} parent=23 // pred_check
          %p150 = pneg %p31
        $region26: #{dinov2_forward.2} parent=23 // pred_check_branch
          %152 = sbr.rel (%p150) target = $region28
        $region27: #{dinov2_forward.2} parent=23 // pred_region
          %p153 = scmp.lt.s32.totalorder %s11, 1
          %s154 = scalar_select %p153, %s11, 1
          %s155 = smul.addr %s154, 5
          %s156 = smul.addr %s155, 2
          %s157 = scalar_lea.vmem %s0, %s156
        $region28: #{dinov2_forward.2} parent=23 // pred_fallthru
          _
      $region24: #{dinov2_forward.2} parent=5 // pred_fallthru
        _
      %p158 = scmp.le.s32.totalorder 1, %s11
      %p159 = scmp.lt.s32.totalorder %s11, 3
      %p160 = pnand %p158, %p159
      %p161 = pneg %p160
      // Predicated region
      $region29: #{dinov2_forward.2} parent=5 // pred_check
        _
      $region30: #{dinov2_forward.2} parent=5 // pred_check_branch
        %163 = sbr.rel (%p160) target = $region32
      $region31: #{dinov2_forward.2} parent=5 // pred_region
        %s164 = ssub.s32 %s11, 1
        // Predicated region
        $region33: #{dinov2_forward.2} parent=31 // pred_check
          %p165 = pneg %p58
        $region34: #{dinov2_forward.2} parent=31 // pred_check_branch
          %167 = sbr.rel (%p165) target = $region36
        $region35: #{dinov2_forward.2} parent=31 // pred_region
          %169 = dma.done [#allocation3], 15360
        $region36: #{dinov2_forward.2} parent=31 // pred_fallthru
          _
        // Predicated region
        $region37: #{dinov2_forward.2} parent=31 // pred_check
          %p170 = pneg %p79
        $region38: #{dinov2_forward.2} parent=31 // pred_check_branch
          %172 = sbr.rel (%p170) target = $region40
        $region39: #{dinov2_forward.2} parent=31 // pred_region
          %174 = dma.done [#allocation5], 48
        $region40: #{dinov2_forward.2} parent=31 // pred_fallthru
          _
        %p175 = scmp.lt.s32.totalorder %s16, 1
        %s176 = scalar_select %p175, %s16, 1
        %s177 = smul.addr %s176, 5
        %s178 = smul.addr %s177, 2
        %s179 = scalar_lea.vmem %s0, %s178
        %p180 = pneg %p37
        %p181 = pneg %p34
        %p182 = pneg %p58
        %p183 = pneg %p55
        %p184 = pneg %p79
        %p185 = pneg %p76
        %p186 = pneg %p105
        %p187 = pneg %p102
        %p188 = scmp.lt.s32.totalorder %s16, 1
        %s189 = scalar_select %p188, %s16, 1
        %s190 = smul.addr %s189, 3
        %s191 = smul.addr %s190, 4
        %s192 = scalar_lea.vmem %s3, %s191
        %p193 = scmp.lt.s32.totalorder %s16, 1
        %s194 = scalar_select %p193, %s16, 1
        %s195 = smul.addr %s194, 5
        %s196 = smul.addr %s195, 2
        %s197 = scalar_lea.vmem %s0, %s196
        %p198 = scmp.lt.s32.totalorder %s16, 1
        %s199 = scalar_select %p198, %s16, 1
        %s200 = smul.addr %s199, 3
        %s201 = smul.addr %s200, 4
        %s202 = scalar_lea.vmem %s3, %s201
        %v203 = vld [vmem:[%s197] sm:$0xff]
        %v204 = vld [vmem:[%s197 + $0x8] sm:$0x3]
        %v205 = vld [vmem:[#allocation2] sm:$0xff]
        %v206 = vld [vmem:[#allocation2 + $0x8] sm:$0xf]
        %v207 = vld [vmem:[#allocation2 + $0xc] sm:$0xff]
        %v208 = vld [vmem:[#allocation2 + $0x14] sm:$0xf]
        %v209 = vld [vmem:[#allocation2 + $0x18] sm:$0xff]
        %v210 = vld [vmem:[#allocation2 + $0x20] sm:$0xf]
        %v211 = vld [vmem:[#allocation2 + $0x24] sm:$0xff]
        %v212 = vld [vmem:[#allocation2 + $0x2c] sm:$0xf]
        %v213 = vld [vmem:[#allocation2 + $0x30] sm:$0xff]
        %v214 = vld [vmem:[#allocation2 + $0x38] sm:$0xf]
        %v215 = vld [vmem:[#allocation2 + $0x3c] sm:$0xff]
        %v216 = vld [vmem:[#allocation2 + $0x44] sm:$0xf]
        %v217 = vld [vmem:[#allocation2 + $0x48] sm:$0xff]
        %v218 = vld [vmem:[#allocation2 + $0x50] sm:$0xf]
        %v219 = vld [vmem:[#allocation2 + $0x54] sm:$0xff]
        %v220 = vld [vmem:[#allocation2 + $0x5c] sm:$0xf]
        %v221 = vld [vmem:[#allocation2 + $0x60] sm:$0xff]
        %v222 = vld [vmem:[#allocation2 + $0x68] sm:$0xf]
        %v223 = vld [vmem:[#allocation2 + $0x6c] sm:$0xff]
        %v224 = vld [vmem:[#allocation2 + $0x74] sm:$0xf]
        %v225 = vld [vmem:[#allocation2 + $0x78] sm:$0xff]
        %v226 = vld [vmem:[#allocation2 + $0x80] sm:$0xf]
        %v227 = vld [vmem:[#allocation2 + $0x84] sm:$0xff]
        %v228 = vld [vmem:[#allocation2 + $0x8c] sm:$0xf]
        %v229 = vld [vmem:[#allocation2 + $0x90] sm:$0xff]
        %v230 = vld [vmem:[#allocation2 + $0x98] sm:$0xf]
        %v231 = vld [vmem:[#allocation2 + $0x9c] sm:$0xff]
        %v232 = vld [vmem:[#allocation2 + $0xa4] sm:$0xf]
        %v233 = vld [vmem:[#allocation2 + $0xa8] sm:$0xff]
        %v234 = vld [vmem:[#allocation2 + $0xb0] sm:$0xf]
        %v235 = vld [vmem:[#allocation2 + $0xb4] sm:$0xff]
        %v236 = vld [vmem:[#allocation2 + $0xbc] sm:$0xf]
        %v237 = vld [vmem:[#allocation2 + $0xc0] sm:$0xff]
        %v238 = vld [vmem:[#allocation2 + $0xc8] sm:$0xf]
        %v239 = vld [vmem:[#allocation2 + $0xcc] sm:$0xff]
        %v240 = vld [vmem:[#allocation2 + $0xd4] sm:$0xf]
        %v241 = vld [vmem:[#allocation2 + $0xd8] sm:$0xff]
        %v242 = vld [vmem:[#allocation2 + $0xe0] sm:$0xf]
        %v243 = vld [vmem:[#allocation2 + $0xe4] sm:$0xff]
        %v244 = vld [vmem:[#allocation2 + $0xec] sm:$0xf]
        %v245 = vld [vmem:[#allocation2 + $0xf0] sm:$0xff]
        %v246 = vld [vmem:[#allocation2 + $0xf8] sm:$0xf]
        %v247 = vld [vmem:[#allocation2 + $0xfc] sm:$0xff]
        %v248 = vld [vmem:[#allocation2 + $0x104] sm:$0xf]
        %v249 = vld [vmem:[#allocation2 + $0x108] sm:$0xff]
        %v250 = vld [vmem:[#allocation2 + $0x110] sm:$0xf]
        %v251 = vld [vmem:[#allocation2 + $0x114] sm:$0xff]
        %v252 = vld [vmem:[#allocation2 + $0x11c] sm:$0xf]
        %v253 = vld [vmem:[#allocation2 + $0x120] sm:$0xff]
        %v254 = vld [vmem:[#allocation2 + $0x128] sm:$0xf]
        %v255 = vld [vmem:[#allocation2 + $0x12c] sm:$0xff]
        %v256 = vld [vmem:[#allocation2 + $0x134] sm:$0xf]
        %v257 = vld [vmem:[#allocation2 + $0x138] sm:$0xff]
        %v258 = vld [vmem:[#allocation2 + $0x140] sm:$0xf]
        %v259 = vld [vmem:[#allocation2 + $0x144] sm:$0xff]
        %v260 = vld [vmem:[#allocation2 + $0x14c] sm:$0xf]
        %v261 = vld [vmem:[#allocation2 + $0x150] sm:$0xff]
        %v262 = vld [vmem:[#allocation2 + $0x158] sm:$0xf]
        %v263 = vld [vmem:[#allocation2 + $0x15c] sm:$0xff]
        %v264 = vld [vmem:[#allocation2 + $0x164] sm:$0xf]
        %v265 = vld [vmem:[#allocation2 + $0x168] sm:$0xff]
        %v266 = vld [vmem:[#allocation2 + $0x170] sm:$0xf]
        %v267 = vld [vmem:[#allocation2 + $0x174] sm:$0xff]
        %v268 = vld [vmem:[#allocation2 + $0x17c] sm:$0xf]
        %v269 = vld [vmem:[#allocation2 + $0x180] sm:$0xff]
        %v270 = vld [vmem:[#allocation2 + $0x188] sm:$0xf]
        %v271 = vld [vmem:[#allocation2 + $0x18c] sm:$0xff]
        %v272 = vld [vmem:[#allocation2 + $0x194] sm:$0xf]
        %v273 = vld [vmem:[#allocation2 + $0x198] sm:$0xff]
        %v274 = vld [vmem:[#allocation2 + $0x1a0] sm:$0xf]
        %v275 = vld [vmem:[#allocation2 + $0x1a4] sm:$0xff]
        %v276 = vld [vmem:[#allocation2 + $0x1ac] sm:$0xf]
        %v277 = vld [vmem:[#allocation2 + $0x1b0] sm:$0xff]
        %v278 = vld [vmem:[#allocation2 + $0x1b8] sm:$0xf]
        %v279 = vld [vmem:[#allocation2 + $0x1bc] sm:$0xff]
        %v280 = vld [vmem:[#allocation2 + $0x1c4] sm:$0xf]
        %v281 = vld [vmem:[#allocation2 + $0x1c8] sm:$0xff]
        %v282 = vld [vmem:[#allocation2 + $0x1d0] sm:$0xf]
        %v283 = vld [vmem:[#allocation2 + $0x1d4] sm:$0xff]
        %v284 = vld [vmem:[#allocation2 + $0x1dc] sm:$0xf]
        %v285 = vld [vmem:[#allocation2 + $0x1e0] sm:$0xff]
        %v286 = vld [vmem:[#allocation2 + $0x1e8] sm:$0xf]
        %v287 = vld [vmem:[#allocation2 + $0x1ec] sm:$0xff]
        %v288 = vld [vmem:[#allocation2 + $0x1f4] sm:$0xf]
        %v289 = vld [vmem:[#allocation2 + $0x1f8] sm:$0xff]
        %v290 = vld [vmem:[#allocation2 + $0x200] sm:$0xf]
        %v291 = vld [vmem:[#allocation2 + $0x204] sm:$0xff]
        %v292 = vld [vmem:[#allocation2 + $0x20c] sm:$0xf]
        %v293 = vld [vmem:[#allocation2 + $0x210] sm:$0xff]
        %v294 = vld [vmem:[#allocation2 + $0x218] sm:$0xf]
        %v295 = vld [vmem:[#allocation2 + $0x21c] sm:$0xff]
        %v296 = vld [vmem:[#allocation2 + $0x224] sm:$0xf]
        %v297 = vld [vmem:[#allocation2 + $0x228] sm:$0xff]
        %v298 = vld [vmem:[#allocation2 + $0x230] sm:$0xf]
        %v299 = vld [vmem:[#allocation2 + $0x234] sm:$0xff]
        %v300 = vld [vmem:[#allocation2 + $0x23c] sm:$0xf]
        %v301 = vld [vmem:[#allocation2 + $0x240] sm:$0xff]
        %v302 = vld [vmem:[#allocation2 + $0x248] sm:$0xf]
        %v303 = vld [vmem:[#allocation2 + $0x24c] sm:$0xff]
        %v304 = vld [vmem:[#allocation2 + $0x254] sm:$0xf]
        %v305 = vld [vmem:[#allocation2 + $0x258] sm:$0xff]
        %v306 = vld [vmem:[#allocation2 + $0x260] sm:$0xf]
        %v307 = vld [vmem:[#allocation2 + $0x264] sm:$0xff]
        %v308 = vld [vmem:[#allocation2 + $0x26c] sm:$0xf]
        %v309 = vld [vmem:[#allocation2 + $0x270] sm:$0xff]
        %v310 = vld [vmem:[#allocation2 + $0x278] sm:$0xf]
        %v311 = vld [vmem:[#allocation2 + $0x27c] sm:$0xff]
        %v312 = vld [vmem:[#allocation2 + $0x284] sm:$0xf]
        %v313 = vld [vmem:[#allocation2 + $0x288] sm:$0xff]
        %v314 = vld [vmem:[#allocation2 + $0x290] sm:$0xf]
        %v315 = vld [vmem:[#allocation2 + $0x294] sm:$0xff]
        %v316 = vld [vmem:[#allocation2 + $0x29c] sm:$0xf]
        %v317 = vld [vmem:[#allocation2 + $0x2a0] sm:$0xff]
        %v318 = vld [vmem:[#allocation2 + $0x2a8] sm:$0xf]
        %v319 = vld [vmem:[#allocation2 + $0x2ac] sm:$0xff]
        %v320 = vld [vmem:[#allocation2 + $0x2b4] sm:$0xf]
        %v321 = vld [vmem:[#allocation2 + $0x2b8] sm:$0xff]
        %v322 = vld [vmem:[#allocation2 + $0x2c0] sm:$0xf]
        %v323 = vld [vmem:[#allocation2 + $0x2c4] sm:$0xff]
        %v324 = vld [vmem:[#allocation2 + $0x2cc] sm:$0xf]
        %v325 = vld [vmem:[#allocation2 + $0x2d0] sm:$0xff]
        %v326 = vld [vmem:[#allocation2 + $0x2d8] sm:$0xf]
        %v327 = vld [vmem:[#allocation2 + $0x2dc] sm:$0xff]
        %v328 = vld [vmem:[#allocation2 + $0x2e4] sm:$0xf]
        %v329 = vld [vmem:[#allocation2 + $0x2e8] sm:$0xff]
        %v330 = vld [vmem:[#allocation2 + $0x2f0] sm:$0xf]
        %v331 = vld [vmem:[#allocation2 + $0x2f4] sm:$0xff]
        %v332 = vld [vmem:[#allocation2 + $0x2fc] sm:$0xf]
        %v333 = vld [vmem:[#allocation2 + $0x300] sm:$0xff]
        %v334 = vld [vmem:[#allocation2 + $0x308] sm:$0xf]
        %v335 = vld [vmem:[#allocation2 + $0x30c] sm:$0xff]
        %v336 = vld [vmem:[#allocation2 + $0x314] sm:$0xf]
        %v337 = vld [vmem:[#allocation2 + $0x318] sm:$0xff]
        %v338 = vld [vmem:[#allocation2 + $0x320] sm:$0xf]
        %v339 = vld [vmem:[#allocation2 + $0x324] sm:$0xff]
        %v340 = vld [vmem:[#allocation2 + $0x32c] sm:$0xf]
        %v341 = vld [vmem:[#allocation2 + $0x330] sm:$0xff]
        %v342 = vld [vmem:[#allocation2 + $0x338] sm:$0xf]
        %v343 = vld [vmem:[#allocation2 + $0x33c] sm:$0xff]
        %v344 = vld [vmem:[#allocation2 + $0x344] sm:$0xf]
        %v345 = vld [vmem:[#allocation2 + $0x348] sm:$0xff]
        %v346 = vld [vmem:[#allocation2 + $0x350] sm:$0xf]
        %v347 = vld [vmem:[#allocation2 + $0x354] sm:$0xff]
        %v348 = vld [vmem:[#allocation2 + $0x35c] sm:$0xf]
        %v349 = vld [vmem:[#allocation2 + $0x360] sm:$0xff]
        %v350 = vld [vmem:[#allocation2 + $0x368] sm:$0xf]
        %v351 = vld [vmem:[#allocation2 + $0x36c] sm:$0xff]
        %v352 = vld [vmem:[#allocation2 + $0x374] sm:$0xf]
        %v353 = vld [vmem:[#allocation2 + $0x378] sm:$0xff]
        %v354 = vld [vmem:[#allocation2 + $0x380] sm:$0xf]
        %v355 = vld [vmem:[#allocation2 + $0x384] sm:$0xff]
        %v356 = vld [vmem:[#allocation2 + $0x38c] sm:$0xf]
        %v357 = vld [vmem:[#allocation2 + $0x390] sm:$0xff]
        %v358 = vld [vmem:[#allocation2 + $0x398] sm:$0xf]
        %v359 = vld [vmem:[#allocation2 + $0x39c] sm:$0xff]
        %v360 = vld [vmem:[#allocation2 + $0x3a4] sm:$0xf]
        %v361 = vld [vmem:[#allocation2 + $0x3a8] sm:$0xff]
        %v362 = vld [vmem:[#allocation2 + $0x3b0] sm:$0xf]
        %v363 = vld [vmem:[#allocation2 + $0x3b4] sm:$0xff]
        %v364 = vld [vmem:[#allocation2 + $0x3bc] sm:$0xf]
        %v365 = vld [vmem:[#allocation4] sm:$0x7]
        %v367 = vperm.slane %v365, 0
        %v368 = vperm.slane %v365, 1
        %v369 = vperm.slane %v365, 2
        %374 = vst [vmem:[#allocation1] ss:$4 sm:$0xff] %v203
        %s376 = scalar_lea.vmem [#allocation1], 32
        %377 = vst [vmem:[%s376] ss:$4 sm:$0xff] %v204
        %v378 = vld.sshfl [vmem:[#allocation1] sm:$0xff pattern:$0x73625140]
        %v379 = vld.sshfl [vmem:[#allocation1 + $0x8] sm:$0xff pattern:$0x73625140]
        %v380 = vld.sshfl [vmem:[#allocation1 + $0x10] sm:$0xff pattern:$0x73625140]
        %v381 = vld.sshfl [vmem:[#allocation1 + $0x18] sm:$0xff pattern:$0x73625140]
        %v382 = vld.sshfl [vmem:[#allocation1 + $0x20] sm:$0xff pattern:$0x73625140]
        %v548 = vunpack.c.l.b16 %v205
        %v549 = vunpack.c.h.b16 %v205
        %v550 = vunpack.c.l.b16 %v206
        %v551 = vunpack.c.l.b16 %v207
        %v552 = vunpack.c.h.b16 %v207
        %v553 = vunpack.c.l.b16 %v208
        %v554 = vunpack.c.l.b16 %v209
        %v555 = vunpack.c.h.b16 %v209
        %v556 = vunpack.c.l.b16 %v210
        %v557 = vunpack.c.l.b16 %v211
        %v558 = vunpack.c.h.b16 %v211
        %v559 = vunpack.c.l.b16 %v212
        %v560 = vunpack.c.l.b16 %v213
        %v561 = vunpack.c.h.b16 %v213
        %v562 = vunpack.c.l.b16 %v214
        %v563 = vunpack.c.l.b16 %v215
        %v564 = vunpack.c.h.b16 %v215
        %v565 = vunpack.c.l.b16 %v216
        %v566 = vunpack.c.l.b16 %v217
        %v567 = vunpack.c.h.b16 %v217
        %v568 = vunpack.c.l.b16 %v218
        %v569 = vunpack.c.l.b16 %v219
        %v570 = vunpack.c.h.b16 %v219
        %v571 = vunpack.c.l.b16 %v220
        %v572 = vunpack.c.l.b16 %v221
        %v573 = vunpack.c.h.b16 %v221
        %v574 = vunpack.c.l.b16 %v222
        %v575 = vunpack.c.l.b16 %v223
        %v576 = vunpack.c.h.b16 %v223
        %v577 = vunpack.c.l.b16 %v224
        %v578 = vunpack.c.l.b16 %v225
        %v579 = vunpack.c.h.b16 %v225
        %v580 = vunpack.c.l.b16 %v226
        %v581 = vunpack.c.l.b16 %v227
        %v582 = vunpack.c.h.b16 %v227
        %v583 = vunpack.c.l.b16 %v228
        %v584 = vunpack.c.l.b16 %v229
        %v585 = vunpack.c.h.b16 %v229
        %v586 = vunpack.c.l.b16 %v230
        %v587 = vunpack.c.l.b16 %v231
        %v588 = vunpack.c.h.b16 %v231
        %v589 = vunpack.c.l.b16 %v232
        %v590 = vunpack.c.l.b16 %v233
        %v591 = vunpack.c.h.b16 %v233
        %v592 = vunpack.c.l.b16 %v234
        %v593 = vunpack.c.l.b16 %v235
        %v594 = vunpack.c.h.b16 %v235
        %v595 = vunpack.c.l.b16 %v236
        %v596 = vunpack.c.l.b16 %v237
        %v597 = vunpack.c.h.b16 %v237
        %v598 = vunpack.c.l.b16 %v238
        %v599 = vunpack.c.l.b16 %v239
        %v600 = vunpack.c.h.b16 %v239
        %v601 = vunpack.c.l.b16 %v240
        %v602 = vunpack.c.l.b16 %v241
        %v603 = vunpack.c.h.b16 %v241
        %v604 = vunpack.c.l.b16 %v242
        %v605 = vunpack.c.l.b16 %v243
        %v606 = vunpack.c.h.b16 %v243
        %v607 = vunpack.c.l.b16 %v244
        %v608 = vunpack.c.l.b16 %v245
        %v609 = vunpack.c.h.b16 %v245
        %v610 = vunpack.c.l.b16 %v246
        %v611 = vunpack.c.l.b16 %v247
        %v612 = vunpack.c.h.b16 %v247
        %v613 = vunpack.c.l.b16 %v248
        %v614 = vunpack.c.l.b16 %v249
        %v615 = vunpack.c.h.b16 %v249
        %v616 = vunpack.c.l.b16 %v250
        %v617 = vunpack.c.l.b16 %v251
        %v618 = vunpack.c.h.b16 %v251
        %v619 = vunpack.c.l.b16 %v252
        %v620 = vunpack.c.l.b16 %v253
        %v621 = vunpack.c.h.b16 %v253
        %v622 = vunpack.c.l.b16 %v254
        %v623 = vunpack.c.l.b16 %v255
        %v624 = vunpack.c.h.b16 %v255
        %v625 = vunpack.c.l.b16 %v256
        %v626 = vunpack.c.l.b16 %v257
        %v627 = vunpack.c.h.b16 %v257
        %v628 = vunpack.c.l.b16 %v258
        %v629 = vunpack.c.l.b16 %v259
        %v630 = vunpack.c.h.b16 %v259
        %v631 = vunpack.c.l.b16 %v260
        %v632 = vunpack.c.l.b16 %v261
        %v633 = vunpack.c.h.b16 %v261
        %v634 = vunpack.c.l.b16 %v262
        %v635 = vunpack.c.l.b16 %v263
        %v636 = vunpack.c.h.b16 %v263
        %v637 = vunpack.c.l.b16 %v264
        %v638 = vunpack.c.l.b16 %v265
        %v639 = vunpack.c.h.b16 %v265
        %v640 = vunpack.c.l.b16 %v266
        %v641 = vunpack.c.l.b16 %v267
        %v642 = vunpack.c.h.b16 %v267
        %v643 = vunpack.c.l.b16 %v268
        %v644 = vunpack.c.l.b16 %v269
        %v645 = vunpack.c.h.b16 %v269
        %v646 = vunpack.c.l.b16 %v270
        %v647 = vunpack.c.l.b16 %v271
        %v648 = vunpack.c.h.b16 %v271
        %v649 = vunpack.c.l.b16 %v272
        %v650 = vunpack.c.l.b16 %v273
        %v651 = vunpack.c.h.b16 %v273
        %v652 = vunpack.c.l.b16 %v274
        %v653 = vunpack.c.l.b16 %v275
        %v654 = vunpack.c.h.b16 %v275
        %v655 = vunpack.c.l.b16 %v276
        %v656 = vunpack.c.l.b16 %v277
        %v657 = vunpack.c.h.b16 %v277
        %v658 = vunpack.c.l.b16 %v278
        %v659 = vunpack.c.l.b16 %v279
        %v660 = vunpack.c.h.b16 %v279
        %v661 = vunpack.c.l.b16 %v280
        %v662 = vunpack.c.l.b16 %v281
        %v663 = vunpack.c.h.b16 %v281
        %v664 = vunpack.c.l.b16 %v282
        %v665 = vunpack.c.l.b16 %v283
        %v666 = vunpack.c.h.b16 %v283
        %v667 = vunpack.c.l.b16 %v284
        %v668 = vunpack.c.l.b16 %v285
        %v669 = vunpack.c.h.b16 %v285
        %v670 = vunpack.c.l.b16 %v286
        %v671 = vunpack.c.l.b16 %v287
        %v672 = vunpack.c.h.b16 %v287
        %v673 = vunpack.c.l.b16 %v288
        %v674 = vunpack.c.l.b16 %v289
        %v675 = vunpack.c.h.b16 %v289
        %v676 = vunpack.c.l.b16 %v290
        %v677 = vunpack.c.l.b16 %v291
        %v678 = vunpack.c.h.b16 %v291
        %v679 = vunpack.c.l.b16 %v292
        %v680 = vunpack.c.l.b16 %v293
        %v681 = vunpack.c.h.b16 %v293
        %v682 = vunpack.c.l.b16 %v294
        %v683 = vunpack.c.l.b16 %v295
        %v684 = vunpack.c.h.b16 %v295
        %v685 = vunpack.c.l.b16 %v296
        %v686 = vunpack.c.l.b16 %v297
        %v687 = vunpack.c.h.b16 %v297
        %v688 = vunpack.c.l.b16 %v298
        %v689 = vunpack.c.l.b16 %v299
        %v690 = vunpack.c.h.b16 %v299
        %v691 = vunpack.c.l.b16 %v300
        %v692 = vunpack.c.l.b16 %v301
        %v693 = vunpack.c.h.b16 %v301
        %v694 = vunpack.c.l.b16 %v302
        %v695 = vunpack.c.l.b16 %v303
        %v696 = vunpack.c.h.b16 %v303
        %v697 = vunpack.c.l.b16 %v304
        %v698 = vunpack.c.l.b16 %v305
        %v699 = vunpack.c.h.b16 %v305
        %v700 = vunpack.c.l.b16 %v306
        %v701 = vunpack.c.l.b16 %v307
        %v702 = vunpack.c.h.b16 %v307
        %v703 = vunpack.c.l.b16 %v308
        %v704 = vunpack.c.l.b16 %v309
        %v705 = vunpack.c.h.b16 %v309
        %v706 = vunpack.c.l.b16 %v310
        %v707 = vunpack.c.l.b16 %v311
        %v708 = vunpack.c.h.b16 %v311
        %v709 = vunpack.c.l.b16 %v312
        %v710 = vunpack.c.l.b16 %v313
        %v711 = vunpack.c.h.b16 %v313
        %v712 = vunpack.c.l.b16 %v314
        %v713 = vunpack.c.l.b16 %v315
        %v714 = vunpack.c.h.b16 %v315
        %v715 = vunpack.c.l.b16 %v316
        %v716 = vunpack.c.l.b16 %v317
        %v717 = vunpack.c.h.b16 %v317
        %v718 = vunpack.c.l.b16 %v318
        %v719 = vunpack.c.l.b16 %v319
        %v720 = vunpack.c.h.b16 %v319
        %v721 = vunpack.c.l.b16 %v320
        %v722 = vunpack.c.l.b16 %v321
        %v723 = vunpack.c.h.b16 %v321
        %v724 = vunpack.c.l.b16 %v322
        %v725 = vunpack.c.l.b16 %v323
        %v726 = vunpack.c.h.b16 %v323
        %v727 = vunpack.c.l.b16 %v324
        %v728 = vunpack.c.l.b16 %v325
        %v729 = vunpack.c.h.b16 %v325
        %v730 = vunpack.c.l.b16 %v326
        %v731 = vunpack.c.l.b16 %v327
        %v732 = vunpack.c.h.b16 %v327
        %v733 = vunpack.c.l.b16 %v328
        %v734 = vunpack.c.l.b16 %v329
        %v735 = vunpack.c.h.b16 %v329
        %v736 = vunpack.c.l.b16 %v330
        %v737 = vunpack.c.l.b16 %v331
        %v738 = vunpack.c.h.b16 %v331
        %v739 = vunpack.c.l.b16 %v332
        %v740 = vunpack.c.l.b16 %v333
        %v741 = vunpack.c.h.b16 %v333
        %v742 = vunpack.c.l.b16 %v334
        %v743 = vunpack.c.l.b16 %v335
        %v744 = vunpack.c.h.b16 %v335
        %v745 = vunpack.c.l.b16 %v336
        %v746 = vunpack.c.l.b16 %v337
        %v747 = vunpack.c.h.b16 %v337
        %v748 = vunpack.c.l.b16 %v338
        %v749 = vunpack.c.l.b16 %v339
        %v750 = vunpack.c.h.b16 %v339
        %v751 = vunpack.c.l.b16 %v340
        %v752 = vunpack.c.l.b16 %v341
        %v753 = vunpack.c.h.b16 %v341
        %v754 = vunpack.c.l.b16 %v342
        %v755 = vunpack.c.l.b16 %v343
        %v756 = vunpack.c.h.b16 %v343
        %v757 = vunpack.c.l.b16 %v344
        %v758 = vunpack.c.l.b16 %v345
        %v759 = vunpack.c.h.b16 %v345
        %v760 = vunpack.c.l.b16 %v346
        %v761 = vunpack.c.l.b16 %v347
        %v762 = vunpack.c.h.b16 %v347
        %v763 = vunpack.c.l.b16 %v348
        %v764 = vunpack.c.l.b16 %v349
        %v765 = vunpack.c.h.b16 %v349
        %v766 = vunpack.c.l.b16 %v350
        %v767 = vunpack.c.l.b16 %v351
        %v768 = vunpack.c.h.b16 %v351
        %v769 = vunpack.c.l.b16 %v352
        %v770 = vunpack.c.l.b16 %v353
        %v771 = vunpack.c.h.b16 %v353
        %v772 = vunpack.c.l.b16 %v354
        %v773 = vunpack.c.l.b16 %v355
        %v774 = vunpack.c.h.b16 %v355
        %v775 = vunpack.c.l.b16 %v356
        %v776 = vunpack.c.l.b16 %v357
        %v777 = vunpack.c.h.b16 %v357
        %v778 = vunpack.c.l.b16 %v358
        %v779 = vunpack.c.l.b16 %v359
        %v780 = vunpack.c.h.b16 %v359
        %v781 = vunpack.c.l.b16 %v360
        %v782 = vunpack.c.l.b16 %v361
        %v783 = vunpack.c.h.b16 %v361
        %v784 = vunpack.c.l.b16 %v362
        %v785 = vunpack.c.l.b16 %v363
        %v786 = vunpack.c.h.b16 %v363
        %v787 = vunpack.c.l.b16 %v364
        %v788 = vpack.c.b16 %v551, %v548
        %v789 = vpack.c.b16 %v552, %v549
        %v790 = vpack.c.b16 %v553, %v550
        %v791 = vpack.c.b16 %v557, %v554
        %v792 = vpack.c.b16 %v558, %v555
        %v793 = vpack.c.b16 %v559, %v556
        %v794 = vpack.c.b16 %v563, %v560
        %v795 = vpack.c.b16 %v564, %v561
        %v796 = vpack.c.b16 %v565, %v562
        %v797 = vpack.c.b16 %v569, %v566
        %v798 = vpack.c.b16 %v570, %v567
        %v799 = vpack.c.b16 %v571, %v568
        %v800 = vpack.c.b16 %v575, %v572
        %v801 = vpack.c.b16 %v576, %v573
        %v802 = vpack.c.b16 %v577, %v574
        %v803 = vpack.c.b16 %v581, %v578
        %v804 = vpack.c.b16 %v582, %v579
        %v805 = vpack.c.b16 %v583, %v580
        %v806 = vpack.c.b16 %v587, %v584
        %v807 = vpack.c.b16 %v588, %v585
        %v808 = vpack.c.b16 %v589, %v586
        %v809 = vpack.c.b16 %v593, %v590
        %v810 = vpack.c.b16 %v594, %v591
        %v811 = vpack.c.b16 %v595, %v592
        %v812 = vpack.c.b16 %v599, %v596
        %v813 = vpack.c.b16 %v600, %v597
        %v814 = vpack.c.b16 %v601, %v598
        %v815 = vpack.c.b16 %v605, %v602
        %v816 = vpack.c.b16 %v606, %v603
        %v817 = vpack.c.b16 %v607, %v604
        %v818 = vpack.c.b16 %v611, %v608
        %v819 = vpack.c.b16 %v612, %v609
        %v820 = vpack.c.b16 %v613, %v610
        %v821 = vpack.c.b16 %v617, %v614
        %v822 = vpack.c.b16 %v618, %v615
        %v823 = vpack.c.b16 %v619, %v616
        %v824 = vpack.c.b16 %v623, %v620
        %v825 = vpack.c.b16 %v624, %v621
        %v826 = vpack.c.b16 %v625, %v622
        %v827 = vpack.c.b16 %v629, %v626
        %v828 = vpack.c.b16 %v630, %v627
        %v829 = vpack.c.b16 %v631, %v628
        %v830 = vpack.c.b16 %v635, %v632
        %v831 = vpack.c.b16 %v636, %v633
        %v832 = vpack.c.b16 %v637, %v634
        %v833 = vpack.c.b16 %v641, %v638
        %v834 = vpack.c.b16 %v642, %v639
        %v835 = vpack.c.b16 %v643, %v640
        %v836 = vpack.c.b16 %v647, %v644
        %v837 = vpack.c.b16 %v648, %v645
        %v838 = vpack.c.b16 %v649, %v646
        %v839 = vpack.c.b16 %v653, %v650
        %v840 = vpack.c.b16 %v654, %v651
        %v841 = vpack.c.b16 %v655, %v652
        %v842 = vpack.c.b16 %v659, %v656
        %v843 = vpack.c.b16 %v660, %v657
        %v844 = vpack.c.b16 %v661, %v658
        %v845 = vpack.c.b16 %v665, %v662
        %v846 = vpack.c.b16 %v666, %v663
        %v847 = vpack.c.b16 %v667, %v664
        %v848 = vpack.c.b16 %v671, %v668
        %v849 = vpack.c.b16 %v672, %v669
        %v850 = vpack.c.b16 %v673, %v670
        %v851 = vpack.c.b16 %v677, %v674
        %v852 = vpack.c.b16 %v678, %v675
        %v853 = vpack.c.b16 %v679, %v676
        %v854 = vpack.c.b16 %v683, %v680
        %v855 = vpack.c.b16 %v684, %v681
        %v856 = vpack.c.b16 %v685, %v682
        %v857 = vpack.c.b16 %v689, %v686
        %v858 = vpack.c.b16 %v690, %v687
        %v859 = vpack.c.b16 %v691, %v688
        %v860 = vpack.c.b16 %v695, %v692
        %v861 = vpack.c.b16 %v696, %v693
        %v862 = vpack.c.b16 %v697, %v694
        %v863 = vpack.c.b16 %v701, %v698
        %v864 = vpack.c.b16 %v702, %v699
        %v865 = vpack.c.b16 %v703, %v700
        %v866 = vpack.c.b16 %v707, %v704
        %v867 = vpack.c.b16 %v708, %v705
        %v868 = vpack.c.b16 %v709, %v706
        %v869 = vpack.c.b16 %v713, %v710
        %v870 = vpack.c.b16 %v714, %v711
        %v871 = vpack.c.b16 %v715, %v712
        %v872 = vpack.c.b16 %v719, %v716
        %v873 = vpack.c.b16 %v720, %v717
        %v874 = vpack.c.b16 %v721, %v718
        %v875 = vpack.c.b16 %v725, %v722
        %v876 = vpack.c.b16 %v726, %v723
        %v877 = vpack.c.b16 %v727, %v724
        %v878 = vpack.c.b16 %v731, %v728
        %v879 = vpack.c.b16 %v732, %v729
        %v880 = vpack.c.b16 %v733, %v730
        %v881 = vpack.c.b16 %v737, %v734
        %v882 = vpack.c.b16 %v738, %v735
        %v883 = vpack.c.b16 %v739, %v736
        %v884 = vpack.c.b16 %v743, %v740
        %v885 = vpack.c.b16 %v744, %v741
        %v886 = vpack.c.b16 %v745, %v742
        %v887 = vpack.c.b16 %v749, %v746
        %v888 = vpack.c.b16 %v750, %v747
        %v889 = vpack.c.b16 %v751, %v748
        %v890 = vpack.c.b16 %v755, %v752
        %v891 = vpack.c.b16 %v756, %v753
        %v892 = vpack.c.b16 %v757, %v754
        %v893 = vpack.c.b16 %v761, %v758
        %v894 = vpack.c.b16 %v762, %v759
        %v895 = vpack.c.b16 %v763, %v760
        %v896 = vpack.c.b16 %v767, %v764
        %v897 = vpack.c.b16 %v768, %v765
        %v898 = vpack.c.b16 %v769, %v766
        %v899 = vpack.c.b16 %v773, %v770
        %v900 = vpack.c.b16 %v774, %v771
        %v901 = vpack.c.b16 %v775, %v772
        %v902 = vpack.c.b16 %v779, %v776
        %v903 = vpack.c.b16 %v780, %v777
        %v904 = vpack.c.b16 %v781, %v778
        %v905 = vpack.c.b16 %v785, %v782
        %v906 = vpack.c.b16 %v786, %v783
        %v907 = vpack.c.b16 %v787, %v784
        %1028 = vmatpush.bf16.msra.mxu0 %v809
        %1029 = vmatpush.bf16.msra.mxu0 %v806
        %1030 = vmatpush.bf16.msra.mxu0 %v803
        %1031 = vmatpush.bf16.msra.mxu0 %v800
        %1032 = vmatpush.bf16.msra.mxu0 %v797
        %1033 = vmatpush.bf16.msra.mxu0 %v794
        %1034 = vmatpush.bf16.msra.mxu0 %v791
        %1035 = vmatpush.bf16.msra.mxu0 %v788
        %1036 = vmatmul.bf16.gmra.mxu0 %v378
        %v1037 = vpop.f32.mrf.mxu0
        %v1038 = vadd.f32 %v367, %v1037
        %v1039 = vpop.f32.mrf.mxu0
        %1040 = vdwg.mxu0
        %1041 = vmatpush.bf16.msra.mxu0 %v833
        %1042 = vmatpush.bf16.msra.mxu0 %v830
        %1043 = vmatpush.bf16.msra.mxu0 %v827
        %1044 = vmatpush.bf16.msra.mxu0 %v824
        %1045 = vmatpush.bf16.msra.mxu0 %v821
        %1046 = vmatpush.bf16.msra.mxu0 %v818
        %1047 = vmatpush.bf16.msra.mxu0 %v815
        %1048 = vmatpush.bf16.msra.mxu0 %v812
        %1049 = vmatmul.bf16.gmra.mxu0 %v379
        %v1050 = vpop.f32.mrf.mxu0
        %v1051 = vadd.f32 %v1038, %v1050
        %v1052 = vpop.f32.mrf.mxu0
        %1053 = vdwg.mxu0
        %1054 = vmatpush.bf16.msra.mxu0 %v857
        %1055 = vmatpush.bf16.msra.mxu0 %v854
        %1056 = vmatpush.bf16.msra.mxu0 %v851
        %1057 = vmatpush.bf16.msra.mxu0 %v848
        %1058 = vmatpush.bf16.msra.mxu0 %v845
        %1059 = vmatpush.bf16.msra.mxu0 %v842
        %1060 = vmatpush.bf16.msra.mxu0 %v839
        %1061 = vmatpush.bf16.msra.mxu0 %v836
        %1062 = vmatmul.bf16.gmra.mxu0 %v380
        %v1063 = vpop.f32.mrf.mxu0
        %v1064 = vadd.f32 %v1051, %v1063
        %v1065 = vpop.f32.mrf.mxu0
        %1066 = vdwg.mxu0
        %1067 = vmatpush.bf16.msra.mxu0 %v881
        %1068 = vmatpush.bf16.msra.mxu0 %v878
        %1069 = vmatpush.bf16.msra.mxu0 %v875
        %1070 = vmatpush.bf16.msra.mxu0 %v872
        %1071 = vmatpush.bf16.msra.mxu0 %v869
        %1072 = vmatpush.bf16.msra.mxu0 %v866
        %1073 = vmatpush.bf16.msra.mxu0 %v863
        %1074 = vmatpush.bf16.msra.mxu0 %v860
        %1075 = vmatmul.bf16.gmra.mxu0 %v381
        %v1076 = vpop.f32.mrf.mxu0
        %v1077 = vadd.f32 %v1064, %v1076
        %v1078 = vpop.f32.mrf.mxu0
        %1079 = vdwg.mxu0
        %1080 = vmatpush.bf16.msra.mxu0 %v905
        %1081 = vmatpush.bf16.msra.mxu0 %v902
        %1082 = vmatpush.bf16.msra.mxu0 %v899
        %1083 = vmatpush.bf16.msra.mxu0 %v896
        %1084 = vmatpush.bf16.msra.mxu0 %v893
        %1085 = vmatpush.bf16.msra.mxu0 %v890
        %1086 = vmatpush.bf16.msra.mxu0 %v887
        %1087 = vmatpush.bf16.msra.mxu0 %v884
        %1088 = vmatmul.bf16.gmra.mxu0 %v382
        %v1089 = vpop.f32.mrf.mxu0
        %v1090 = vadd.f32 %v1077, %v1089
        %v1091 = vpop.f32.mrf.mxu0
        %1092 = vdwg.mxu0
        %1093 = vmatpush.bf16.msra.mxu0 %v810
        %1094 = vmatpush.bf16.msra.mxu0 %v807
        %1095 = vmatpush.bf16.msra.mxu0 %v804
        %1096 = vmatpush.bf16.msra.mxu0 %v801
        %1097 = vmatpush.bf16.msra.mxu0 %v798
        %1098 = vmatpush.bf16.msra.mxu0 %v795
        %1099 = vmatpush.bf16.msra.mxu0 %v792
        %1100 = vmatpush.bf16.msra.mxu0 %v789
        %1101 = vmatmul.bf16.gmra.mxu0 %v378
        %v1102 = vpop.f32.mrf.mxu0
        %v1103 = vadd.f32 %v368, %v1102
        %v1104 = vpop.f32.mrf.mxu0
        %1105 = vdwg.mxu0
        %1106 = vmatpush.bf16.msra.mxu0 %v834
        %1107 = vmatpush.bf16.msra.mxu0 %v831
        %1108 = vmatpush.bf16.msra.mxu0 %v828
        %1109 = vmatpush.bf16.msra.mxu0 %v825
        %1110 = vmatpush.bf16.msra.mxu0 %v822
        %1111 = vmatpush.bf16.msra.mxu0 %v819
        %1112 = vmatpush.bf16.msra.mxu0 %v816
        %1113 = vmatpush.bf16.msra.mxu0 %v813
        %1114 = vmatmul.bf16.gmra.mxu0 %v379
        %v1115 = vpop.f32.mrf.mxu0
        %v1116 = vadd.f32 %v1103, %v1115
        %v1117 = vpop.f32.mrf.mxu0
        %1118 = vdwg.mxu0
        %1119 = vmatpush.bf16.msra.mxu0 %v858
        %1120 = vmatpush.bf16.msra.mxu0 %v855
        %1121 = vmatpush.bf16.msra.mxu0 %v852
        %1122 = vmatpush.bf16.msra.mxu0 %v849
        %1123 = vmatpush.bf16.msra.mxu0 %v846
        %1124 = vmatpush.bf16.msra.mxu0 %v843
        %1125 = vmatpush.bf16.msra.mxu0 %v840
        %1126 = vmatpush.bf16.msra.mxu0 %v837
        %1127 = vmatmul.bf16.gmra.mxu0 %v380
        %v1128 = vpop.f32.mrf.mxu0
        %v1129 = vadd.f32 %v1116, %v1128
        %v1130 = vpop.f32.mrf.mxu0
        %1131 = vdwg.mxu0
        %1132 = vmatpush.bf16.msra.mxu0 %v882
        %1133 = vmatpush.bf16.msra.mxu0 %v879
        %1134 = vmatpush.bf16.msra.mxu0 %v876
        %1135 = vmatpush.bf16.msra.mxu0 %v873
        %1136 = vmatpush.bf16.msra.mxu0 %v870
        %1137 = vmatpush.bf16.msra.mxu0 %v867
        %1138 = vmatpush.bf16.msra.mxu0 %v864
        %1139 = vmatpush.bf16.msra.mxu0 %v861
        %1140 = vmatmul.bf16.gmra.mxu0 %v381
        %v1141 = vpop.f32.mrf.mxu0
        %v1142 = vadd.f32 %v1129, %v1141
        %v1143 = vpop.f32.mrf.mxu0
        %1144 = vdwg.mxu0
        %1145 = vmatpush.bf16.msra.mxu0 %v906
        %1146 = vmatpush.bf16.msra.mxu0 %v903
        %1147 = vmatpush.bf16.msra.mxu0 %v900
        %1148 = vmatpush.bf16.msra.mxu0 %v897
        %1149 = vmatpush.bf16.msra.mxu0 %v894
        %1150 = vmatpush.bf16.msra.mxu0 %v891
        %1151 = vmatpush.bf16.msra.mxu0 %v888
        %1152 = vmatpush.bf16.msra.mxu0 %v885
        %1153 = vmatmul.bf16.gmra.mxu0 %v382
        %v1154 = vpop.f32.mrf.mxu0
        %v1155 = vadd.f32 %v1142, %v1154
        %v1156 = vpop.f32.mrf.mxu0
        %1157 = vdwg.mxu0
        %1158 = vmatpush.bf16.msra.mxu0 %v811
        %1159 = vmatpush.bf16.msra.mxu0 %v808
        %1160 = vmatpush.bf16.msra.mxu0 %v805
        %1161 = vmatpush.bf16.msra.mxu0 %v802
        %1162 = vmatpush.bf16.msra.mxu0 %v799
        %1163 = vmatpush.bf16.msra.mxu0 %v796
        %1164 = vmatpush.bf16.msra.mxu0 %v793
        %1165 = vmatpush.bf16.msra.mxu0 %v790
        %1166 = vmatmul.bf16.gmra.mxu0 %v378
        %v1167 = vpop.f32.mrf.mxu0
        %v1168 = vadd.f32 %v369, %v1167
        %v1169 = vpop.f32.mrf.mxu0
        %1170 = vdwg.mxu0
        %1171 = vmatpush.bf16.msra.mxu0 %v835
        %1172 = vmatpush.bf16.msra.mxu0 %v832
        %1173 = vmatpush.bf16.msra.mxu0 %v829
        %1174 = vmatpush.bf16.msra.mxu0 %v826
        %1175 = vmatpush.bf16.msra.mxu0 %v823
        %1176 = vmatpush.bf16.msra.mxu0 %v820
        %1177 = vmatpush.bf16.msra.mxu0 %v817
        %1178 = vmatpush.bf16.msra.mxu0 %v814
        %1179 = vmatmul.bf16.gmra.mxu0 %v379
        %v1180 = vpop.f32.mrf.mxu0
        %v1181 = vadd.f32 %v1168, %v1180
        %v1182 = vpop.f32.mrf.mxu0
        %1183 = vdwg.mxu0
        %1184 = vmatpush.bf16.msra.mxu0 %v859
        %1185 = vmatpush.bf16.msra.mxu0 %v856
        %1186 = vmatpush.bf16.msra.mxu0 %v853
        %1187 = vmatpush.bf16.msra.mxu0 %v850
        %1188 = vmatpush.bf16.msra.mxu0 %v847
        %1189 = vmatpush.bf16.msra.mxu0 %v844
        %1190 = vmatpush.bf16.msra.mxu0 %v841
        %1191 = vmatpush.bf16.msra.mxu0 %v838
        %1192 = vmatmul.bf16.gmra.mxu0 %v380
        %v1193 = vpop.f32.mrf.mxu0
        %v1194 = vadd.f32 %v1181, %v1193
        %v1195 = vpop.f32.mrf.mxu0
        %1196 = vdwg.mxu0
        %1197 = vmatpush.bf16.msra.mxu0 %v883
        %1198 = vmatpush.bf16.msra.mxu0 %v880
        %1199 = vmatpush.bf16.msra.mxu0 %v877
        %1200 = vmatpush.bf16.msra.mxu0 %v874
        %1201 = vmatpush.bf16.msra.mxu0 %v871
        %1202 = vmatpush.bf16.msra.mxu0 %v868
        %1203 = vmatpush.bf16.msra.mxu0 %v865
        %1204 = vmatpush.bf16.msra.mxu0 %v862
        %1205 = vmatmul.bf16.gmra.mxu0 %v381
        %v1206 = vpop.f32.mrf.mxu0
        %v1207 = vadd.f32 %v1194, %v1206
        %v1208 = vpop.f32.mrf.mxu0
        %1209 = vdwg.mxu0
        %1210 = vmatpush.bf16.msra.mxu0 %v907
        %1211 = vmatpush.bf16.msra.mxu0 %v904
        %1212 = vmatpush.bf16.msra.mxu0 %v901
        %1213 = vmatpush.bf16.msra.mxu0 %v898
        %1214 = vmatpush.bf16.msra.mxu0 %v895
        %1215 = vmatpush.bf16.msra.mxu0 %v892
        %1216 = vmatpush.bf16.msra.mxu0 %v889
        %1217 = vmatpush.bf16.msra.mxu0 %v886
        %1218 = vmatmul.bf16.gmra.mxu0 %v382
        %v1219 = vpop.f32.mrf.mxu0
        %v1220 = vadd.f32 %v1207, %v1219
        %v1221 = vpop.f32.mrf.mxu0
        %1222 = vdwg.mxu0
        %v1225 = vrot.slane %v1155, 4
        %vm1226 = vcmask 1043456
        %v1227 = vsel %vm1226, %v1090, %v1225
        %1229 = vst [vmem:[%s202] sm:$0xff] %v1227
        %1230 = vst [vmem:[%s202 + $0x8] sm:$0xf] %v1220
        %p1231 = scmp.lt.s32.totalorder %s16, 1
        %s1232 = scalar_select %p1231, %s16, 1
        %s1233 = smul.addr %s1232, 3
        %s1234 = smul.addr %s1233, 4
        %s1235 = scalar_lea.vmem %s3, %s1234
        // Predicated region
        $region41: #{dinov2_forward.2} parent=31 // pred_check
          %p1236 = pneg %p102
        $region42: #{dinov2_forward.2} parent=31 // pred_check_branch
          %1238 = sbr.rel (%p1236) target = $region44
        $region43: #{dinov2_forward.2} parent=31 // pred_region
          _
        $region44: #{dinov2_forward.2} parent=31 // pred_fallthru
          _
      $region32: #{dinov2_forward.2} parent=5 // pred_fallthru
        _
      %p1239 = scmp.le.s32.totalorder 2, %s11
      // Predicated region
      $region45: #{dinov2_forward.2} parent=5 // pred_check
        %p1240 = pneg %p1239
      $region46: #{dinov2_forward.2} parent=5 // pred_check_branch
        %1242 = sbr.rel (%p1240) target = $region48
      $region47: #{dinov2_forward.2} parent=5 // pred_region
        %s1243 = ssub.s32 %s11, 2
        // Predicated region
        $region49: #{dinov2_forward.2} parent=47 // pred_check
          %p1244 = pneg %p108
        $region50: #{dinov2_forward.2} parent=47 // pred_check_branch
          %1246 = sbr.rel (%p1244) target = $region52
        $region51: #{dinov2_forward.2} parent=47 // pred_region
          %p1247 = scmp.lt.s32.totalorder %s17, 1
          %s1248 = scalar_select %p1247, %s17, 1
          %s1249 = smul.addr %s1248, 3
          %s1250 = smul.addr %s1249, 4
          %s1251 = scalar_lea.vmem %s3, %s1250
        $region52: #{dinov2_forward.2} parent=47 // pred_fallthru
          _
      $region48: #{dinov2_forward.2} parent=5 // pred_fallthru
        _
    $region6: #{dinov2_forward.2} parent=1 // loop_footer
      %s15 = sadd.s32 1, %s11
    $region7: #{dinov2_forward.2} parent=1 // loop_footer_branch
      %10 = sbr.rel target = $region3
    $region8: #{dinov2_forward.2} parent=1 // loop_exit
      _
    %1252 = vsyncpa [#allocation3], 1
    %s1253 = scalar_lea.sflag [#allocation3], 1
    %1254 = vsyncpa %s1253, 1
    %1255 = vsyncpa [#allocation5], 1

// kernel: dinov2_forward.3
$region0: #{dinov2_forward.3}
  #allocation0 [shape = 'u32[]', space=smem, size = 0x4, offset = 0x4, fixed_abs, tag = 'smem constant byte address 0x4 - core index']
  #allocation1 [shape = 'u32[72,128]{1,0:T(1,128)}', space=vmem, size = 0x9000, scoped, tag = 'internal scratch']
  %s0 = inlined_call_operand.vmem [shape: f32[2,16,384], index: 0, kind: input, shape index: {}]
  %s1 = inlined_call_operand.vmem [shape: f32[1,16], index: 1, kind: input, shape index: {}]
  %s2 = inlined_call_operand.hbm [shape: f32[12,1,384], index: 2, kind: input, shape index: {}]
  %s3 = inlined_call_operand.hbm [shape: f32[12,1,384], index: 3, kind: input, shape index: {}]
  %s4 = inlined_call_operand.hbm [shape: bf16[12,384,1152], index: 4, kind: input, shape index: {}]
  %s5 = inlined_call_operand.hbm [shape: f32[12,1,1152], index: 5, kind: input, shape index: {}]
  %s6 = inlined_call_operand.hbm [shape: bf16[12,384,384], index: 6, kind: input, shape index: {}]
  %s7 = inlined_call_operand.hbm [shape: f32[12,1,384], index: 7, kind: input, shape index: {}]
  %s8 = inlined_call_operand.hbm [shape: f32[12,1,384], index: 8, kind: input, shape index: {}]
  %s9 = inlined_call_operand.hbm [shape: f32[12,1,384], index: 9, kind: input, shape index: {}]
  %s10 = inlined_call_operand.hbm [shape: bf16[12,384,1536], index: 10, kind: input, shape index: {}]
  %s11 = inlined_call_operand.hbm [shape: f32[12,1,1536], index: 11, kind: input, shape index: {}]
  %s12 = inlined_call_operand.hbm [shape: bf16[12,1536,384], index: 12, kind: input, shape index: {}]
  %s13 = inlined_call_operand.hbm [shape: f32[12,1,384], index: 13, kind: input, shape index: {}]
  %s14 = inlined_call_operand.hbm [shape: f32[1,384], index: 14, kind: input, shape index: {}]
  %s15 = inlined_call_operand.hbm [shape: f32[1,384], index: 15, kind: input, shape index: {}]
  %s16 = inlined_call_operand.vmem [shape: f32[2,16,384], index: 16, kind: output, shape index: {}]
  %s17 = sld [smem:[#allocation0]]
  $region165: #{dinov2_forward.3} parent=0
    _
  %s19 = ssub.s32 1, %s17
  %s20 = scalar_select 0, %s19, %s17
  $region1: #{dinov2_forward.3} parent=0
    #allocation2 [shape = 'u8[3072]{0}', space=vmem, size = 0xc00, scoped, tag = 'input window, operand 2']
    #allocation3 [shape = 's32[2]{0}', space=sflag, size = 0x8, scoped, tag = 'scoped memory for dinov2_forward.3']
    #allocation4 [shape = 'u8[3072]{0}', space=vmem, size = 0xc00, scoped, tag = 'input window, operand 3']
    #allocation5 [shape = 's32[2]{0}', space=sflag, size = 0x8, scoped, tag = 'scoped memory for dinov2_forward.3']
    #allocation6 [shape = 'u8[1769472]{0}', space=vmem, size = 0x1b0000, scoped, tag = 'input window, operand 4']
    #allocation7 [shape = 'u8[9216]{0}', space=vmem, size = 0x2400, scoped, tag = 'input window, operand 5']
    #allocation8 [shape = 's32[2]{0}', space=sflag, size = 0x8, scoped, tag = 'scoped memory for dinov2_forward.3']
    #allocation9 [shape = 'u8[589824]{0}', space=vmem, size = 0x90000, scoped, tag = 'input window, operand 6']
    #allocation10 [shape = 'u8[3072]{0}', space=vmem, size = 0xc00, scoped, tag = 'input window, operand 7']
    #allocation11 [shape = 's32[2]{0}', space=sflag, size = 0x8, scoped, tag = 'scoped memory for dinov2_forward.3']
    #allocation12 [shape = 'u8[3072]{0}', space=vmem, size = 0xc00, scoped, tag = 'input window, operand 8']
    #allocation13 [shape = 'u8[3072]{0}', space=vmem, size = 0xc00, scoped, tag = 'input window, operand 9']
    #allocation14 [shape = 's32[2]{0}', space=sflag, size = 0x8, scoped, tag = 'scoped memory for dinov2_forward.3']
    #allocation15 [shape = 'u8[2359296]{0}', space=vmem, size = 0x240000, scoped, tag = 'input window, operand 10']
    #allocation16 [shape = 'u8[12288]{0}', space=vmem, size = 0x3000, scoped, tag = 'input window, operand 11']
    #allocation17 [shape = 's32[2]{0}', space=sflag, size = 0x8, scoped, tag = 'scoped memory for dinov2_forward.3']
    #allocation18 [shape = 'u8[2359296]{0}', space=vmem, size = 0x240000, scoped, tag = 'input window, operand 12']
    #allocation19 [shape = 'u8[3072]{0}', space=vmem, size = 0xc00, scoped, tag = 'input window, operand 13']
    #allocation20 [shape = 's32[2]{0}', space=sflag, size = 0x8, scoped, tag = 'scoped memory for dinov2_forward.3']
    #allocation21 [shape = 'u8[1536]{0}', space=vmem, size = 0x800, scoped, tag = 'input window, operand 14, single buffered']
    #allocation22 [shape = 'u8[1536]{0}', space=vmem, size = 0x800, scoped, tag = 'input window, operand 15, single buffered']
    #allocation23 [shape = 's32[1]{0}', space=sflag, size = 0x4, scoped, tag = 'scoped memory for dinov2_forward.3']
    %21 = vsyncpa [#allocation3], 0
    %s22 = scalar_lea.sflag [#allocation3], 1
    %23 = vsyncpa %s22, 0
    %24 = vsyncpa [#allocation5], 0
    %s25 = scalar_lea.sflag [#allocation5], 1
    %26 = vsyncpa %s25, 0
    %27 = vsyncpa [#allocation8], 0
    %s28 = scalar_lea.sflag [#allocation8], 1
    %29 = vsyncpa %s28, 0
    %30 = vsyncpa [#allocation11], 0
    %s31 = scalar_lea.sflag [#allocation11], 1
    %32 = vsyncpa %s31, 0
    %33 = vsyncpa [#allocation14], 0
    %s34 = scalar_lea.sflag [#allocation14], 1
    %35 = vsyncpa %s34, 0
    %36 = vsyncpa [#allocation17], 0
    %s37 = scalar_lea.sflag [#allocation17], 1
    %38 = vsyncpa %s37, 0
    %39 = vsyncpa [#allocation20], 0
    %s40 = scalar_lea.sflag [#allocation20], 1
    %41 = vsyncpa %s40, 0
    %42 = vsyncpa [#allocation23], 0
    loop: start=0, step=1, limit=26
    $region2: #{dinov2_forward.3} parent=1 // loop_pre_header
      _
    $region3: #{dinov2_forward.3} parent=1 // loop_header
      %s44 = sphi 0, %s48
      %p45 = scmp.ge.s32.totalorder %s44, 26
      %s51 = sphi 0, %s63
      %s52 = sphi 0, %s59
      %s53 = sphi 0, %s51
      %s54 = sphi 0, %s52
      %s55 = sphi 0, %s53
      %s56 = sphi 0, %s54
      %s66 = sphi 0, %s68
      %s69 = sphi 0, %s66
      %s70 = sphi 0, %s69
      %s86 = sphi 0, %s70
      %s90 = sphi 0, %s90
      %s92 = sphi 0, %s90
      %s93 = sphi 0, %s92
      %s107 = sphi 0, %s93
      %s113 = sphi 0, %s115
      %s116 = sphi 0, %s113
      %s117 = sphi 0, %s116
      %s133 = sphi 0, %s117
      %s139 = sphi 0, %s141
      %s142 = sphi 0, %s139
      %s143 = sphi 0, %s142
      %s159 = sphi 0, %s143
      %s165 = sphi 0, %s167
      %s168 = sphi 0, %s165
      %s169 = sphi 0, %s168
      %s185 = sphi 0, %s169
      %s191 = sphi 0, %s193
      %s194 = sphi 0, %s191
      %s195 = sphi 0, %s194
      %s211 = sphi 0, %s195
      %s217 = sphi 0, %s219
      %s220 = sphi 0, %s217
      %s221 = sphi 0, %s220
      %s237 = sphi 0, %s221
      %s243 = sphi 0, %s245
      %s246 = sphi 0, %s243
      %s247 = sphi 0, %s246
      %s263 = sphi 0, %s247
      %s269 = sphi 0, %s271
      %s272 = sphi 0, %s269
      %s273 = sphi 0, %s272
      %s289 = sphi 0, %s273
      %s295 = sphi 0, %s297
      %s298 = sphi 0, %s295
      %s299 = sphi 0, %s298
      %s315 = sphi 0, %s299
      %s321 = sphi 0, %s323
      %s324 = sphi 0, %s321
      %s325 = sphi 0, %s324
      %s341 = sphi 0, %s325
      %s347 = sphi 0, %s349
      %s350 = sphi 0, %s347
      %s351 = sphi 0, %s350
      %s367 = sphi 0, %s351
      %s373 = sphi 0, %s375
      %s376 = sphi 0, %s373
      %s377 = sphi 0, %s376
      %s393 = sphi 0, %s377
      %s399 = sphi 0, %s401
      %s402 = sphi 0, %s399
      %s403 = sphi 0, %s402
      %s419 = sphi 0, %s403
      %s423 = sphi 0, %s423
      %s425 = sphi 0, %s423
      %s426 = sphi 0, %s425
      %s440 = sphi 0, %s426
      %s444 = sphi 0, %s444
      %s446 = sphi 0, %s444
      %s447 = sphi 0, %s446
      %s461 = sphi 0, %s447
      %s467 = sphi 0, %s469
      %s470 = sphi 0, %s467
      %s471 = sphi 0, %s470
      %s487 = sphi 0, %s471
    $region4: #{dinov2_forward.3} parent=1 // loop_header_branch
      %47 = sbr.rel (%p45) target = $region8
    $region5: #{dinov2_forward.3} parent=1 // loop_body
      %s49 = ssub.s32 %s44, 1
      %s50 = ssub.s32 %s44, 2
      %s57 = sadd.s32 1, %s52
      %p58 = scmp.ge.s32.totalorder %s57, 12
      %s59 = scalar_select %p58, 0, %s57
      %s60 = sadd.s32 1, %s51
      %s61 = scalar_select %p58, %s60, %s51
      %p62 = scmp.ge.s32.totalorder %s61, 2
      %s63 = scalar_select %p62, 0, %s61
      %s64 = ssub.s32 %s51, %s63
      %p65 = scmp.eq.s32.totalorder %s64, 0
      %s67 = sadd.s32 %s66, 1
      %s68 = scalar_select %p65, %s66, %s67
      %p71 = pneg %p65
      %p72 = scmp.eq.s32.totalorder %s44, 23
      %p73 = por %p71, %p72
      %p74 = scmp.ne.s32.totalorder %s66, %s69
      %p75 = scmp.eq.s32.totalorder %s44, 0
      %p76 = por %p74, %p75
      %p77 = scmp.ne.s32.totalorder %s66, %s69
      %p78 = scmp.eq.s32.totalorder %s49, 23
      %p79 = por %p77, %p78
      %p80 = scmp.ne.s32.totalorder %s69, %s70
      %p81 = scmp.eq.s32.totalorder %s49, 0
      %p82 = por %p80, %p81
      %p83 = scmp.ne.s32.totalorder %s69, %s70
      %p84 = scmp.eq.s32.totalorder %s50, 23
      %p85 = por %p83, %p84
      %p87 = scmp.ne.s32.totalorder %s70, %s86
      %p88 = scmp.eq.s32.totalorder %s50, 0
      %p89 = por %p87, %p88
      %s91 = sadd.s32 %s90, 1
      %p94 = scmp.eq.s32.totalorder %s44, 23
      %p95 = scmp.ne.s32.totalorder %s90, %s92
      %p96 = scmp.eq.s32.totalorder %s44, 0
      %p97 = por %p95, %p96
      %p98 = scmp.ne.s32.totalorder %s90, %s92
      %p99 = scmp.eq.s32.totalorder %s49, 23
      %p100 = por %p98, %p99
      %p101 = scmp.ne.s32.totalorder %s92, %s93
      %p102 = scmp.eq.s32.totalorder %s49, 0
      %p103 = por %p101, %p102
      %p104 = scmp.ne.s32.totalorder %s92, %s93
      %p105 = scmp.eq.s32.totalorder %s50, 23
      %p106 = por %p104, %p105
      %p108 = scmp.ne.s32.totalorder %s93, %s107
      %p109 = scmp.eq.s32.totalorder %s50, 0
      %p110 = por %p108, %p109
      %s111 = ssub.s32 %s52, %s59
      %p112 = scmp.eq.s32.totalorder %s111, 0
      %s114 = sadd.s32 %s113, 1
      %s115 = scalar_select %p112, %s113, %s114
      %p118 = pneg %p112
      %p119 = scmp.eq.s32.totalorder %s44, 23
      %p120 = por %p118, %p119
      %p121 = scmp.ne.s32.totalorder %s113, %s116
      %p122 = scmp.eq.s32.totalorder %s44, 0
      %p123 = por %p121, %p122
      %p124 = scmp.ne.s32.totalorder %s113, %s116
      %p125 = scmp.eq.s32.totalorder %s49, 23
      %p126 = por %p124, %p125
      %p127 = scmp.ne.s32.totalorder %s116, %s117
      %p128 = scmp.eq.s32.totalorder %s49, 0
      %p129 = por %p127, %p128
      %p130 = scmp.ne.s32.totalorder %s116, %s117
      %p131 = scmp.eq.s32.totalorder %s50, 23
      %p132 = por %p130, %p131
      %p134 = scmp.ne.s32.totalorder %s117, %s133
      %p135 = scmp.eq.s32.totalorder %s50, 0
      %p136 = por %p134, %p135
      %s137 = ssub.s32 %s52, %s59
      %p138 = scmp.eq.s32.totalorder %s137, 0
      %s140 = sadd.s32 %s139, 1
      %s141 = scalar_select %p138, %s139, %s140
      %p144 = pneg %p138
      %p145 = scmp.eq.s32.totalorder %s44, 23
      %p146 = por %p144, %p145
      %p147 = scmp.ne.s32.totalorder %s139, %s142
      %p148 = scmp.eq.s32.totalorder %s44, 0
      %p149 = por %p147, %p148
      %p150 = scmp.ne.s32.totalorder %s139, %s142
      %p151 = scmp.eq.s32.totalorder %s49, 23
      %p152 = por %p150, %p151
      %p153 = scmp.ne.s32.totalorder %s142, %s143
      %p154 = scmp.eq.s32.totalorder %s49, 0
      %p155 = por %p153, %p154
      %p156 = scmp.ne.s32.totalorder %s142, %s143
      %p157 = scmp.eq.s32.totalorder %s50, 23
      %p158 = por %p156, %p157
      %p160 = scmp.ne.s32.totalorder %s143, %s159
      %p161 = scmp.eq.s32.totalorder %s50, 0
      %p162 = por %p160, %p161
      %s163 = ssub.s32 %s52, %s59
      %p164 = scmp.eq.s32.totalorder %s163, 0
      %s166 = sadd.s32 %s165, 1
      %s167 = scalar_select %p164, %s165, %s166
      %p170 = pneg %p164
      %p171 = scmp.eq.s32.totalorder %s44, 23
      %p172 = por %p170, %p171
      %p173 = scmp.ne.s32.totalorder %s165, %s168
      %p174 = scmp.eq.s32.totalorder %s44, 0
      %p175 = por %p173, %p174
      %p176 = scmp.ne.s32.totalorder %s165, %s168
      %p177 = scmp.eq.s32.totalorder %s49, 23
      %p178 = por %p176, %p177
      %p179 = scmp.ne.s32.totalorder %s168, %s169
      %p180 = scmp.eq.s32.totalorder %s49, 0
      %p181 = por %p179, %p180
      %p182 = scmp.ne.s32.totalorder %s168, %s169
      %p183 = scmp.eq.s32.totalorder %s50, 23
      %p184 = por %p182, %p183
      %p186 = scmp.ne.s32.totalorder %s169, %s185
      %p187 = scmp.eq.s32.totalorder %s50, 0
      %p188 = por %p186, %p187
      %s189 = ssub.s32 %s52, %s59
      %p190 = scmp.eq.s32.totalorder %s189, 0
      %s192 = sadd.s32 %s191, 1
      %s193 = scalar_select %p190, %s191, %s192
      %p196 = pneg %p190
      %p197 = scmp.eq.s32.totalorder %s44, 23
      %p198 = por %p196, %p197
      %p199 = scmp.ne.s32.totalorder %s191, %s194
      %p200 = scmp.eq.s32.totalorder %s44, 0
      %p201 = por %p199, %p200
      %p202 = scmp.ne.s32.totalorder %s191, %s194
      %p203 = scmp.eq.s32.totalorder %s49, 23
      %p204 = por %p202, %p203
      %p205 = scmp.ne.s32.totalorder %s194, %s195
      %p206 = scmp.eq.s32.totalorder %s49, 0
      %p207 = por %p205, %p206
      %p208 = scmp.ne.s32.totalorder %s194, %s195
      %p209 = scmp.eq.s32.totalorder %s50, 23
      %p210 = por %p208, %p209
      %p212 = scmp.ne.s32.totalorder %s195, %s211
      %p213 = scmp.eq.s32.totalorder %s50, 0
      %p214 = por %p212, %p213
      %s215 = ssub.s32 %s52, %s59
      %p216 = scmp.eq.s32.totalorder %s215, 0
      %s218 = sadd.s32 %s217, 1
      %s219 = scalar_select %p216, %s217, %s218
      %p222 = pneg %p216
      %p223 = scmp.eq.s32.totalorder %s44, 23
      %p224 = por %p222, %p223
      %p225 = scmp.ne.s32.totalorder %s217, %s220
      %p226 = scmp.eq.s32.totalorder %s44, 0
      %p227 = por %p225, %p226
      %p228 = scmp.ne.s32.totalorder %s217, %s220
      %p229 = scmp.eq.s32.totalorder %s49, 23
      %p230 = por %p228, %p229
      %p231 = scmp.ne.s32.totalorder %s220, %s221
      %p232 = scmp.eq.s32.totalorder %s49, 0
      %p233 = por %p231, %p232
      %p234 = scmp.ne.s32.totalorder %s220, %s221
      %p235 = scmp.eq.s32.totalorder %s50, 23
      %p236 = por %p234, %p235
      %p238 = scmp.ne.s32.totalorder %s221, %s237
      %p239 = scmp.eq.s32.totalorder %s50, 0
      %p240 = por %p238, %p239
      %s241 = ssub.s32 %s52, %s59
      %p242 = scmp.eq.s32.totalorder %s241, 0
      %s244 = sadd.s32 %s243, 1
      %s245 = scalar_select %p242, %s243, %s244
      %p248 = pneg %p242
      %p249 = scmp.eq.s32.totalorder %s44, 23
      %p250 = por %p248, %p249
      %p251 = scmp.ne.s32.totalorder %s243, %s246
      %p252 = scmp.eq.s32.totalorder %s44, 0
      %p253 = por %p251, %p252
      %p254 = scmp.ne.s32.totalorder %s243, %s246
      %p255 = scmp.eq.s32.totalorder %s49, 23
      %p256 = por %p254, %p255
      %p257 = scmp.ne.s32.totalorder %s246, %s247
      %p258 = scmp.eq.s32.totalorder %s49, 0
      %p259 = por %p257, %p258
      %p260 = scmp.ne.s32.totalorder %s246, %s247
      %p261 = scmp.eq.s32.totalorder %s50, 23
      %p262 = por %p260, %p261
      %p264 = scmp.ne.s32.totalorder %s247, %s263
      %p265 = scmp.eq.s32.totalorder %s50, 0
      %p266 = por %p264, %p265
      %s267 = ssub.s32 %s52, %s59
      %p268 = scmp.eq.s32.totalorder %s267, 0
      %s270 = sadd.s32 %s269, 1
      %s271 = scalar_select %p268, %s269, %s270
      %p274 = pneg %p268
      %p275 = scmp.eq.s32.totalorder %s44, 23
      %p276 = por %p274, %p275
      %p277 = scmp.ne.s32.totalorder %s269, %s272
      %p278 = scmp.eq.s32.totalorder %s44, 0
      %p279 = por %p277, %p278
      %p280 = scmp.ne.s32.totalorder %s269, %s272
      %p281 = scmp.eq.s32.totalorder %s49, 23
      %p282 = por %p280, %p281
      %p283 = scmp.ne.s32.totalorder %s272, %s273
      %p284 = scmp.eq.s32.totalorder %s49, 0
      %p285 = por %p283, %p284
      %p286 = scmp.ne.s32.totalorder %s272, %s273
      %p287 = scmp.eq.s32.totalorder %s50, 23
      %p288 = por %p286, %p287
      %p290 = scmp.ne.s32.totalorder %s273, %s289
      %p291 = scmp.eq.s32.totalorder %s50, 0
      %p292 = por %p290, %p291
      %s293 = ssub.s32 %s52, %s59
      %p294 = scmp.eq.s32.totalorder %s293, 0
      %s296 = sadd.s32 %s295, 1
      %s297 = scalar_select %p294, %s295, %s296
      %p300 = pneg %p294
      %p301 = scmp.eq.s32.totalorder %s44, 23
      %p302 = por %p300, %p301
      %p303 = scmp.ne.s32.totalorder %s295, %s298
      %p304 = scmp.eq.s32.totalorder %s44, 0
      %p305 = por %p303, %p304
      %p306 = scmp.ne.s32.totalorder %s295, %s298
      %p307 = scmp.eq.s32.totalorder %s49, 23
      %p308 = por %p306, %p307
      %p309 = scmp.ne.s32.totalorder %s298, %s299
      %p310 = scmp.eq.s32.totalorder %s49, 0
      %p311 = por %p309, %p310
      %p312 = scmp.ne.s32.totalorder %s298, %s299
      %p313 = scmp.eq.s32.totalorder %s50, 23
      %p314 = por %p312, %p313
      %p316 = scmp.ne.s32.totalorder %s299, %s315
      %p317 = scmp.eq.s32.totalorder %s50, 0
      %p318 = por %p316, %p317
      %s319 = ssub.s32 %s52, %s59
      %p320 = scmp.eq.s32.totalorder %s319, 0
      %s322 = sadd.s32 %s321, 1
      %s323 = scalar_select %p320, %s321, %s322
      %p326 = pneg %p320
      %p327 = scmp.eq.s32.totalorder %s44, 23
      %p328 = por %p326, %p327
      %p329 = scmp.ne.s32.totalorder %s321, %s324
      %p330 = scmp.eq.s32.totalorder %s44, 0
      %p331 = por %p329, %p330
      %p332 = scmp.ne.s32.totalorder %s321, %s324
      %p333 = scmp.eq.s32.totalorder %s49, 23
      %p334 = por %p332, %p333
      %p335 = scmp.ne.s32.totalorder %s324, %s325
      %p336 = scmp.eq.s32.totalorder %s49, 0
      %p337 = por %p335, %p336
      %p338 = scmp.ne.s32.totalorder %s324, %s325
      %p339 = scmp.eq.s32.totalorder %s50, 23
      %p340 = por %p338, %p339
      %p342 = scmp.ne.s32.totalorder %s325, %s341
      %p343 = scmp.eq.s32.totalorder %s50, 0
      %p344 = por %p342, %p343
      %s345 = ssub.s32 %s52, %s59
      %p346 = scmp.eq.s32.totalorder %s345, 0
      %s348 = sadd.s32 %s347, 1
      %s349 = scalar_select %p346, %s347, %s348
      %p352 = pneg %p346
      %p353 = scmp.eq.s32.totalorder %s44, 23
      %p354 = por %p352, %p353
      %p355 = scmp.ne.s32.totalorder %s347, %s350
      %p356 = scmp.eq.s32.totalorder %s44, 0
      %p357 = por %p355, %p356
      %p358 = scmp.ne.s32.totalorder %s347, %s350
      %p359 = scmp.eq.s32.totalorder %s49, 23
      %p360 = por %p358, %p359
      %p361 = scmp.ne.s32.totalorder %s350, %s351
      %p362 = scmp.eq.s32.totalorder %s49, 0
      %p363 = por %p361, %p362
      %p364 = scmp.ne.s32.totalorder %s350, %s351
      %p365 = scmp.eq.s32.totalorder %s50, 23
      %p366 = por %p364, %p365
      %p368 = scmp.ne.s32.totalorder %s351, %s367
      %p369 = scmp.eq.s32.totalorder %s50, 0
      %p370 = por %p368, %p369
      %s371 = ssub.s32 %s52, %s59
      %p372 = scmp.eq.s32.totalorder %s371, 0
      %s374 = sadd.s32 %s373, 1
      %s375 = scalar_select %p372, %s373, %s374
      %p378 = pneg %p372
      %p379 = scmp.eq.s32.totalorder %s44, 23
      %p380 = por %p378, %p379
      %p381 = scmp.ne.s32.totalorder %s373, %s376
      %p382 = scmp.eq.s32.totalorder %s44, 0
      %p383 = por %p381, %p382
      %p384 = scmp.ne.s32.totalorder %s373, %s376
      %p385 = scmp.eq.s32.totalorder %s49, 23
      %p386 = por %p384, %p385
      %p387 = scmp.ne.s32.totalorder %s376, %s377
      %p388 = scmp.eq.s32.totalorder %s49, 0
      %p389 = por %p387, %p388
      %p390 = scmp.ne.s32.totalorder %s376, %s377
      %p391 = scmp.eq.s32.totalorder %s50, 23
      %p392 = por %p390, %p391
      %p394 = scmp.ne.s32.totalorder %s377, %s393
      %p395 = scmp.eq.s32.totalorder %s50, 0
      %p396 = por %p394, %p395
      %s397 = ssub.s32 %s52, %s59
      %p398 = scmp.eq.s32.totalorder %s397, 0
      %s400 = sadd.s32 %s399, 1
      %s401 = scalar_select %p398, %s399, %s400
      %p404 = pneg %p398
      %p405 = scmp.eq.s32.totalorder %s44, 23
      %p406 = por %p404, %p405
      %p407 = scmp.ne.s32.totalorder %s399, %s402
      %p408 = scmp.eq.s32.totalorder %s44, 0
      %p409 = por %p407, %p408
      %p410 = scmp.ne.s32.totalorder %s399, %s402
      %p411 = scmp.eq.s32.totalorder %s49, 23
      %p412 = por %p410, %p411
      %p413 = scmp.ne.s32.totalorder %s402, %s403
      %p414 = scmp.eq.s32.totalorder %s49, 0
      %p415 = por %p413, %p414
      %p416 = scmp.ne.s32.totalorder %s402, %s403
      %p417 = scmp.eq.s32.totalorder %s50, 23
      %p418 = por %p416, %p417
      %p420 = scmp.ne.s32.totalorder %s403, %s419
      %p421 = scmp.eq.s32.totalorder %s50, 0
      %p422 = por %p420, %p421
      %s424 = sadd.s32 %s423, 1
      %p427 = scmp.eq.s32.totalorder %s44, 23
      %p428 = scmp.ne.s32.totalorder %s423, %s425
      %p429 = scmp.eq.s32.totalorder %s44, 0
      %p430 = por %p428, %p429
      %p431 = scmp.ne.s32.totalorder %s423, %s425
      %p432 = scmp.eq.s32.totalorder %s49, 23
      %p433 = por %p431, %p432
      %p434 = scmp.ne.s32.totalorder %s425, %s426
      %p435 = scmp.eq.s32.totalorder %s49, 0
      %p436 = por %p434, %p435
      %p437 = scmp.ne.s32.totalorder %s425, %s426
      %p438 = scmp.eq.s32.totalorder %s50, 23
      %p439 = por %p437, %p438
      %p441 = scmp.ne.s32.totalorder %s426, %s440
      %p442 = scmp.eq.s32.totalorder %s50, 0
      %p443 = por %p441, %p442
      %s445 = sadd.s32 %s444, 1
      %p448 = scmp.eq.s32.totalorder %s44, 23
      %p449 = scmp.ne.s32.totalorder %s444, %s446
      %p450 = scmp.eq.s32.totalorder %s44, 0
      %p451 = por %p449, %p450
      %p452 = scmp.ne.s32.totalorder %s444, %s446
      %p453 = scmp.eq.s32.totalorder %s49, 23
      %p454 = por %p452, %p453
      %p455 = scmp.ne.s32.totalorder %s446, %s447
      %p456 = scmp.eq.s32.totalorder %s49, 0
      %p457 = por %p455, %p456
      %p458 = scmp.ne.s32.totalorder %s446, %s447
      %p459 = scmp.eq.s32.totalorder %s50, 23
      %p460 = por %p458, %p459
      %p462 = scmp.ne.s32.totalorder %s447, %s461
      %p463 = scmp.eq.s32.totalorder %s50, 0
      %p464 = por %p462, %p463
      %s465 = ssub.s32 %s51, %s63
      %p466 = scmp.eq.s32.totalorder %s465, 0
      %s468 = sadd.s32 %s467, 1
      %s469 = scalar_select %p466, %s467, %s468
      %p472 = pneg %p466
      %p473 = scmp.eq.s32.totalorder %s44, 23
      %p474 = por %p472, %p473
      %p475 = scmp.ne.s32.totalorder %s467, %s470
      %p476 = scmp.eq.s32.totalorder %s44, 0
      %p477 = por %p475, %p476
      %p478 = scmp.ne.s32.totalorder %s467, %s470
      %p479 = scmp.eq.s32.totalorder %s49, 23
      %p480 = por %p478, %p479
      %p481 = scmp.ne.s32.totalorder %s470, %s471
      %p482 = scmp.eq.s32.totalorder %s49, 0
      %p483 = por %p481, %p482
      %p484 = scmp.ne.s32.totalorder %s470, %s471
      %p485 = scmp.eq.s32.totalorder %s50, 23
      %p486 = por %p484, %p485
      %p488 = scmp.ne.s32.totalorder %s471, %s487
      %p489 = scmp.eq.s32.totalorder %s50, 0
      %p490 = por %p488, %p489
      %p491 = scmp.le.s32.totalorder 1, %s44
      %p492 = scmp.lt.s32.totalorder %s44, 25
      %p493 = pnand %p491, %p492
      %p494 = pneg %p493
      // Predicated region
      $region9: #{dinov2_forward.3} parent=5 // pred_check
        _
      $region10: #{dinov2_forward.3} parent=5 // pred_check_branch
        %496 = sbr.rel (%p493) target = $region12
      $region11: #{dinov2_forward.3} parent=5 // pred_region
        %s497 = ssub.s32 %s44, 1
        // Predicated region
        $region13: #{dinov2_forward.3} parent=11 // pred_check
          %p498 = pneg %p103
        $region14: #{dinov2_forward.3} parent=11 // pred_check_branch
          %500 = sbr.rel (%p498) target = $region16
        $region15: #{dinov2_forward.3} parent=11 // pred_region
          _
        $region16: #{dinov2_forward.3} parent=11 // pred_fallthru
          _
        // Predicated region
        $region17: #{dinov2_forward.3} parent=11 // pred_check
          %p501 = pneg %p436
        $region18: #{dinov2_forward.3} parent=11 // pred_check_branch
          %503 = sbr.rel (%p501) target = $region20
        $region19: #{dinov2_forward.3} parent=11 // pred_region
          %505 = vsyncadd [#allocation20], 0
          %s507 = sshll.u32 %s14, 4
          %s508 = int_to_ptr.hbm [resolvable:$true] %s507
          %s509 = sshll.u32 [#allocation21], 4
          %s510 = int_to_ptr.vmem [resolvable:$true] %s509
          %512 = dma.hbm_to_vmem [thread:$0]  %s508, 48, %s510, [#allocation20]
        $region20: #{dinov2_forward.3} parent=11 // pred_fallthru
          _
        // Predicated region
        $region21: #{dinov2_forward.3} parent=11 // pred_check
          %p513 = pneg %p457
        $region22: #{dinov2_forward.3} parent=11 // pred_check_branch
          %515 = sbr.rel (%p513) target = $region24
        $region23: #{dinov2_forward.3} parent=11 // pred_region
          %517 = vsyncadd [#allocation23], 0
          %s519 = sshll.u32 %s15, 4
          %s520 = int_to_ptr.hbm [resolvable:$true] %s519
          %s521 = sshll.u32 [#allocation22], 4
          %s522 = int_to_ptr.vmem [resolvable:$true] %s521
          %524 = dma.hbm_to_vmem [thread:$0]  %s520, 48, %s522, [#allocation23]
        $region24: #{dinov2_forward.3} parent=11 // pred_fallthru
          _
      $region12: #{dinov2_forward.3} parent=5 // pred_fallthru
        _
      %p525 = scmp.lt.s32.totalorder %s44, 24
      // Predicated region
      $region25: #{dinov2_forward.3} parent=5 // pred_check
        %p526 = pneg %p525
      $region26: #{dinov2_forward.3} parent=5 // pred_check_branch
        %528 = sbr.rel (%p526) target = $region28
      $region27: #{dinov2_forward.3} parent=5 // pred_region
        // Predicated region
        $region29: #{dinov2_forward.3} parent=27 // pred_check
          %p529 = pneg %p76
        $region30: #{dinov2_forward.3} parent=27 // pred_check_branch
          %531 = sbr.rel (%p529) target = $region32
        $region31: #{dinov2_forward.3} parent=27 // pred_region
          %p532 = scmp.lt.s32.totalorder %s51, 1
          %s533 = scalar_select %p532, %s51, 1
          %s534 = smul.addr %s533, 6
          %s535 = smul.addr %s534, 8
          %s536 = scalar_lea.vmem %s0, %s535
        $region32: #{dinov2_forward.3} parent=27 // pred_fallthru
          _
        // Predicated region
        $region33: #{dinov2_forward.3} parent=27 // pred_check
          %p537 = pneg %p123
        $region34: #{dinov2_forward.3} parent=27 // pred_check_branch
          %539 = sbr.rel (%p537) target = $region36
        $region35: #{dinov2_forward.3} parent=27 // pred_region
          %s540 = sand.u32 %s113, 1
          %s541 = scalar_lea.sflag [#allocation3], %s540
          %s542 = sand.u32 %s113, 1
          %s543 = smul.addr %s542, 3
          %s544 = scalar_lea.vmem [#allocation2], %s543
          %546 = vsyncadd %s541, 0
          %s547 = smul.addr %s52, 3
          %s548 = scalar_lea.hbm %s2, %s547
          %s550 = sshll.u32 %s548, 4
          %s551 = int_to_ptr.hbm [resolvable:$true] %s550
          %s552 = sshll.u32 %s544, 4
          %s553 = int_to_ptr.vmem [resolvable:$true] %s552
          %555 = dma.hbm_to_vmem [thread:$0]  %s551, 48, %s553, %s541
        $region36: #{dinov2_forward.3} parent=27 // pred_fallthru
          _
        // Predicated region
        $region37: #{dinov2_forward.3} parent=27 // pred_check
          %p556 = pneg %p149
        $region38: #{dinov2_forward.3} parent=27 // pred_check_branch
          %558 = sbr.rel (%p556) target = $region40
        $region39: #{dinov2_forward.3} parent=27 // pred_region
          %s559 = sand.u32 %s44, 1
          %s560 = scalar_lea.sflag [#allocation5], %s559
          %s561 = sand.u32 %s139, 1
          %s562 = smul.addr %s561, 3
          %s563 = scalar_lea.vmem [#allocation4], %s562
          %565 = vsyncadd %s560, 0
          %s566 = smul.addr %s52, 3
          %s567 = scalar_lea.hbm %s3, %s566
          %s569 = sshll.u32 %s567, 4
          %s570 = int_to_ptr.hbm [resolvable:$true] %s569
          %s571 = sshll.u32 %s563, 4
          %s572 = int_to_ptr.vmem [resolvable:$true] %s571
          %574 = dma.hbm_to_vmem [thread:$0]  %s570, 48, %s572, %s560
        $region40: #{dinov2_forward.3} parent=27 // pred_fallthru
          _
        // Predicated region
        $region41: #{dinov2_forward.3} parent=27 // pred_check
          %p575 = pneg %p175
        $region42: #{dinov2_forward.3} parent=27 // pred_check_branch
          %577 = sbr.rel (%p575) target = $region44
        $region43: #{dinov2_forward.3} parent=27 // pred_region
          %s578 = sand.u32 %s44, 1
          %s579 = scalar_lea.sflag [#allocation5], %s578
          %s580 = sand.u32 %s165, 1
          %s581 = smul.addr %s580, 1728
          %s582 = scalar_lea.vmem [#allocation6], %s581
          %584 = vsyncadd %s579, 0
          %s585 = smul.addr %s52, 432
          %s586 = smul.addr %s585, 4
          %s587 = scalar_lea.hbm %s4, %s586
          %s588 = sshll.u32 %s587, 4
          %s589 = int_to_ptr.hbm [resolvable:$true] %s588
          %s590 = sshll.u32 %s582, 4
          %s591 = int_to_ptr.vmem [resolvable:$true] %s590
          %596 = dma.hbm_to_vmem [thread:$0]  %s589, 27648, %s591, %s579, 576, 576, 36
        $region44: #{dinov2_forward.3} parent=27 // pred_fallthru
          _
        // Predicated region
        $region45: #{dinov2_forward.3} parent=27 // pred_check
          %p597 = pneg %p201
        $region46: #{dinov2_forward.3} parent=27 // pred_check_branch
          %599 = sbr.rel (%p597) target = $region48
        $region47: #{dinov2_forward.3} parent=27 // pred_region
          %s600 = sand.u32 %s44, 1
          %s601 = scalar_lea.sflag [#allocation8], %s600
          %s602 = sand.u32 %s191, 1
          %s603 = smul.addr %s602, 9
          %s604 = scalar_lea.vmem [#allocation7], %s603
          %606 = vsyncadd %s601, 0
          %s607 = smul.addr %s52, 9
          %s608 = scalar_lea.hbm %s5, %s607
          %s610 = sshll.u32 %s608, 4
          %s611 = int_to_ptr.hbm [resolvable:$true] %s610
          %s612 = sshll.u32 %s604, 4
          %s613 = int_to_ptr.vmem [resolvable:$true] %s612
          %615 = dma.hbm_to_vmem [thread:$0]  %s611, 144, %s613, %s601
        $region48: #{dinov2_forward.3} parent=27 // pred_fallthru
          _
        // Predicated region
        $region49: #{dinov2_forward.3} parent=27 // pred_check
          %p616 = pneg %p227
        $region50: #{dinov2_forward.3} parent=27 // pred_check_branch
          %618 = sbr.rel (%p616) target = $region52
        $region51: #{dinov2_forward.3} parent=27 // pred_region
          %s619 = sand.u32 %s44, 1
          %s620 = scalar_lea.sflag [#allocation8], %s619
          %s621 = sand.u32 %s217, 1
          %s622 = smul.addr %s621, 576
          %s623 = scalar_lea.vmem [#allocation9], %s622
          %625 = vsyncadd %s620, 0
          %s626 = smul.addr %s52, 144
          %s627 = smul.addr %s626, 4
          %s628 = scalar_lea.hbm %s6, %s627
          %s629 = sshll.u32 %s628, 4
          %s630 = int_to_ptr.hbm [resolvable:$true] %s629
          %s631 = sshll.u32 %s623, 4
          %s632 = int_to_ptr.vmem [resolvable:$true] %s631
          %637 = dma.hbm_to_vmem [thread:$0]  %s630, 9216, %s632, %s620, 192, 192, 12
        $region52: #{dinov2_forward.3} parent=27 // pred_fallthru
          _
        // Predicated region
        $region53: #{dinov2_forward.3} parent=27 // pred_check
          %p638 = pneg %p253
        $region54: #{dinov2_forward.3} parent=27 // pred_check_branch
          %640 = sbr.rel (%p638) target = $region56
        $region55: #{dinov2_forward.3} parent=27 // pred_region
          %s641 = sand.u32 %s44, 1
          %s642 = scalar_lea.sflag [#allocation11], %s641
          %s643 = sand.u32 %s243, 1
          %s644 = smul.addr %s643, 3
          %s645 = scalar_lea.vmem [#allocation10], %s644
          %647 = vsyncadd %s642, 0
          %s648 = smul.addr %s52, 3
          %s649 = scalar_lea.hbm %s7, %s648
          %s651 = sshll.u32 %s649, 4
          %s652 = int_to_ptr.hbm [resolvable:$true] %s651
          %s653 = sshll.u32 %s645, 4
          %s654 = int_to_ptr.vmem [resolvable:$true] %s653
          %656 = dma.hbm_to_vmem [thread:$0]  %s652, 48, %s654, %s642
        $region56: #{dinov2_forward.3} parent=27 // pred_fallthru
          _
        // Predicated region
        $region57: #{dinov2_forward.3} parent=27 // pred_check
          %p657 = pneg %p279
        $region58: #{dinov2_forward.3} parent=27 // pred_check_branch
          %659 = sbr.rel (%p657) target = $region60
        $region59: #{dinov2_forward.3} parent=27 // pred_region
          %s660 = sand.u32 %s44, 1
          %s661 = scalar_lea.sflag [#allocation11], %s660
          %s662 = sand.u32 %s269, 1
          %s663 = smul.addr %s662, 3
          %s664 = scalar_lea.vmem [#allocation12], %s663
          %666 = vsyncadd %s661, 0
          %s667 = smul.addr %s52, 3
          %s668 = scalar_lea.hbm %s8, %s667
          %s670 = sshll.u32 %s668, 4
          %s671 = int_to_ptr.hbm [resolvable:$true] %s670
          %s672 = sshll.u32 %s664, 4
          %s673 = int_to_ptr.vmem [resolvable:$true] %s672
          %675 = dma.hbm_to_vmem [thread:$0]  %s671, 48, %s673, %s661
        $region60: #{dinov2_forward.3} parent=27 // pred_fallthru
          _
        // Predicated region
        $region61: #{dinov2_forward.3} parent=27 // pred_check
          %p676 = pneg %p305
        $region62: #{dinov2_forward.3} parent=27 // pred_check_branch
          %678 = sbr.rel (%p676) target = $region64
        $region63: #{dinov2_forward.3} parent=27 // pred_region
          %s679 = sand.u32 %s44, 1
          %s680 = scalar_lea.sflag [#allocation14], %s679
          %s681 = sand.u32 %s295, 1
          %s682 = smul.addr %s681, 3
          %s683 = scalar_lea.vmem [#allocation13], %s682
          %685 = vsyncadd %s680, 0
          %s686 = smul.addr %s52, 3
          %s687 = scalar_lea.hbm %s9, %s686
          %s689 = sshll.u32 %s687, 4
          %s690 = int_to_ptr.hbm [resolvable:$true] %s689
          %s691 = sshll.u32 %s683, 4
          %s692 = int_to_ptr.vmem [resolvable:$true] %s691
          %694 = dma.hbm_to_vmem [thread:$0]  %s690, 48, %s692, %s680
        $region64: #{dinov2_forward.3} parent=27 // pred_fallthru
          _
        // Predicated region
        $region65: #{dinov2_forward.3} parent=27 // pred_check
          %p695 = pneg %p331
        $region66: #{dinov2_forward.3} parent=27 // pred_check_branch
          %697 = sbr.rel (%p695) target = $region68
        $region67: #{dinov2_forward.3} parent=27 // pred_region
          %s698 = sand.u32 %s44, 1
          %s699 = scalar_lea.sflag [#allocation14], %s698
          %s700 = sand.u32 %s321, 1
          %s701 = smul.addr %s700, 2304
          %s702 = scalar_lea.vmem [#allocation15], %s701
          %704 = vsyncadd %s699, 0
          %s705 = smul.addr %s52, 576
          %s706 = smul.addr %s705, 4
          %s707 = scalar_lea.hbm %s10, %s706
          %s708 = sshll.u32 %s707, 4
          %s709 = int_to_ptr.hbm [resolvable:$true] %s708
          %s710 = sshll.u32 %s702, 4
          %s711 = int_to_ptr.vmem [resolvable:$true] %s710
          %716 = dma.hbm_to_vmem [thread:$0]  %s709, 36864, %s711, %s699, 768, 768, 48
        $region68: #{dinov2_forward.3} parent=27 // pred_fallthru
          _
        // Predicated region
        $region69: #{dinov2_forward.3} parent=27 // pred_check
          %p717 = pneg %p357
        $region70: #{dinov2_forward.3} parent=27 // pred_check_branch
          %719 = sbr.rel (%p717) target = $region72
        $region71: #{dinov2_forward.3} parent=27 // pred_region
          %s720 = sand.u32 %s44, 1
          %s721 = scalar_lea.sflag [#allocation17], %s720
          %s722 = sand.u32 %s347, 1
          %s723 = smul.addr %s722, 12
          %s724 = scalar_lea.vmem [#allocation16], %s723
          %726 = vsyncadd %s721, 0
          %s727 = smul.addr %s52, 12
          %s728 = scalar_lea.hbm %s11, %s727
          %s730 = sshll.u32 %s728, 4
          %s731 = int_to_ptr.hbm [resolvable:$true] %s730
          %s732 = sshll.u32 %s724, 4
          %s733 = int_to_ptr.vmem [resolvable:$true] %s732
          %735 = dma.hbm_to_vmem [thread:$0]  %s731, 192, %s733, %s721
        $region72: #{dinov2_forward.3} parent=27 // pred_fallthru
          _
        // Predicated region
        $region73: #{dinov2_forward.3} parent=27 // pred_check
          %p736 = pneg %p383
        $region74: #{dinov2_forward.3} parent=27 // pred_check_branch
          %738 = sbr.rel (%p736) target = $region76
        $region75: #{dinov2_forward.3} parent=27 // pred_region
          %s739 = sand.u32 %s44, 1
          %s740 = scalar_lea.sflag [#allocation17], %s739
          %s741 = sand.u32 %s373, 1
          %s742 = smul.addr %s741, 2304
          %s743 = scalar_lea.vmem [#allocation18], %s742
          %745 = vsyncadd %s740, 0
          %s746 = smul.addr %s52, 576
          %s747 = smul.addr %s746, 4
          %s748 = scalar_lea.hbm %s12, %s747
          %s749 = sshll.u32 %s748, 4
          %s750 = int_to_ptr.hbm [resolvable:$true] %s749
          %s751 = sshll.u32 %s743, 4
          %s752 = int_to_ptr.vmem [resolvable:$true] %s751
          %757 = dma.hbm_to_vmem [thread:$0]  %s750, 36864, %s752, %s740, 192, 192, 12
        $region76: #{dinov2_forward.3} parent=27 // pred_fallthru
          _
        // Predicated region
        $region77: #{dinov2_forward.3} parent=27 // pred_check
          %p758 = pneg %p409
        $region78: #{dinov2_forward.3} parent=27 // pred_check_branch
          %760 = sbr.rel (%p758) target = $region80
        $region79: #{dinov2_forward.3} parent=27 // pred_region
          %s761 = sand.u32 %s44, 1
          %s762 = scalar_lea.sflag [#allocation20], %s761
          %s763 = sand.u32 %s399, 1
          %s764 = smul.addr %s763, 3
          %s765 = scalar_lea.vmem [#allocation19], %s764
          %767 = vsyncadd %s762, 0
          %s768 = smul.addr %s52, 3
          %s769 = scalar_lea.hbm %s13, %s768
          %s771 = sshll.u32 %s769, 4
          %s772 = int_to_ptr.hbm [resolvable:$true] %s771
          %s773 = sshll.u32 %s765, 4
          %s774 = int_to_ptr.vmem [resolvable:$true] %s773
          %776 = dma.hbm_to_vmem [thread:$0]  %s772, 48, %s774, %s762
        $region80: #{dinov2_forward.3} parent=27 // pred_fallthru
          _
      $region28: #{dinov2_forward.3} parent=5 // pred_fallthru
        _
      %p777 = scmp.le.s32.totalorder 1, %s44
      %p778 = scmp.lt.s32.totalorder %s44, 25
      %p779 = pnand %p777, %p778
      %p780 = pneg %p779
      // Predicated region
      $region81: #{dinov2_forward.3} parent=5 // pred_check
        _
      $region82: #{dinov2_forward.3} parent=5 // pred_check_branch
        %782 = sbr.rel (%p779) target = $region84
      $region83: #{dinov2_forward.3} parent=5 // pred_region
        %s783 = ssub.s32 %s44, 1
        %s784 = sand.u32 %s116, 1
        %s785 = scalar_lea.sflag [#allocation3], %s784
        %s786 = sand.u32 %s116, 1
        %s787 = smul.addr %s786, 3
        %s788 = scalar_lea.vmem [#allocation2], %s787
        // Predicated region
        $region85: #{dinov2_forward.3} parent=83 // pred_check
          %p789 = pneg %p129
        $region86: #{dinov2_forward.3} parent=83 // pred_check_branch
          %791 = sbr.rel (%p789) target = $region88
        $region87: #{dinov2_forward.3} parent=83 // pred_region
          %793 = dma.done %s785, 48
        $region88: #{dinov2_forward.3} parent=83 // pred_fallthru
          _
        %s794 = sand.u32 %s49, 1
        %s795 = scalar_lea.sflag [#allocation5], %s794
        %s796 = sand.u32 %s142, 1
        %s797 = smul.addr %s796, 3
        %s798 = scalar_lea.vmem [#allocation4], %s797
        // Predicated region
        $region89: #{dinov2_forward.3} parent=83 // pred_check
          %p799 = pneg %p155
        $region90: #{dinov2_forward.3} parent=83 // pred_check_branch
          %801 = sbr.rel (%p799) target = $region92
        $region91: #{dinov2_forward.3} parent=83 // pred_region
          %803 = dma.done %s795, 48
        $region92: #{dinov2_forward.3} parent=83 // pred_fallthru
          _
        %s804 = sand.u32 %s49, 1
        %s805 = scalar_lea.sflag [#allocation5], %s804
        %s806 = sand.u32 %s168, 1
        %s807 = smul.addr %s806, 1728
        %s808 = scalar_lea.vmem [#allocation6], %s807
        // Predicated region
        $region93: #{dinov2_forward.3} parent=83 // pred_check
          %p809 = pneg %p181
        $region94: #{dinov2_forward.3} parent=83 // pred_check_branch
          %811 = sbr.rel (%p809) target = $region96
        $region95: #{dinov2_forward.3} parent=83 // pred_region
          %813 = dma.done %s805, 27648
        $region96: #{dinov2_forward.3} parent=83 // pred_fallthru
          _
        %s814 = sand.u32 %s49, 1
        %s815 = scalar_lea.sflag [#allocation8], %s814
        %s816 = sand.u32 %s194, 1
        %s817 = smul.addr %s816, 9
        %s818 = scalar_lea.vmem [#allocation7], %s817
        // Predicated region
        $region97: #{dinov2_forward.3} parent=83 // pred_check
          %p819 = pneg %p207
        $region98: #{dinov2_forward.3} parent=83 // pred_check_branch
          %821 = sbr.rel (%p819) target = $region100
        $region99: #{dinov2_forward.3} parent=83 // pred_region
          %823 = dma.done %s815, 144
        $region100: #{dinov2_forward.3} parent=83 // pred_fallthru
          _
        %s824 = sand.u32 %s49, 1
        %s825 = scalar_lea.sflag [#allocation8], %s824
        %s826 = sand.u32 %s220, 1
        %s827 = smul.addr %s826, 576
        %s828 = scalar_lea.vmem [#allocation9], %s827
        // Predicated region
        $region101: #{dinov2_forward.3} parent=83 // pred_check
          %p829 = pneg %p233
        $region102: #{dinov2_forward.3} parent=83 // pred_check_branch
          %831 = sbr.rel (%p829) target = $region104
        $region103: #{dinov2_forward.3} parent=83 // pred_region
          %833 = dma.done %s825, 9216
        $region104: #{dinov2_forward.3} parent=83 // pred_fallthru
          _
        %s834 = sand.u32 %s49, 1
        %s835 = scalar_lea.sflag [#allocation11], %s834
        %s836 = sand.u32 %s246, 1
        %s837 = smul.addr %s836, 3
        %s838 = scalar_lea.vmem [#allocation10], %s837
        // Predicated region
        $region105: #{dinov2_forward.3} parent=83 // pred_check
          %p839 = pneg %p259
        $region106: #{dinov2_forward.3} parent=83 // pred_check_branch
          %841 = sbr.rel (%p839) target = $region108
        $region107: #{dinov2_forward.3} parent=83 // pred_region
          %843 = dma.done %s835, 48
        $region108: #{dinov2_forward.3} parent=83 // pred_fallthru
          _
        %s844 = sand.u32 %s49, 1
        %s845 = scalar_lea.sflag [#allocation11], %s844
        %s846 = sand.u32 %s272, 1
        %s847 = smul.addr %s846, 3
        %s848 = scalar_lea.vmem [#allocation12], %s847
        // Predicated region
        $region109: #{dinov2_forward.3} parent=83 // pred_check
          %p849 = pneg %p285
        $region110: #{dinov2_forward.3} parent=83 // pred_check_branch
          %851 = sbr.rel (%p849) target = $region112
        $region111: #{dinov2_forward.3} parent=83 // pred_region
          %853 = dma.done %s845, 48
        $region112: #{dinov2_forward.3} parent=83 // pred_fallthru
          _
        %s854 = sand.u32 %s49, 1
        %s855 = scalar_lea.sflag [#allocation14], %s854
        %s856 = sand.u32 %s298, 1
        %s857 = smul.addr %s856, 3
        %s858 = scalar_lea.vmem [#allocation13], %s857
        // Predicated region
        $region113: #{dinov2_forward.3} parent=83 // pred_check
          %p859 = pneg %p311
        $region114: #{dinov2_forward.3} parent=83 // pred_check_branch
          %861 = sbr.rel (%p859) target = $region116
        $region115: #{dinov2_forward.3} parent=83 // pred_region
          %863 = dma.done %s855, 48
        $region116: #{dinov2_forward.3} parent=83 // pred_fallthru
          _
        %s864 = sand.u32 %s49, 1
        %s865 = scalar_lea.sflag [#allocation14], %s864
        %s866 = sand.u32 %s324, 1
        %s867 = smul.addr %s866, 2304
        %s868 = scalar_lea.vmem [#allocation15], %s867
        // Predicated region
        $region117: #{dinov2_forward.3} parent=83 // pred_check
          %p869 = pneg %p337
        $region118: #{dinov2_forward.3} parent=83 // pred_check_branch
          %871 = sbr.rel (%p869) target = $region120
        $region119: #{dinov2_forward.3} parent=83 // pred_region
          %873 = dma.done %s865, 36864
        $region120: #{dinov2_forward.3} parent=83 // pred_fallthru
          _
        %s874 = sand.u32 %s49, 1
        %s875 = scalar_lea.sflag [#allocation17], %s874
        %s876 = sand.u32 %s350, 1
        %s877 = smul.addr %s876, 12
        %s878 = scalar_lea.vmem [#allocation16], %s877
        // Predicated region
        $region121: #{dinov2_forward.3} parent=83 // pred_check
          %p879 = pneg %p363
        $region122: #{dinov2_forward.3} parent=83 // pred_check_branch
          %881 = sbr.rel (%p879) target = $region124
        $region123: #{dinov2_forward.3} parent=83 // pred_region
          %883 = dma.done %s875, 192
        $region124: #{dinov2_forward.3} parent=83 // pred_fallthru
          _
        %s884 = sand.u32 %s49, 1
        %s885 = scalar_lea.sflag [#allocation17], %s884
        %s886 = sand.u32 %s376, 1
        %s887 = smul.addr %s886, 2304
        %s888 = scalar_lea.vmem [#allocation18], %s887
        // Predicated region
        $region125: #{dinov2_forward.3} parent=83 // pred_check
          %p889 = pneg %p389
        $region126: #{dinov2_forward.3} parent=83 // pred_check_branch
          %891 = sbr.rel (%p889) target = $region128
        $region127: #{dinov2_forward.3} parent=83 // pred_region
          %893 = dma.done %s885, 36864
        $region128: #{dinov2_forward.3} parent=83 // pred_fallthru
          _
        %s894 = sand.u32 %s49, 1
        %s895 = scalar_lea.sflag [#allocation20], %s894
        %s896 = sand.u32 %s402, 1
        %s897 = smul.addr %s896, 3
        %s898 = scalar_lea.vmem [#allocation19], %s897
        // Predicated region
        $region129: #{dinov2_forward.3} parent=83 // pred_check
          %p899 = pneg %p415
        $region130: #{dinov2_forward.3} parent=83 // pred_check_branch
          %901 = sbr.rel (%p899) target = $region132
        $region131: #{dinov2_forward.3} parent=83 // pred_region
          %903 = dma.done %s895, 48
        $region132: #{dinov2_forward.3} parent=83 // pred_fallthru
          _
        // Predicated region
        $region133: #{dinov2_forward.3} parent=83 // pred_check
          %p904 = pneg %p436
        $region134: #{dinov2_forward.3} parent=83 // pred_check_branch
          %906 = sbr.rel (%p904) target = $region136
        $region135: #{dinov2_forward.3} parent=83 // pred_region
          %908 = dma.done [#allocation20], 48
        $region136: #{dinov2_forward.3} parent=83 // pred_fallthru
          _
        // Predicated region
        $region137: #{dinov2_forward.3} parent=83 // pred_check
          %p909 = pneg %p457
        $region138: #{dinov2_forward.3} parent=83 // pred_check_branch
          %911 = sbr.rel (%p909) target = $region140
        $region139: #{dinov2_forward.3} parent=83 // pred_region
          %913 = dma.done [#allocation23], 48
        $region140: #{dinov2_forward.3} parent=83 // pred_fallthru
          _
        %p914 = scmp.lt.s32.totalorder %s53, 1
        %s915 = scalar_select %p914, %s53, 1
        %s916 = smul.addr %s915, 6
        %s917 = smul.addr %s916, 8
        %s918 = scalar_lea.vmem %s0, %s917
        %p919 = pneg %p82
        %p920 = pneg %p79
        %p921 = pneg %p103
        %p922 = pneg %p100
        %s923 = sand.u32 %s116, 1
        %s924 = scalar_lea.sflag [#allocation3], %s923
        %s925 = sand.u32 %s116, 1
        %s926 = smul.addr %s925, 3
        %s927 = scalar_lea.vmem [#allocation2], %s926
        %p928 = pneg %p129
        %p929 = pneg %p126
        %s930 = sand.u32 %s49, 1
        %s931 = scalar_lea.sflag [#allocation5], %s930
        %s932 = sand.u32 %s142, 1
        %s933 = smul.addr %s932, 3
        %s934 = scalar_lea.vmem [#allocation4], %s933
        %p935 = pneg %p155
        %p936 = pneg %p152
        %s937 = sand.u32 %s49, 1
        %s938 = scalar_lea.sflag [#allocation5], %s937
        %s939 = sand.u32 %s168, 1
        %s940 = smul.addr %s939, 1728
        %s941 = scalar_lea.vmem [#allocation6], %s940
        %p942 = pneg %p181
        %p943 = pneg %p178
        %s944 = sand.u32 %s49, 1
        %s945 = scalar_lea.sflag [#allocation8], %s944
        %s946 = sand.u32 %s194, 1
        %s947 = smul.addr %s946, 9
        %s948 = scalar_lea.vmem [#allocation7], %s947
        %p949 = pneg %p207
        %p950 = pneg %p204
        %s951 = sand.u32 %s49, 1
        %s952 = scalar_lea.sflag [#allocation8], %s951
        %s953 = sand.u32 %s220, 1
        %s954 = smul.addr %s953, 576
        %s955 = scalar_lea.vmem [#allocation9], %s954
        %p956 = pneg %p233
        %p957 = pneg %p230
        %s958 = sand.u32 %s49, 1
        %s959 = scalar_lea.sflag [#allocation11], %s958
        %s960 = sand.u32 %s246, 1
        %s961 = smul.addr %s960, 3
        %s962 = scalar_lea.vmem [#allocation10], %s961
        %p963 = pneg %p259
        %p964 = pneg %p256
        %s965 = sand.u32 %s49, 1
        %s966 = scalar_lea.sflag [#allocation11], %s965
        %s967 = sand.u32 %s272, 1
        %s968 = smul.addr %s967, 3
        %s969 = scalar_lea.vmem [#allocation12], %s968
        %p970 = pneg %p285
        %p971 = pneg %p282
        %s972 = sand.u32 %s49, 1
        %s973 = scalar_lea.sflag [#allocation14], %s972
        %s974 = sand.u32 %s298, 1
        %s975 = smul.addr %s974, 3
        %s976 = scalar_lea.vmem [#allocation13], %s975
        %p977 = pneg %p311
        %p978 = pneg %p308
        %s979 = sand.u32 %s49, 1
        %s980 = scalar_lea.sflag [#allocation14], %s979
        %s981 = sand.u32 %s324, 1
        %s982 = smul.addr %s981, 2304
        %s983 = scalar_lea.vmem [#allocation15], %s982
        %p984 = pneg %p337
        %p985 = pneg %p334
        %s986 = sand.u32 %s49, 1
        %s987 = scalar_lea.sflag [#allocation17], %s986
        %s988 = sand.u32 %s350, 1
        %s989 = smul.addr %s988, 12
        %s990 = scalar_lea.vmem [#allocation16], %s989
        %p991 = pneg %p363
        %p992 = pneg %p360
        %s993 = sand.u32 %s49, 1
        %s994 = scalar_lea.sflag [#allocation17], %s993
        %s995 = sand.u32 %s376, 1
        %s996 = smul.addr %s995, 2304
        %s997 = scalar_lea.vmem [#allocation18], %s996
        %p998 = pneg %p389
        %p999 = pneg %p386
        %s1000 = sand.u32 %s49, 1
        %s1001 = scalar_lea.sflag [#allocation20], %s1000
        %s1002 = sand.u32 %s402, 1
        %s1003 = smul.addr %s1002, 3
        %s1004 = scalar_lea.vmem [#allocation19], %s1003
        %p1005 = pneg %p415
        %p1006 = pneg %p412
        %p1007 = pneg %p436
        %p1008 = pneg %p433
        %p1009 = pneg %p457
        %p1010 = pneg %p454
        %p1011 = pneg %p483
        %p1012 = pneg %p480
        %p1013 = scmp.lt.s32.totalorder %s53, 1
        %s1014 = scalar_select %p1013, %s53, 1
        %s1015 = smul.addr %s1014, 6
        %s1016 = smul.addr %s1015, 8
        %s1017 = scalar_lea.vmem %s16, %s1016
        %p1018 = scmp.lt.s32.totalorder %s53, 1
        %s1019 = scalar_select %p1018, %s53, 1
        %s1020 = smul.addr %s1019, 6
        %s1021 = smul.addr %s1020, 8
        %s1022 = scalar_lea.vmem %s0, %s1021
        %p1023 = scmp.lt.s32.totalorder %s53, 1
        %s1024 = scalar_select %p1023, %s53, 1
        %s1025 = smul.addr %s1024, 6
        %s1026 = smul.addr %s1025, 8
        %s1027 = scalar_lea.vmem %s16, %s1026
        %p1029 = scmp.eq.s32.totalorder %s54, 0
        // Predicated region
        $region141: #{dinov2_forward.3} parent=83 // pred_check
          %p1030 = pneg %p1029
        $region142: #{dinov2_forward.3} parent=83 // pred_check_branch
          %1032 = sbr.rel (%p1030) target = $region144
        $region143: #{dinov2_forward.3} parent=83 // pred_region
          %v1033 = vld [vmem:[%s1022] sm:$0xff]
          %v1034 = vld [vmem:[%s1022 + $0x8] sm:$0xff]
          %v1035 = vld [vmem:[%s1022 + $0x10] sm:$0xff]
          %v1036 = vld [vmem:[%s1022 + $0x18] sm:$0xff]
          %v1037 = vld [vmem:[%s1022 + $0x20] sm:$0xff]
          %v1038 = vld [vmem:[%s1022 + $0x28] sm:$0xff]
          %1039 = vst [vmem:[%s1027] sm:$0xff] %v1033
          %1040 = vst [vmem:[%s1027 + $0x8] sm:$0xff] %v1034
          %1041 = vst [vmem:[%s1027 + $0x10] sm:$0xff] %v1035
          %1042 = vst [vmem:[%s1027 + $0x18] sm:$0xff] %v1036
          %1043 = vst [vmem:[%s1027 + $0x20] sm:$0xff] %v1037
          %1044 = vst [vmem:[%s1027 + $0x28] sm:$0xff] %v1038
        $region144: #{dinov2_forward.3} parent=83 // pred_fallthru
          _
        %v1045 = vld [vmem:[%s1027] sm:$0xff]
        %v1046 = vld [vmem:[%s1027 + $0x8] sm:$0xff]
        %v1047 = vld [vmem:[%s1027 + $0x10] sm:$0xff]
        %v1048 = vld [vmem:[%s1027 + $0x18] sm:$0xff]
        %v1049 = vld [vmem:[%s1027 + $0x20] sm:$0xff]
        %v1050 = vld [vmem:[%s1027 + $0x28] sm:$0xff]
        %v1051 = vld [vmem:[%s788] sm:$0x7]
        %v1052 = vld [vmem:[%s798] sm:$0x7]
        %v1053 = vadd.f32 %v1045, %v1046
        %v1054 = vadd.f32 %v1053, %v1047
        %1055 = vadd.xlane.f32.xlu0 %v1054
        %v1056 = vpop.xlane.xlu0 %1055
        %v1057 = vadd.f32 %v1048, %v1049
        %v1058 = vadd.f32 %v1057, %v1050
        %1059 = vadd.xlane.f32.xlu0 %v1058
        %v1060 = vpop.xlane.xlu0 %1059
        %v1061 = vrcp.pop 384.0
        %v1062 = vmul.f32 384.0, %v1061
        %v1063 = vsub.f32 1.0, %v1062
        %v1064 = vmul.f32 %v1061, %v1063
        %v1065 = vadd.f32 %v1061, %v1064
        %vm1066 = vweird.f32 %v1061
        %v1067 = vsel %vm1066, %v1061, %v1065
        %v1068 = vmul.f32 %v1056, %v1067
        %v1069 = vmul.f32 %v1060, %v1067
        %v1070 = vsub.f32 %v1045, %v1068
        %v1071 = vsub.f32 %v1046, %v1068
        %v1072 = vsub.f32 %v1047, %v1068
        %v1073 = vsub.f32 %v1048, %v1069
        %v1074 = vsub.f32 %v1049, %v1069
        %v1075 = vsub.f32 %v1050, %v1069
        %v1076 = vmul.f32 %v1070, %v1070
        %v1077 = vmul.f32 %v1071, %v1071
        %v1078 = vmul.f32 %v1072, %v1072
        %v1079 = vmul.f32 %v1073, %v1073
        %v1080 = vmul.f32 %v1074, %v1074
        %v1081 = vmul.f32 %v1075, %v1075
        %v1082 = vadd.f32 %v1076, %v1077
        %v1083 = vadd.f32 %v1082, %v1078
        %1084 = vadd.xlane.f32.xlu0 %v1083
        %v1085 = vpop.xlane.xlu0 %1084
        %v1086 = vadd.f32 %v1079, %v1080
        %v1087 = vadd.f32 %v1086, %v1081
        %1088 = vadd.xlane.f32.xlu0 %v1087
        %v1089 = vpop.xlane.xlu0 %1088
        %v1090 = vmul.f32 %v1085, %v1067
        %v1091 = vmul.f32 %v1089, %v1067
        %v1092 = vadd.f32 %v1090, 1e-06
        %v1093 = vadd.f32 %v1091, 1e-06
        %v1094 = vrsqrt.pop %v1092
        %v1095 = vmul.f32 %v1094, %v1092
        %v1096 = vmul.f32 %v1095, %v1094
        %v1097 = vmul.f32 0.5, %v1096
        %v1098 = vsub.f32 1.5, %v1097
        %v1099 = vmul.f32 %v1094, %v1098
        %vm1100 = vweird.f32 %v1092
        %vm1101 = vweird.f32 %v1094
        %vm1102 = vmor %vm1100, %vm1101
        %v1103 = vsel %vm1102, %v1094, %v1099
        %v1104 = vrsqrt.pop %v1093
        %v1105 = vmul.f32 %v1104, %v1093
        %v1106 = vmul.f32 %v1105, %v1104
        %v1107 = vmul.f32 0.5, %v1106
        %v1108 = vsub.f32 1.5, %v1107
        %v1109 = vmul.f32 %v1104, %v1108
        %vm1110 = vweird.f32 %v1093
        %vm1111 = vweird.f32 %v1104
        %vm1112 = vmor %vm1110, %vm1111
        %v1113 = vsel %vm1112, %v1104, %v1109
        %v1114 = vmul.f32 %v1070, %v1103
        %v1115 = vmul.f32 %v1071, %v1103
        %v1116 = vmul.f32 %v1072, %v1103
        %v1117 = vmul.f32 %v1073, %v1113
        %v1118 = vmul.f32 %v1074, %v1113
        %v1119 = vmul.f32 %v1075, %v1113
        %v1121 = vperm.slane %v1051, 0
        %v1122 = vperm.slane %v1051, 1
        %v1123 = vperm.slane %v1051, 2
        %v1127 = vmul.f32 %v1114, %v1121
        %v1128 = vmul.f32 %v1115, %v1122
        %v1129 = vmul.f32 %v1116, %v1123
        %v1130 = vmul.f32 %v1117, %v1121
        %v1131 = vmul.f32 %v1118, %v1122
        %v1132 = vmul.f32 %v1119, %v1123
        %v1134 = vperm.slane %v1052, 0
        %v1135 = vperm.slane %v1052, 1
        %v1136 = vperm.slane %v1052, 2
        %v1140 = vadd.f32 %v1127, %v1134
        %v1141 = vadd.f32 %v1128, %v1135
        %v1142 = vadd.f32 %v1129, %v1136
        %v1143 = vadd.f32 %v1130, %v1134
        %v1144 = vadd.f32 %v1131, %v1135
        %v1145 = vadd.f32 %v1132, %v1136
        %v1146 = vpack.c.bf16 %v1143, %v1140
        %v1147 = vpack.c.bf16 %v1144, %v1141
        %v1148 = vpack.c.bf16 %v1145, %v1142
        %v1149 = vld [vmem:[%s808] sm:$0xff]
        %v1150 = vld [vmem:[%s808 + $0x8] sm:$0xff]
        %v1151 = vld [vmem:[%s808 + $0x10] sm:$0xff]
        %v1152 = vld [vmem:[%s808 + $0x18] sm:$0xff]
        %v1153 = vld [vmem:[%s808 + $0x20] sm:$0xf]
        %v1154 = vld [vmem:[%s808 + $0x24] sm:$0xff]
        %v1155 = vld [vmem:[%s808 + $0x2c] sm:$0xff]
        %v1156 = vld [vmem:[%s808 + $0x34] sm:$0xff]
        %v1157 = vld [vmem:[%s808 + $0x3c] sm:$0xff]
        %v1158 = vld [vmem:[%s808 + $0x44] sm:$0xf]
        %v1159 = vld [vmem:[%s808 + $0x48] sm:$0xff]
        %v1160 = vld [vmem:[%s808 + $0x50] sm:$0xff]
        %v1161 = vld [vmem:[%s808 + $0x58] sm:$0xff]
        %v1162 = vld [vmem:[%s808 + $0x60] sm:$0xff]
        %v1163 = vld [vmem:[%s808 + $0x68] sm:$0xf]
        %v1164 = vld [vmem:[%s808 + $0x6c] sm:$0xff]
        %v1165 = vld [vmem:[%s808 + $0x74] sm:$0xff]
        %v1166 = vld [vmem:[%s808 + $0x7c] sm:$0xff]
        %v1167 = vld [vmem:[%s808 + $0x84] sm:$0xff]
        %v1168 = vld [vmem:[%s808 + $0x8c] sm:$0xf]
        %v1169 = vld [vmem:[%s808 + $0x90] sm:$0xff]
        %v1170 = vld [vmem:[%s808 + $0x98] sm:$0xff]
        %v1171 = vld [vmem:[%s808 + $0xa0] sm:$0xff]
        %v1172 = vld [vmem:[%s808 + $0xa8] sm:$0xff]
        %v1173 = vld [vmem:[%s808 + $0xb0] sm:$0xf]
        %v1174 = vld [vmem:[%s808 + $0xb4] sm:$0xff]
        %v1175 = vld [vmem:[%s808 + $0xbc] sm:$0xff]
        %v1176 = vld [vmem:[%s808 + $0xc4] sm:$0xff]
        %v1177 = vld [vmem:[%s808 + $0xcc] sm:$0xff]
        %v1178 = vld [vmem:[%s808 + $0xd4] sm:$0xf]
        %v1179 = vld [vmem:[%s808 + $0xd8] sm:$0xff]
        %v1180 = vld [vmem:[%s808 + $0xe0] sm:$0xff]
        %v1181 = vld [vmem:[%s808 + $0xe8] sm:$0xff]
        %v1182 = vld [vmem:[%s808 + $0xf0] sm:$0xff]
        %v1183 = vld [vmem:[%s808 + $0xf8] sm:$0xf]
        %v1184 = vld [vmem:[%s808 + $0xfc] sm:$0xff]
        %v1185 = vld [vmem:[%s808 + $0x104] sm:$0xff]
        %v1186 = vld [vmem:[%s808 + $0x10c] sm:$0xff]
        %v1187 = vld [vmem:[%s808 + $0x114] sm:$0xff]
        %v1188 = vld [vmem:[%s808 + $0x11c] sm:$0xf]
        %v1189 = vld [vmem:[%s808 + $0x120] sm:$0xff]
        %v1190 = vld [vmem:[%s808 + $0x128] sm:$0xff]
        %v1191 = vld [vmem:[%s808 + $0x130] sm:$0xff]
        %v1192 = vld [vmem:[%s808 + $0x138] sm:$0xff]
        %v1193 = vld [vmem:[%s808 + $0x140] sm:$0xf]
        %v1194 = vld [vmem:[%s808 + $0x144] sm:$0xff]
        %v1195 = vld [vmem:[%s808 + $0x14c] sm:$0xff]
        %v1196 = vld [vmem:[%s808 + $0x154] sm:$0xff]
        %v1197 = vld [vmem:[%s808 + $0x15c] sm:$0xff]
        %v1198 = vld [vmem:[%s808 + $0x164] sm:$0xf]
        %v1199 = vld [vmem:[%s808 + $0x168] sm:$0xff]
        %v1200 = vld [vmem:[%s808 + $0x170] sm:$0xff]
        %v1201 = vld [vmem:[%s808 + $0x178] sm:$0xff]
        %v1202 = vld [vmem:[%s808 + $0x180] sm:$0xff]
        %v1203 = vld [vmem:[%s808 + $0x188] sm:$0xf]
        %v1204 = vld [vmem:[%s808 + $0x18c] sm:$0xff]
        %v1205 = vld [vmem:[%s808 + $0x194] sm:$0xff]
        %v1206 = vld [vmem:[%s808 + $0x19c] sm:$0xff]
        %v1207 = vld [vmem:[%s808 + $0x1a4] sm:$0xff]
        %v1208 = vld [vmem:[%s808 + $0x1ac] sm:$0xf]
        %v1209 = vld [vmem:[%s808 + $0x1b0] sm:$0xff]
        %v1210 = vld [vmem:[%s808 + $0x1b8] sm:$0xff]
        %v1211 = vld [vmem:[%s808 + $0x1c0] sm:$0xff]
        %v1212 = vld [vmem:[%s808 + $0x1c8] sm:$0xff]
        %v1213 = vld [vmem:[%s808 + $0x1d0] sm:$0xf]
        %v1214 = vld [vmem:[%s808 + $0x1d4] sm:$0xff]
        %v1215 = vld [vmem:[%s808 + $0x1dc] sm:$0xff]
        %v1216 = vld [vmem:[%s808 + $0x1e4] sm:$0xff]
        %v1217 = vld [vmem:[%s808 + $0x1ec] sm:$0xff]
        %v1218 = vld [vmem:[%s808 + $0x1f4] sm:$0xf]
        %v1219 = vld [vmem:[%s808 + $0x1f8] sm:$0xff]
        %v1220 = vld [vmem:[%s808 + $0x200] sm:$0xff]
        %v1221 = vld [vmem:[%s808 + $0x208] sm:$0xff]
        %v1222 = vld [vmem:[%s808 + $0x210] sm:$0xff]
        %v1223 = vld [vmem:[%s808 + $0x218] sm:$0xf]
        %v1224 = vld [vmem:[%s808 + $0x21c] sm:$0xff]
        %v1225 = vld [vmem:[%s808 + $0x224] sm:$0xff]
        %v1226 = vld [vmem:[%s808 + $0x22c] sm:$0xff]
        %v1227 = vld [vmem:[%s808 + $0x234] sm:$0xff]
        %v1228 = vld [vmem:[%s808 + $0x23c] sm:$0xf]
        %v1229 = vld [vmem:[%s808 + $0x240] sm:$0xff]
        %v1230 = vld [vmem:[%s808 + $0x248] sm:$0xff]
        %v1231 = vld [vmem:[%s808 + $0x250] sm:$0xff]
        %v1232 = vld [vmem:[%s808 + $0x258] sm:$0xff]
        %v1233 = vld [vmem:[%s808 + $0x260] sm:$0xf]
        %v1234 = vld [vmem:[%s808 + $0x264] sm:$0xff]
        %v1235 = vld [vmem:[%s808 + $0x26c] sm:$0xff]
        %v1236 = vld [vmem:[%s808 + $0x274] sm:$0xff]
        %v1237 = vld [vmem:[%s808 + $0x27c] sm:$0xff]
        %v1238 = vld [vmem:[%s808 + $0x284] sm:$0xf]
        %v1239 = vld [vmem:[%s808 + $0x288] sm:$0xff]
        %v1240 = vld [vmem:[%s808 + $0x290] sm:$0xff]
        %v1241 = vld [vmem:[%s808 + $0x298] sm:$0xff]
        %v1242 = vld [vmem:[%s808 + $0x2a0] sm:$0xff]
        %v1243 = vld [vmem:[%s808 + $0x2a8] sm:$0xf]
        %v1244 = vld [vmem:[%s808 + $0x2ac] sm:$0xff]
        %v1245 = vld [vmem:[%s808 + $0x2b4] sm:$0xff]
        %v1246 = vld [vmem:[%s808 + $0x2bc] sm:$0xff]
        %v1247 = vld [vmem:[%s808 + $0x2c4] sm:$0xff]
        %v1248 = vld [vmem:[%s808 + $0x2cc] sm:$0xf]
        %v1249 = vld [vmem:[%s808 + $0x2d0] sm:$0xff]
        %v1250 = vld [vmem:[%s808 + $0x2d8] sm:$0xff]
        %v1251 = vld [vmem:[%s808 + $0x2e0] sm:$0xff]
        %v1252 = vld [vmem:[%s808 + $0x2e8] sm:$0xff]
        %v1253 = vld [vmem:[%s808 + $0x2f0] sm:$0xf]
        %v1254 = vld [vmem:[%s808 + $0x2f4] sm:$0xff]
        %v1255 = vld [vmem:[%s808 + $0x2fc] sm:$0xff]
        %v1256 = vld [vmem:[%s808 + $0x304] sm:$0xff]
        %v1257 = vld [vmem:[%s808 + $0x30c] sm:$0xff]
        %v1258 = vld [vmem:[%s808 + $0x314] sm:$0xf]
        %v1259 = vld [vmem:[%s808 + $0x318] sm:$0xff]
        %v1260 = vld [vmem:[%s808 + $0x320] sm:$0xff]
        %v1261 = vld [vmem:[%s808 + $0x328] sm:$0xff]
        %v1262 = vld [vmem:[%s808 + $0x330] sm:$0xff]
        %v1263 = vld [vmem:[%s808 + $0x338] sm:$0xf]
        %v1264 = vld [vmem:[%s808 + $0x33c] sm:$0xff]
        %v1265 = vld [vmem:[%s808 + $0x344] sm:$0xff]
        %v1266 = vld [vmem:[%s808 + $0x34c] sm:$0xff]
        %v1267 = vld [vmem:[%s808 + $0x354] sm:$0xff]
        %v1268 = vld [vmem:[%s808 + $0x35c] sm:$0xf]
        %v1269 = vld [vmem:[%s808 + $0x360] sm:$0xff]
        %v1270 = vld [vmem:[%s808 + $0x368] sm:$0xff]
        %v1271 = vld [vmem:[%s808 + $0x370] sm:$0xff]
        %v1272 = vld [vmem:[%s808 + $0x378] sm:$0xff]
        %v1273 = vld [vmem:[%s808 + $0x380] sm:$0xf]
        %v1274 = vld [vmem:[%s808 + $0x384] sm:$0xff]
        %v1275 = vld [vmem:[%s808 + $0x38c] sm:$0xff]
        %v1276 = vld [vmem:[%s808 + $0x394] sm:$0xff]
        %v1277 = vld [vmem:[%s808 + $0x39c] sm:$0xff]
        %v1278 = vld [vmem:[%s808 + $0x3a4] sm:$0xf]
        %v1279 = vld [vmem:[%s808 + $0x3a8] sm:$0xff]
        %v1280 = vld [vmem:[%s808 + $0x3b0] sm:$0xff]
        %v1281 = vld [vmem:[%s808 + $0x3b8] sm:$0xff]
        %v1282 = vld [vmem:[%s808 + $0x3c0] sm:$0xff]
        %v1283 = vld [vmem:[%s808 + $0x3c8] sm:$0xf]
        %v1284 = vld [vmem:[%s808 + $0x3cc] sm:$0xff]
        %v1285 = vld [vmem:[%s808 + $0x3d4] sm:$0xff]
        %v1286 = vld [vmem:[%s808 + $0x3dc] sm:$0xff]
        %v1287 = vld [vmem:[%s808 + $0x3e4] sm:$0xff]
        %v1288 = vld [vmem:[%s808 + $0x3ec] sm:$0xf]
        %v1289 = vld [vmem:[%s808 + $0x3f0] sm:$0xff]
        %v1290 = vld [vmem:[%s808 + $0x3f8] sm:$0xff]
        %v1291 = vld [vmem:[%s808 + $0x400] sm:$0xff]
        %v1292 = vld [vmem:[%s808 + $0x408] sm:$0xff]
        %v1293 = vld [vmem:[%s808 + $0x410] sm:$0xf]
        %v1294 = vld [vmem:[%s808 + $0x414] sm:$0xff]
        %v1295 = vld [vmem:[%s808 + $0x41c] sm:$0xff]
        %v1296 = vld [vmem:[%s808 + $0x424] sm:$0xff]
        %v1297 = vld [vmem:[%s808 + $0x42c] sm:$0xff]
        %v1298 = vld [vmem:[%s808 + $0x434] sm:$0xf]
        %v1299 = vld [vmem:[%s808 + $0x438] sm:$0xff]
        %v1300 = vld [vmem:[%s808 + $0x440] sm:$0xff]
        %v1301 = vld [vmem:[%s808 + $0x448] sm:$0xff]
        %v1302 = vld [vmem:[%s808 + $0x450] sm:$0xff]
        %v1303 = vld [vmem:[%s808 + $0x458] sm:$0xf]
        %v1304 = vld [vmem:[%s808 + $0x45c] sm:$0xff]
        %v1305 = vld [vmem:[%s808 + $0x464] sm:$0xff]
        %v1306 = vld [vmem:[%s808 + $0x46c] sm:$0xff]
        %v1307 = vld [vmem:[%s808 + $0x474] sm:$0xff]
        %v1308 = vld [vmem:[%s808 + $0x47c] sm:$0xf]
        %v1309 = vld [vmem:[%s808 + $0x480] sm:$0xff]
        %v1310 = vld [vmem:[%s808 + $0x488] sm:$0xff]
        %v1311 = vld [vmem:[%s808 + $0x490] sm:$0xff]
        %v1312 = vld [vmem:[%s808 + $0x498] sm:$0xff]
        %v1313 = vld [vmem:[%s808 + $0x4a0] sm:$0xf]
        %v1314 = vld [vmem:[%s808 + $0x4a4] sm:$0xff]
        %v1315 = vld [vmem:[%s808 + $0x4ac] sm:$0xff]
        %v1316 = vld [vmem:[%s808 + $0x4b4] sm:$0xff]
        %v1317 = vld [vmem:[%s808 + $0x4bc] sm:$0xff]
        %v1318 = vld [vmem:[%s808 + $0x4c4] sm:$0xf]
        %v1319 = vld [vmem:[%s808 + $0x4c8] sm:$0xff]
        %v1320 = vld [vmem:[%s808 + $0x4d0] sm:$0xff]
        %v1321 = vld [vmem:[%s808 + $0x4d8] sm:$0xff]
        %v1322 = vld [vmem:[%s808 + $0x4e0] sm:$0xff]
        %v1323 = vld [vmem:[%s808 + $0x4e8] sm:$0xf]
        %v1324 = vld [vmem:[%s808 + $0x4ec] sm:$0xff]
        %v1325 = vld [vmem:[%s808 + $0x4f4] sm:$0xff]
        %v1326 = vld [vmem:[%s808 + $0x4fc] sm:$0xff]
        %v1327 = vld [vmem:[%s808 + $0x504] sm:$0xff]
        %v1328 = vld [vmem:[%s808 + $0x50c] sm:$0xf]
        %v1329 = vld [vmem:[%s808 + $0x510] sm:$0xff]
        %v1330 = vld [vmem:[%s808 + $0x518] sm:$0xff]
        %v1331 = vld [vmem:[%s808 + $0x520] sm:$0xff]
        %v1332 = vld [vmem:[%s808 + $0x528] sm:$0xff]
        %v1333 = vld [vmem:[%s808 + $0x530] sm:$0xf]
        %v1334 = vld [vmem:[%s808 + $0x534] sm:$0xff]
        %v1335 = vld [vmem:[%s808 + $0x53c] sm:$0xff]
        %v1336 = vld [vmem:[%s808 + $0x544] sm:$0xff]
        %v1337 = vld [vmem:[%s808 + $0x54c] sm:$0xff]
        %v1338 = vld [vmem:[%s808 + $0x554] sm:$0xf]
        %v1339 = vld [vmem:[%s808 + $0x558] sm:$0xff]
        %v1340 = vld [vmem:[%s808 + $0x560] sm:$0xff]
        %v1341 = vld [vmem:[%s808 + $0x568] sm:$0xff]
        %v1342 = vld [vmem:[%s808 + $0x570] sm:$0xff]
        %v1343 = vld [vmem:[%s808 + $0x578] sm:$0xf]
        %v1344 = vld [vmem:[%s808 + $0x57c] sm:$0xff]
        %v1345 = vld [vmem:[%s808 + $0x584] sm:$0xff]
        %v1346 = vld [vmem:[%s808 + $0x58c] sm:$0xff]
        %v1347 = vld [vmem:[%s808 + $0x594] sm:$0xff]
        %v1348 = vld [vmem:[%s808 + $0x59c] sm:$0xf]
        %v1349 = vld [vmem:[%s808 + $0x5a0] sm:$0xff]
        %v1350 = vld [vmem:[%s808 + $0x5a8] sm:$0xff]
        %v1351 = vld [vmem:[%s808 + $0x5b0] sm:$0xff]
        %v1352 = vld [vmem:[%s808 + $0x5b8] sm:$0xff]
        %v1353 = vld [vmem:[%s808 + $0x5c0] sm:$0xf]
        %v1354 = vld [vmem:[%s808 + $0x5c4] sm:$0xff]
        %v1355 = vld [vmem:[%s808 + $0x5cc] sm:$0xff]
        %v1356 = vld [vmem:[%s808 + $0x5d4] sm:$0xff]
        %v1357 = vld [vmem:[%s808 + $0x5dc] sm:$0xff]
        %v1358 = vld [vmem:[%s808 + $0x5e4] sm:$0xf]
        %v1359 = vld [vmem:[%s808 + $0x5e8] sm:$0xff]
        %v1360 = vld [vmem:[%s808 + $0x5f0] sm:$0xff]
        %v1361 = vld [vmem:[%s808 + $0x5f8] sm:$0xff]
        %v1362 = vld [vmem:[%s808 + $0x600] sm:$0xff]
        %v1363 = vld [vmem:[%s808 + $0x608] sm:$0xf]
        %v1364 = vld [vmem:[%s808 + $0x60c] sm:$0xff]
        %v1365 = vld [vmem:[%s808 + $0x614] sm:$0xff]
        %v1366 = vld [vmem:[%s808 + $0x61c] sm:$0xff]
        %v1367 = vld [vmem:[%s808 + $0x624] sm:$0xff]
        %v1368 = vld [vmem:[%s808 + $0x62c] sm:$0xf]
        %v1369 = vld [vmem:[%s808 + $0x630] sm:$0xff]
        %v1370 = vld [vmem:[%s808 + $0x638] sm:$0xff]
        %v1371 = vld [vmem:[%s808 + $0x640] sm:$0xff]
        %v1372 = vld [vmem:[%s808 + $0x648] sm:$0xff]
        %v1373 = vld [vmem:[%s808 + $0x650] sm:$0xf]
        %v1374 = vld [vmem:[%s808 + $0x654] sm:$0xff]
        %v1375 = vld [vmem:[%s808 + $0x65c] sm:$0xff]
        %v1376 = vld [vmem:[%s808 + $0x664] sm:$0xff]
        %v1377 = vld [vmem:[%s808 + $0x66c] sm:$0xff]
        %v1378 = vld [vmem:[%s808 + $0x674] sm:$0xf]
        %v1379 = vld [vmem:[%s808 + $0x678] sm:$0xff]
        %v1380 = vld [vmem:[%s808 + $0x680] sm:$0xff]
        %v1381 = vld [vmem:[%s808 + $0x688] sm:$0xff]
        %v1382 = vld [vmem:[%s808 + $0x690] sm:$0xff]
        %v1383 = vld [vmem:[%s808 + $0x698] sm:$0xf]
        %v1384 = vld [vmem:[%s808 + $0x69c] sm:$0xff]
        %v1385 = vld [vmem:[%s808 + $0x6a4] sm:$0xff]
        %v1386 = vld [vmem:[%s808 + $0x6ac] sm:$0xff]
        %v1387 = vld [vmem:[%s808 + $0x6b4] sm:$0xff]
        %v1388 = vld [vmem:[%s808 + $0x6bc] sm:$0xf]
        %v1389 = vld [vmem:[%s818] sm:$0xff]
        %v1390 = vld [vmem:[%s818 + $0x8] sm:$0x1]
        %v1393 = vperm.slane %v1389, 0
        %v1394 = vperm.slane %v1389, 1
        %v1395 = vperm.slane %v1389, 2
        %v1396 = vperm.slane %v1389, 3
        %v1397 = vperm.slane %v1389, 4
        %v1398 = vperm.slane %v1389, 5
        %v1399 = vperm.slane %v1389, 6
        %v1400 = vperm.slane %v1389, 7
        %v1401 = vperm.slane %v1390, 0
        %v1651 = vunpack.c.l.b16 %v1149
        %v1652 = vunpack.c.h.b16 %v1149
        %v1653 = vunpack.c.l.b16 %v1150
        %v1654 = vunpack.c.h.b16 %v1150
        %v1655 = vunpack.c.l.b16 %v1151
        %v1656 = vunpack.c.h.b16 %v1151
        %v1657 = vunpack.c.l.b16 %v1152
        %v1658 = vunpack.c.h.b16 %v1152
        %v1659 = vunpack.c.l.b16 %v1153
        %v1660 = vunpack.c.l.b16 %v1154
        %v1661 = vunpack.c.h.b16 %v1154
        %v1662 = vunpack.c.l.b16 %v1155
        %v1663 = vunpack.c.h.b16 %v1155
        %v1664 = vunpack.c.l.b16 %v1156
        %v1665 = vunpack.c.h.b16 %v1156
        %v1666 = vunpack.c.l.b16 %v1157
        %v1667 = vunpack.c.h.b16 %v1157
        %v1668 = vunpack.c.l.b16 %v1158
        %v1669 = vunpack.c.l.b16 %v1159
        %v1670 = vunpack.c.h.b16 %v1159
        %v1671 = vunpack.c.l.b16 %v1160
        %v1672 = vunpack.c.h.b16 %v1160
        %v1673 = vunpack.c.l.b16 %v1161
        %v1674 = vunpack.c.h.b16 %v1161
        %v1675 = vunpack.c.l.b16 %v1162
        %v1676 = vunpack.c.h.b16 %v1162
        %v1677 = vunpack.c.l.b16 %v1163
        %v1678 = vunpack.c.l.b16 %v1164
        %v1679 = vunpack.c.h.b16 %v1164
        %v1680 = vunpack.c.l.b16 %v1165
        %v1681 = vunpack.c.h.b16 %v1165
        %v1682 = vunpack.c.l.b16 %v1166
        %v1683 = vunpack.c.h.b16 %v1166
        %v1684 = vunpack.c.l.b16 %v1167
        %v1685 = vunpack.c.h.b16 %v1167
        %v1686 = vunpack.c.l.b16 %v1168
        %v1687 = vunpack.c.l.b16 %v1169
        %v1688 = vunpack.c.h.b16 %v1169
        %v1689 = vunpack.c.l.b16 %v1170
        %v1690 = vunpack.c.h.b16 %v1170
        %v1691 = vunpack.c.l.b16 %v1171
        %v1692 = vunpack.c.h.b16 %v1171
        %v1693 = vunpack.c.l.b16 %v1172
        %v1694 = vunpack.c.h.b16 %v1172
        %v1695 = vunpack.c.l.b16 %v1173
        %v1696 = vunpack.c.l.b16 %v1174
        %v1697 = vunpack.c.h.b16 %v1174
        %v1698 = vunpack.c.l.b16 %v1175
        %v1699 = vunpack.c.h.b16 %v1175
        %v1700 = vunpack.c.l.b16 %v1176
        %v1701 = vunpack.c.h.b16 %v1176
        %v1702 = vunpack.c.l.b16 %v1177
        %v1703 = vunpack.c.h.b16 %v1177
        %v1704 = vunpack.c.l.b16 %v1178
        %v1705 = vunpack.c.l.b16 %v1179
        %v1706 = vunpack.c.h.b16 %v1179
        %v1707 = vunpack.c.l.b16 %v1180
        %v1708 = vunpack.c.h.b16 %v1180
        %v1709 = vunpack.c.l.b16 %v1181
        %v1710 = vunpack.c.h.b16 %v1181
        %v1711 = vunpack.c.l.b16 %v1182
        %v1712 = vunpack.c.h.b16 %v1182
        %v1713 = vunpack.c.l.b16 %v1183
        %v1714 = vunpack.c.l.b16 %v1184
        %v1715 = vunpack.c.h.b16 %v1184
        %v1716 = vunpack.c.l.b16 %v1185
        %v1717 = vunpack.c.h.b16 %v1185
        %v1718 = vunpack.c.l.b16 %v1186
        %v1719 = vunpack.c.h.b16 %v1186
        %v1720 = vunpack.c.l.b16 %v1187
        %v1721 = vunpack.c.h.b16 %v1187
        %v1722 = vunpack.c.l.b16 %v1188
        %v1723 = vunpack.c.l.b16 %v1189
        %v1724 = vunpack.c.h.b16 %v1189
        %v1725 = vunpack.c.l.b16 %v1190
        %v1726 = vunpack.c.h.b16 %v1190
        %v1727 = vunpack.c.l.b16 %v1191
        %v1728 = vunpack.c.h.b16 %v1191
        %v1729 = vunpack.c.l.b16 %v1192
        %v1730 = vunpack.c.h.b16 %v1192
        %v1731 = vunpack.c.l.b16 %v1193
        %v1732 = vunpack.c.l.b16 %v1194
        %v1733 = vunpack.c.h.b16 %v1194
        %v1734 = vunpack.c.l.b16 %v1195
        %v1735 = vunpack.c.h.b16 %v1195
        %v1736 = vunpack.c.l.b16 %v1196
        %v1737 = vunpack.c.h.b16 %v1196
        %v1738 = vunpack.c.l.b16 %v1197
        %v1739 = vunpack.c.h.b16 %v1197
        %v1740 = vunpack.c.l.b16 %v1198
        %v1741 = vunpack.c.l.b16 %v1199
        %v1742 = vunpack.c.h.b16 %v1199
        %v1743 = vunpack.c.l.b16 %v1200
        %v1744 = vunpack.c.h.b16 %v1200
        %v1745 = vunpack.c.l.b16 %v1201
        %v1746 = vunpack.c.h.b16 %v1201
        %v1747 = vunpack.c.l.b16 %v1202
        %v1748 = vunpack.c.h.b16 %v1202
        %v1749 = vunpack.c.l.b16 %v1203
        %v1750 = vunpack.c.l.b16 %v1204
        %v1751 = vunpack.c.h.b16 %v1204
        %v1752 = vunpack.c.l.b16 %v1205
        %v1753 = vunpack.c.h.b16 %v1205
        %v1754 = vunpack.c.l.b16 %v1206
        %v1755 = vunpack.c.h.b16 %v1206
        %v1756 = vunpack.c.l.b16 %v1207
        %v1757 = vunpack.c.h.b16 %v1207
        %v1758 = vunpack.c.l.b16 %v1208
        %v1759 = vunpack.c.l.b16 %v1209
        %v1760 = vunpack.c.h.b16 %v1209
        %v1761 = vunpack.c.l.b16 %v1210
        %v1762 = vunpack.c.h.b16 %v1210
        %v1763 = vunpack.c.l.b16 %v1211
        %v1764 = vunpack.c.h.b16 %v1211
        %v1765 = vunpack.c.l.b16 %v1212
        %v1766 = vunpack.c.h.b16 %v1212
        %v1767 = vunpack.c.l.b16 %v1213
        %v1768 = vunpack.c.l.b16 %v1214
        %v1769 = vunpack.c.h.b16 %v1214
        %v1770 = vunpack.c.l.b16 %v1215
        %v1771 = vunpack.c.h.b16 %v1215
        %v1772 = vunpack.c.l.b16 %v1216
        %v1773 = vunpack.c.h.b16 %v1216
        %v1774 = vunpack.c.l.b16 %v1217
        %v1775 = vunpack.c.h.b16 %v1217
        %v1776 = vunpack.c.l.b16 %v1218
        %v1777 = vunpack.c.l.b16 %v1219
        %v1778 = vunpack.c.h.b16 %v1219
        %v1779 = vunpack.c.l.b16 %v1220
        %v1780 = vunpack.c.h.b16 %v1220
        %v1781 = vunpack.c.l.b16 %v1221
        %v1782 = vunpack.c.h.b16 %v1221
        %v1783 = vunpack.c.l.b16 %v1222
        %v1784 = vunpack.c.h.b16 %v1222
        %v1785 = vunpack.c.l.b16 %v1223
        %v1786 = vunpack.c.l.b16 %v1224
        %v1787 = vunpack.c.h.b16 %v1224
        %v1788 = vunpack.c.l.b16 %v1225
        %v1789 = vunpack.c.h.b16 %v1225
        %v1790 = vunpack.c.l.b16 %v1226
        %v1791 = vunpack.c.h.b16 %v1226
        %v1792 = vunpack.c.l.b16 %v1227
        %v1793 = vunpack.c.h.b16 %v1227
        %v1794 = vunpack.c.l.b16 %v1228
        %v1795 = vunpack.c.l.b16 %v1229
        %v1796 = vunpack.c.h.b16 %v1229
        %v1797 = vunpack.c.l.b16 %v1230
        %v1798 = vunpack.c.h.b16 %v1230
        %v1799 = vunpack.c.l.b16 %v1231
        %v1800 = vunpack.c.h.b16 %v1231
        %v1801 = vunpack.c.l.b16 %v1232
        %v1802 = vunpack.c.h.b16 %v1232
        %v1803 = vunpack.c.l.b16 %v1233
        %v1804 = vunpack.c.l.b16 %v1234
        %v1805 = vunpack.c.h.b16 %v1234
        %v1806 = vunpack.c.l.b16 %v1235
        %v1807 = vunpack.c.h.b16 %v1235
        %v1808 = vunpack.c.l.b16 %v1236
        %v1809 = vunpack.c.h.b16 %v1236
        %v1810 = vunpack.c.l.b16 %v1237
        %v1811 = vunpack.c.h.b16 %v1237
        %v1812 = vunpack.c.l.b16 %v1238
        %v1813 = vunpack.c.l.b16 %v1239
        %v1814 = vunpack.c.h.b16 %v1239
        %v1815 = vunpack.c.l.b16 %v1240
        %v1816 = vunpack.c.h.b16 %v1240
        %v1817 = vunpack.c.l.b16 %v1241
        %v1818 = vunpack.c.h.b16 %v1241
        %v1819 = vunpack.c.l.b16 %v1242
        %v1820 = vunpack.c.h.b16 %v1242
        %v1821 = vunpack.c.l.b16 %v1243
        %v1822 = vunpack.c.l.b16 %v1244
        %v1823 = vunpack.c.h.b16 %v1244
        %v1824 = vunpack.c.l.b16 %v1245
        %v1825 = vunpack.c.h.b16 %v1245
        %v1826 = vunpack.c.l.b16 %v1246
        %v1827 = vunpack.c.h.b16 %v1246
        %v1828 = vunpack.c.l.b16 %v1247
        %v1829 = vunpack.c.h.b16 %v1247
        %v1830 = vunpack.c.l.b16 %v1248
        %v1831 = vunpack.c.l.b16 %v1249
        %v1832 = vunpack.c.h.b16 %v1249
        %v1833 = vunpack.c.l.b16 %v1250
        %v1834 = vunpack.c.h.b16 %v1250
        %v1835 = vunpack.c.l.b16 %v1251
        %v1836 = vunpack.c.h.b16 %v1251
        %v1837 = vunpack.c.l.b16 %v1252
        %v1838 = vunpack.c.h.b16 %v1252
        %v1839 = vunpack.c.l.b16 %v1253
        %v1840 = vunpack.c.l.b16 %v1254
        %v1841 = vunpack.c.h.b16 %v1254
        %v1842 = vunpack.c.l.b16 %v1255
        %v1843 = vunpack.c.h.b16 %v1255
        %v1844 = vunpack.c.l.b16 %v1256
        %v1845 = vunpack.c.h.b16 %v1256
        %v1846 = vunpack.c.l.b16 %v1257
        %v1847 = vunpack.c.h.b16 %v1257
        %v1848 = vunpack.c.l.b16 %v1258
        %v1849 = vunpack.c.l.b16 %v1259
        %v1850 = vunpack.c.h.b16 %v1259
        %v1851 = vunpack.c.l.b16 %v1260
        %v1852 = vunpack.c.h.b16 %v1260
        %v1853 = vunpack.c.l.b16 %v1261
        %v1854 = vunpack.c.h.b16 %v1261
        %v1855 = vunpack.c.l.b16 %v1262
        %v1856 = vunpack.c.h.b16 %v1262
        %v1857 = vunpack.c.l.b16 %v1263
        %v1858 = vunpack.c.l.b16 %v1264
        %v1859 = vunpack.c.h.b16 %v1264
        %v1860 = vunpack.c.l.b16 %v1265
        %v1861 = vunpack.c.h.b16 %v1265
        %v1862 = vunpack.c.l.b16 %v1266
        %v1863 = vunpack.c.h.b16 %v1266
        %v1864 = vunpack.c.l.b16 %v1267
        %v1865 = vunpack.c.h.b16 %v1267
        %v1866 = vunpack.c.l.b16 %v1268
        %v1867 = vunpack.c.l.b16 %v1269
        %v1868 = vunpack.c.h.b16 %v1269
        %v1869 = vunpack.c.l.b16 %v1270
        %v1870 = vunpack.c.h.b16 %v1270
        %v1871 = vunpack.c.l.b16 %v1271
        %v1872 = vunpack.c.h.b16 %v1271
        %v1873 = vunpack.c.l.b16 %v1272
        %v1874 = vunpack.c.h.b16 %v1272
        %v1875 = vunpack.c.l.b16 %v1273
        %v1876 = vunpack.c.l.b16 %v1274
        %v1877 = vunpack.c.h.b16 %v1274
        %v1878 = vunpack.c.l.b16 %v1275
        %v1879 = vunpack.c.h.b16 %v1275
        %v1880 = vunpack.c.l.b16 %v1276
        %v1881 = vunpack.c.h.b16 %v1276
        %v1882 = vunpack.c.l.b16 %v1277
        %v1883 = vunpack.c.h.b16 %v1277
        %v1884 = vunpack.c.l.b16 %v1278
        %v1885 = vunpack.c.l.b16 %v1279
        %v1886 = vunpack.c.h.b16 %v1279
        %v1887 = vunpack.c.l.b16 %v1280
        %v1888 = vunpack.c.h.b16 %v1280
        %v1889 = vunpack.c.l.b16 %v1281
        %v1890 = vunpack.c.h.b16 %v1281
        %v1891 = vunpack.c.l.b16 %v1282
        %v1892 = vunpack.c.h.b16 %v1282
        %v1893 = vunpack.c.l.b16 %v1283
        %v1894 = vunpack.c.l.b16 %v1284
        %v1895 = vunpack.c.h.b16 %v1284
        %v1896 = vunpack.c.l.b16 %v1285
        %v1897 = vunpack.c.h.b16 %v1285
        %v1898 = vunpack.c.l.b16 %v1286
        %v1899 = vunpack.c.h.b16 %v1286
        %v1900 = vunpack.c.l.b16 %v1287
        %v1901 = vunpack.c.h.b16 %v1287
        %v1902 = vunpack.c.l.b16 %v1288
        %v1903 = vunpack.c.l.b16 %v1289
        %v1904 = vunpack.c.h.b16 %v1289
        %v1905 = vunpack.c.l.b16 %v1290
        %v1906 = vunpack.c.h.b16 %v1290
        %v1907 = vunpack.c.l.b16 %v1291
        %v1908 = vunpack.c.h.b16 %v1291
        %v1909 = vunpack.c.l.b16 %v1292
        %v1910 = vunpack.c.h.b16 %v1292
        %v1911 = vunpack.c.l.b16 %v1293
        %v1912 = vunpack.c.l.b16 %v1294
        %v1913 = vunpack.c.h.b16 %v1294
        %v1914 = vunpack.c.l.b16 %v1295
        %v1915 = vunpack.c.h.b16 %v1295
        %v1916 = vunpack.c.l.b16 %v1296
        %v1917 = vunpack.c.h.b16 %v1296
        %v1918 = vunpack.c.l.b16 %v1297
        %v1919 = vunpack.c.h.b16 %v1297
        %v1920 = vunpack.c.l.b16 %v1298
        %v1921 = vunpack.c.l.b16 %v1299
        %v1922 = vunpack.c.h.b16 %v1299
        %v1923 = vunpack.c.l.b16 %v1300
        %v1924 = vunpack.c.h.b16 %v1300
        %v1925 = vunpack.c.l.b16 %v1301
        %v1926 = vunpack.c.h.b16 %v1301
        %v1927 = vunpack.c.l.b16 %v1302
        %v1928 = vunpack.c.h.b16 %v1302
        %v1929 = vunpack.c.l.b16 %v1303
        %v1930 = vunpack.c.l.b16 %v1304
        %v1931 = vunpack.c.h.b16 %v1304
        %v1932 = vunpack.c.l.b16 %v1305
        %v1933 = vunpack.c.h.b16 %v1305
        %v1934 = vunpack.c.l.b16 %v1306
        %v1935 = vunpack.c.h.b16 %v1306
        %v1936 = vunpack.c.l.b16 %v1307
        %v1937 = vunpack.c.h.b16 %v1307
        %v1938 = vunpack.c.l.b16 %v1308
        %v1939 = vunpack.c.l.b16 %v1309
        %v1940 = vunpack.c.h.b16 %v1309
        %v1941 = vunpack.c.l.b16 %v1310
        %v1942 = vunpack.c.h.b16 %v1310
        %v1943 = vunpack.c.l.b16 %v1311
        %v1944 = vunpack.c.h.b16 %v1311
        %v1945 = vunpack.c.l.b16 %v1312
        %v1946 = vunpack.c.h.b16 %v1312
        %v1947 = vunpack.c.l.b16 %v1313
        %v1948 = vunpack.c.l.b16 %v1314
        %v1949 = vunpack.c.h.b16 %v1314
        %v1950 = vunpack.c.l.b16 %v1315
        %v1951 = vunpack.c.h.b16 %v1315
        %v1952 = vunpack.c.l.b16 %v1316
        %v1953 = vunpack.c.h.b16 %v1316
        %v1954 = vunpack.c.l.b16 %v1317
        %v1955 = vunpack.c.h.b16 %v1317
        %v1956 = vunpack.c.l.b16 %v1318
        %v1957 = vunpack.c.l.b16 %v1319
        %v1958 = vunpack.c.h.b16 %v1319
        %v1959 = vunpack.c.l.b16 %v1320
        %v1960 = vunpack.c.h.b16 %v1320
        %v1961 = vunpack.c.l.b16 %v1321
        %v1962 = vunpack.c.h.b16 %v1321
        %v1963 = vunpack.c.l.b16 %v1322
        %v1964 = vunpack.c.h.b16 %v1322
        %v1965 = vunpack.c.l.b16 %v1323
        %v1966 = vunpack.c.l.b16 %v1324
        %v1967 = vunpack.c.h.b16 %v1324
        %v1968 = vunpack.c.l.b16 %v1325
        %v1969 = vunpack.c.h.b16 %v1325
        %v1970 = vunpack.c.l.b16 %v1326
        %v1971 = vunpack.c.h.b16 %v1326
        %v1972 = vunpack.c.l.b16 %v1327
        %v1973 = vunpack.c.h.b16 %v1327
        %v1974 = vunpack.c.l.b16 %v1328
        %v1975 = vunpack.c.l.b16 %v1329
        %v1976 = vunpack.c.h.b16 %v1329
        %v1977 = vunpack.c.l.b16 %v1330
        %v1978 = vunpack.c.h.b16 %v1330
        %v1979 = vunpack.c.l.b16 %v1331
        %v1980 = vunpack.c.h.b16 %v1331
        %v1981 = vunpack.c.l.b16 %v1332
        %v1982 = vunpack.c.h.b16 %v1332
        %v1983 = vunpack.c.l.b16 %v1333
        %v1984 = vunpack.c.l.b16 %v1334
        %v1985 = vunpack.c.h.b16 %v1334
        %v1986 = vunpack.c.l.b16 %v1335
        %v1987 = vunpack.c.h.b16 %v1335
        %v1988 = vunpack.c.l.b16 %v1336
        %v1989 = vunpack.c.h.b16 %v1336
        %v1990 = vunpack.c.l.b16 %v1337
        %v1991 = vunpack.c.h.b16 %v1337
        %v1992 = vunpack.c.l.b16 %v1338
        %v1993 = vunpack.c.l.b16 %v1339
        %v1994 = vunpack.c.h.b16 %v1339
        %v1995 = vunpack.c.l.b16 %v1340
        %v1996 = vunpack.c.h.b16 %v1340
        %v1997 = vunpack.c.l.b16 %v1341
        %v1998 = vunpack.c.h.b16 %v1341
        %v1999 = vunpack.c.l.b16 %v1342
        %v2000 = vunpack.c.h.b16 %v1342
        %v2001 = vunpack.c.l.b16 %v1343
        %v2002 = vunpack.c.l.b16 %v1344
        %v2003 = vunpack.c.h.b16 %v1344
        %v2004 = vunpack.c.l.b16 %v1345
        %v2005 = vunpack.c.h.b16 %v1345
        %v2006 = vunpack.c.l.b16 %v1346
        %v2007 = vunpack.c.h.b16 %v1346
        %v2008 = vunpack.c.l.b16 %v1347
        %v2009 = vunpack.c.h.b16 %v1347
        %v2010 = vunpack.c.l.b16 %v1348
        %v2011 = vunpack.c.l.b16 %v1349
        %v2012 = vunpack.c.h.b16 %v1349
        %v2013 = vunpack.c.l.b16 %v1350
        %v2014 = vunpack.c.h.b16 %v1350
        %v2015 = vunpack.c.l.b16 %v1351
        %v2016 = vunpack.c.h.b16 %v1351
        %v2017 = vunpack.c.l.b16 %v1352
        %v2018 = vunpack.c.h.b16 %v1352
        %v2019 = vunpack.c.l.b16 %v1353
        %v2020 = vunpack.c.l.b16 %v1354
        %v2021 = vunpack.c.h.b16 %v1354
        %v2022 = vunpack.c.l.b16 %v1355
        %v2023 = vunpack.c.h.b16 %v1355
        %v2024 = vunpack.c.l.b16 %v1356
        %v2025 = vunpack.c.h.b16 %v1356
        %v2026 = vunpack.c.l.b16 %v1357
        %v2027 = vunpack.c.h.b16 %v1357
        %v2028 = vunpack.c.l.b16 %v1358
        %v2029 = vunpack.c.l.b16 %v1359
        %v2030 = vunpack.c.h.b16 %v1359
        %v2031 = vunpack.c.l.b16 %v1360
        %v2032 = vunpack.c.h.b16 %v1360
        %v2033 = vunpack.c.l.b16 %v1361
        %v2034 = vunpack.c.h.b16 %v1361
        %v2035 = vunpack.c.l.b16 %v1362
        %v2036 = vunpack.c.h.b16 %v1362
        %v2037 = vunpack.c.l.b16 %v1363
        %v2038 = vunpack.c.l.b16 %v1364
        %v2039 = vunpack.c.h.b16 %v1364
        %v2040 = vunpack.c.l.b16 %v1365
        %v2041 = vunpack.c.h.b16 %v1365
        %v2042 = vunpack.c.l.b16 %v1366
        %v2043 = vunpack.c.h.b16 %v1366
        %v2044 = vunpack.c.l.b16 %v1367
        %v2045 = vunpack.c.h.b16 %v1367
        %v2046 = vunpack.c.l.b16 %v1368
        %v2047 = vunpack.c.l.b16 %v1369
        %v2048 = vunpack.c.h.b16 %v1369
        %v2049 = vunpack.c.l.b16 %v1370
        %v2050 = vunpack.c.h.b16 %v1370
        %v2051 = vunpack.c.l.b16 %v1371
        %v2052 = vunpack.c.h.b16 %v1371
        %v2053 = vunpack.c.l.b16 %v1372
        %v2054 = vunpack.c.h.b16 %v1372
        %v2055 = vunpack.c.l.b16 %v1373
        %v2056 = vunpack.c.l.b16 %v1374
        %v2057 = vunpack.c.h.b16 %v1374
        %v2058 = vunpack.c.l.b16 %v1375
        %v2059 = vunpack.c.h.b16 %v1375
        %v2060 = vunpack.c.l.b16 %v1376
        %v2061 = vunpack.c.h.b16 %v1376
        %v2062 = vunpack.c.l.b16 %v1377
        %v2063 = vunpack.c.h.b16 %v1377
        %v2064 = vunpack.c.l.b16 %v1378
        %v2065 = vunpack.c.l.b16 %v1379
        %v2066 = vunpack.c.h.b16 %v1379
        %v2067 = vunpack.c.l.b16 %v1380
        %v2068 = vunpack.c.h.b16 %v1380
        %v2069 = vunpack.c.l.b16 %v1381
        %v2070 = vunpack.c.h.b16 %v1381
        %v2071 = vunpack.c.l.b16 %v1382
        %v2072 = vunpack.c.h.b16 %v1382
        %v2073 = vunpack.c.l.b16 %v1383
        %v2074 = vunpack.c.l.b16 %v1384
        %v2075 = vunpack.c.h.b16 %v1384
        %v2076 = vunpack.c.l.b16 %v1385
        %v2077 = vunpack.c.h.b16 %v1385
        %v2078 = vunpack.c.l.b16 %v1386
        %v2079 = vunpack.c.h.b16 %v1386
        %v2080 = vunpack.c.l.b16 %v1387
        %v2081 = vunpack.c.h.b16 %v1387
        %v2082 = vunpack.c.l.b16 %v1388
        %v2083 = vpack.c.b16 %v1660, %v1651
        %v2084 = vpack.c.b16 %v1661, %v1652
        %v2085 = vpack.c.b16 %v1662, %v1653
        %v2086 = vpack.c.b16 %v1663, %v1654
        %v2087 = vpack.c.b16 %v1664, %v1655
        %v2088 = vpack.c.b16 %v1665, %v1656
        %v2089 = vpack.c.b16 %v1666, %v1657
        %v2090 = vpack.c.b16 %v1667, %v1658
        %v2091 = vpack.c.b16 %v1668, %v1659
        %v2092 = vpack.c.b16 %v1678, %v1669
        %v2093 = vpack.c.b16 %v1679, %v1670
        %v2094 = vpack.c.b16 %v1680, %v1671
        %v2095 = vpack.c.b16 %v1681, %v1672
        %v2096 = vpack.c.b16 %v1682, %v1673
        %v2097 = vpack.c.b16 %v1683, %v1674
        %v2098 = vpack.c.b16 %v1684, %v1675
        %v2099 = vpack.c.b16 %v1685, %v1676
        %v2100 = vpack.c.b16 %v1686, %v1677
        %v2101 = vpack.c.b16 %v1696, %v1687
        %v2102 = vpack.c.b16 %v1697, %v1688
        %v2103 = vpack.c.b16 %v1698, %v1689
        %v2104 = vpack.c.b16 %v1699, %v1690
        %v2105 = vpack.c.b16 %v1700, %v1691
        %v2106 = vpack.c.b16 %v1701, %v1692
        %v2107 = vpack.c.b16 %v1702, %v1693
        %v2108 = vpack.c.b16 %v1703, %v1694
        %v2109 = vpack.c.b16 %v1704, %v1695
        %v2110 = vpack.c.b16 %v1714, %v1705
        %v2111 = vpack.c.b16 %v1715, %v1706
        %v2112 = vpack.c.b16 %v1716, %v1707
        %v2113 = vpack.c.b16 %v1717, %v1708
        %v2114 = vpack.c.b16 %v1718, %v1709
        %v2115 = vpack.c.b16 %v1719, %v1710
        %v2116 = vpack.c.b16 %v1720, %v1711
        %v2117 = vpack.c.b16 %v1721, %v1712
        %v2118 = vpack.c.b16 %v1722, %v1713
        %v2119 = vpack.c.b16 %v1732, %v1723
        %v2120 = vpack.c.b16 %v1733, %v1724
        %v2121 = vpack.c.b16 %v1734, %v1725
        %v2122 = vpack.c.b16 %v1735, %v1726
        %v2123 = vpack.c.b16 %v1736, %v1727
        %v2124 = vpack.c.b16 %v1737, %v1728
        %v2125 = vpack.c.b16 %v1738, %v1729
        %v2126 = vpack.c.b16 %v1739, %v1730
        %v2127 = vpack.c.b16 %v1740, %v1731
        %v2128 = vpack.c.b16 %v1750, %v1741
        %v2129 = vpack.c.b16 %v1751, %v1742
        %v2130 = vpack.c.b16 %v1752, %v1743
        %v2131 = vpack.c.b16 %v1753, %v1744
        %v2132 = vpack.c.b16 %v1754, %v1745
        %v2133 = vpack.c.b16 %v1755, %v1746
        %v2134 = vpack.c.b16 %v1756, %v1747
        %v2135 = vpack.c.b16 %v1757, %v1748
        %v2136 = vpack.c.b16 %v1758, %v1749
        %v2137 = vpack.c.b16 %v1768, %v1759
        %v2138 = vpack.c.b16 %v1769, %v1760
        %v2139 = vpack.c.b16 %v1770, %v1761
        %v2140 = vpack.c.b16 %v1771, %v1762
        %v2141 = vpack.c.b16 %v1772, %v1763
        %v2142 = vpack.c.b16 %v1773, %v1764
        %v2143 = vpack.c.b16 %v1774, %v1765
        %v2144 = vpack.c.b16 %v1775, %v1766
        %v2145 = vpack.c.b16 %v1776, %v1767
        %v2146 = vpack.c.b16 %v1786, %v1777
        %v2147 = vpack.c.b16 %v1787, %v1778
        %v2148 = vpack.c.b16 %v1788, %v1779
        %v2149 = vpack.c.b16 %v1789, %v1780
        %v2150 = vpack.c.b16 %v1790, %v1781
        %v2151 = vpack.c.b16 %v1791, %v1782
        %v2152 = vpack.c.b16 %v1792, %v1783
        %v2153 = vpack.c.b16 %v1793, %v1784
        %v2154 = vpack.c.b16 %v1794, %v1785
        %v2155 = vpack.c.b16 %v1804, %v1795
        %v2156 = vpack.c.b16 %v1805, %v1796
        %v2157 = vpack.c.b16 %v1806, %v1797
        %v2158 = vpack.c.b16 %v1807, %v1798
        %v2159 = vpack.c.b16 %v1808, %v1799
        %v2160 = vpack.c.b16 %v1809, %v1800
        %v2161 = vpack.c.b16 %v1810, %v1801
        %v2162 = vpack.c.b16 %v1811, %v1802
        %v2163 = vpack.c.b16 %v1812, %v1803
        %v2164 = vpack.c.b16 %v1822, %v1813
        %v2165 = vpack.c.b16 %v1823, %v1814
        %v2166 = vpack.c.b16 %v1824, %v1815
        %v2167 = vpack.c.b16 %v1825, %v1816
        %v2168 = vpack.c.b16 %v1826, %v1817
        %v2169 = vpack.c.b16 %v1827, %v1818
        %v2170 = vpack.c.b16 %v1828, %v1819
        %v2171 = vpack.c.b16 %v1829, %v1820
        %v2172 = vpack.c.b16 %v1830, %v1821
        %v2173 = vpack.c.b16 %v1840, %v1831
        %v2174 = vpack.c.b16 %v1841, %v1832
        %v2175 = vpack.c.b16 %v1842, %v1833
        %v2176 = vpack.c.b16 %v1843, %v1834
        %v2177 = vpack.c.b16 %v1844, %v1835
        %v2178 = vpack.c.b16 %v1845, %v1836
        %v2179 = vpack.c.b16 %v1846, %v1837
        %v2180 = vpack.c.b16 %v1847, %v1838
        %v2181 = vpack.c.b16 %v1848, %v1839
        %v2182 = vpack.c.b16 %v1858, %v1849
        %v2183 = vpack.c.b16 %v1859, %v1850
        %v2184 = vpack.c.b16 %v1860, %v1851
        %v2185 = vpack.c.b16 %v1861, %v1852
        %v2186 = vpack.c.b16 %v1862, %v1853
        %v2187 = vpack.c.b16 %v1863, %v1854
        %v2188 = vpack.c.b16 %v1864, %v1855
        %v2189 = vpack.c.b16 %v1865, %v1856
        %v2190 = vpack.c.b16 %v1866, %v1857
        %v2191 = vpack.c.b16 %v1876, %v1867
        %v2192 = vpack.c.b16 %v1877, %v1868
        %v2193 = vpack.c.b16 %v1878, %v1869
        %v2194 = vpack.c.b16 %v1879, %v1870
        %v2195 = vpack.c.b16 %v1880, %v1871
        %v2196 = vpack.c.b16 %v1881, %v1872
        %v2197 = vpack.c.b16 %v1882, %v1873
        %v2198 = vpack.c.b16 %v1883, %v1874
        %v2199 = vpack.c.b16 %v1884, %v1875
        %v2200 = vpack.c.b16 %v1894, %v1885
        %v2201 = vpack.c.b16 %v1895, %v1886
        %v2202 = vpack.c.b16 %v1896, %v1887
        %v2203 = vpack.c.b16 %v1897, %v1888
        %v2204 = vpack.c.b16 %v1898, %v1889
        %v2205 = vpack.c.b16 %v1899, %v1890
        %v2206 = vpack.c.b16 %v1900, %v1891
        %v2207 = vpack.c.b16 %v1901, %v1892
        %v2208 = vpack.c.b16 %v1902, %v1893
        %v2209 = vpack.c.b16 %v1912, %v1903
        %v2210 = vpack.c.b16 %v1913, %v1904
        %v2211 = vpack.c.b16 %v1914, %v1905
        %v2212 = vpack.c.b16 %v1915, %v1906
        %v2213 = vpack.c.b16 %v1916, %v1907
        %v2214 = vpack.c.b16 %v1917, %v1908
        %v2215 = vpack.c.b16 %v1918, %v1909
        %v2216 = vpack.c.b16 %v1919, %v1910
        %v2217 = vpack.c.b16 %v1920, %v1911
        %v2218 = vpack.c.b16 %v1930, %v1921
        %v2219 = vpack.c.b16 %v1931, %v1922
        %v2220 = vpack.c.b16 %v1932, %v1923
        %v2221 = vpack.c.b16 %v1933, %v1924
        %v2222 = vpack.c.b16 %v1934, %v1925
        %v2223 = vpack.c.b16 %v1935, %v1926
        %v2224 = vpack.c.b16 %v1936, %v1927
        %v2225 = vpack.c.b16 %v1937, %v1928
        %v2226 = vpack.c.b16 %v1938, %v1929
        %v2227 = vpack.c.b16 %v1948, %v1939
        %v2228 = vpack.c.b16 %v1949, %v1940
        %v2229 = vpack.c.b16 %v1950, %v1941
        %v2230 = vpack.c.b16 %v1951, %v1942
        %v2231 = vpack.c.b16 %v1952, %v1943
        %v2232 = vpack.c.b16 %v1953, %v1944
        %v2233 = vpack.c.b16 %v1954, %v1945
        %v2234 = vpack.c.b16 %v1955, %v1946
        %v2235 = vpack.c.b16 %v1956, %v1947
        %v2236 = vpack.c.b16 %v1966, %v1957
        %v2237 = vpack.c.b16 %v1967, %v1958
        %v2238 = vpack.c.b16 %v1968, %v1959
        %v2239 = vpack.c.b16 %v1969, %v1960
        %v2240 = vpack.c.b16 %v1970, %v1961
        %v2241 = vpack.c.b16 %v1971, %v1962
        %v2242 = vpack.c.b16 %v1972, %v1963
        %v2243 = vpack.c.b16 %v1973, %v1964
        %v2244 = vpack.c.b16 %v1974, %v1965
        %v2245 = vpack.c.b16 %v1984, %v1975
        %v2246 = vpack.c.b16 %v1985, %v1976
        %v2247 = vpack.c.b16 %v1986, %v1977
        %v2248 = vpack.c.b16 %v1987, %v1978
        %v2249 = vpack.c.b16 %v1988, %v1979
        %v2250 = vpack.c.b16 %v1989, %v1980
        %v2251 = vpack.c.b16 %v1990, %v1981
        %v2252 = vpack.c.b16 %v1991, %v1982
        %v2253 = vpack.c.b16 %v1992, %v1983
        %v2254 = vpack.c.b16 %v2002, %v1993
        %v2255 = vpack.c.b16 %v2003, %v1994
        %v2256 = vpack.c.b16 %v2004, %v1995
        %v2257 = vpack.c.b16 %v2005, %v1996
        %v2258 = vpack.c.b16 %v2006, %v1997
        %v2259 = vpack.c.b16 %v2007, %v1998
        %v2260 = vpack.c.b16 %v2008, %v1999
        %v2261 = vpack.c.b16 %v2009, %v2000
        %v2262 = vpack.c.b16 %v2010, %v2001
        %v2263 = vpack.c.b16 %v2020, %v2011
        %v2264 = vpack.c.b16 %v2021, %v2012
        %v2265 = vpack.c.b16 %v2022, %v2013
        %v2266 = vpack.c.b16 %v2023, %v2014
        %v2267 = vpack.c.b16 %v2024, %v2015
        %v2268 = vpack.c.b16 %v2025, %v2016
        %v2269 = vpack.c.b16 %v2026, %v2017
        %v2270 = vpack.c.b16 %v2027, %v2018
        %v2271 = vpack.c.b16 %v2028, %v2019
        %v2272 = vpack.c.b16 %v2038, %v2029
        %v2273 = vpack.c.b16 %v2039, %v2030
        %v2274 = vpack.c.b16 %v2040, %v2031
        %v2275 = vpack.c.b16 %v2041, %v2032
        %v2276 = vpack.c.b16 %v2042, %v2033
        %v2277 = vpack.c.b16 %v2043, %v2034
        %v2278 = vpack.c.b16 %v2044, %v2035
        %v2279 = vpack.c.b16 %v2045, %v2036
        %v2280 = vpack.c.b16 %v2046, %v2037
        %v2281 = vpack.c.b16 %v2056, %v2047
        %v2282 = vpack.c.b16 %v2057, %v2048
        %v2283 = vpack.c.b16 %v2058, %v2049
        %v2284 = vpack.c.b16 %v2059, %v2050
        %v2285 = vpack.c.b16 %v2060, %v2051
        %v2286 = vpack.c.b16 %v2061, %v2052
        %v2287 = vpack.c.b16 %v2062, %v2053
        %v2288 = vpack.c.b16 %v2063, %v2054
        %v2289 = vpack.c.b16 %v2064, %v2055
        %v2290 = vpack.c.b16 %v2074, %v2065
        %v2291 = vpack.c.b16 %v2075, %v2066
        %v2292 = vpack.c.b16 %v2076, %v2067
        %v2293 = vpack.c.b16 %v2077, %v2068
        %v2294 = vpack.c.b16 %v2078, %v2069
        %v2295 = vpack.c.b16 %v2079, %v2070
        %v2296 = vpack.c.b16 %v2080, %v2071
        %v2297 = vpack.c.b16 %v2081, %v2072
        %v2298 = vpack.c.b16 %v2082, %v2073
        %2515 = vmatpush.bf16.msra.mxu0 %v2146
        %2516 = vmatpush.bf16.msra.mxu0 %v2137
        %2517 = vmatpush.bf16.msra.mxu0 %v2128
        %2518 = vmatpush.bf16.msra.mxu0 %v2119
        %2519 = vmatpush.bf16.msra.mxu0 %v2110
        %2520 = vmatpush.bf16.msra.mxu0 %v2101
        %2521 = vmatpush.bf16.msra.mxu0 %v2092
        %2522 = vmatpush.bf16.msra.mxu0 %v2083
        %2523 = vmatmul.bf16.gmra.mxu0 %v1146
        %v2524 = vpop.f32.mrf.mxu0
        %v2525 = vadd.f32 %v1393, %v2524
        %v2526 = vpop.f32.mrf.mxu0
        %v2527 = vadd.f32 %v1393, %v2526
        %2528 = vdwg.mxu0
        %2529 = vmatpush.bf16.msra.mxu0 %v2218
        %2530 = vmatpush.bf16.msra.mxu0 %v2209
        %2531 = vmatpush.bf16.msra.mxu0 %v2200
        %2532 = vmatpush.bf16.msra.mxu0 %v2191
        %2533 = vmatpush.bf16.msra.mxu0 %v2182
        %2534 = vmatpush.bf16.msra.mxu0 %v2173
        %2535 = vmatpush.bf16.msra.mxu0 %v2164
        %2536 = vmatpush.bf16.msra.mxu0 %v2155
        %2537 = vmatmul.bf16.gmra.mxu0 %v1147
        %v2538 = vpop.f32.mrf.mxu0
        %v2539 = vadd.f32 %v2525, %v2538
        %v2540 = vpop.f32.mrf.mxu0
        %v2541 = vadd.f32 %v2527, %v2540
        %2542 = vdwg.mxu0
        %2543 = vmatpush.bf16.msra.mxu0 %v2290
        %2544 = vmatpush.bf16.msra.mxu0 %v2281
        %2545 = vmatpush.bf16.msra.mxu0 %v2272
        %2546 = vmatpush.bf16.msra.mxu0 %v2263
        %2547 = vmatpush.bf16.msra.mxu0 %v2254
        %2548 = vmatpush.bf16.msra.mxu0 %v2245
        %2549 = vmatpush.bf16.msra.mxu0 %v2236
        %2550 = vmatpush.bf16.msra.mxu0 %v2227
        %2551 = vmatmul.bf16.gmra.mxu0 %v1148
        %v2552 = vpop.f32.mrf.mxu0
        %v2553 = vadd.f32 %v2539, %v2552
        %v2554 = vpop.f32.mrf.mxu0
        %v2555 = vadd.f32 %v2541, %v2554
        %2556 = vdwg.mxu0
        %2557 = vmatpush.bf16.msra.mxu0 %v2147
        %2558 = vmatpush.bf16.msra.mxu0 %v2138
        %2559 = vmatpush.bf16.msra.mxu0 %v2129
        %2560 = vmatpush.bf16.msra.mxu0 %v2120
        %2561 = vmatpush.bf16.msra.mxu0 %v2111
        %2562 = vmatpush.bf16.msra.mxu0 %v2102
        %2563 = vmatpush.bf16.msra.mxu0 %v2093
        %2564 = vmatpush.bf16.msra.mxu0 %v2084
        %2565 = vmatmul.bf16.gmra.mxu0 %v1146
        %v2566 = vpop.f32.mrf.mxu0
        %v2567 = vadd.f32 %v1394, %v2566
        %v2568 = vpop.f32.mrf.mxu0
        %v2569 = vadd.f32 %v1394, %v2568
        %2570 = vdwg.mxu0
        %2571 = vmatpush.bf16.msra.mxu0 %v2219
        %2572 = vmatpush.bf16.msra.mxu0 %v2210
        %2573 = vmatpush.bf16.msra.mxu0 %v2201
        %2574 = vmatpush.bf16.msra.mxu0 %v2192
        %2575 = vmatpush.bf16.msra.mxu0 %v2183
        %2576 = vmatpush.bf16.msra.mxu0 %v2174
        %2577 = vmatpush.bf16.msra.mxu0 %v2165
        %2578 = vmatpush.bf16.msra.mxu0 %v2156
        %2579 = vmatmul.bf16.gmra.mxu0 %v1147
        %v2580 = vpop.f32.mrf.mxu0
        %v2581 = vadd.f32 %v2567, %v2580
        %v2582 = vpop.f32.mrf.mxu0
        %v2583 = vadd.f32 %v2569, %v2582
        %2584 = vdwg.mxu0
        %2585 = vmatpush.bf16.msra.mxu0 %v2291
        %2586 = vmatpush.bf16.msra.mxu0 %v2282
        %2587 = vmatpush.bf16.msra.mxu0 %v2273
        %2588 = vmatpush.bf16.msra.mxu0 %v2264
        %2589 = vmatpush.bf16.msra.mxu0 %v2255
        %2590 = vmatpush.bf16.msra.mxu0 %v2246
        %2591 = vmatpush.bf16.msra.mxu0 %v2237
        %2592 = vmatpush.bf16.msra.mxu0 %v2228
        %2593 = vmatmul.bf16.gmra.mxu0 %v1148
        %v2594 = vpop.f32.mrf.mxu0
        %v2595 = vadd.f32 %v2581, %v2594
        %v2596 = vpop.f32.mrf.mxu0
        %v2597 = vadd.f32 %v2583, %v2596
        %2598 = vdwg.mxu0
        %2599 = vmatpush.bf16.msra.mxu0 %v2148
        %2600 = vmatpush.bf16.msra.mxu0 %v2139
        %2601 = vmatpush.bf16.msra.mxu0 %v2130
        %2602 = vmatpush.bf16.msra.mxu0 %v2121
        %2603 = vmatpush.bf16.msra.mxu0 %v2112
        %2604 = vmatpush.bf16.msra.mxu0 %v2103
        %2605 = vmatpush.bf16.msra.mxu0 %v2094
        %2606 = vmatpush.bf16.msra.mxu0 %v2085
        %2607 = vmatmul.bf16.gmra.mxu0 %v1146
        %v2608 = vpop.f32.mrf.mxu0
        %v2609 = vadd.f32 %v1395, %v2608
        %v2610 = vpop.f32.mrf.mxu0
        %v2611 = vadd.f32 %v1395, %v2610
        %2612 = vdwg.mxu0
        %2613 = vmatpush.bf16.msra.mxu0 %v2220
        %2614 = vmatpush.bf16.msra.mxu0 %v2211
        %2615 = vmatpush.bf16.msra.mxu0 %v2202
        %2616 = vmatpush.bf16.msra.mxu0 %v2193
        %2617 = vmatpush.bf16.msra.mxu0 %v2184
        %2618 = vmatpush.bf16.msra.mxu0 %v2175
        %2619 = vmatpush.bf16.msra.mxu0 %v2166
        %2620 = vmatpush.bf16.msra.mxu0 %v2157
        %2621 = vmatmul.bf16.gmra.mxu0 %v1147
        %v2622 = vpop.f32.mrf.mxu0
        %v2623 = vadd.f32 %v2609, %v2622
        %v2624 = vpop.f32.mrf.mxu0
        %v2625 = vadd.f32 %v2611, %v2624
        %2626 = vdwg.mxu0
        %2627 = vmatpush.bf16.msra.mxu0 %v2292
        %2628 = vmatpush.bf16.msra.mxu0 %v2283
        %2629 = vmatpush.bf16.msra.mxu0 %v2274
        %2630 = vmatpush.bf16.msra.mxu0 %v2265
        %2631 = vmatpush.bf16.msra.mxu0 %v2256
        %2632 = vmatpush.bf16.msra.mxu0 %v2247
        %2633 = vmatpush.bf16.msra.mxu0 %v2238
        %2634 = vmatpush.bf16.msra.mxu0 %v2229
        %2635 = vmatmul.bf16.gmra.mxu0 %v1148
        %v2636 = vpop.f32.mrf.mxu0
        %v2637 = vadd.f32 %v2623, %v2636
        %v2638 = vpop.f32.mrf.mxu0
        %v2639 = vadd.f32 %v2625, %v2638
        %2640 = vdwg.mxu0
        %2641 = vmatpush.bf16.msra.mxu0 %v2149
        %2642 = vmatpush.bf16.msra.mxu0 %v2140
        %2643 = vmatpush.bf16.msra.mxu0 %v2131
        %2644 = vmatpush.bf16.msra.mxu0 %v2122
        %2645 = vmatpush.bf16.msra.mxu0 %v2113
        %2646 = vmatpush.bf16.msra.mxu0 %v2104
        %2647 = vmatpush.bf16.msra.mxu0 %v2095
        %2648 = vmatpush.bf16.msra.mxu0 %v2086
        %2649 = vmatmul.bf16.gmra.mxu0 %v1146
        %v2650 = vpop.f32.mrf.mxu0
        %v2651 = vadd.f32 %v1396, %v2650
        %v2652 = vpop.f32.mrf.mxu0
        %v2653 = vadd.f32 %v1396, %v2652
        %2654 = vdwg.mxu0
        %2655 = vmatpush.bf16.msra.mxu0 %v2221
        %2656 = vmatpush.bf16.msra.mxu0 %v2212
        %2657 = vmatpush.bf16.msra.mxu0 %v2203
        %2658 = vmatpush.bf16.msra.mxu0 %v2194
        %2659 = vmatpush.bf16.msra.mxu0 %v2185
        %2660 = vmatpush.bf16.msra.mxu0 %v2176
        %2661 = vmatpush.bf16.msra.mxu0 %v2167
        %2662 = vmatpush.bf16.msra.mxu0 %v2158
        %2663 = vmatmul.bf16.gmra.mxu0 %v1147
        %v2664 = vpop.f32.mrf.mxu0
        %v2665 = vadd.f32 %v2651, %v2664
        %v2666 = vpop.f32.mrf.mxu0
        %v2667 = vadd.f32 %v2653, %v2666
        %2668 = vdwg.mxu0
        %2669 = vmatpush.bf16.msra.mxu0 %v2293
        %2670 = vmatpush.bf16.msra.mxu0 %v2284
        %2671 = vmatpush.bf16.msra.mxu0 %v2275
        %2672 = vmatpush.bf16.msra.mxu0 %v2266
        %2673 = vmatpush.bf16.msra.mxu0 %v2257
        %2674 = vmatpush.bf16.msra.mxu0 %v2248
        %2675 = vmatpush.bf16.msra.mxu0 %v2239
        %2676 = vmatpush.bf16.msra.mxu0 %v2230
        %2677 = vmatmul.bf16.gmra.mxu0 %v1148
        %v2678 = vpop.f32.mrf.mxu0
        %v2679 = vadd.f32 %v2665, %v2678
        %v2680 = vpop.f32.mrf.mxu0
        %v2681 = vadd.f32 %v2667, %v2680
        %2682 = vdwg.mxu0
        %2683 = vmatpush.bf16.msra.mxu0 %v2150
        %2684 = vmatpush.bf16.msra.mxu0 %v2141
        %2685 = vmatpush.bf16.msra.mxu0 %v2132
        %2686 = vmatpush.bf16.msra.mxu0 %v2123
        %2687 = vmatpush.bf16.msra.mxu0 %v2114
        %2688 = vmatpush.bf16.msra.mxu0 %v2105
        %2689 = vmatpush.bf16.msra.mxu0 %v2096
        %2690 = vmatpush.bf16.msra.mxu0 %v2087
        %2691 = vmatmul.bf16.gmra.mxu0 %v1146
        %v2692 = vpop.f32.mrf.mxu0
        %v2693 = vadd.f32 %v1397, %v2692
        %v2694 = vpop.f32.mrf.mxu0
        %v2695 = vadd.f32 %v1397, %v2694
        %2696 = vdwg.mxu0
        %2697 = vmatpush.bf16.msra.mxu0 %v2222
        %2698 = vmatpush.bf16.msra.mxu0 %v2213
        %2699 = vmatpush.bf16.msra.mxu0 %v2204
        %2700 = vmatpush.bf16.msra.mxu0 %v2195
        %2701 = vmatpush.bf16.msra.mxu0 %v2186
        %2702 = vmatpush.bf16.msra.mxu0 %v2177
        %2703 = vmatpush.bf16.msra.mxu0 %v2168
        %2704 = vmatpush.bf16.msra.mxu0 %v2159
        %2705 = vmatmul.bf16.gmra.mxu0 %v1147
        %v2706 = vpop.f32.mrf.mxu0
        %v2707 = vadd.f32 %v2693, %v2706
        %v2708 = vpop.f32.mrf.mxu0
        %v2709 = vadd.f32 %v2695, %v2708
        %2710 = vdwg.mxu0
        %2711 = vmatpush.bf16.msra.mxu0 %v2294
        %2712 = vmatpush.bf16.msra.mxu0 %v2285
        %2713 = vmatpush.bf16.msra.mxu0 %v2276
        %2714 = vmatpush.bf16.msra.mxu0 %v2267
        %2715 = vmatpush.bf16.msra.mxu0 %v2258
        %2716 = vmatpush.bf16.msra.mxu0 %v2249
        %2717 = vmatpush.bf16.msra.mxu0 %v2240
        %2718 = vmatpush.bf16.msra.mxu0 %v2231
        %2719 = vmatmul.bf16.gmra.mxu0 %v1148
        %v2720 = vpop.f32.mrf.mxu0
        %v2721 = vadd.f32 %v2707, %v2720
        %v2722 = vpop.f32.mrf.mxu0
        %v2723 = vadd.f32 %v2709, %v2722
        %2724 = vdwg.mxu0
        %2725 = vmatpush.bf16.msra.mxu0 %v2151
        %2726 = vmatpush.bf16.msra.mxu0 %v2142
        %2727 = vmatpush.bf16.msra.mxu0 %v2133
        %2728 = vmatpush.bf16.msra.mxu0 %v2124
        %2729 = vmatpush.bf16.msra.mxu0 %v2115
        %2730 = vmatpush.bf16.msra.mxu0 %v2106
        %2731 = vmatpush.bf16.msra.mxu0 %v2097
        %2732 = vmatpush.bf16.msra.mxu0 %v2088
        %2733 = vmatmul.bf16.gmra.mxu0 %v1146
        %v2734 = vpop.f32.mrf.mxu0
        %v2735 = vadd.f32 %v1398, %v2734
        %v2736 = vpop.f32.mrf.mxu0
        %v2737 = vadd.f32 %v1398, %v2736
        %2738 = vdwg.mxu0
        %2739 = vmatpush.bf16.msra.mxu0 %v2223
        %2740 = vmatpush.bf16.msra.mxu0 %v2214
        %2741 = vmatpush.bf16.msra.mxu0 %v2205
        %2742 = vmatpush.bf16.msra.mxu0 %v2196
        %2743 = vmatpush.bf16.msra.mxu0 %v2187
        %2744 = vmatpush.bf16.msra.mxu0 %v2178
        %2745 = vmatpush.bf16.msra.mxu0 %v2169
        %2746 = vmatpush.bf16.msra.mxu0 %v2160
        %2747 = vmatmul.bf16.gmra.mxu0 %v1147
        %v2748 = vpop.f32.mrf.mxu0
        %v2749 = vadd.f32 %v2735, %v2748
        %v2750 = vpop.f32.mrf.mxu0
        %v2751 = vadd.f32 %v2737, %v2750
        %2752 = vdwg.mxu0
        %2753 = vmatpush.bf16.msra.mxu0 %v2295
        %2754 = vmatpush.bf16.msra.mxu0 %v2286
        %2755 = vmatpush.bf16.msra.mxu0 %v2277
        %2756 = vmatpush.bf16.msra.mxu0 %v2268
        %2757 = vmatpush.bf16.msra.mxu0 %v2259
        %2758 = vmatpush.bf16.msra.mxu0 %v2250
        %2759 = vmatpush.bf16.msra.mxu0 %v2241
        %2760 = vmatpush.bf16.msra.mxu0 %v2232
        %2761 = vmatmul.bf16.gmra.mxu0 %v1148
        %v2762 = vpop.f32.mrf.mxu0
        %v2763 = vadd.f32 %v2749, %v2762
        %v2764 = vpop.f32.mrf.mxu0
        %v2765 = vadd.f32 %v2751, %v2764
        %2766 = vdwg.mxu0
        %2767 = vmatpush.bf16.msra.mxu0 %v2152
        %2768 = vmatpush.bf16.msra.mxu0 %v2143
        %2769 = vmatpush.bf16.msra.mxu0 %v2134
        %2770 = vmatpush.bf16.msra.mxu0 %v2125
        %2771 = vmatpush.bf16.msra.mxu0 %v2116
        %2772 = vmatpush.bf16.msra.mxu0 %v2107
        %2773 = vmatpush.bf16.msra.mxu0 %v2098
        %2774 = vmatpush.bf16.msra.mxu0 %v2089
        %2775 = vmatmul.bf16.gmra.mxu0 %v1146
        %v2776 = vpop.f32.mrf.mxu0
        %v2777 = vadd.f32 %v1399, %v2776
        %v2778 = vpop.f32.mrf.mxu0
        %v2779 = vadd.f32 %v1399, %v2778
        %2780 = vdwg.mxu0
        %2781 = vmatpush.bf16.msra.mxu0 %v2224
        %2782 = vmatpush.bf16.msra.mxu0 %v2215
        %2783 = vmatpush.bf16.msra.mxu0 %v2206
        %2784 = vmatpush.bf16.msra.mxu0 %v2197
        %2785 = vmatpush.bf16.msra.mxu0 %v2188
        %2786 = vmatpush.bf16.msra.mxu0 %v2179
        %2787 = vmatpush.bf16.msra.mxu0 %v2170
        %2788 = vmatpush.bf16.msra.mxu0 %v2161
        %2789 = vmatmul.bf16.gmra.mxu0 %v1147
        %v2790 = vpop.f32.mrf.mxu0
        %v2791 = vadd.f32 %v2777, %v2790
        %v2792 = vpop.f32.mrf.mxu0
        %v2793 = vadd.f32 %v2779, %v2792
        %2794 = vdwg.mxu0
        %2795 = vmatpush.bf16.msra.mxu0 %v2296
        %2796 = vmatpush.bf16.msra.mxu0 %v2287
        %2797 = vmatpush.bf16.msra.mxu0 %v2278
        %2798 = vmatpush.bf16.msra.mxu0 %v2269
        %2799 = vmatpush.bf16.msra.mxu0 %v2260
        %2800 = vmatpush.bf16.msra.mxu0 %v2251
        %2801 = vmatpush.bf16.msra.mxu0 %v2242
        %2802 = vmatpush.bf16.msra.mxu0 %v2233
        %2803 = vmatmul.bf16.gmra.mxu0 %v1148
        %v2804 = vpop.f32.mrf.mxu0
        %v2805 = vadd.f32 %v2791, %v2804
        %v2806 = vpop.f32.mrf.mxu0
        %v2807 = vadd.f32 %v2793, %v2806
        %2808 = vdwg.mxu0
        %2809 = vmatpush.bf16.msra.mxu0 %v2153
        %2810 = vmatpush.bf16.msra.mxu0 %v2144
        %2811 = vmatpush.bf16.msra.mxu0 %v2135
        %2812 = vmatpush.bf16.msra.mxu0 %v2126
        %2813 = vmatpush.bf16.msra.mxu0 %v2117
        %2814 = vmatpush.bf16.msra.mxu0 %v2108
        %2815 = vmatpush.bf16.msra.mxu0 %v2099
        %2816 = vmatpush.bf16.msra.mxu0 %v2090
        %2817 = vmatmul.bf16.gmra.mxu0 %v1146
        %v2818 = vpop.f32.mrf.mxu0
        %v2819 = vadd.f32 %v1400, %v2818
        %v2820 = vpop.f32.mrf.mxu0
        %v2821 = vadd.f32 %v1400, %v2820
        %2822 = vdwg.mxu0
        %2823 = vmatpush.bf16.msra.mxu0 %v2225
        %2824 = vmatpush.bf16.msra.mxu0 %v2216
        %2825 = vmatpush.bf16.msra.mxu0 %v2207
        %2826 = vmatpush.bf16.msra.mxu0 %v2198
        %2827 = vmatpush.bf16.msra.mxu0 %v2189
        %2828 = vmatpush.bf16.msra.mxu0 %v2180
        %2829 = vmatpush.bf16.msra.mxu0 %v2171
        %2830 = vmatpush.bf16.msra.mxu0 %v2162
        %2831 = vmatmul.bf16.gmra.mxu0 %v1147
        %v2832 = vpop.f32.mrf.mxu0
        %v2833 = vadd.f32 %v2819, %v2832
        %v2834 = vpop.f32.mrf.mxu0
        %v2835 = vadd.f32 %v2821, %v2834
        %2836 = vdwg.mxu0
        %2837 = vmatpush.bf16.msra.mxu0 %v2297
        %2838 = vmatpush.bf16.msra.mxu0 %v2288
        %2839 = vmatpush.bf16.msra.mxu0 %v2279
        %2840 = vmatpush.bf16.msra.mxu0 %v2270
        %2841 = vmatpush.bf16.msra.mxu0 %v2261
        %2842 = vmatpush.bf16.msra.mxu0 %v2252
        %2843 = vmatpush.bf16.msra.mxu0 %v2243
        %2844 = vmatpush.bf16.msra.mxu0 %v2234
        %2845 = vmatmul.bf16.gmra.mxu0 %v1148
        %v2846 = vpop.f32.mrf.mxu0
        %v2847 = vadd.f32 %v2833, %v2846
        %v2848 = vpop.f32.mrf.mxu0
        %v2849 = vadd.f32 %v2835, %v2848
        %2850 = vdwg.mxu0
        %2851 = vmatpush.bf16.msra.mxu0 %v2154
        %2852 = vmatpush.bf16.msra.mxu0 %v2145
        %2853 = vmatpush.bf16.msra.mxu0 %v2136
        %2854 = vmatpush.bf16.msra.mxu0 %v2127
        %2855 = vmatpush.bf16.msra.mxu0 %v2118
        %2856 = vmatpush.bf16.msra.mxu0 %v2109
        %2857 = vmatpush.bf16.msra.mxu0 %v2100
        %2858 = vmatpush.bf16.msra.mxu0 %v2091
        %2859 = vmatmul.bf16.gmra.mxu0 %v1146
        %v2860 = vpop.f32.mrf.mxu0
        %v2861 = vadd.f32 %v1401, %v2860
        %v2862 = vpop.f32.mrf.mxu0
        %v2863 = vadd.f32 %v1401, %v2862
        %2864 = vdwg.mxu0
        %2865 = vmatpush.bf16.msra.mxu0 %v2226
        %2866 = vmatpush.bf16.msra.mxu0 %v2217
        %2867 = vmatpush.bf16.msra.mxu0 %v2208
        %2868 = vmatpush.bf16.msra.mxu0 %v2199
        %2869 = vmatpush.bf16.msra.mxu0 %v2190
        %2870 = vmatpush.bf16.msra.mxu0 %v2181
        %2871 = vmatpush.bf16.msra.mxu0 %v2172
        %2872 = vmatpush.bf16.msra.mxu0 %v2163
        %2873 = vmatmul.bf16.gmra.mxu0 %v1147
        %v2874 = vpop.f32.mrf.mxu0
        %v2875 = vadd.f32 %v2861, %v2874
        %v2876 = vpop.f32.mrf.mxu0
        %v2877 = vadd.f32 %v2863, %v2876
        %2878 = vdwg.mxu0
        %2879 = vmatpush.bf16.msra.mxu0 %v2298
        %2880 = vmatpush.bf16.msra.mxu0 %v2289
        %2881 = vmatpush.bf16.msra.mxu0 %v2280
        %2882 = vmatpush.bf16.msra.mxu0 %v2271
        %2883 = vmatpush.bf16.msra.mxu0 %v2262
        %2884 = vmatpush.bf16.msra.mxu0 %v2253
        %2885 = vmatpush.bf16.msra.mxu0 %v2244
        %2886 = vmatpush.bf16.msra.mxu0 %v2235
        %2887 = vmatmul.bf16.gmra.mxu0 %v1148
        %v2888 = vpop.f32.mrf.mxu0
        %v2889 = vadd.f32 %v2875, %v2888
        %v2890 = vpop.f32.mrf.mxu0
        %v2891 = vadd.f32 %v2877, %v2890
        %2892 = vdwg.mxu0
        %v2893 = vpack.c.bf16 %v2595, %v2553
        %v2894 = vpack.c.bf16 %v2679, %v2637
        %v2895 = vpack.c.bf16 %v2763, %v2721
        %v2896 = vpack.c.bf16 %v2847, %v2805
        %v2897 = vpack.c.bf16 %v2889, %v2889
        %v2898 = vpack.c.bf16 %v2597, %v2555
        %v2899 = vpack.c.bf16 %v2681, %v2639
        %v2900 = vpack.c.bf16 %v2765, %v2723
        %v2901 = vpack.c.bf16 %v2849, %v2807
        %v2902 = vpack.c.bf16 %v2891, %v2891
        %v2903 = vld [vmem:[%s1] sm:$0x1]
        %v2905 = vperm.slane %v2903, 0
        %v2909 = vunpack.c.l.b16 %v2893
        %v2910 = vunpack.c.l.b16 %v2898
        %v2911 = vpack.c.b16 %v2910, %v2909
        %v2914 = vunpack.c.h.b16 %v2894
        %v2915 = vunpack.c.h.b16 %v2899
        %v2916 = vpack.c.b16 %v2915, %v2914
        %vm2917 = vcmask 523264
        %v2919 = vsel %vm2917, %v2911, 0
        %v2922 = vsel %vm2917, %v2916, 0
        %2924 = vmatpush.bf16.xpose.msra.mxu0 0
        %2925 = vmatpush.bf16.xpose.msra.mxu0 0
        %2926 = vmatpush.bf16.xpose.msra.mxu0 0
        %2927 = vmatpush.bf16.xpose.msra.mxu0 0
        %2928 = vmatpush.bf16.xpose.msra.mxu0 0
        %2929 = vmatpush.bf16.xpose.msra.mxu0 0
        %2930 = vmatpush.bf16.xpose.msra.mxu0 0
        %2931 = vmatpush.bf16.xpose.msra.mxu0 %v2922
        %2932 = vmatmul.bf16.gmra.mxu0 %v2919
        %v2933 = vpop.f32.mrf.mxu0
        %v2934 = vadd.f32 %v2905, %v2933
        %v2935 = vpop.f32.mrf.mxu0
        %v2936 = vadd.f32 %v2905, %v2935
        %2937 = vdwg.mxu0
        %vm2938 = vcmask 130048
        %v2939 = vsel %vm2938, %v2934, -inf
        %2940 = vmax.xlane.f32.xlu0 %v2939
        %v2941 = vpop.xlane.xlu0 %2940
        %v2942 = vsel %vm2938, %v2936, -inf
        %2943 = vmax.xlane.f32.xlu0 %v2942
        %v2944 = vpop.xlane.xlu0 %2943
        %v2945 = vsub.f32 %v2934, %v2941
        %v2946 = vsub.f32 %v2936, %v2944
        %v2947 = vmul.f32 %v2945, 1.442695
        %v2948 = vpow.pop %v2947
        %v2949 = vmul.f32 %v2946, 1.442695
        %v2950 = vpow.pop %v2949
        %v2951 = vsel %vm2938, %v2948, 0.0
        %2952 = vadd.xlane.f32.xlu0 %v2951
        %v2953 = vpop.xlane.xlu0 %2952
        %v2954 = vsel %vm2938, %v2950, 0.0
        %2955 = vadd.xlane.f32.xlu0 %v2954
        %v2956 = vpop.xlane.xlu0 %2955
        %v2957 = vrcp.pop %v2953
        %v2958 = vrcp.pop %v2956
        %v2959 = vmul.f32 %v2948, %v2957
        %v2960 = vmul.f32 %v2950, %v2958
        %v2961 = vpack.c.bf16 %v2960, %v2959
        %v2964 = vunpack.c.l.b16 %v2896
        %v2965 = vunpack.c.l.b16 %v2901
        %v2966 = vpack.c.b16 %v2965, %v2964
        %v2969 = vsel %vm2938, %v2961, 0
        %2971 = vmatpush.bf16.msra.mxu0 0
        %2972 = vmatpush.bf16.msra.mxu0 0
        %2973 = vmatpush.bf16.msra.mxu0 0
        %2974 = vmatpush.bf16.msra.mxu0 0
        %2975 = vmatpush.bf16.msra.mxu0 0
        %2976 = vmatpush.bf16.msra.mxu0 0
        %2977 = vmatpush.bf16.msra.mxu0 0
        %2978 = vmatpush.bf16.msra.mxu0 %v2966
        %2979 = vmatmul.bf16.gmra.mxu0 %v2969
        %v2980 = vpop.f32.mrf.mxu0
        %v2981 = vadd.f32 0.0, %v2980
        %v2982 = vpop.f32.mrf.mxu0
        %v2983 = vadd.f32 0.0, %v2982
        %2984 = vdwg.mxu0
        %v2985 = vpack.c.bf16 %v2981, %v2981
        %v2986 = vpack.c.bf16 %v2983, %v2983
        %2987 = vrot.lane.b32.xlu0 %v2911, 64
        %v2988 = vpop.permute.xlu0 %2987
        %2989 = vrot.lane.b32.xlu0 %v2916, 64
        %v2990 = vpop.permute.xlu0 %2989
        %v2992 = vsel %vm2917, %v2988, 0
        %v2995 = vsel %vm2917, %v2990, 0
        %2997 = vmatpush.bf16.xpose.msra.mxu0 0
        %2998 = vmatpush.bf16.xpose.msra.mxu0 0
        %2999 = vmatpush.bf16.xpose.msra.mxu0 0
        %3000 = vmatpush.bf16.xpose.msra.mxu0 0
        %3001 = vmatpush.bf16.xpose.msra.mxu0 0
        %3002 = vmatpush.bf16.xpose.msra.mxu0 0
        %3003 = vmatpush.bf16.xpose.msra.mxu0 0
        %3004 = vmatpush.bf16.xpose.msra.mxu0 %v2995
        %3005 = vmatmul.bf16.gmra.mxu0 %v2992
        %v3006 = vpop.f32.mrf.mxu0
        %v3007 = vadd.f32 %v2905, %v3006
        %v3008 = vpop.f32.mrf.mxu0
        %v3009 = vadd.f32 %v2905, %v3008
        %3010 = vdwg.mxu0
        %v3011 = vsel %vm2938, %v3007, -inf
        %3012 = vmax.xlane.f32.xlu0 %v3011
        %v3013 = vpop.xlane.xlu0 %3012
        %v3014 = vsel %vm2938, %v3009, -inf
        %3015 = vmax.xlane.f32.xlu0 %v3014
        %v3016 = vpop.xlane.xlu0 %3015
        %v3017 = vsub.f32 %v3007, %v3013
        %v3018 = vsub.f32 %v3009, %v3016
        %v3019 = vmul.f32 %v3017, 1.442695
        %v3020 = vpow.pop %v3019
        %v3021 = vmul.f32 %v3018, 1.442695
        %v3022 = vpow.pop %v3021
        %v3023 = vsel %vm2938, %v3020, 0.0
        %3024 = vadd.xlane.f32.xlu0 %v3023
        %v3025 = vpop.xlane.xlu0 %3024
        %v3026 = vsel %vm2938, %v3022, 0.0
        %3027 = vadd.xlane.f32.xlu0 %v3026
        %v3028 = vpop.xlane.xlu0 %3027
        %v3029 = vrcp.pop %v3025
        %v3030 = vrcp.pop %v3028
        %v3031 = vmul.f32 %v3020, %v3029
        %v3032 = vmul.f32 %v3022, %v3030
        %v3033 = vpack.c.bf16 %v3032, %v3031
        %3034 = vrot.lane.b32.xlu0 %v2966, 64
        %v3035 = vpop.permute.xlu0 %3034
        %v3038 = vsel %vm2938, %v3033, 0
        %3040 = vmatpush.bf16.msra.mxu0 0
        %3041 = vmatpush.bf16.msra.mxu0 0
        %3042 = vmatpush.bf16.msra.mxu0 0
        %3043 = vmatpush.bf16.msra.mxu0 0
        %3044 = vmatpush.bf16.msra.mxu0 0
        %3045 = vmatpush.bf16.msra.mxu0 0
        %3046 = vmatpush.bf16.msra.mxu0 0
        %3047 = vmatpush.bf16.msra.mxu0 %v3035
        %3048 = vmatmul.bf16.gmra.mxu0 %v3038
        %v3049 = vpop.f32.mrf.mxu0
        %v3050 = vadd.f32 0.0, %v3049
        %v3051 = vpop.f32.mrf.mxu0
        %v3052 = vadd.f32 0.0, %v3051
        %3053 = vdwg.mxu0
        %v3054 = vpack.c.bf16 %v3050, %v3050
        %v3055 = vpack.c.bf16 %v3052, %v3052
        %v3056 = vunpack.c.h.b16 %v2893
        %v3057 = vunpack.c.h.b16 %v2898
        %v3058 = vpack.c.b16 %v3057, %v3056
        %v3061 = vunpack.c.l.b16 %v2895
        %v3062 = vunpack.c.l.b16 %v2900
        %v3063 = vpack.c.b16 %v3062, %v3061
        %v3065 = vsel %vm2917, %v3058, 0
        %v3068 = vsel %vm2917, %v3063, 0
        %3070 = vmatpush.bf16.xpose.msra.mxu0 0
        %3071 = vmatpush.bf16.xpose.msra.mxu0 0
        %3072 = vmatpush.bf16.xpose.msra.mxu0 0
        %3073 = vmatpush.bf16.xpose.msra.mxu0 0
        %3074 = vmatpush.bf16.xpose.msra.mxu0 0
        %3075 = vmatpush.bf16.xpose.msra.mxu0 0
        %3076 = vmatpush.bf16.xpose.msra.mxu0 0
        %3077 = vmatpush.bf16.xpose.msra.mxu0 %v3068
        %3078 = vmatmul.bf16.gmra.mxu0 %v3065
        %v3079 = vpop.f32.mrf.mxu0
        %v3080 = vadd.f32 %v2905, %v3079
        %v3081 = vpop.f32.mrf.mxu0
        %v3082 = vadd.f32 %v2905, %v3081
        %3083 = vdwg.mxu0
        %v3084 = vsel %vm2938, %v3080, -inf
        %3085 = vmax.xlane.f32.xlu0 %v3084
        %v3086 = vpop.xlane.xlu0 %3085
        %v3087 = vsel %vm2938, %v3082, -inf
        %3088 = vmax.xlane.f32.xlu0 %v3087
        %v3089 = vpop.xlane.xlu0 %3088
        %v3090 = vsub.f32 %v3080, %v3086
        %v3091 = vsub.f32 %v3082, %v3089
        %v3092 = vmul.f32 %v3090, 1.442695
        %v3093 = vpow.pop %v3092
        %v3094 = vmul.f32 %v3091, 1.442695
        %v3095 = vpow.pop %v3094
        %v3096 = vsel %vm2938, %v3093, 0.0
        %3097 = vadd.xlane.f32.xlu0 %v3096
        %v3098 = vpop.xlane.xlu0 %3097
        %v3099 = vsel %vm2938, %v3095, 0.0
        %3100 = vadd.xlane.f32.xlu0 %v3099
        %v3101 = vpop.xlane.xlu0 %3100
        %v3102 = vrcp.pop %v3098
        %v3103 = vrcp.pop %v3101
        %v3104 = vmul.f32 %v3093, %v3102
        %v3105 = vmul.f32 %v3095, %v3103
        %v3106 = vpack.c.bf16 %v3105, %v3104
        %v3107 = vunpack.c.h.b16 %v2896
        %v3108 = vunpack.c.h.b16 %v2901
        %v3109 = vpack.c.b16 %v3108, %v3107
        %v3112 = vsel %vm2938, %v3106, 0
        %3114 = vmatpush.bf16.msra.mxu0 0
        %3115 = vmatpush.bf16.msra.mxu0 0
        %3116 = vmatpush.bf16.msra.mxu0 0
        %3117 = vmatpush.bf16.msra.mxu0 0
        %3118 = vmatpush.bf16.msra.mxu0 0
        %3119 = vmatpush.bf16.msra.mxu0 0
        %3120 = vmatpush.bf16.msra.mxu0 0
        %3121 = vmatpush.bf16.msra.mxu0 %v3109
        %3122 = vmatmul.bf16.gmra.mxu0 %v3112
        %v3123 = vpop.f32.mrf.mxu0
        %v3124 = vadd.f32 0.0, %v3123
        %v3125 = vpop.f32.mrf.mxu0
        %v3126 = vadd.f32 0.0, %v3125
        %3127 = vdwg.mxu0
        %v3128 = vpack.c.bf16 %v3124, %v3124
        %v3129 = vpack.c.bf16 %v3126, %v3126
        %3130 = vrot.lane.b32.xlu0 %v3058, 64
        %v3131 = vpop.permute.xlu0 %3130
        %3132 = vrot.lane.b32.xlu0 %v3063, 64
        %v3133 = vpop.permute.xlu0 %3132
        %v3135 = vsel %vm2917, %v3131, 0
        %v3138 = vsel %vm2917, %v3133, 0
        %3140 = vmatpush.bf16.xpose.msra.mxu0 0
        %3141 = vmatpush.bf16.xpose.msra.mxu0 0
        %3142 = vmatpush.bf16.xpose.msra.mxu0 0
        %3143 = vmatpush.bf16.xpose.msra.mxu0 0
        %3144 = vmatpush.bf16.xpose.msra.mxu0 0
        %3145 = vmatpush.bf16.xpose.msra.mxu0 0
        %3146 = vmatpush.bf16.xpose.msra.mxu0 0
        %3147 = vmatpush.bf16.xpose.msra.mxu0 %v3138
        %3148 = vmatmul.bf16.gmra.mxu0 %v3135
        %v3149 = vpop.f32.mrf.mxu0
        %v3150 = vadd.f32 %v2905, %v3149
        %v3151 = vpop.f32.mrf.mxu0
        %v3152 = vadd.f32 %v2905, %v3151
        %3153 = vdwg.mxu0
        %v3154 = vsel %vm2938, %v3150, -inf
        %3155 = vmax.xlane.f32.xlu0 %v3154
        %v3156 = vpop.xlane.xlu0 %3155
        %v3157 = vsel %vm2938, %v3152, -inf
        %3158 = vmax.xlane.f32.xlu0 %v3157
        %v3159 = vpop.xlane.xlu0 %3158
        %v3160 = vsub.f32 %v3150, %v3156
        %v3161 = vsub.f32 %v3152, %v3159
        %v3162 = vmul.f32 %v3160, 1.442695
        %v3163 = vpow.pop %v3162
        %v3164 = vmul.f32 %v3161, 1.442695
        %v3165 = vpow.pop %v3164
        %v3166 = vsel %vm2938, %v3163, 0.0
        %3167 = vadd.xlane.f32.xlu0 %v3166
        %v3168 = vpop.xlane.xlu0 %3167
        %v3169 = vsel %vm2938, %v3165, 0.0
        %3170 = vadd.xlane.f32.xlu0 %v3169
        %v3171 = vpop.xlane.xlu0 %3170
        %v3172 = vrcp.pop %v3168
        %v3173 = vrcp.pop %v3171
        %v3174 = vmul.f32 %v3163, %v3172
        %v3175 = vmul.f32 %v3165, %v3173
        %v3176 = vpack.c.bf16 %v3175, %v3174
        %3177 = vrot.lane.b32.xlu0 %v3109, 64
        %v3178 = vpop.permute.xlu0 %3177
        %v3181 = vsel %vm2938, %v3176, 0
        %3183 = vmatpush.bf16.msra.mxu0 0
        %3184 = vmatpush.bf16.msra.mxu0 0
        %3185 = vmatpush.bf16.msra.mxu0 0
        %3186 = vmatpush.bf16.msra.mxu0 0
        %3187 = vmatpush.bf16.msra.mxu0 0
        %3188 = vmatpush.bf16.msra.mxu0 0
        %3189 = vmatpush.bf16.msra.mxu0 0
        %3190 = vmatpush.bf16.msra.mxu0 %v3178
        %3191 = vmatmul.bf16.gmra.mxu0 %v3181
        %v3192 = vpop.f32.mrf.mxu0
        %v3193 = vadd.f32 0.0, %v3192
        %v3194 = vpop.f32.mrf.mxu0
        %v3195 = vadd.f32 0.0, %v3194
        %3196 = vdwg.mxu0
        %v3197 = vpack.c.bf16 %v3193, %v3193
        %v3198 = vpack.c.bf16 %v3195, %v3195
        %v3199 = vunpack.c.l.b16 %v2894
        %v3200 = vunpack.c.l.b16 %v2899
        %v3201 = vpack.c.b16 %v3200, %v3199
        %v3202 = vunpack.c.h.b16 %v2895
        %v3203 = vunpack.c.h.b16 %v2900
        %v3204 = vpack.c.b16 %v3203, %v3202
        %v3206 = vsel %vm2917, %v3201, 0
        %v3209 = vsel %vm2917, %v3204, 0
        %3211 = vmatpush.bf16.xpose.msra.mxu0 0
        %3212 = vmatpush.bf16.xpose.msra.mxu0 0
        %3213 = vmatpush.bf16.xpose.msra.mxu0 0
        %3214 = vmatpush.bf16.xpose.msra.mxu0 0
        %3215 = vmatpush.bf16.xpose.msra.mxu0 0
        %3216 = vmatpush.bf16.xpose.msra.mxu0 0
        %3217 = vmatpush.bf16.xpose.msra.mxu0 0
        %3218 = vmatpush.bf16.xpose.msra.mxu0 %v3209
        %3219 = vmatmul.bf16.gmra.mxu0 %v3206
        %v3220 = vpop.f32.mrf.mxu0
        %v3221 = vadd.f32 %v2905, %v3220
        %v3222 = vpop.f32.mrf.mxu0
        %v3223 = vadd.f32 %v2905, %v3222
        %3224 = vdwg.mxu0
        %v3225 = vsel %vm2938, %v3221, -inf
        %3226 = vmax.xlane.f32.xlu0 %v3225
        %v3227 = vpop.xlane.xlu0 %3226
        %v3228 = vsel %vm2938, %v3223, -inf
        %3229 = vmax.xlane.f32.xlu0 %v3228
        %v3230 = vpop.xlane.xlu0 %3229
        %v3231 = vsub.f32 %v3221, %v3227
        %v3232 = vsub.f32 %v3223, %v3230
        %v3233 = vmul.f32 %v3231, 1.442695
        %v3234 = vpow.pop %v3233
        %v3235 = vmul.f32 %v3232, 1.442695
        %v3236 = vpow.pop %v3235
        %v3237 = vsel %vm2938, %v3234, 0.0
        %3238 = vadd.xlane.f32.xlu0 %v3237
        %v3239 = vpop.xlane.xlu0 %3238
        %v3240 = vsel %vm2938, %v3236, 0.0
        %3241 = vadd.xlane.f32.xlu0 %v3240
        %v3242 = vpop.xlane.xlu0 %3241
        %v3243 = vrcp.pop %v3239
        %v3244 = vrcp.pop %v3242
        %v3245 = vmul.f32 %v3234, %v3243
        %v3246 = vmul.f32 %v3236, %v3244
        %v3247 = vpack.c.bf16 %v3246, %v3245
        %v3250 = vunpack.c.l.b16 %v2897
        %v3251 = vunpack.c.l.b16 %v2902
        %v3252 = vpack.c.b16 %v3251, %v3250
        %v3255 = vsel %vm2938, %v3247, 0
        %3257 = vmatpush.bf16.msra.mxu0 0
        %3258 = vmatpush.bf16.msra.mxu0 0
        %3259 = vmatpush.bf16.msra.mxu0 0
        %3260 = vmatpush.bf16.msra.mxu0 0
        %3261 = vmatpush.bf16.msra.mxu0 0
        %3262 = vmatpush.bf16.msra.mxu0 0
        %3263 = vmatpush.bf16.msra.mxu0 0
        %3264 = vmatpush.bf16.msra.mxu0 %v3252
        %3265 = vmatmul.bf16.gmra.mxu0 %v3255
        %v3266 = vpop.f32.mrf.mxu0
        %v3267 = vadd.f32 0.0, %v3266
        %v3268 = vpop.f32.mrf.mxu0
        %v3269 = vadd.f32 0.0, %v3268
        %3270 = vdwg.mxu0
        %v3271 = vpack.c.bf16 %v3267, %v3267
        %v3272 = vpack.c.bf16 %v3269, %v3269
        %3273 = vrot.lane.b32.xlu0 %v3201, 64
        %v3274 = vpop.permute.xlu0 %3273
        %3275 = vrot.lane.b32.xlu0 %v3204, 64
        %v3276 = vpop.permute.xlu0 %3275
        %v3278 = vsel %vm2917, %v3274, 0
        %v3281 = vsel %vm2917, %v3276, 0
        %3283 = vmatpush.bf16.xpose.msra.mxu0 0
        %3284 = vmatpush.bf16.xpose.msra.mxu0 0
        %3285 = vmatpush.bf16.xpose.msra.mxu0 0
        %3286 = vmatpush.bf16.xpose.msra.mxu0 0
        %3287 = vmatpush.bf16.xpose.msra.mxu0 0
        %3288 = vmatpush.bf16.xpose.msra.mxu0 0
        %3289 = vmatpush.bf16.xpose.msra.mxu0 0
        %3290 = vmatpush.bf16.xpose.msra.mxu0 %v3281
        %3291 = vmatmul.bf16.gmra.mxu0 %v3278
        %v3292 = vpop.f32.mrf.mxu0
        %v3293 = vadd.f32 %v2905, %v3292
        %v3294 = vpop.f32.mrf.mxu0
        %v3295 = vadd.f32 %v2905, %v3294
        %3296 = vdwg.mxu0
        %v3297 = vsel %vm2938, %v3293, -inf
        %3298 = vmax.xlane.f32.xlu0 %v3297
        %v3299 = vpop.xlane.xlu0 %3298
        %v3300 = vsel %vm2938, %v3295, -inf
        %3301 = vmax.xlane.f32.xlu0 %v3300
        %v3302 = vpop.xlane.xlu0 %3301
        %v3303 = vsub.f32 %v3293, %v3299
        %v3304 = vsub.f32 %v3295, %v3302
        %v3305 = vmul.f32 %v3303, 1.442695
        %v3306 = vpow.pop %v3305
        %v3307 = vmul.f32 %v3304, 1.442695
        %v3308 = vpow.pop %v3307
        %v3309 = vsel %vm2938, %v3306, 0.0
        %3310 = vadd.xlane.f32.xlu0 %v3309
        %v3311 = vpop.xlane.xlu0 %3310
        %v3312 = vsel %vm2938, %v3308, 0.0
        %3313 = vadd.xlane.f32.xlu0 %v3312
        %v3314 = vpop.xlane.xlu0 %3313
        %v3315 = vrcp.pop %v3311
        %v3316 = vrcp.pop %v3314
        %v3317 = vmul.f32 %v3306, %v3315
        %v3318 = vmul.f32 %v3308, %v3316
        %v3319 = vpack.c.bf16 %v3318, %v3317
        %3320 = vrot.lane.b32.xlu0 %v3252, 64
        %v3321 = vpop.permute.xlu0 %3320
        %v3324 = vsel %vm2938, %v3319, 0
        %3326 = vmatpush.bf16.msra.mxu0 0
        %3327 = vmatpush.bf16.msra.mxu0 0
        %3328 = vmatpush.bf16.msra.mxu0 0
        %3329 = vmatpush.bf16.msra.mxu0 0
        %3330 = vmatpush.bf16.msra.mxu0 0
        %3331 = vmatpush.bf16.msra.mxu0 0
        %3332 = vmatpush.bf16.msra.mxu0 0
        %3333 = vmatpush.bf16.msra.mxu0 %v3321
        %3334 = vmatmul.bf16.gmra.mxu0 %v3324
        %v3335 = vpop.f32.mrf.mxu0
        %v3336 = vadd.f32 0.0, %v3335
        %v3337 = vpop.f32.mrf.mxu0
        %v3338 = vadd.f32 0.0, %v3337
        %3339 = vdwg.mxu0
        %v3340 = vpack.c.bf16 %v3336, %v3336
        %v3341 = vpack.c.bf16 %v3338, %v3338
        %v3344 = vunpack.c.l.b16 %v2985
        %v3345 = vunpack.c.l.b16 %v2986
        %v3346 = vpack.c.b16 %v3345, %v3344
        %v3349 = vunpack.c.l.b16 %v3054
        %v3350 = vunpack.c.l.b16 %v3055
        %v3351 = vpack.c.b16 %v3350, %v3349
        %3352 = vrot.lane.b32.xlu0 %v3351, 64
        %v3353 = vpop.permute.xlu0 %3352
        %v3356 = vunpack.c.l.b16 %v3128
        %v3357 = vunpack.c.l.b16 %v3129
        %v3358 = vpack.c.b16 %v3357, %v3356
        %v3361 = vunpack.c.l.b16 %v3197
        %v3362 = vunpack.c.l.b16 %v3198
        %v3363 = vpack.c.b16 %v3362, %v3361
        %3364 = vrot.lane.b32.xlu0 %v3363, 64
        %v3365 = vpop.permute.xlu0 %3364
        %v3368 = vunpack.c.l.b16 %v3271
        %v3369 = vunpack.c.l.b16 %v3272
        %v3370 = vpack.c.b16 %v3369, %v3368
        %v3373 = vunpack.c.l.b16 %v3340
        %v3374 = vunpack.c.l.b16 %v3341
        %v3375 = vpack.c.b16 %v3374, %v3373
        %3376 = vrot.lane.b32.xlu0 %v3375, 64
        %v3377 = vpop.permute.xlu0 %3376
        %v3380 = vsel %vm2917, %v3346, %v3353
        %v3384 = vsel %vm2917, %v3358, %v3365
        %v3388 = vsel %vm2917, %v3370, %v3377
        %v3390 = vld [vmem:[%s828] sm:$0xff]
        %v3391 = vld [vmem:[%s828 + $0x8] sm:$0xf]
        %v3392 = vld [vmem:[%s828 + $0xc] sm:$0xff]
        %v3393 = vld [vmem:[%s828 + $0x14] sm:$0xf]
        %v3394 = vld [vmem:[%s828 + $0x18] sm:$0xff]
        %v3395 = vld [vmem:[%s828 + $0x20] sm:$0xf]
        %v3396 = vld [vmem:[%s828 + $0x24] sm:$0xff]
        %v3397 = vld [vmem:[%s828 + $0x2c] sm:$0xf]
        %v3398 = vld [vmem:[%s828 + $0x30] sm:$0xff]
        %v3399 = vld [vmem:[%s828 + $0x38] sm:$0xf]
        %v3400 = vld [vmem:[%s828 + $0x3c] sm:$0xff]
        %v3401 = vld [vmem:[%s828 + $0x44] sm:$0xf]
        %v3402 = vld [vmem:[%s828 + $0x48] sm:$0xff]
        %v3403 = vld [vmem:[%s828 + $0x50] sm:$0xf]
        %v3404 = vld [vmem:[%s828 + $0x54] sm:$0xff]
        %v3405 = vld [vmem:[%s828 + $0x5c] sm:$0xf]
        %v3406 = vld [vmem:[%s828 + $0x60] sm:$0xff]
        %v3407 = vld [vmem:[%s828 + $0x68] sm:$0xf]
        %v3408 = vld [vmem:[%s828 + $0x6c] sm:$0xff]
        %v3409 = vld [vmem:[%s828 + $0x74] sm:$0xf]
        %v3410 = vld [vmem:[%s828 + $0x78] sm:$0xff]
        %v3411 = vld [vmem:[%s828 + $0x80] sm:$0xf]
        %v3412 = vld [vmem:[%s828 + $0x84] sm:$0xff]
        %v3413 = vld [vmem:[%s828 + $0x8c] sm:$0xf]
        %v3414 = vld [vmem:[%s828 + $0x90] sm:$0xff]
        %v3415 = vld [vmem:[%s828 + $0x98] sm:$0xf]
        %v3416 = vld [vmem:[%s828 + $0x9c] sm:$0xff]
        %v3417 = vld [vmem:[%s828 + $0xa4] sm:$0xf]
        %v3418 = vld [vmem:[%s828 + $0xa8] sm:$0xff]
        %v3419 = vld [vmem:[%s828 + $0xb0] sm:$0xf]
        %v3420 = vld [vmem:[%s828 + $0xb4] sm:$0xff]
        %v3421 = vld [vmem:[%s828 + $0xbc] sm:$0xf]
        %v3422 = vld [vmem:[%s828 + $0xc0] sm:$0xff]
        %v3423 = vld [vmem:[%s828 + $0xc8] sm:$0xf]
        %v3424 = vld [vmem:[%s828 + $0xcc] sm:$0xff]
        %v3425 = vld [vmem:[%s828 + $0xd4] sm:$0xf]
        %v3426 = vld [vmem:[%s828 + $0xd8] sm:$0xff]
        %v3427 = vld [vmem:[%s828 + $0xe0] sm:$0xf]
        %v3428 = vld [vmem:[%s828 + $0xe4] sm:$0xff]
        %v3429 = vld [vmem:[%s828 + $0xec] sm:$0xf]
        %v3430 = vld [vmem:[%s828 + $0xf0] sm:$0xff]
        %v3431 = vld [vmem:[%s828 + $0xf8] sm:$0xf]
        %v3432 = vld [vmem:[%s828 + $0xfc] sm:$0xff]
        %v3433 = vld [vmem:[%s828 + $0x104] sm:$0xf]
        %v3434 = vld [vmem:[%s828 + $0x108] sm:$0xff]
        %v3435 = vld [vmem:[%s828 + $0x110] sm:$0xf]
        %v3436 = vld [vmem:[%s828 + $0x114] sm:$0xff]
        %v3437 = vld [vmem:[%s828 + $0x11c] sm:$0xf]
        %v3438 = vld [vmem:[%s828 + $0x120] sm:$0xff]
        %v3439 = vld [vmem:[%s828 + $0x128] sm:$0xf]
        %v3440 = vld [vmem:[%s828 + $0x12c] sm:$0xff]
        %v3441 = vld [vmem:[%s828 + $0x134] sm:$0xf]
        %v3442 = vld [vmem:[%s828 + $0x138] sm:$0xff]
        %v3443 = vld [vmem:[%s828 + $0x140] sm:$0xf]
        %v3444 = vld [vmem:[%s828 + $0x144] sm:$0xff]
        %v3445 = vld [vmem:[%s828 + $0x14c] sm:$0xf]
        %v3446 = vld [vmem:[%s828 + $0x150] sm:$0xff]
        %v3447 = vld [vmem:[%s828 + $0x158] sm:$0xf]
        %v3448 = vld [vmem:[%s828 + $0x15c] sm:$0xff]
        %v3449 = vld [vmem:[%s828 + $0x164] sm:$0xf]
        %v3450 = vld [vmem:[%s828 + $0x168] sm:$0xff]
        %v3451 = vld [vmem:[%s828 + $0x170] sm:$0xf]
        %v3452 = vld [vmem:[%s828 + $0x174] sm:$0xff]
        %v3453 = vld [vmem:[%s828 + $0x17c] sm:$0xf]
        %v3454 = vld [vmem:[%s828 + $0x180] sm:$0xff]
        %v3455 = vld [vmem:[%s828 + $0x188] sm:$0xf]
        %v3456 = vld [vmem:[%s828 + $0x18c] sm:$0xff]
        %v3457 = vld [vmem:[%s828 + $0x194] sm:$0xf]
        %v3458 = vld [vmem:[%s828 + $0x198] sm:$0xff]
        %v3459 = vld [vmem:[%s828 + $0x1a0] sm:$0xf]
        %v3460 = vld [vmem:[%s828 + $0x1a4] sm:$0xff]
        %v3461 = vld [vmem:[%s828 + $0x1ac] sm:$0xf]
        %v3462 = vld [vmem:[%s828 + $0x1b0] sm:$0xff]
        %v3463 = vld [vmem:[%s828 + $0x1b8] sm:$0xf]
        %v3464 = vld [vmem:[%s828 + $0x1bc] sm:$0xff]
        %v3465 = vld [vmem:[%s828 + $0x1c4] sm:$0xf]
        %v3466 = vld [vmem:[%s828 + $0x1c8] sm:$0xff]
        %v3467 = vld [vmem:[%s828 + $0x1d0] sm:$0xf]
        %v3468 = vld [vmem:[%s828 + $0x1d4] sm:$0xff]
        %v3469 = vld [vmem:[%s828 + $0x1dc] sm:$0xf]
        %v3470 = vld [vmem:[%s828 + $0x1e0] sm:$0xff]
        %v3471 = vld [vmem:[%s828 + $0x1e8] sm:$0xf]
        %v3472 = vld [vmem:[%s828 + $0x1ec] sm:$0xff]
        %v3473 = vld [vmem:[%s828 + $0x1f4] sm:$0xf]
        %v3474 = vld [vmem:[%s828 + $0x1f8] sm:$0xff]
        %v3475 = vld [vmem:[%s828 + $0x200] sm:$0xf]
        %v3476 = vld [vmem:[%s828 + $0x204] sm:$0xff]
        %v3477 = vld [vmem:[%s828 + $0x20c] sm:$0xf]
        %v3478 = vld [vmem:[%s828 + $0x210] sm:$0xff]
        %v3479 = vld [vmem:[%s828 + $0x218] sm:$0xf]
        %v3480 = vld [vmem:[%s828 + $0x21c] sm:$0xff]
        %v3481 = vld [vmem:[%s828 + $0x224] sm:$0xf]
        %v3482 = vld [vmem:[%s828 + $0x228] sm:$0xff]
        %v3483 = vld [vmem:[%s828 + $0x230] sm:$0xf]
        %v3484 = vld [vmem:[%s828 + $0x234] sm:$0xff]
        %v3485 = vld [vmem:[%s828 + $0x23c] sm:$0xf]
        %v3486 = vld [vmem:[%s838] sm:$0x7]
        %v3488 = vperm.slane %v3486, 0
        %v3489 = vperm.slane %v3486, 1
        %v3490 = vperm.slane %v3486, 2
        %v3590 = vunpack.c.l.b16 %v3390
        %v3591 = vunpack.c.h.b16 %v3390
        %v3592 = vunpack.c.l.b16 %v3391
        %v3593 = vunpack.c.l.b16 %v3392
        %v3594 = vunpack.c.h.b16 %v3392
        %v3595 = vunpack.c.l.b16 %v3393
        %v3596 = vunpack.c.l.b16 %v3394
        %v3597 = vunpack.c.h.b16 %v3394
        %v3598 = vunpack.c.l.b16 %v3395
        %v3599 = vunpack.c.l.b16 %v3396
        %v3600 = vunpack.c.h.b16 %v3396
        %v3601 = vunpack.c.l.b16 %v3397
        %v3602 = vunpack.c.l.b16 %v3398
        %v3603 = vunpack.c.h.b16 %v3398
        %v3604 = vunpack.c.l.b16 %v3399
        %v3605 = vunpack.c.l.b16 %v3400
        %v3606 = vunpack.c.h.b16 %v3400
        %v3607 = vunpack.c.l.b16 %v3401
        %v3608 = vunpack.c.l.b16 %v3402
        %v3609 = vunpack.c.h.b16 %v3402
        %v3610 = vunpack.c.l.b16 %v3403
        %v3611 = vunpack.c.l.b16 %v3404
        %v3612 = vunpack.c.h.b16 %v3404
        %v3613 = vunpack.c.l.b16 %v3405
        %v3614 = vunpack.c.l.b16 %v3406
        %v3615 = vunpack.c.h.b16 %v3406
        %v3616 = vunpack.c.l.b16 %v3407
        %v3617 = vunpack.c.l.b16 %v3408
        %v3618 = vunpack.c.h.b16 %v3408
        %v3619 = vunpack.c.l.b16 %v3409
        %v3620 = vunpack.c.l.b16 %v3410
        %v3621 = vunpack.c.h.b16 %v3410
        %v3622 = vunpack.c.l.b16 %v3411
        %v3623 = vunpack.c.l.b16 %v3412
        %v3624 = vunpack.c.h.b16 %v3412
        %v3625 = vunpack.c.l.b16 %v3413
        %v3626 = vunpack.c.l.b16 %v3414
        %v3627 = vunpack.c.h.b16 %v3414
        %v3628 = vunpack.c.l.b16 %v3415
        %v3629 = vunpack.c.l.b16 %v3416
        %v3630 = vunpack.c.h.b16 %v3416
        %v3631 = vunpack.c.l.b16 %v3417
        %v3632 = vunpack.c.l.b16 %v3418
        %v3633 = vunpack.c.h.b16 %v3418
        %v3634 = vunpack.c.l.b16 %v3419
        %v3635 = vunpack.c.l.b16 %v3420
        %v3636 = vunpack.c.h.b16 %v3420
        %v3637 = vunpack.c.l.b16 %v3421
        %v3638 = vunpack.c.l.b16 %v3422
        %v3639 = vunpack.c.h.b16 %v3422
        %v3640 = vunpack.c.l.b16 %v3423
        %v3641 = vunpack.c.l.b16 %v3424
        %v3642 = vunpack.c.h.b16 %v3424
        %v3643 = vunpack.c.l.b16 %v3425
        %v3644 = vunpack.c.l.b16 %v3426
        %v3645 = vunpack.c.h.b16 %v3426
        %v3646 = vunpack.c.l.b16 %v3427
        %v3647 = vunpack.c.l.b16 %v3428
        %v3648 = vunpack.c.h.b16 %v3428
        %v3649 = vunpack.c.l.b16 %v3429
        %v3650 = vunpack.c.l.b16 %v3430
        %v3651 = vunpack.c.h.b16 %v3430
        %v3652 = vunpack.c.l.b16 %v3431
        %v3653 = vunpack.c.l.b16 %v3432
        %v3654 = vunpack.c.h.b16 %v3432
        %v3655 = vunpack.c.l.b16 %v3433
        %v3656 = vunpack.c.l.b16 %v3434
        %v3657 = vunpack.c.h.b16 %v3434
        %v3658 = vunpack.c.l.b16 %v3435
        %v3659 = vunpack.c.l.b16 %v3436
        %v3660 = vunpack.c.h.b16 %v3436
        %v3661 = vunpack.c.l.b16 %v3437
        %v3662 = vunpack.c.l.b16 %v3438
        %v3663 = vunpack.c.h.b16 %v3438
        %v3664 = vunpack.c.l.b16 %v3439
        %v3665 = vunpack.c.l.b16 %v3440
        %v3666 = vunpack.c.h.b16 %v3440
        %v3667 = vunpack.c.l.b16 %v3441
        %v3668 = vunpack.c.l.b16 %v3442
        %v3669 = vunpack.c.h.b16 %v3442
        %v3670 = vunpack.c.l.b16 %v3443
        %v3671 = vunpack.c.l.b16 %v3444
        %v3672 = vunpack.c.h.b16 %v3444
        %v3673 = vunpack.c.l.b16 %v3445
        %v3674 = vunpack.c.l.b16 %v3446
        %v3675 = vunpack.c.h.b16 %v3446
        %v3676 = vunpack.c.l.b16 %v3447
        %v3677 = vunpack.c.l.b16 %v3448
        %v3678 = vunpack.c.h.b16 %v3448
        %v3679 = vunpack.c.l.b16 %v3449
        %v3680 = vunpack.c.l.b16 %v3450
        %v3681 = vunpack.c.h.b16 %v3450
        %v3682 = vunpack.c.l.b16 %v3451
        %v3683 = vunpack.c.l.b16 %v3452
        %v3684 = vunpack.c.h.b16 %v3452
        %v3685 = vunpack.c.l.b16 %v3453
        %v3686 = vunpack.c.l.b16 %v3454
        %v3687 = vunpack.c.h.b16 %v3454
        %v3688 = vunpack.c.l.b16 %v3455
        %v3689 = vunpack.c.l.b16 %v3456
        %v3690 = vunpack.c.h.b16 %v3456
        %v3691 = vunpack.c.l.b16 %v3457
        %v3692 = vunpack.c.l.b16 %v3458
        %v3693 = vunpack.c.h.b16 %v3458
        %v3694 = vunpack.c.l.b16 %v3459
        %v3695 = vunpack.c.l.b16 %v3460
        %v3696 = vunpack.c.h.b16 %v3460
        %v3697 = vunpack.c.l.b16 %v3461
        %v3698 = vunpack.c.l.b16 %v3462
        %v3699 = vunpack.c.h.b16 %v3462
        %v3700 = vunpack.c.l.b16 %v3463
        %v3701 = vunpack.c.l.b16 %v3464
        %v3702 = vunpack.c.h.b16 %v3464
        %v3703 = vunpack.c.l.b16 %v3465
        %v3704 = vunpack.c.l.b16 %v3466
        %v3705 = vunpack.c.h.b16 %v3466
        %v3706 = vunpack.c.l.b16 %v3467
        %v3707 = vunpack.c.l.b16 %v3468
        %v3708 = vunpack.c.h.b16 %v3468
        %v3709 = vunpack.c.l.b16 %v3469
        %v3710 = vunpack.c.l.b16 %v3470
        %v3711 = vunpack.c.h.b16 %v3470
        %v3712 = vunpack.c.l.b16 %v3471
        %v3713 = vunpack.c.l.b16 %v3472
        %v3714 = vunpack.c.h.b16 %v3472
        %v3715 = vunpack.c.l.b16 %v3473
        %v3716 = vunpack.c.l.b16 %v3474
        %v3717 = vunpack.c.h.b16 %v3474
        %v3718 = vunpack.c.l.b16 %v3475
        %v3719 = vunpack.c.l.b16 %v3476
        %v3720 = vunpack.c.h.b16 %v3476
        %v3721 = vunpack.c.l.b16 %v3477
        %v3722 = vunpack.c.l.b16 %v3478
        %v3723 = vunpack.c.h.b16 %v3478
        %v3724 = vunpack.c.l.b16 %v3479
        %v3725 = vunpack.c.l.b16 %v3480
        %v3726 = vunpack.c.h.b16 %v3480
        %v3727 = vunpack.c.l.b16 %v3481
        %v3728 = vunpack.c.l.b16 %v3482
        %v3729 = vunpack.c.h.b16 %v3482
        %v3730 = vunpack.c.l.b16 %v3483
        %v3731 = vunpack.c.l.b16 %v3484
        %v3732 = vunpack.c.h.b16 %v3484
        %v3733 = vunpack.c.l.b16 %v3485
        %v3734 = vpack.c.b16 %v3593, %v3590
        %v3735 = vpack.c.b16 %v3594, %v3591
        %v3736 = vpack.c.b16 %v3595, %v3592
        %v3737 = vpack.c.b16 %v3599, %v3596
        %v3738 = vpack.c.b16 %v3600, %v3597
        %v3739 = vpack.c.b16 %v3601, %v3598
        %v3740 = vpack.c.b16 %v3605, %v3602
        %v3741 = vpack.c.b16 %v3606, %v3603
        %v3742 = vpack.c.b16 %v3607, %v3604
        %v3743 = vpack.c.b16 %v3611, %v3608
        %v3744 = vpack.c.b16 %v3612, %v3609
        %v3745 = vpack.c.b16 %v3613, %v3610
        %v3746 = vpack.c.b16 %v3617, %v3614
        %v3747 = vpack.c.b16 %v3618, %v3615
        %v3748 = vpack.c.b16 %v3619, %v3616
        %v3749 = vpack.c.b16 %v3623, %v3620
        %v3750 = vpack.c.b16 %v3624, %v3621
        %v3751 = vpack.c.b16 %v3625, %v3622
        %v3752 = vpack.c.b16 %v3629, %v3626
        %v3753 = vpack.c.b16 %v3630, %v3627
        %v3754 = vpack.c.b16 %v3631, %v3628
        %v3755 = vpack.c.b16 %v3635, %v3632
        %v3756 = vpack.c.b16 %v3636, %v3633
        %v3757 = vpack.c.b16 %v3637, %v3634
        %v3758 = vpack.c.b16 %v3641, %v3638
        %v3759 = vpack.c.b16 %v3642, %v3639
        %v3760 = vpack.c.b16 %v3643, %v3640
        %v3761 = vpack.c.b16 %v3647, %v3644
        %v3762 = vpack.c.b16 %v3648, %v3645
        %v3763 = vpack.c.b16 %v3649, %v3646
        %v3764 = vpack.c.b16 %v3653, %v3650
        %v3765 = vpack.c.b16 %v3654, %v3651
        %v3766 = vpack.c.b16 %v3655, %v3652
        %v3767 = vpack.c.b16 %v3659, %v3656
        %v3768 = vpack.c.b16 %v3660, %v3657
        %v3769 = vpack.c.b16 %v3661, %v3658
        %v3770 = vpack.c.b16 %v3665, %v3662
        %v3771 = vpack.c.b16 %v3666, %v3663
        %v3772 = vpack.c.b16 %v3667, %v3664
        %v3773 = vpack.c.b16 %v3671, %v3668
        %v3774 = vpack.c.b16 %v3672, %v3669
        %v3775 = vpack.c.b16 %v3673, %v3670
        %v3776 = vpack.c.b16 %v3677, %v3674
        %v3777 = vpack.c.b16 %v3678, %v3675
        %v3778 = vpack.c.b16 %v3679, %v3676
        %v3779 = vpack.c.b16 %v3683, %v3680
        %v3780 = vpack.c.b16 %v3684, %v3681
        %v3781 = vpack.c.b16 %v3685, %v3682
        %v3782 = vpack.c.b16 %v3689, %v3686
        %v3783 = vpack.c.b16 %v3690, %v3687
        %v3784 = vpack.c.b16 %v3691, %v3688
        %v3785 = vpack.c.b16 %v3695, %v3692
        %v3786 = vpack.c.b16 %v3696, %v3693
        %v3787 = vpack.c.b16 %v3697, %v3694
        %v3788 = vpack.c.b16 %v3701, %v3698
        %v3789 = vpack.c.b16 %v3702, %v3699
        %v3790 = vpack.c.b16 %v3703, %v3700
        %v3791 = vpack.c.b16 %v3707, %v3704
        %v3792 = vpack.c.b16 %v3708, %v3705
        %v3793 = vpack.c.b16 %v3709, %v3706
        %v3794 = vpack.c.b16 %v3713, %v3710
        %v3795 = vpack.c.b16 %v3714, %v3711
        %v3796 = vpack.c.b16 %v3715, %v3712
        %v3797 = vpack.c.b16 %v3719, %v3716
        %v3798 = vpack.c.b16 %v3720, %v3717
        %v3799 = vpack.c.b16 %v3721, %v3718
        %v3800 = vpack.c.b16 %v3725, %v3722
        %v3801 = vpack.c.b16 %v3726, %v3723
        %v3802 = vpack.c.b16 %v3727, %v3724
        %v3803 = vpack.c.b16 %v3731, %v3728
        %v3804 = vpack.c.b16 %v3732, %v3729
        %v3805 = vpack.c.b16 %v3733, %v3730
        %3878 = vmatpush.bf16.msra.mxu0 %v3755
        %3879 = vmatpush.bf16.msra.mxu0 %v3752
        %3880 = vmatpush.bf16.msra.mxu0 %v3749
        %3881 = vmatpush.bf16.msra.mxu0 %v3746
        %3882 = vmatpush.bf16.msra.mxu0 %v3743
        %3883 = vmatpush.bf16.msra.mxu0 %v3740
        %3884 = vmatpush.bf16.msra.mxu0 %v3737
        %3885 = vmatpush.bf16.msra.mxu0 %v3734
        %3886 = vmatmul.bf16.gmra.mxu0 %v3380
        %v3887 = vpop.f32.mrf.mxu0
        %v3888 = vadd.f32 %v3488, %v3887
        %v3889 = vpop.f32.mrf.mxu0
        %v3890 = vadd.f32 %v3488, %v3889
        %3891 = vdwg.mxu0
        %3892 = vmatpush.bf16.msra.mxu0 %v3779
        %3893 = vmatpush.bf16.msra.mxu0 %v3776
        %3894 = vmatpush.bf16.msra.mxu0 %v3773
        %3895 = vmatpush.bf16.msra.mxu0 %v3770
        %3896 = vmatpush.bf16.msra.mxu0 %v3767
        %3897 = vmatpush.bf16.msra.mxu0 %v3764
        %3898 = vmatpush.bf16.msra.mxu0 %v3761
        %3899 = vmatpush.bf16.msra.mxu0 %v3758
        %3900 = vmatmul.bf16.gmra.mxu0 %v3384
        %v3901 = vpop.f32.mrf.mxu0
        %v3902 = vadd.f32 %v3888, %v3901
        %v3903 = vpop.f32.mrf.mxu0
        %v3904 = vadd.f32 %v3890, %v3903
        %3905 = vdwg.mxu0
        %3906 = vmatpush.bf16.msra.mxu0 %v3803
        %3907 = vmatpush.bf16.msra.mxu0 %v3800
        %3908 = vmatpush.bf16.msra.mxu0 %v3797
        %3909 = vmatpush.bf16.msra.mxu0 %v3794
        %3910 = vmatpush.bf16.msra.mxu0 %v3791
        %3911 = vmatpush.bf16.msra.mxu0 %v3788
        %3912 = vmatpush.bf16.msra.mxu0 %v3785
        %3913 = vmatpush.bf16.msra.mxu0 %v3782
        %3914 = vmatmul.bf16.gmra.mxu0 %v3388
        %v3915 = vpop.f32.mrf.mxu0
        %v3916 = vadd.f32 %v3902, %v3915
        %v3917 = vpop.f32.mrf.mxu0
        %v3918 = vadd.f32 %v3904, %v3917
        %3919 = vdwg.mxu0
        %3920 = vmatpush.bf16.msra.mxu0 %v3756
        %3921 = vmatpush.bf16.msra.mxu0 %v3753
        %3922 = vmatpush.bf16.msra.mxu0 %v3750
        %3923 = vmatpush.bf16.msra.mxu0 %v3747
        %3924 = vmatpush.bf16.msra.mxu0 %v3744
        %3925 = vmatpush.bf16.msra.mxu0 %v3741
        %3926 = vmatpush.bf16.msra.mxu0 %v3738
        %3927 = vmatpush.bf16.msra.mxu0 %v3735
        %3928 = vmatmul.bf16.gmra.mxu0 %v3380
        %v3929 = vpop.f32.mrf.mxu0
        %v3930 = vadd.f32 %v3489, %v3929
        %v3931 = vpop.f32.mrf.mxu0
        %v3932 = vadd.f32 %v3489, %v3931
        %3933 = vdwg.mxu0
        %3934 = vmatpush.bf16.msra.mxu0 %v3780
        %3935 = vmatpush.bf16.msra.mxu0 %v3777
        %3936 = vmatpush.bf16.msra.mxu0 %v3774
        %3937 = vmatpush.bf16.msra.mxu0 %v3771
        %3938 = vmatpush.bf16.msra.mxu0 %v3768
        %3939 = vmatpush.bf16.msra.mxu0 %v3765
        %3940 = vmatpush.bf16.msra.mxu0 %v3762
        %3941 = vmatpush.bf16.msra.mxu0 %v3759
        %3942 = vmatmul.bf16.gmra.mxu0 %v3384
        %v3943 = vpop.f32.mrf.mxu0
        %v3944 = vadd.f32 %v3930, %v3943
        %v3945 = vpop.f32.mrf.mxu0
        %v3946 = vadd.f32 %v3932, %v3945
        %3947 = vdwg.mxu0
        %3948 = vmatpush.bf16.msra.mxu0 %v3804
        %3949 = vmatpush.bf16.msra.mxu0 %v3801
        %3950 = vmatpush.bf16.msra.mxu0 %v3798
        %3951 = vmatpush.bf16.msra.mxu0 %v3795
        %3952 = vmatpush.bf16.msra.mxu0 %v3792
        %3953 = vmatpush.bf16.msra.mxu0 %v3789
        %3954 = vmatpush.bf16.msra.mxu0 %v3786
        %3955 = vmatpush.bf16.msra.mxu0 %v3783
        %3956 = vmatmul.bf16.gmra.mxu0 %v3388
        %v3957 = vpop.f32.mrf.mxu0
        %v3958 = vadd.f32 %v3944, %v3957
        %v3959 = vpop.f32.mrf.mxu0
        %v3960 = vadd.f32 %v3946, %v3959
        %3961 = vdwg.mxu0
        %3962 = vmatpush.bf16.msra.mxu0 %v3757
        %3963 = vmatpush.bf16.msra.mxu0 %v3754
        %3964 = vmatpush.bf16.msra.mxu0 %v3751
        %3965 = vmatpush.bf16.msra.mxu0 %v3748
        %3966 = vmatpush.bf16.msra.mxu0 %v3745
        %3967 = vmatpush.bf16.msra.mxu0 %v3742
        %3968 = vmatpush.bf16.msra.mxu0 %v3739
        %3969 = vmatpush.bf16.msra.mxu0 %v3736
        %3970 = vmatmul.bf16.gmra.mxu0 %v3380
        %v3971 = vpop.f32.mrf.mxu0
        %v3972 = vadd.f32 %v3490, %v3971
        %v3973 = vpop.f32.mrf.mxu0
        %v3974 = vadd.f32 %v3490, %v3973
        %3975 = vdwg.mxu0
        %3976 = vmatpush.bf16.msra.mxu0 %v3781
        %3977 = vmatpush.bf16.msra.mxu0 %v3778
        %3978 = vmatpush.bf16.msra.mxu0 %v3775
        %3979 = vmatpush.bf16.msra.mxu0 %v3772
        %3980 = vmatpush.bf16.msra.mxu0 %v3769
        %3981 = vmatpush.bf16.msra.mxu0 %v3766
        %3982 = vmatpush.bf16.msra.mxu0 %v3763
        %3983 = vmatpush.bf16.msra.mxu0 %v3760
        %3984 = vmatmul.bf16.gmra.mxu0 %v3384
        %v3985 = vpop.f32.mrf.mxu0
        %v3986 = vadd.f32 %v3972, %v3985
        %v3987 = vpop.f32.mrf.mxu0
        %v3988 = vadd.f32 %v3974, %v3987
        %3989 = vdwg.mxu0
        %3990 = vmatpush.bf16.msra.mxu0 %v3805
        %3991 = vmatpush.bf16.msra.mxu0 %v3802
        %3992 = vmatpush.bf16.msra.mxu0 %v3799
        %3993 = vmatpush.bf16.msra.mxu0 %v3796
        %3994 = vmatpush.bf16.msra.mxu0 %v3793
        %3995 = vmatpush.bf16.msra.mxu0 %v3790
        %3996 = vmatpush.bf16.msra.mxu0 %v3787
        %3997 = vmatpush.bf16.msra.mxu0 %v3784
        %3998 = vmatmul.bf16.gmra.mxu0 %v3388
        %v3999 = vpop.f32.mrf.mxu0
        %v4000 = vadd.f32 %v3986, %v3999
        %v4001 = vpop.f32.mrf.mxu0
        %v4002 = vadd.f32 %v3988, %v4001
        %4003 = vdwg.mxu0
        %v4004 = vadd.f32 %v1045, %v3916
        %v4005 = vadd.f32 %v1046, %v3958
        %v4006 = vadd.f32 %v1047, %v4000
        %v4007 = vadd.f32 %v1048, %v3918
        %v4008 = vadd.f32 %v1049, %v3960
        %v4009 = vadd.f32 %v1050, %v4002
        %v4010 = vld [vmem:[%s848] sm:$0x7]
        %v4011 = vld [vmem:[%s858] sm:$0x7]
        %v4012 = vadd.f32 %v4004, %v4005
        %v4013 = vadd.f32 %v4012, %v4006
        %4014 = vadd.xlane.f32.xlu0 %v4013
        %v4015 = vpop.xlane.xlu0 %4014
        %v4016 = vadd.f32 %v4007, %v4008
        %v4017 = vadd.f32 %v4016, %v4009
        %4018 = vadd.xlane.f32.xlu0 %v4017
        %v4019 = vpop.xlane.xlu0 %4018
        %v4020 = vmul.f32 %v4015, %v1067
        %v4021 = vmul.f32 %v4019, %v1067
        %v4022 = vsub.f32 %v4004, %v4020
        %v4023 = vsub.f32 %v4005, %v4020
        %v4024 = vsub.f32 %v4006, %v4020
        %v4025 = vsub.f32 %v4007, %v4021
        %v4026 = vsub.f32 %v4008, %v4021
        %v4027 = vsub.f32 %v4009, %v4021
        %v4028 = vmul.f32 %v4022, %v4022
        %v4029 = vmul.f32 %v4023, %v4023
        %v4030 = vmul.f32 %v4024, %v4024
        %v4031 = vmul.f32 %v4025, %v4025
        %v4032 = vmul.f32 %v4026, %v4026
        %v4033 = vmul.f32 %v4027, %v4027
        %v4034 = vadd.f32 %v4028, %v4029
        %v4035 = vadd.f32 %v4034, %v4030
        %4036 = vadd.xlane.f32.xlu0 %v4035
        %v4037 = vpop.xlane.xlu0 %4036
        %v4038 = vadd.f32 %v4031, %v4032
        %v4039 = vadd.f32 %v4038, %v4033
        %4040 = vadd.xlane.f32.xlu0 %v4039
        %v4041 = vpop.xlane.xlu0 %4040
        %v4042 = vmul.f32 %v4037, %v1067
        %v4043 = vmul.f32 %v4041, %v1067
        %v4044 = vadd.f32 %v4042, 1e-06
        %v4045 = vadd.f32 %v4043, 1e-06
        %v4046 = vrsqrt.pop %v4044
        %v4047 = vmul.f32 %v4046, %v4044
        %v4048 = vmul.f32 %v4047, %v4046
        %v4049 = vmul.f32 0.5, %v4048
        %v4050 = vsub.f32 1.5, %v4049
        %v4051 = vmul.f32 %v4046, %v4050
        %vm4052 = vweird.f32 %v4044
        %vm4053 = vweird.f32 %v4046
        %vm4054 = vmor %vm4052, %vm4053
        %v4055 = vsel %vm4054, %v4046, %v4051
        %v4056 = vrsqrt.pop %v4045
        %v4057 = vmul.f32 %v4056, %v4045
        %v4058 = vmul.f32 %v4057, %v4056
        %v4059 = vmul.f32 0.5, %v4058
        %v4060 = vsub.f32 1.5, %v4059
        %v4061 = vmul.f32 %v4056, %v4060
        %vm4062 = vweird.f32 %v4045
        %vm4063 = vweird.f32 %v4056
        %vm4064 = vmor %vm4062, %vm4063
        %v4065 = vsel %vm4064, %v4056, %v4061
        %v4066 = vmul.f32 %v4022, %v4055
        %v4067 = vmul.f32 %v4023, %v4055
        %v4068 = vmul.f32 %v4024, %v4055
        %v4069 = vmul.f32 %v4025, %v4065
        %v4070 = vmul.f32 %v4026, %v4065
        %v4071 = vmul.f32 %v4027, %v4065
        %v4073 = vperm.slane %v4010, 0
        %v4074 = vperm.slane %v4010, 1
        %v4075 = vperm.slane %v4010, 2
        %v4079 = vmul.f32 %v4066, %v4073
        %v4080 = vmul.f32 %v4067, %v4074
        %v4081 = vmul.f32 %v4068, %v4075
        %v4082 = vmul.f32 %v4069, %v4073
        %v4083 = vmul.f32 %v4070, %v4074
        %v4084 = vmul.f32 %v4071, %v4075
        %v4086 = vperm.slane %v4011, 0
        %v4087 = vperm.slane %v4011, 1
        %v4088 = vperm.slane %v4011, 2
        %v4092 = vadd.f32 %v4079, %v4086
        %v4093 = vadd.f32 %v4080, %v4087
        %v4094 = vadd.f32 %v4081, %v4088
        %v4095 = vadd.f32 %v4082, %v4086
        %v4096 = vadd.f32 %v4083, %v4087
        %v4097 = vadd.f32 %v4084, %v4088
        %v4098 = vpack.c.bf16 %v4095, %v4092
        %v4099 = vpack.c.bf16 %v4096, %v4093
        %v4100 = vpack.c.bf16 %v4097, %v4094
        %v4101 = vld [vmem:[%s868] sm:$0xff]
        %v4102 = vld [vmem:[%s868 + $0x8] sm:$0xff]
        %v4103 = vld [vmem:[%s868 + $0x10] sm:$0xff]
        %v4104 = vld [vmem:[%s868 + $0x18] sm:$0xff]
        %v4105 = vld [vmem:[%s868 + $0x20] sm:$0xff]
        %v4106 = vld [vmem:[%s868 + $0x28] sm:$0xff]
        %v4107 = vld [vmem:[%s868 + $0x30] sm:$0xff]
        %v4108 = vld [vmem:[%s868 + $0x38] sm:$0xff]
        %v4109 = vld [vmem:[%s868 + $0x40] sm:$0xff]
        %v4110 = vld [vmem:[%s868 + $0x48] sm:$0xff]
        %v4111 = vld [vmem:[%s868 + $0x50] sm:$0xff]
        %v4112 = vld [vmem:[%s868 + $0x58] sm:$0xff]
        %v4113 = vld [vmem:[%s868 + $0x60] sm:$0xff]
        %v4114 = vld [vmem:[%s868 + $0x68] sm:$0xff]
        %v4115 = vld [vmem:[%s868 + $0x70] sm:$0xff]
        %v4116 = vld [vmem:[%s868 + $0x78] sm:$0xff]
        %v4117 = vld [vmem:[%s868 + $0x80] sm:$0xff]
        %v4118 = vld [vmem:[%s868 + $0x88] sm:$0xff]
        %v4119 = vld [vmem:[%s868 + $0x90] sm:$0xff]
        %v4120 = vld [vmem:[%s868 + $0x98] sm:$0xff]
        %v4121 = vld [vmem:[%s868 + $0xa0] sm:$0xff]
        %v4122 = vld [vmem:[%s868 + $0xa8] sm:$0xff]
        %v4123 = vld [vmem:[%s868 + $0xb0] sm:$0xff]
        %v4124 = vld [vmem:[%s868 + $0xb8] sm:$0xff]
        %v4125 = vld [vmem:[%s868 + $0xc0] sm:$0xff]
        %v4126 = vld [vmem:[%s868 + $0xc8] sm:$0xff]
        %v4127 = vld [vmem:[%s868 + $0xd0] sm:$0xff]
        %v4128 = vld [vmem:[%s868 + $0xd8] sm:$0xff]
        %v4129 = vld [vmem:[%s868 + $0xe0] sm:$0xff]
        %v4130 = vld [vmem:[%s868 + $0xe8] sm:$0xff]
        %v4131 = vld [vmem:[%s868 + $0xf0] sm:$0xff]
        %v4132 = vld [vmem:[%s868 + $0xf8] sm:$0xff]
        %v4133 = vld [vmem:[%s868 + $0x100] sm:$0xff]
        %v4134 = vld [vmem:[%s868 + $0x108] sm:$0xff]
        %v4135 = vld [vmem:[%s868 + $0x110] sm:$0xff]
        %v4136 = vld [vmem:[%s868 + $0x118] sm:$0xff]
        %v4137 = vld [vmem:[%s868 + $0x120] sm:$0xff]
        %v4138 = vld [vmem:[%s868 + $0x128] sm:$0xff]
        %v4139 = vld [vmem:[%s868 + $0x130] sm:$0xff]
        %v4140 = vld [vmem:[%s868 + $0x138] sm:$0xff]
        %v4141 = vld [vmem:[%s868 + $0x140] sm:$0xff]
        %v4142 = vld [vmem:[%s868 + $0x148] sm:$0xff]
        %v4143 = vld [vmem:[%s868 + $0x150] sm:$0xff]
        %v4144 = vld [vmem:[%s868 + $0x158] sm:$0xff]
        %v4145 = vld [vmem:[%s868 + $0x160] sm:$0xff]
        %v4146 = vld [vmem:[%s868 + $0x168] sm:$0xff]
        %v4147 = vld [vmem:[%s868 + $0x170] sm:$0xff]
        %v4148 = vld [vmem:[%s868 + $0x178] sm:$0xff]
        %v4149 = vld [vmem:[%s868 + $0x180] sm:$0xff]
        %v4150 = vld [vmem:[%s868 + $0x188] sm:$0xff]
        %v4151 = vld [vmem:[%s868 + $0x190] sm:$0xff]
        %v4152 = vld [vmem:[%s868 + $0x198] sm:$0xff]
        %v4153 = vld [vmem:[%s868 + $0x1a0] sm:$0xff]
        %v4154 = vld [vmem:[%s868 + $0x1a8] sm:$0xff]
        %v4155 = vld [vmem:[%s868 + $0x1b0] sm:$0xff]
        %v4156 = vld [vmem:[%s868 + $0x1b8] sm:$0xff]
        %v4157 = vld [vmem:[%s868 + $0x1c0] sm:$0xff]
        %v4158 = vld [vmem:[%s868 + $0x1c8] sm:$0xff]
        %v4159 = vld [vmem:[%s868 + $0x1d0] sm:$0xff]
        %v4160 = vld [vmem:[%s868 + $0x1d8] sm:$0xff]
        %v4161 = vld [vmem:[%s868 + $0x1e0] sm:$0xff]
        %v4162 = vld [vmem:[%s868 + $0x1e8] sm:$0xff]
        %v4163 = vld [vmem:[%s868 + $0x1f0] sm:$0xff]
        %v4164 = vld [vmem:[%s868 + $0x1f8] sm:$0xff]
        %v4165 = vld [vmem:[%s868 + $0x200] sm:$0xff]
        %v4166 = vld [vmem:[%s868 + $0x208] sm:$0xff]
        %v4167 = vld [vmem:[%s868 + $0x210] sm:$0xff]
        %v4168 = vld [vmem:[%s868 + $0x218] sm:$0xff]
        %v4169 = vld [vmem:[%s868 + $0x220] sm:$0xff]
        %v4170 = vld [vmem:[%s868 + $0x228] sm:$0xff]
        %v4171 = vld [vmem:[%s868 + $0x230] sm:$0xff]
        %v4172 = vld [vmem:[%s868 + $0x238] sm:$0xff]
        %v4173 = vld [vmem:[%s868 + $0x240] sm:$0xff]
        %v4174 = vld [vmem:[%s868 + $0x248] sm:$0xff]
        %v4175 = vld [vmem:[%s868 + $0x250] sm:$0xff]
        %v4176 = vld [vmem:[%s868 + $0x258] sm:$0xff]
        %v4177 = vld [vmem:[%s868 + $0x260] sm:$0xff]
        %v4178 = vld [vmem:[%s868 + $0x268] sm:$0xff]
        %v4179 = vld [vmem:[%s868 + $0x270] sm:$0xff]
        %v4180 = vld [vmem:[%s868 + $0x278] sm:$0xff]
        %v4181 = vld [vmem:[%s868 + $0x280] sm:$0xff]
        %v4182 = vld [vmem:[%s868 + $0x288] sm:$0xff]
        %v4183 = vld [vmem:[%s868 + $0x290] sm:$0xff]
        %v4184 = vld [vmem:[%s868 + $0x298] sm:$0xff]
        %v4185 = vld [vmem:[%s868 + $0x2a0] sm:$0xff]
        %v4186 = vld [vmem:[%s868 + $0x2a8] sm:$0xff]
        %v4187 = vld [vmem:[%s868 + $0x2b0] sm:$0xff]
        %v4188 = vld [vmem:[%s868 + $0x2b8] sm:$0xff]
        %v4189 = vld [vmem:[%s868 + $0x2c0] sm:$0xff]
        %v4190 = vld [vmem:[%s868 + $0x2c8] sm:$0xff]
        %v4191 = vld [vmem:[%s868 + $0x2d0] sm:$0xff]
        %v4192 = vld [vmem:[%s868 + $0x2d8] sm:$0xff]
        %v4193 = vld [vmem:[%s868 + $0x2e0] sm:$0xff]
        %v4194 = vld [vmem:[%s868 + $0x2e8] sm:$0xff]
        %v4195 = vld [vmem:[%s868 + $0x2f0] sm:$0xff]
        %v4196 = vld [vmem:[%s868 + $0x2f8] sm:$0xff]
        %v4197 = vld [vmem:[%s868 + $0x300] sm:$0xff]
        %v4198 = vld [vmem:[%s868 + $0x308] sm:$0xff]
        %v4199 = vld [vmem:[%s868 + $0x310] sm:$0xff]
        %v4200 = vld [vmem:[%s868 + $0x318] sm:$0xff]
        %v4201 = vld [vmem:[%s868 + $0x320] sm:$0xff]
        %v4202 = vld [vmem:[%s868 + $0x328] sm:$0xff]
        %v4203 = vld [vmem:[%s868 + $0x330] sm:$0xff]
        %v4204 = vld [vmem:[%s868 + $0x338] sm:$0xff]
        %v4205 = vld [vmem:[%s868 + $0x340] sm:$0xff]
        %v4206 = vld [vmem:[%s868 + $0x348] sm:$0xff]
        %v4207 = vld [vmem:[%s868 + $0x350] sm:$0xff]
        %v4208 = vld [vmem:[%s868 + $0x358] sm:$0xff]
        %v4209 = vld [vmem:[%s868 + $0x360] sm:$0xff]
        %v4210 = vld [vmem:[%s868 + $0x368] sm:$0xff]
        %v4211 = vld [vmem:[%s868 + $0x370] sm:$0xff]
        %v4212 = vld [vmem:[%s868 + $0x378] sm:$0xff]
        %v4213 = vld [vmem:[%s868 + $0x380] sm:$0xff]
        %v4214 = vld [vmem:[%s868 + $0x388] sm:$0xff]
        %v4215 = vld [vmem:[%s868 + $0x390] sm:$0xff]
        %v4216 = vld [vmem:[%s868 + $0x398] sm:$0xff]
        %v4217 = vld [vmem:[%s868 + $0x3a0] sm:$0xff]
        %v4218 = vld [vmem:[%s868 + $0x3a8] sm:$0xff]
        %v4219 = vld [vmem:[%s868 + $0x3b0] sm:$0xff]
        %v4220 = vld [vmem:[%s868 + $0x3b8] sm:$0xff]
        %v4221 = vld [vmem:[%s868 + $0x3c0] sm:$0xff]
        %v4222 = vld [vmem:[%s868 + $0x3c8] sm:$0xff]
        %v4223 = vld [vmem:[%s868 + $0x3d0] sm:$0xff]
        %v4224 = vld [vmem:[%s868 + $0x3d8] sm:$0xff]
        %v4225 = vld [vmem:[%s868 + $0x3e0] sm:$0xff]
        %v4226 = vld [vmem:[%s868 + $0x3e8] sm:$0xff]
        %v4227 = vld [vmem:[%s868 + $0x3f0] sm:$0xff]
        %v4228 = vld [vmem:[%s868 + $0x3f8] sm:$0xff]
        %v4229 = vld [vmem:[%s868 + $0x400] sm:$0xff]
        %v4230 = vld [vmem:[%s868 + $0x408] sm:$0xff]
        %v4231 = vld [vmem:[%s868 + $0x410] sm:$0xff]
        %v4232 = vld [vmem:[%s868 + $0x418] sm:$0xff]
        %v4233 = vld [vmem:[%s868 + $0x420] sm:$0xff]
        %v4234 = vld [vmem:[%s868 + $0x428] sm:$0xff]
        %v4235 = vld [vmem:[%s868 + $0x430] sm:$0xff]
        %v4236 = vld [vmem:[%s868 + $0x438] sm:$0xff]
        %v4237 = vld [vmem:[%s868 + $0x440] sm:$0xff]
        %v4238 = vld [vmem:[%s868 + $0x448] sm:$0xff]
        %v4239 = vld [vmem:[%s868 + $0x450] sm:$0xff]
        %v4240 = vld [vmem:[%s868 + $0x458] sm:$0xff]
        %v4241 = vld [vmem:[%s868 + $0x460] sm:$0xff]
        %v4242 = vld [vmem:[%s868 + $0x468] sm:$0xff]
        %v4243 = vld [vmem:[%s868 + $0x470] sm:$0xff]
        %v4244 = vld [vmem:[%s868 + $0x478] sm:$0xff]
        %v4245 = vld [vmem:[%s868 + $0x480] sm:$0xff]
        %v4246 = vld [vmem:[%s868 + $0x488] sm:$0xff]
        %v4247 = vld [vmem:[%s868 + $0x490] sm:$0xff]
        %v4248 = vld [vmem:[%s868 + $0x498] sm:$0xff]
        %v4249 = vld [vmem:[%s868 + $0x4a0] sm:$0xff]
        %v4250 = vld [vmem:[%s868 + $0x4a8] sm:$0xff]
        %v4251 = vld [vmem:[%s868 + $0x4b0] sm:$0xff]
        %v4252 = vld [vmem:[%s868 + $0x4b8] sm:$0xff]
        %v4253 = vld [vmem:[%s868 + $0x4c0] sm:$0xff]
        %v4254 = vld [vmem:[%s868 + $0x4c8] sm:$0xff]
        %v4255 = vld [vmem:[%s868 + $0x4d0] sm:$0xff]
        %v4256 = vld [vmem:[%s868 + $0x4d8] sm:$0xff]
        %v4257 = vld [vmem:[%s868 + $0x4e0] sm:$0xff]
        %v4258 = vld [vmem:[%s868 + $0x4e8] sm:$0xff]
        %v4259 = vld [vmem:[%s868 + $0x4f0] sm:$0xff]
        %v4260 = vld [vmem:[%s868 + $0x4f8] sm:$0xff]
        %v4261 = vld [vmem:[%s868 + $0x500] sm:$0xff]
        %v4262 = vld [vmem:[%s868 + $0x508] sm:$0xff]
        %v4263 = vld [vmem:[%s868 + $0x510] sm:$0xff]
        %v4264 = vld [vmem:[%s868 + $0x518] sm:$0xff]
        %v4265 = vld [vmem:[%s868 + $0x520] sm:$0xff]
        %v4266 = vld [vmem:[%s868 + $0x528] sm:$0xff]
        %v4267 = vld [vmem:[%s868 + $0x530] sm:$0xff]
        %v4268 = vld [vmem:[%s868 + $0x538] sm:$0xff]
        %v4269 = vld [vmem:[%s868 + $0x540] sm:$0xff]
        %v4270 = vld [vmem:[%s868 + $0x548] sm:$0xff]
        %v4271 = vld [vmem:[%s868 + $0x550] sm:$0xff]
        %v4272 = vld [vmem:[%s868 + $0x558] sm:$0xff]
        %v4273 = vld [vmem:[%s868 + $0x560] sm:$0xff]
        %v4274 = vld [vmem:[%s868 + $0x568] sm:$0xff]
        %v4275 = vld [vmem:[%s868 + $0x570] sm:$0xff]
        %v4276 = vld [vmem:[%s868 + $0x578] sm:$0xff]
        %v4277 = vld [vmem:[%s868 + $0x580] sm:$0xff]
        %v4278 = vld [vmem:[%s868 + $0x588] sm:$0xff]
        %v4279 = vld [vmem:[%s868 + $0x590] sm:$0xff]
        %v4280 = vld [vmem:[%s868 + $0x598] sm:$0xff]
        %v4281 = vld [vmem:[%s868 + $0x5a0] sm:$0xff]
        %v4282 = vld [vmem:[%s868 + $0x5a8] sm:$0xff]
        %v4283 = vld [vmem:[%s868 + $0x5b0] sm:$0xff]
        %v4284 = vld [vmem:[%s868 + $0x5b8] sm:$0xff]
        %v4285 = vld [vmem:[%s868 + $0x5c0] sm:$0xff]
        %v4286 = vld [vmem:[%s868 + $0x5c8] sm:$0xff]
        %v4287 = vld [vmem:[%s868 + $0x5d0] sm:$0xff]
        %v4288 = vld [vmem:[%s868 + $0x5d8] sm:$0xff]
        %v4289 = vld [vmem:[%s868 + $0x5e0] sm:$0xff]
        %v4290 = vld [vmem:[%s868 + $0x5e8] sm:$0xff]
        %v4291 = vld [vmem:[%s868 + $0x5f0] sm:$0xff]
        %v4292 = vld [vmem:[%s868 + $0x5f8] sm:$0xff]
        %v4293 = vld [vmem:[%s868 + $0x600] sm:$0xff]
        %v4294 = vld [vmem:[%s868 + $0x608] sm:$0xff]
        %v4295 = vld [vmem:[%s868 + $0x610] sm:$0xff]
        %v4296 = vld [vmem:[%s868 + $0x618] sm:$0xff]
        %v4297 = vld [vmem:[%s868 + $0x620] sm:$0xff]
        %v4298 = vld [vmem:[%s868 + $0x628] sm:$0xff]
        %v4299 = vld [vmem:[%s868 + $0x630] sm:$0xff]
        %v4300 = vld [vmem:[%s868 + $0x638] sm:$0xff]
        %v4301 = vld [vmem:[%s868 + $0x640] sm:$0xff]
        %v4302 = vld [vmem:[%s868 + $0x648] sm:$0xff]
        %v4303 = vld [vmem:[%s868 + $0x650] sm:$0xff]
        %v4304 = vld [vmem:[%s868 + $0x658] sm:$0xff]
        %v4305 = vld [vmem:[%s868 + $0x660] sm:$0xff]
        %v4306 = vld [vmem:[%s868 + $0x668] sm:$0xff]
        %v4307 = vld [vmem:[%s868 + $0x670] sm:$0xff]
        %v4308 = vld [vmem:[%s868 + $0x678] sm:$0xff]
        %v4309 = vld [vmem:[%s868 + $0x680] sm:$0xff]
        %v4310 = vld [vmem:[%s868 + $0x688] sm:$0xff]
        %v4311 = vld [vmem:[%s868 + $0x690] sm:$0xff]
        %v4312 = vld [vmem:[%s868 + $0x698] sm:$0xff]
        %v4313 = vld [vmem:[%s868 + $0x6a0] sm:$0xff]
        %v4314 = vld [vmem:[%s868 + $0x6a8] sm:$0xff]
        %v4315 = vld [vmem:[%s868 + $0x6b0] sm:$0xff]
        %v4316 = vld [vmem:[%s868 + $0x6b8] sm:$0xff]
        %v4317 = vld [vmem:[%s868 + $0x6c0] sm:$0xff]
        %v4318 = vld [vmem:[%s868 + $0x6c8] sm:$0xff]
        %v4319 = vld [vmem:[%s868 + $0x6d0] sm:$0xff]
        %v4320 = vld [vmem:[%s868 + $0x6d8] sm:$0xff]
        %v4321 = vld [vmem:[%s868 + $0x6e0] sm:$0xff]
        %v4322 = vld [vmem:[%s868 + $0x6e8] sm:$0xff]
        %v4323 = vld [vmem:[%s868 + $0x6f0] sm:$0xff]
        %v4324 = vld [vmem:[%s868 + $0x6f8] sm:$0xff]
        %v4325 = vld [vmem:[%s868 + $0x700] sm:$0xff]
        %v4326 = vld [vmem:[%s868 + $0x708] sm:$0xff]
        %v4327 = vld [vmem:[%s868 + $0x710] sm:$0xff]
        %v4328 = vld [vmem:[%s868 + $0x718] sm:$0xff]
        %v4329 = vld [vmem:[%s868 + $0x720] sm:$0xff]
        %v4330 = vld [vmem:[%s868 + $0x728] sm:$0xff]
        %v4331 = vld [vmem:[%s868 + $0x730] sm:$0xff]
        %v4332 = vld [vmem:[%s868 + $0x738] sm:$0xff]
        %v4333 = vld [vmem:[%s868 + $0x740] sm:$0xff]
        %v4334 = vld [vmem:[%s868 + $0x748] sm:$0xff]
        %v4335 = vld [vmem:[%s868 + $0x750] sm:$0xff]
        %v4336 = vld [vmem:[%s868 + $0x758] sm:$0xff]
        %v4337 = vld [vmem:[%s868 + $0x760] sm:$0xff]
        %v4338 = vld [vmem:[%s868 + $0x768] sm:$0xff]
        %v4339 = vld [vmem:[%s868 + $0x770] sm:$0xff]
        %v4340 = vld [vmem:[%s868 + $0x778] sm:$0xff]
        %v4341 = vld [vmem:[%s868 + $0x780] sm:$0xff]
        %v4342 = vld [vmem:[%s868 + $0x788] sm:$0xff]
        %v4343 = vld [vmem:[%s868 + $0x790] sm:$0xff]
        %v4344 = vld [vmem:[%s868 + $0x798] sm:$0xff]
        %v4345 = vld [vmem:[%s868 + $0x7a0] sm:$0xff]
        %v4346 = vld [vmem:[%s868 + $0x7a8] sm:$0xff]
        %v4347 = vld [vmem:[%s868 + $0x7b0] sm:$0xff]
        %v4348 = vld [vmem:[%s868 + $0x7b8] sm:$0xff]
        %v4349 = vld [vmem:[%s868 + $0x7c0] sm:$0xff]
        %v4350 = vld [vmem:[%s868 + $0x7c8] sm:$0xff]
        %v4351 = vld [vmem:[%s868 + $0x7d0] sm:$0xff]
        %v4352 = vld [vmem:[%s868 + $0x7d8] sm:$0xff]
        %v4353 = vld [vmem:[%s868 + $0x7e0] sm:$0xff]
        %v4354 = vld [vmem:[%s868 + $0x7e8] sm:$0xff]
        %v4355 = vld [vmem:[%s868 + $0x7f0] sm:$0xff]
        %v4356 = vld [vmem:[%s868 + $0x7f8] sm:$0xff]
        %v4357 = vld [vmem:[%s868 + $0x800] sm:$0xff]
        %v4358 = vld [vmem:[%s868 + $0x808] sm:$0xff]
        %v4359 = vld [vmem:[%s868 + $0x810] sm:$0xff]
        %v4360 = vld [vmem:[%s868 + $0x818] sm:$0xff]
        %v4361 = vld [vmem:[%s868 + $0x820] sm:$0xff]
        %v4362 = vld [vmem:[%s868 + $0x828] sm:$0xff]
        %v4363 = vld [vmem:[%s868 + $0x830] sm:$0xff]
        %v4364 = vld [vmem:[%s868 + $0x838] sm:$0xff]
        %v4365 = vld [vmem:[%s868 + $0x840] sm:$0xff]
        %v4366 = vld [vmem:[%s868 + $0x848] sm:$0xff]
        %v4367 = vld [vmem:[%s868 + $0x850] sm:$0xff]
        %v4368 = vld [vmem:[%s868 + $0x858] sm:$0xff]
        %v4369 = vld [vmem:[%s868 + $0x860] sm:$0xff]
        %v4370 = vld [vmem:[%s868 + $0x868] sm:$0xff]
        %v4371 = vld [vmem:[%s868 + $0x870] sm:$0xff]
        %v4372 = vld [vmem:[%s868 + $0x878] sm:$0xff]
        %v4373 = vld [vmem:[%s868 + $0x880] sm:$0xff]
        %v4374 = vld [vmem:[%s868 + $0x888] sm:$0xff]
        %v4375 = vld [vmem:[%s868 + $0x890] sm:$0xff]
        %v4376 = vld [vmem:[%s868 + $0x898] sm:$0xff]
        %v4377 = vld [vmem:[%s868 + $0x8a0] sm:$0xff]
        %v4378 = vld [vmem:[%s868 + $0x8a8] sm:$0xff]
        %v4379 = vld [vmem:[%s868 + $0x8b0] sm:$0xff]
        %v4380 = vld [vmem:[%s868 + $0x8b8] sm:$0xff]
        %v4381 = vld [vmem:[%s868 + $0x8c0] sm:$0xff]
        %v4382 = vld [vmem:[%s868 + $0x8c8] sm:$0xff]
        %v4383 = vld [vmem:[%s868 + $0x8d0] sm:$0xff]
        %v4384 = vld [vmem:[%s868 + $0x8d8] sm:$0xff]
        %v4385 = vld [vmem:[%s868 + $0x8e0] sm:$0xff]
        %v4386 = vld [vmem:[%s868 + $0x8e8] sm:$0xff]
        %v4387 = vld [vmem:[%s868 + $0x8f0] sm:$0xff]
        %v4388 = vld [vmem:[%s868 + $0x8f8] sm:$0xff]
        %v4389 = vld [vmem:[%s878] sm:$0xff]
        %v4390 = vld [vmem:[%s878 + $0x8] sm:$0xf]
        %v4393 = vperm.slane %v4389, 0
        %v4394 = vperm.slane %v4389, 1
        %v4395 = vperm.slane %v4389, 2
        %v4396 = vperm.slane %v4389, 3
        %v4397 = vperm.slane %v4389, 4
        %v4398 = vperm.slane %v4389, 5
        %v4399 = vperm.slane %v4389, 6
        %v4400 = vperm.slane %v4389, 7
        %v4401 = vperm.slane %v4390, 0
        %v4402 = vperm.slane %v4390, 1
        %v4403 = vperm.slane %v4390, 2
        %v4404 = vperm.slane %v4390, 3
        %v4705 = vunpack.c.l.b16 %v4101
        %v4706 = vunpack.c.h.b16 %v4101
        %v4707 = vunpack.c.l.b16 %v4102
        %v4708 = vunpack.c.h.b16 %v4102
        %v4709 = vunpack.c.l.b16 %v4103
        %v4710 = vunpack.c.h.b16 %v4103
        %v4711 = vunpack.c.l.b16 %v4104
        %v4712 = vunpack.c.h.b16 %v4104
        %v4713 = vunpack.c.l.b16 %v4105
        %v4714 = vunpack.c.h.b16 %v4105
        %v4715 = vunpack.c.l.b16 %v4106
        %v4716 = vunpack.c.h.b16 %v4106
        %v4717 = vunpack.c.l.b16 %v4107
        %v4718 = vunpack.c.h.b16 %v4107
        %v4719 = vunpack.c.l.b16 %v4108
        %v4720 = vunpack.c.h.b16 %v4108
        %v4721 = vunpack.c.l.b16 %v4109
        %v4722 = vunpack.c.h.b16 %v4109
        %v4723 = vunpack.c.l.b16 %v4110
        %v4724 = vunpack.c.h.b16 %v4110
        %v4725 = vunpack.c.l.b16 %v4111
        %v4726 = vunpack.c.h.b16 %v4111
        %v4727 = vunpack.c.l.b16 %v4112
        %v4728 = vunpack.c.h.b16 %v4112
        %v4729 = vunpack.c.l.b16 %v4113
        %v4730 = vunpack.c.h.b16 %v4113
        %v4731 = vunpack.c.l.b16 %v4114
        %v4732 = vunpack.c.h.b16 %v4114
        %v4733 = vunpack.c.l.b16 %v4115
        %v4734 = vunpack.c.h.b16 %v4115
        %v4735 = vunpack.c.l.b16 %v4116
        %v4736 = vunpack.c.h.b16 %v4116
        %v4737 = vunpack.c.l.b16 %v4117
        %v4738 = vunpack.c.h.b16 %v4117
        %v4739 = vunpack.c.l.b16 %v4118
        %v4740 = vunpack.c.h.b16 %v4118
        %v4741 = vunpack.c.l.b16 %v4119
        %v4742 = vunpack.c.h.b16 %v4119
        %v4743 = vunpack.c.l.b16 %v4120
        %v4744 = vunpack.c.h.b16 %v4120
        %v4745 = vunpack.c.l.b16 %v4121
        %v4746 = vunpack.c.h.b16 %v4121
        %v4747 = vunpack.c.l.b16 %v4122
        %v4748 = vunpack.c.h.b16 %v4122
        %v4749 = vunpack.c.l.b16 %v4123
        %v4750 = vunpack.c.h.b16 %v4123
        %v4751 = vunpack.c.l.b16 %v4124
        %v4752 = vunpack.c.h.b16 %v4124
        %v4753 = vunpack.c.l.b16 %v4125
        %v4754 = vunpack.c.h.b16 %v4125
        %v4755 = vunpack.c.l.b16 %v4126
        %v4756 = vunpack.c.h.b16 %v4126
        %v4757 = vunpack.c.l.b16 %v4127
        %v4758 = vunpack.c.h.b16 %v4127
        %v4759 = vunpack.c.l.b16 %v4128
        %v4760 = vunpack.c.h.b16 %v4128
        %v4761 = vunpack.c.l.b16 %v4129
        %v4762 = vunpack.c.h.b16 %v4129
        %v4763 = vunpack.c.l.b16 %v4130
        %v4764 = vunpack.c.h.b16 %v4130
        %v4765 = vunpack.c.l.b16 %v4131
        %v4766 = vunpack.c.h.b16 %v4131
        %v4767 = vunpack.c.l.b16 %v4132
        %v4768 = vunpack.c.h.b16 %v4132
        %v4769 = vunpack.c.l.b16 %v4133
        %v4770 = vunpack.c.h.b16 %v4133
        %v4771 = vunpack.c.l.b16 %v4134
        %v4772 = vunpack.c.h.b16 %v4134
        %v4773 = vunpack.c.l.b16 %v4135
        %v4774 = vunpack.c.h.b16 %v4135
        %v4775 = vunpack.c.l.b16 %v4136
        %v4776 = vunpack.c.h.b16 %v4136
        %v4777 = vunpack.c.l.b16 %v4137
        %v4778 = vunpack.c.h.b16 %v4137
        %v4779 = vunpack.c.l.b16 %v4138
        %v4780 = vunpack.c.h.b16 %v4138
        %v4781 = vunpack.c.l.b16 %v4139
        %v4782 = vunpack.c.h.b16 %v4139
        %v4783 = vunpack.c.l.b16 %v4140
        %v4784 = vunpack.c.h.b16 %v4140
        %v4785 = vunpack.c.l.b16 %v4141
        %v4786 = vunpack.c.h.b16 %v4141
        %v4787 = vunpack.c.l.b16 %v4142
        %v4788 = vunpack.c.h.b16 %v4142
        %v4789 = vunpack.c.l.b16 %v4143
        %v4790 = vunpack.c.h.b16 %v4143
        %v4791 = vunpack.c.l.b16 %v4144
        %v4792 = vunpack.c.h.b16 %v4144
        %v4793 = vunpack.c.l.b16 %v4145
        %v4794 = vunpack.c.h.b16 %v4145
        %v4795 = vunpack.c.l.b16 %v4146
        %v4796 = vunpack.c.h.b16 %v4146
        %v4797 = vunpack.c.l.b16 %v4147
        %v4798 = vunpack.c.h.b16 %v4147
        %v4799 = vunpack.c.l.b16 %v4148
        %v4800 = vunpack.c.h.b16 %v4148
        %v4801 = vunpack.c.l.b16 %v4149
        %v4802 = vunpack.c.h.b16 %v4149
        %v4803 = vunpack.c.l.b16 %v4150
        %v4804 = vunpack.c.h.b16 %v4150
        %v4805 = vunpack.c.l.b16 %v4151
        %v4806 = vunpack.c.h.b16 %v4151
        %v4807 = vunpack.c.l.b16 %v4152
        %v4808 = vunpack.c.h.b16 %v4152
        %v4809 = vunpack.c.l.b16 %v4153
        %v4810 = vunpack.c.h.b16 %v4153
        %v4811 = vunpack.c.l.b16 %v4154
        %v4812 = vunpack.c.h.b16 %v4154
        %v4813 = vunpack.c.l.b16 %v4155
        %v4814 = vunpack.c.h.b16 %v4155
        %v4815 = vunpack.c.l.b16 %v4156
        %v4816 = vunpack.c.h.b16 %v4156
        %v4817 = vunpack.c.l.b16 %v4157
        %v4818 = vunpack.c.h.b16 %v4157
        %v4819 = vunpack.c.l.b16 %v4158
        %v4820 = vunpack.c.h.b16 %v4158
        %v4821 = vunpack.c.l.b16 %v4159
        %v4822 = vunpack.c.h.b16 %v4159
        %v4823 = vunpack.c.l.b16 %v4160
        %v4824 = vunpack.c.h.b16 %v4160
        %v4825 = vunpack.c.l.b16 %v4161
        %v4826 = vunpack.c.h.b16 %v4161
        %v4827 = vunpack.c.l.b16 %v4162
        %v4828 = vunpack.c.h.b16 %v4162
        %v4829 = vunpack.c.l.b16 %v4163
        %v4830 = vunpack.c.h.b16 %v4163
        %v4831 = vunpack.c.l.b16 %v4164
        %v4832 = vunpack.c.h.b16 %v4164
        %v4833 = vunpack.c.l.b16 %v4165
        %v4834 = vunpack.c.h.b16 %v4165
        %v4835 = vunpack.c.l.b16 %v4166
        %v4836 = vunpack.c.h.b16 %v4166
        %v4837 = vunpack.c.l.b16 %v4167
        %v4838 = vunpack.c.h.b16 %v4167
        %v4839 = vunpack.c.l.b16 %v4168
        %v4840 = vunpack.c.h.b16 %v4168
        %v4841 = vunpack.c.l.b16 %v4169
        %v4842 = vunpack.c.h.b16 %v4169
        %v4843 = vunpack.c.l.b16 %v4170
        %v4844 = vunpack.c.h.b16 %v4170
        %v4845 = vunpack.c.l.b16 %v4171
        %v4846 = vunpack.c.h.b16 %v4171
        %v4847 = vunpack.c.l.b16 %v4172
        %v4848 = vunpack.c.h.b16 %v4172
        %v4849 = vunpack.c.l.b16 %v4173
        %v4850 = vunpack.c.h.b16 %v4173
        %v4851 = vunpack.c.l.b16 %v4174
        %v4852 = vunpack.c.h.b16 %v4174
        %v4853 = vunpack.c.l.b16 %v4175
        %v4854 = vunpack.c.h.b16 %v4175
        %v4855 = vunpack.c.l.b16 %v4176
        %v4856 = vunpack.c.h.b16 %v4176
        %v4857 = vunpack.c.l.b16 %v4177
        %v4858 = vunpack.c.h.b16 %v4177
        %v4859 = vunpack.c.l.b16 %v4178
        %v4860 = vunpack.c.h.b16 %v4178
        %v4861 = vunpack.c.l.b16 %v4179
        %v4862 = vunpack.c.h.b16 %v4179
        %v4863 = vunpack.c.l.b16 %v4180
        %v4864 = vunpack.c.h.b16 %v4180
        %v4865 = vunpack.c.l.b16 %v4181
        %v4866 = vunpack.c.h.b16 %v4181
        %v4867 = vunpack.c.l.b16 %v4182
        %v4868 = vunpack.c.h.b16 %v4182
        %v4869 = vunpack.c.l.b16 %v4183
        %v4870 = vunpack.c.h.b16 %v4183
        %v4871 = vunpack.c.l.b16 %v4184
        %v4872 = vunpack.c.h.b16 %v4184
        %v4873 = vunpack.c.l.b16 %v4185
        %v4874 = vunpack.c.h.b16 %v4185
        %v4875 = vunpack.c.l.b16 %v4186
        %v4876 = vunpack.c.h.b16 %v4186
        %v4877 = vunpack.c.l.b16 %v4187
        %v4878 = vunpack.c.h.b16 %v4187
        %v4879 = vunpack.c.l.b16 %v4188
        %v4880 = vunpack.c.h.b16 %v4188
        %v4881 = vunpack.c.l.b16 %v4189
        %v4882 = vunpack.c.h.b16 %v4189
        %v4883 = vunpack.c.l.b16 %v4190
        %v4884 = vunpack.c.h.b16 %v4190
        %v4885 = vunpack.c.l.b16 %v4191
        %v4886 = vunpack.c.h.b16 %v4191
        %v4887 = vunpack.c.l.b16 %v4192
        %v4888 = vunpack.c.h.b16 %v4192
        %v4889 = vunpack.c.l.b16 %v4193
        %v4890 = vunpack.c.h.b16 %v4193
        %v4891 = vunpack.c.l.b16 %v4194
        %v4892 = vunpack.c.h.b16 %v4194
        %v4893 = vunpack.c.l.b16 %v4195
        %v4894 = vunpack.c.h.b16 %v4195
        %v4895 = vunpack.c.l.b16 %v4196
        %v4896 = vunpack.c.h.b16 %v4196
        %v4897 = vunpack.c.l.b16 %v4197
        %v4898 = vunpack.c.h.b16 %v4197
        %v4899 = vunpack.c.l.b16 %v4198
        %v4900 = vunpack.c.h.b16 %v4198
        %v4901 = vunpack.c.l.b16 %v4199
        %v4902 = vunpack.c.h.b16 %v4199
        %v4903 = vunpack.c.l.b16 %v4200
        %v4904 = vunpack.c.h.b16 %v4200
        %v4905 = vunpack.c.l.b16 %v4201
        %v4906 = vunpack.c.h.b16 %v4201
        %v4907 = vunpack.c.l.b16 %v4202
        %v4908 = vunpack.c.h.b16 %v4202
        %v4909 = vunpack.c.l.b16 %v4203
        %v4910 = vunpack.c.h.b16 %v4203
        %v4911 = vunpack.c.l.b16 %v4204
        %v4912 = vunpack.c.h.b16 %v4204
        %v4913 = vunpack.c.l.b16 %v4205
        %v4914 = vunpack.c.h.b16 %v4205
        %v4915 = vunpack.c.l.b16 %v4206
        %v4916 = vunpack.c.h.b16 %v4206
        %v4917 = vunpack.c.l.b16 %v4207
        %v4918 = vunpack.c.h.b16 %v4207
        %v4919 = vunpack.c.l.b16 %v4208
        %v4920 = vunpack.c.h.b16 %v4208
        %v4921 = vunpack.c.l.b16 %v4209
        %v4922 = vunpack.c.h.b16 %v4209
        %v4923 = vunpack.c.l.b16 %v4210
        %v4924 = vunpack.c.h.b16 %v4210
        %v4925 = vunpack.c.l.b16 %v4211
        %v4926 = vunpack.c.h.b16 %v4211
        %v4927 = vunpack.c.l.b16 %v4212
        %v4928 = vunpack.c.h.b16 %v4212
        %v4929 = vunpack.c.l.b16 %v4213
        %v4930 = vunpack.c.h.b16 %v4213
        %v4931 = vunpack.c.l.b16 %v4214
        %v4932 = vunpack.c.h.b16 %v4214
        %v4933 = vunpack.c.l.b16 %v4215
        %v4934 = vunpack.c.h.b16 %v4215
        %v4935 = vunpack.c.l.b16 %v4216
        %v4936 = vunpack.c.h.b16 %v4216
        %v4937 = vunpack.c.l.b16 %v4217
        %v4938 = vunpack.c.h.b16 %v4217
        %v4939 = vunpack.c.l.b16 %v4218
        %v4940 = vunpack.c.h.b16 %v4218
        %v4941 = vunpack.c.l.b16 %v4219
        %v4942 = vunpack.c.h.b16 %v4219
        %v4943 = vunpack.c.l.b16 %v4220
        %v4944 = vunpack.c.h.b16 %v4220
        %v4945 = vunpack.c.l.b16 %v4221
        %v4946 = vunpack.c.h.b16 %v4221
        %v4947 = vunpack.c.l.b16 %v4222
        %v4948 = vunpack.c.h.b16 %v4222
        %v4949 = vunpack.c.l.b16 %v4223
        %v4950 = vunpack.c.h.b16 %v4223
        %v4951 = vunpack.c.l.b16 %v4224
        %v4952 = vunpack.c.h.b16 %v4224
        %v4953 = vunpack.c.l.b16 %v4225
        %v4954 = vunpack.c.h.b16 %v4225
        %v4955 = vunpack.c.l.b16 %v4226
        %v4956 = vunpack.c.h.b16 %v4226
        %v4957 = vunpack.c.l.b16 %v4227
        %v4958 = vunpack.c.h.b16 %v4227
        %v4959 = vunpack.c.l.b16 %v4228
        %v4960 = vunpack.c.h.b16 %v4228
        %v4961 = vunpack.c.l.b16 %v4229
        %v4962 = vunpack.c.h.b16 %v4229
        %v4963 = vunpack.c.l.b16 %v4230
        %v4964 = vunpack.c.h.b16 %v4230
        %v4965 = vunpack.c.l.b16 %v4231
        %v4966 = vunpack.c.h.b16 %v4231
        %v4967 = vunpack.c.l.b16 %v4232
        %v4968 = vunpack.c.h.b16 %v4232
        %v4969 = vunpack.c.l.b16 %v4233
        %v4970 = vunpack.c.h.b16 %v4233
        %v4971 = vunpack.c.l.b16 %v4234
        %v4972 = vunpack.c.h.b16 %v4234
        %v4973 = vunpack.c.l.b16 %v4235
        %v4974 = vunpack.c.h.b16 %v4235
        %v4975 = vunpack.c.l.b16 %v4236
        %v4976 = vunpack.c.h.b16 %v4236
        %v4977 = vunpack.c.l.b16 %v4237
        %v4978 = vunpack.c.h.b16 %v4237
        %v4979 = vunpack.c.l.b16 %v4238
        %v4980 = vunpack.c.h.b16 %v4238
        %v4981 = vunpack.c.l.b16 %v4239
        %v4982 = vunpack.c.h.b16 %v4239
        %v4983 = vunpack.c.l.b16 %v4240
        %v4984 = vunpack.c.h.b16 %v4240
        %v4985 = vunpack.c.l.b16 %v4241
        %v4986 = vunpack.c.h.b16 %v4241
        %v4987 = vunpack.c.l.b16 %v4242
        %v4988 = vunpack.c.h.b16 %v4242
        %v4989 = vunpack.c.l.b16 %v4243
        %v4990 = vunpack.c.h.b16 %v4243
        %v4991 = vunpack.c.l.b16 %v4244
        %v4992 = vunpack.c.h.b16 %v4244
        %v4993 = vunpack.c.l.b16 %v4245
        %v4994 = vunpack.c.h.b16 %v4245
        %v4995 = vunpack.c.l.b16 %v4246
        %v4996 = vunpack.c.h.b16 %v4246
        %v4997 = vunpack.c.l.b16 %v4247
        %v4998 = vunpack.c.h.b16 %v4247
        %v4999 = vunpack.c.l.b16 %v4248
        %v5000 = vunpack.c.h.b16 %v4248
        %v5001 = vunpack.c.l.b16 %v4249
        %v5002 = vunpack.c.h.b16 %v4249
        %v5003 = vunpack.c.l.b16 %v4250
        %v5004 = vunpack.c.h.b16 %v4250
        %v5005 = vunpack.c.l.b16 %v4251
        %v5006 = vunpack.c.h.b16 %v4251
        %v5007 = vunpack.c.l.b16 %v4252
        %v5008 = vunpack.c.h.b16 %v4252
        %v5009 = vunpack.c.l.b16 %v4253
        %v5010 = vunpack.c.h.b16 %v4253
        %v5011 = vunpack.c.l.b16 %v4254
        %v5012 = vunpack.c.h.b16 %v4254
        %v5013 = vunpack.c.l.b16 %v4255
        %v5014 = vunpack.c.h.b16 %v4255
        %v5015 = vunpack.c.l.b16 %v4256
        %v5016 = vunpack.c.h.b16 %v4256
        %v5017 = vunpack.c.l.b16 %v4257
        %v5018 = vunpack.c.h.b16 %v4257
        %v5019 = vunpack.c.l.b16 %v4258
        %v5020 = vunpack.c.h.b16 %v4258
        %v5021 = vunpack.c.l.b16 %v4259
        %v5022 = vunpack.c.h.b16 %v4259
        %v5023 = vunpack.c.l.b16 %v4260
        %v5024 = vunpack.c.h.b16 %v4260
        %v5025 = vunpack.c.l.b16 %v4261
        %v5026 = vunpack.c.h.b16 %v4261
        %v5027 = vunpack.c.l.b16 %v4262
        %v5028 = vunpack.c.h.b16 %v4262
        %v5029 = vunpack.c.l.b16 %v4263
        %v5030 = vunpack.c.h.b16 %v4263
        %v5031 = vunpack.c.l.b16 %v4264
        %v5032 = vunpack.c.h.b16 %v4264
        %v5033 = vunpack.c.l.b16 %v4265
        %v5034 = vunpack.c.h.b16 %v4265
        %v5035 = vunpack.c.l.b16 %v4266
        %v5036 = vunpack.c.h.b16 %v4266
        %v5037 = vunpack.c.l.b16 %v4267
        %v5038 = vunpack.c.h.b16 %v4267
        %v5039 = vunpack.c.l.b16 %v4268
        %v5040 = vunpack.c.h.b16 %v4268
        %v5041 = vunpack.c.l.b16 %v4269
        %v5042 = vunpack.c.h.b16 %v4269
        %v5043 = vunpack.c.l.b16 %v4270
        %v5044 = vunpack.c.h.b16 %v4270
        %v5045 = vunpack.c.l.b16 %v4271
        %v5046 = vunpack.c.h.b16 %v4271
        %v5047 = vunpack.c.l.b16 %v4272
        %v5048 = vunpack.c.h.b16 %v4272
        %v5049 = vunpack.c.l.b16 %v4273
        %v5050 = vunpack.c.h.b16 %v4273
        %v5051 = vunpack.c.l.b16 %v4274
        %v5052 = vunpack.c.h.b16 %v4274
        %v5053 = vunpack.c.l.b16 %v4275
        %v5054 = vunpack.c.h.b16 %v4275
        %v5055 = vunpack.c.l.b16 %v4276
        %v5056 = vunpack.c.h.b16 %v4276
        %v5057 = vunpack.c.l.b16 %v4277
        %v5058 = vunpack.c.h.b16 %v4277
        %v5059 = vunpack.c.l.b16 %v4278
        %v5060 = vunpack.c.h.b16 %v4278
        %v5061 = vunpack.c.l.b16 %v4279
        %v5062 = vunpack.c.h.b16 %v4279
        %v5063 = vunpack.c.l.b16 %v4280
        %v5064 = vunpack.c.h.b16 %v4280
        %v5065 = vunpack.c.l.b16 %v4281
        %v5066 = vunpack.c.h.b16 %v4281
        %v5067 = vunpack.c.l.b16 %v4282
        %v5068 = vunpack.c.h.b16 %v4282
        %v5069 = vunpack.c.l.b16 %v4283
        %v5070 = vunpack.c.h.b16 %v4283
        %v5071 = vunpack.c.l.b16 %v4284
        %v5072 = vunpack.c.h.b16 %v4284
        %v5073 = vunpack.c.l.b16 %v4285
        %v5074 = vunpack.c.h.b16 %v4285
        %v5075 = vunpack.c.l.b16 %v4286
        %v5076 = vunpack.c.h.b16 %v4286
        %v5077 = vunpack.c.l.b16 %v4287
        %v5078 = vunpack.c.h.b16 %v4287
        %v5079 = vunpack.c.l.b16 %v4288
        %v5080 = vunpack.c.h.b16 %v4288
        %v5081 = vunpack.c.l.b16 %v4289
        %v5082 = vunpack.c.h.b16 %v4289
        %v5083 = vunpack.c.l.b16 %v4290
        %v5084 = vunpack.c.h.b16 %v4290
        %v5085 = vunpack.c.l.b16 %v4291
        %v5086 = vunpack.c.h.b16 %v4291
        %v5087 = vunpack.c.l.b16 %v4292
        %v5088 = vunpack.c.h.b16 %v4292
        %v5089 = vunpack.c.l.b16 %v4293
        %v5090 = vunpack.c.h.b16 %v4293
        %v5091 = vunpack.c.l.b16 %v4294
        %v5092 = vunpack.c.h.b16 %v4294
        %v5093 = vunpack.c.l.b16 %v4295
        %v5094 = vunpack.c.h.b16 %v4295
        %v5095 = vunpack.c.l.b16 %v4296
        %v5096 = vunpack.c.h.b16 %v4296
        %v5097 = vunpack.c.l.b16 %v4297
        %v5098 = vunpack.c.h.b16 %v4297
        %v5099 = vunpack.c.l.b16 %v4298
        %v5100 = vunpack.c.h.b16 %v4298
        %v5101 = vunpack.c.l.b16 %v4299
        %v5102 = vunpack.c.h.b16 %v4299
        %v5103 = vunpack.c.l.b16 %v4300
        %v5104 = vunpack.c.h.b16 %v4300
        %v5105 = vunpack.c.l.b16 %v4301
        %v5106 = vunpack.c.h.b16 %v4301
        %v5107 = vunpack.c.l.b16 %v4302
        %v5108 = vunpack.c.h.b16 %v4302
        %v5109 = vunpack.c.l.b16 %v4303
        %v5110 = vunpack.c.h.b16 %v4303
        %v5111 = vunpack.c.l.b16 %v4304
        %v5112 = vunpack.c.h.b16 %v4304
        %v5113 = vunpack.c.l.b16 %v4305
        %v5114 = vunpack.c.h.b16 %v4305
        %v5115 = vunpack.c.l.b16 %v4306
        %v5116 = vunpack.c.h.b16 %v4306
        %v5117 = vunpack.c.l.b16 %v4307
        %v5118 = vunpack.c.h.b16 %v4307
        %v5119 = vunpack.c.l.b16 %v4308
        %v5120 = vunpack.c.h.b16 %v4308
        %v5121 = vunpack.c.l.b16 %v4309
        %v5122 = vunpack.c.h.b16 %v4309
        %v5123 = vunpack.c.l.b16 %v4310
        %v5124 = vunpack.c.h.b16 %v4310
        %v5125 = vunpack.c.l.b16 %v4311
        %v5126 = vunpack.c.h.b16 %v4311
        %v5127 = vunpack.c.l.b16 %v4312
        %v5128 = vunpack.c.h.b16 %v4312
        %v5129 = vunpack.c.l.b16 %v4313
        %v5130 = vunpack.c.h.b16 %v4313
        %v5131 = vunpack.c.l.b16 %v4314
        %v5132 = vunpack.c.h.b16 %v4314
        %v5133 = vunpack.c.l.b16 %v4315
        %v5134 = vunpack.c.h.b16 %v4315
        %v5135 = vunpack.c.l.b16 %v4316
        %v5136 = vunpack.c.h.b16 %v4316
        %v5137 = vunpack.c.l.b16 %v4317
        %v5138 = vunpack.c.h.b16 %v4317
        %v5139 = vunpack.c.l.b16 %v4318
        %v5140 = vunpack.c.h.b16 %v4318
        %v5141 = vunpack.c.l.b16 %v4319
        %v5142 = vunpack.c.h.b16 %v4319
        %v5143 = vunpack.c.l.b16 %v4320
        %v5144 = vunpack.c.h.b16 %v4320
        %v5145 = vunpack.c.l.b16 %v4321
        %v5146 = vunpack.c.h.b16 %v4321
        %v5147 = vunpack.c.l.b16 %v4322
        %v5148 = vunpack.c.h.b16 %v4322
        %v5149 = vunpack.c.l.b16 %v4323
        %v5150 = vunpack.c.h.b16 %v4323
        %v5151 = vunpack.c.l.b16 %v4324
        %v5152 = vunpack.c.h.b16 %v4324
        %v5153 = vunpack.c.l.b16 %v4325
        %v5154 = vunpack.c.h.b16 %v4325
        %v5155 = vunpack.c.l.b16 %v4326
        %v5156 = vunpack.c.h.b16 %v4326
        %v5157 = vunpack.c.l.b16 %v4327
        %v5158 = vunpack.c.h.b16 %v4327
        %v5159 = vunpack.c.l.b16 %v4328
        %v5160 = vunpack.c.h.b16 %v4328
        %v5161 = vunpack.c.l.b16 %v4329
        %v5162 = vunpack.c.h.b16 %v4329
        %v5163 = vunpack.c.l.b16 %v4330
        %v5164 = vunpack.c.h.b16 %v4330
        %v5165 = vunpack.c.l.b16 %v4331
        %v5166 = vunpack.c.h.b16 %v4331
        %v5167 = vunpack.c.l.b16 %v4332
        %v5168 = vunpack.c.h.b16 %v4332
        %v5169 = vunpack.c.l.b16 %v4333
        %v5170 = vunpack.c.h.b16 %v4333
        %v5171 = vunpack.c.l.b16 %v4334
        %v5172 = vunpack.c.h.b16 %v4334
        %v5173 = vunpack.c.l.b16 %v4335
        %v5174 = vunpack.c.h.b16 %v4335
        %v5175 = vunpack.c.l.b16 %v4336
        %v5176 = vunpack.c.h.b16 %v4336
        %v5177 = vunpack.c.l.b16 %v4337
        %v5178 = vunpack.c.h.b16 %v4337
        %v5179 = vunpack.c.l.b16 %v4338
        %v5180 = vunpack.c.h.b16 %v4338
        %v5181 = vunpack.c.l.b16 %v4339
        %v5182 = vunpack.c.h.b16 %v4339
        %v5183 = vunpack.c.l.b16 %v4340
        %v5184 = vunpack.c.h.b16 %v4340
        %v5185 = vunpack.c.l.b16 %v4341
        %v5186 = vunpack.c.h.b16 %v4341
        %v5187 = vunpack.c.l.b16 %v4342
        %v5188 = vunpack.c.h.b16 %v4342
        %v5189 = vunpack.c.l.b16 %v4343
        %v5190 = vunpack.c.h.b16 %v4343
        %v5191 = vunpack.c.l.b16 %v4344
        %v5192 = vunpack.c.h.b16 %v4344
        %v5193 = vunpack.c.l.b16 %v4345
        %v5194 = vunpack.c.h.b16 %v4345
        %v5195 = vunpack.c.l.b16 %v4346
        %v5196 = vunpack.c.h.b16 %v4346
        %v5197 = vunpack.c.l.b16 %v4347
        %v5198 = vunpack.c.h.b16 %v4347
        %v5199 = vunpack.c.l.b16 %v4348
        %v5200 = vunpack.c.h.b16 %v4348
        %v5201 = vunpack.c.l.b16 %v4349
        %v5202 = vunpack.c.h.b16 %v4349
        %v5203 = vunpack.c.l.b16 %v4350
        %v5204 = vunpack.c.h.b16 %v4350
        %v5205 = vunpack.c.l.b16 %v4351
        %v5206 = vunpack.c.h.b16 %v4351
        %v5207 = vunpack.c.l.b16 %v4352
        %v5208 = vunpack.c.h.b16 %v4352
        %v5209 = vunpack.c.l.b16 %v4353
        %v5210 = vunpack.c.h.b16 %v4353
        %v5211 = vunpack.c.l.b16 %v4354
        %v5212 = vunpack.c.h.b16 %v4354
        %v5213 = vunpack.c.l.b16 %v4355
        %v5214 = vunpack.c.h.b16 %v4355
        %v5215 = vunpack.c.l.b16 %v4356
        %v5216 = vunpack.c.h.b16 %v4356
        %v5217 = vunpack.c.l.b16 %v4357
        %v5218 = vunpack.c.h.b16 %v4357
        %v5219 = vunpack.c.l.b16 %v4358
        %v5220 = vunpack.c.h.b16 %v4358
        %v5221 = vunpack.c.l.b16 %v4359
        %v5222 = vunpack.c.h.b16 %v4359
        %v5223 = vunpack.c.l.b16 %v4360
        %v5224 = vunpack.c.h.b16 %v4360
        %v5225 = vunpack.c.l.b16 %v4361
        %v5226 = vunpack.c.h.b16 %v4361
        %v5227 = vunpack.c.l.b16 %v4362
        %v5228 = vunpack.c.h.b16 %v4362
        %v5229 = vunpack.c.l.b16 %v4363
        %v5230 = vunpack.c.h.b16 %v4363
        %v5231 = vunpack.c.l.b16 %v4364
        %v5232 = vunpack.c.h.b16 %v4364
        %v5233 = vunpack.c.l.b16 %v4365
        %v5234 = vunpack.c.h.b16 %v4365
        %v5235 = vunpack.c.l.b16 %v4366
        %v5236 = vunpack.c.h.b16 %v4366
        %v5237 = vunpack.c.l.b16 %v4367
        %v5238 = vunpack.c.h.b16 %v4367
        %v5239 = vunpack.c.l.b16 %v4368
        %v5240 = vunpack.c.h.b16 %v4368
        %v5241 = vunpack.c.l.b16 %v4369
        %v5242 = vunpack.c.h.b16 %v4369
        %v5243 = vunpack.c.l.b16 %v4370
        %v5244 = vunpack.c.h.b16 %v4370
        %v5245 = vunpack.c.l.b16 %v4371
        %v5246 = vunpack.c.h.b16 %v4371
        %v5247 = vunpack.c.l.b16 %v4372
        %v5248 = vunpack.c.h.b16 %v4372
        %v5249 = vunpack.c.l.b16 %v4373
        %v5250 = vunpack.c.h.b16 %v4373
        %v5251 = vunpack.c.l.b16 %v4374
        %v5252 = vunpack.c.h.b16 %v4374
        %v5253 = vunpack.c.l.b16 %v4375
        %v5254 = vunpack.c.h.b16 %v4375
        %v5255 = vunpack.c.l.b16 %v4376
        %v5256 = vunpack.c.h.b16 %v4376
        %v5257 = vunpack.c.l.b16 %v4377
        %v5258 = vunpack.c.h.b16 %v4377
        %v5259 = vunpack.c.l.b16 %v4378
        %v5260 = vunpack.c.h.b16 %v4378
        %v5261 = vunpack.c.l.b16 %v4379
        %v5262 = vunpack.c.h.b16 %v4379
        %v5263 = vunpack.c.l.b16 %v4380
        %v5264 = vunpack.c.h.b16 %v4380
        %v5265 = vunpack.c.l.b16 %v4381
        %v5266 = vunpack.c.h.b16 %v4381
        %v5267 = vunpack.c.l.b16 %v4382
        %v5268 = vunpack.c.h.b16 %v4382
        %v5269 = vunpack.c.l.b16 %v4383
        %v5270 = vunpack.c.h.b16 %v4383
        %v5271 = vunpack.c.l.b16 %v4384
        %v5272 = vunpack.c.h.b16 %v4384
        %v5273 = vunpack.c.l.b16 %v4385
        %v5274 = vunpack.c.h.b16 %v4385
        %v5275 = vunpack.c.l.b16 %v4386
        %v5276 = vunpack.c.h.b16 %v4386
        %v5277 = vunpack.c.l.b16 %v4387
        %v5278 = vunpack.c.h.b16 %v4387
        %v5279 = vunpack.c.l.b16 %v4388
        %v5280 = vunpack.c.h.b16 %v4388
        %v5281 = vpack.c.b16 %v4717, %v4705
        %v5282 = vpack.c.b16 %v4718, %v4706
        %v5283 = vpack.c.b16 %v4719, %v4707
        %v5284 = vpack.c.b16 %v4720, %v4708
        %v5285 = vpack.c.b16 %v4721, %v4709
        %v5286 = vpack.c.b16 %v4722, %v4710
        %v5287 = vpack.c.b16 %v4723, %v4711
        %v5288 = vpack.c.b16 %v4724, %v4712
        %v5289 = vpack.c.b16 %v4725, %v4713
        %v5290 = vpack.c.b16 %v4726, %v4714
        %v5291 = vpack.c.b16 %v4727, %v4715
        %v5292 = vpack.c.b16 %v4728, %v4716
        %v5293 = vpack.c.b16 %v4741, %v4729
        %v5294 = vpack.c.b16 %v4742, %v4730
        %v5295 = vpack.c.b16 %v4743, %v4731
        %v5296 = vpack.c.b16 %v4744, %v4732
        %v5297 = vpack.c.b16 %v4745, %v4733
        %v5298 = vpack.c.b16 %v4746, %v4734
        %v5299 = vpack.c.b16 %v4747, %v4735
        %v5300 = vpack.c.b16 %v4748, %v4736
        %v5301 = vpack.c.b16 %v4749, %v4737
        %v5302 = vpack.c.b16 %v4750, %v4738
        %v5303 = vpack.c.b16 %v4751, %v4739
        %v5304 = vpack.c.b16 %v4752, %v4740
        %v5305 = vpack.c.b16 %v4765, %v4753
        %v5306 = vpack.c.b16 %v4766, %v4754
        %v5307 = vpack.c.b16 %v4767, %v4755
        %v5308 = vpack.c.b16 %v4768, %v4756
        %v5309 = vpack.c.b16 %v4769, %v4757
        %v5310 = vpack.c.b16 %v4770, %v4758
        %v5311 = vpack.c.b16 %v4771, %v4759
        %v5312 = vpack.c.b16 %v4772, %v4760
        %v5313 = vpack.c.b16 %v4773, %v4761
        %v5314 = vpack.c.b16 %v4774, %v4762
        %v5315 = vpack.c.b16 %v4775, %v4763
        %v5316 = vpack.c.b16 %v4776, %v4764
        %v5317 = vpack.c.b16 %v4789, %v4777
        %v5318 = vpack.c.b16 %v4790, %v4778
        %v5319 = vpack.c.b16 %v4791, %v4779
        %v5320 = vpack.c.b16 %v4792, %v4780
        %v5321 = vpack.c.b16 %v4793, %v4781
        %v5322 = vpack.c.b16 %v4794, %v4782
        %v5323 = vpack.c.b16 %v4795, %v4783
        %v5324 = vpack.c.b16 %v4796, %v4784
        %v5325 = vpack.c.b16 %v4797, %v4785
        %v5326 = vpack.c.b16 %v4798, %v4786
        %v5327 = vpack.c.b16 %v4799, %v4787
        %v5328 = vpack.c.b16 %v4800, %v4788
        %v5329 = vpack.c.b16 %v4813, %v4801
        %v5330 = vpack.c.b16 %v4814, %v4802
        %v5331 = vpack.c.b16 %v4815, %v4803
        %v5332 = vpack.c.b16 %v4816, %v4804
        %v5333 = vpack.c.b16 %v4817, %v4805
        %v5334 = vpack.c.b16 %v4818, %v4806
        %v5335 = vpack.c.b16 %v4819, %v4807
        %v5336 = vpack.c.b16 %v4820, %v4808
        %v5337 = vpack.c.b16 %v4821, %v4809
        %v5338 = vpack.c.b16 %v4822, %v4810
        %v5339 = vpack.c.b16 %v4823, %v4811
        %v5340 = vpack.c.b16 %v4824, %v4812
        %v5341 = vpack.c.b16 %v4837, %v4825
        %v5342 = vpack.c.b16 %v4838, %v4826
        %v5343 = vpack.c.b16 %v4839, %v4827
        %v5344 = vpack.c.b16 %v4840, %v4828
        %v5345 = vpack.c.b16 %v4841, %v4829
        %v5346 = vpack.c.b16 %v4842, %v4830
        %v5347 = vpack.c.b16 %v4843, %v4831
        %v5348 = vpack.c.b16 %v4844, %v4832
        %v5349 = vpack.c.b16 %v4845, %v4833
        %v5350 = vpack.c.b16 %v4846, %v4834
        %v5351 = vpack.c.b16 %v4847, %v4835
        %v5352 = vpack.c.b16 %v4848, %v4836
        %v5353 = vpack.c.b16 %v4861, %v4849
        %v5354 = vpack.c.b16 %v4862, %v4850
        %v5355 = vpack.c.b16 %v4863, %v4851
        %v5356 = vpack.c.b16 %v4864, %v4852
        %v5357 = vpack.c.b16 %v4865, %v4853
        %v5358 = vpack.c.b16 %v4866, %v4854
        %v5359 = vpack.c.b16 %v4867, %v4855
        %v5360 = vpack.c.b16 %v4868, %v4856
        %v5361 = vpack.c.b16 %v4869, %v4857
        %v5362 = vpack.c.b16 %v4870, %v4858
        %v5363 = vpack.c.b16 %v4871, %v4859
        %v5364 = vpack.c.b16 %v4872, %v4860
        %v5365 = vpack.c.b16 %v4885, %v4873
        %v5366 = vpack.c.b16 %v4886, %v4874
        %v5367 = vpack.c.b16 %v4887, %v4875
        %v5368 = vpack.c.b16 %v4888, %v4876
        %v5369 = vpack.c.b16 %v4889, %v4877
        %v5370 = vpack.c.b16 %v4890, %v4878
        %v5371 = vpack.c.b16 %v4891, %v4879
        %v5372 = vpack.c.b16 %v4892, %v4880
        %v5373 = vpack.c.b16 %v4893, %v4881
        %v5374 = vpack.c.b16 %v4894, %v4882
        %v5375 = vpack.c.b16 %v4895, %v4883
        %v5376 = vpack.c.b16 %v4896, %v4884
        %v5377 = vpack.c.b16 %v4909, %v4897
        %v5378 = vpack.c.b16 %v4910, %v4898
        %v5379 = vpack.c.b16 %v4911, %v4899
        %v5380 = vpack.c.b16 %v4912, %v4900
        %v5381 = vpack.c.b16 %v4913, %v4901
        %v5382 = vpack.c.b16 %v4914, %v4902
        %v5383 = vpack.c.b16 %v4915, %v4903
        %v5384 = vpack.c.b16 %v4916, %v4904
        %v5385 = vpack.c.b16 %v4917, %v4905
        %v5386 = vpack.c.b16 %v4918, %v4906
        %v5387 = vpack.c.b16 %v4919, %v4907
        %v5388 = vpack.c.b16 %v4920, %v4908
        %v5389 = vpack.c.b16 %v4933, %v4921
        %v5390 = vpack.c.b16 %v4934, %v4922
        %v5391 = vpack.c.b16 %v4935, %v4923
        %v5392 = vpack.c.b16 %v4936, %v4924
        %v5393 = vpack.c.b16 %v4937, %v4925
        %v5394 = vpack.c.b16 %v4938, %v4926
        %v5395 = vpack.c.b16 %v4939, %v4927
        %v5396 = vpack.c.b16 %v4940, %v4928
        %v5397 = vpack.c.b16 %v4941, %v4929
        %v5398 = vpack.c.b16 %v4942, %v4930
        %v5399 = vpack.c.b16 %v4943, %v4931
        %v5400 = vpack.c.b16 %v4944, %v4932
        %v5401 = vpack.c.b16 %v4957, %v4945
        %v5402 = vpack.c.b16 %v4958, %v4946
        %v5403 = vpack.c.b16 %v4959, %v4947
        %v5404 = vpack.c.b16 %v4960, %v4948
        %v5405 = vpack.c.b16 %v4961, %v4949
        %v5406 = vpack.c.b16 %v4962, %v4950
        %v5407 = vpack.c.b16 %v4963, %v4951
        %v5408 = vpack.c.b16 %v4964, %v4952
        %v5409 = vpack.c.b16 %v4965, %v4953
        %v5410 = vpack.c.b16 %v4966, %v4954
        %v5411 = vpack.c.b16 %v4967, %v4955
        %v5412 = vpack.c.b16 %v4968, %v4956
        %v5413 = vpack.c.b16 %v4981, %v4969
        %v5414 = vpack.c.b16 %v4982, %v4970
        %v5415 = vpack.c.b16 %v4983, %v4971
        %v5416 = vpack.c.b16 %v4984, %v4972
        %v5417 = vpack.c.b16 %v4985, %v4973
        %v5418 = vpack.c.b16 %v4986, %v4974
        %v5419 = vpack.c.b16 %v4987, %v4975
        %v5420 = vpack.c.b16 %v4988, %v4976
        %v5421 = vpack.c.b16 %v4989, %v4977
        %v5422 = vpack.c.b16 %v4990, %v4978
        %v5423 = vpack.c.b16 %v4991, %v4979
        %v5424 = vpack.c.b16 %v4992, %v4980
        %v5425 = vpack.c.b16 %v5005, %v4993
        %v5426 = vpack.c.b16 %v5006, %v4994
        %v5427 = vpack.c.b16 %v5007, %v4995
        %v5428 = vpack.c.b16 %v5008, %v4996
        %v5429 = vpack.c.b16 %v5009, %v4997
        %v5430 = vpack.c.b16 %v5010, %v4998
        %v5431 = vpack.c.b16 %v5011, %v4999
        %v5432 = vpack.c.b16 %v5012, %v5000
        %v5433 = vpack.c.b16 %v5013, %v5001
        %v5434 = vpack.c.b16 %v5014, %v5002
        %v5435 = vpack.c.b16 %v5015, %v5003
        %v5436 = vpack.c.b16 %v5016, %v5004
        %v5437 = vpack.c.b16 %v5029, %v5017
        %v5438 = vpack.c.b16 %v5030, %v5018
        %v5439 = vpack.c.b16 %v5031, %v5019
        %v5440 = vpack.c.b16 %v5032, %v5020
        %v5441 = vpack.c.b16 %v5033, %v5021
        %v5442 = vpack.c.b16 %v5034, %v5022
        %v5443 = vpack.c.b16 %v5035, %v5023
        %v5444 = vpack.c.b16 %v5036, %v5024
        %v5445 = vpack.c.b16 %v5037, %v5025
        %v5446 = vpack.c.b16 %v5038, %v5026
        %v5447 = vpack.c.b16 %v5039, %v5027
        %v5448 = vpack.c.b16 %v5040, %v5028
        %v5449 = vpack.c.b16 %v5053, %v5041
        %v5450 = vpack.c.b16 %v5054, %v5042
        %v5451 = vpack.c.b16 %v5055, %v5043
        %v5452 = vpack.c.b16 %v5056, %v5044
        %v5453 = vpack.c.b16 %v5057, %v5045
        %v5454 = vpack.c.b16 %v5058, %v5046
        %v5455 = vpack.c.b16 %v5059, %v5047
        %v5456 = vpack.c.b16 %v5060, %v5048
        %v5457 = vpack.c.b16 %v5061, %v5049
        %v5458 = vpack.c.b16 %v5062, %v5050
        %v5459 = vpack.c.b16 %v5063, %v5051
        %v5460 = vpack.c.b16 %v5064, %v5052
        %v5461 = vpack.c.b16 %v5077, %v5065
        %v5462 = vpack.c.b16 %v5078, %v5066
        %v5463 = vpack.c.b16 %v5079, %v5067
        %v5464 = vpack.c.b16 %v5080, %v5068
        %v5465 = vpack.c.b16 %v5081, %v5069
        %v5466 = vpack.c.b16 %v5082, %v5070
        %v5467 = vpack.c.b16 %v5083, %v5071
        %v5468 = vpack.c.b16 %v5084, %v5072
        %v5469 = vpack.c.b16 %v5085, %v5073
        %v5470 = vpack.c.b16 %v5086, %v5074
        %v5471 = vpack.c.b16 %v5087, %v5075
        %v5472 = vpack.c.b16 %v5088, %v5076
        %v5473 = vpack.c.b16 %v5101, %v5089
        %v5474 = vpack.c.b16 %v5102, %v5090
        %v5475 = vpack.c.b16 %v5103, %v5091
        %v5476 = vpack.c.b16 %v5104, %v5092
        %v5477 = vpack.c.b16 %v5105, %v5093
        %v5478 = vpack.c.b16 %v5106, %v5094
        %v5479 = vpack.c.b16 %v5107, %v5095
        %v5480 = vpack.c.b16 %v5108, %v5096
        %v5481 = vpack.c.b16 %v5109, %v5097
        %v5482 = vpack.c.b16 %v5110, %v5098
        %v5483 = vpack.c.b16 %v5111, %v5099
        %v5484 = vpack.c.b16 %v5112, %v5100
        %v5485 = vpack.c.b16 %v5125, %v5113
        %v5486 = vpack.c.b16 %v5126, %v5114
        %v5487 = vpack.c.b16 %v5127, %v5115
        %v5488 = vpack.c.b16 %v5128, %v5116
        %v5489 = vpack.c.b16 %v5129, %v5117
        %v5490 = vpack.c.b16 %v5130, %v5118
        %v5491 = vpack.c.b16 %v5131, %v5119
        %v5492 = vpack.c.b16 %v5132, %v5120
        %v5493 = vpack.c.b16 %v5133, %v5121
        %v5494 = vpack.c.b16 %v5134, %v5122
        %v5495 = vpack.c.b16 %v5135, %v5123
        %v5496 = vpack.c.b16 %v5136, %v5124
        %v5497 = vpack.c.b16 %v5149, %v5137
        %v5498 = vpack.c.b16 %v5150, %v5138
        %v5499 = vpack.c.b16 %v5151, %v5139
        %v5500 = vpack.c.b16 %v5152, %v5140
        %v5501 = vpack.c.b16 %v5153, %v5141
        %v5502 = vpack.c.b16 %v5154, %v5142
        %v5503 = vpack.c.b16 %v5155, %v5143
        %v5504 = vpack.c.b16 %v5156, %v5144
        %v5505 = vpack.c.b16 %v5157, %v5145
        %v5506 = vpack.c.b16 %v5158, %v5146
        %v5507 = vpack.c.b16 %v5159, %v5147
        %v5508 = vpack.c.b16 %v5160, %v5148
        %v5509 = vpack.c.b16 %v5173, %v5161
        %v5510 = vpack.c.b16 %v5174, %v5162
        %v5511 = vpack.c.b16 %v5175, %v5163
        %v5512 = vpack.c.b16 %v5176, %v5164
        %v5513 = vpack.c.b16 %v5177, %v5165
        %v5514 = vpack.c.b16 %v5178, %v5166
        %v5515 = vpack.c.b16 %v5179, %v5167
        %v5516 = vpack.c.b16 %v5180, %v5168
        %v5517 = vpack.c.b16 %v5181, %v5169
        %v5518 = vpack.c.b16 %v5182, %v5170
        %v5519 = vpack.c.b16 %v5183, %v5171
        %v5520 = vpack.c.b16 %v5184, %v5172
        %v5521 = vpack.c.b16 %v5197, %v5185
        %v5522 = vpack.c.b16 %v5198, %v5186
        %v5523 = vpack.c.b16 %v5199, %v5187
        %v5524 = vpack.c.b16 %v5200, %v5188
        %v5525 = vpack.c.b16 %v5201, %v5189
        %v5526 = vpack.c.b16 %v5202, %v5190
        %v5527 = vpack.c.b16 %v5203, %v5191
        %v5528 = vpack.c.b16 %v5204, %v5192
        %v5529 = vpack.c.b16 %v5205, %v5193
        %v5530 = vpack.c.b16 %v5206, %v5194
        %v5531 = vpack.c.b16 %v5207, %v5195
        %v5532 = vpack.c.b16 %v5208, %v5196
        %v5533 = vpack.c.b16 %v5221, %v5209
        %v5534 = vpack.c.b16 %v5222, %v5210
        %v5535 = vpack.c.b16 %v5223, %v5211
        %v5536 = vpack.c.b16 %v5224, %v5212
        %v5537 = vpack.c.b16 %v5225, %v5213
        %v5538 = vpack.c.b16 %v5226, %v5214
        %v5539 = vpack.c.b16 %v5227, %v5215
        %v5540 = vpack.c.b16 %v5228, %v5216
        %v5541 = vpack.c.b16 %v5229, %v5217
        %v5542 = vpack.c.b16 %v5230, %v5218
        %v5543 = vpack.c.b16 %v5231, %v5219
        %v5544 = vpack.c.b16 %v5232, %v5220
        %v5545 = vpack.c.b16 %v5245, %v5233
        %v5546 = vpack.c.b16 %v5246, %v5234
        %v5547 = vpack.c.b16 %v5247, %v5235
        %v5548 = vpack.c.b16 %v5248, %v5236
        %v5549 = vpack.c.b16 %v5249, %v5237
        %v5550 = vpack.c.b16 %v5250, %v5238
        %v5551 = vpack.c.b16 %v5251, %v5239
        %v5552 = vpack.c.b16 %v5252, %v5240
        %v5553 = vpack.c.b16 %v5253, %v5241
        %v5554 = vpack.c.b16 %v5254, %v5242
        %v5555 = vpack.c.b16 %v5255, %v5243
        %v5556 = vpack.c.b16 %v5256, %v5244
        %v5557 = vpack.c.b16 %v5269, %v5257
        %v5558 = vpack.c.b16 %v5270, %v5258
        %v5559 = vpack.c.b16 %v5271, %v5259
        %v5560 = vpack.c.b16 %v5272, %v5260
        %v5561 = vpack.c.b16 %v5273, %v5261
        %v5562 = vpack.c.b16 %v5274, %v5262
        %v5563 = vpack.c.b16 %v5275, %v5263
        %v5564 = vpack.c.b16 %v5276, %v5264
        %v5565 = vpack.c.b16 %v5277, %v5265
        %v5566 = vpack.c.b16 %v5278, %v5266
        %v5567 = vpack.c.b16 %v5279, %v5267
        %v5568 = vpack.c.b16 %v5280, %v5268
        %5857 = vmatpush.bf16.msra.mxu0 %v5365
        %5858 = vmatpush.bf16.msra.mxu0 %v5353
        %5859 = vmatpush.bf16.msra.mxu0 %v5341
        %5860 = vmatpush.bf16.msra.mxu0 %v5329
        %5861 = vmatpush.bf16.msra.mxu0 %v5317
        %5862 = vmatpush.bf16.msra.mxu0 %v5305
        %5863 = vmatpush.bf16.msra.mxu0 %v5293
        %5864 = vmatpush.bf16.msra.mxu0 %v5281
        %5865 = vmatmul.bf16.gmra.mxu0 %v4098
        %v5866 = vpop.f32.mrf.mxu0
        %v5867 = vadd.f32 %v4393, %v5866
        %v5868 = vpop.f32.mrf.mxu0
        %v5869 = vadd.f32 %v4393, %v5868
        %5870 = vdwg.mxu0
        %5871 = vmatpush.bf16.msra.mxu0 %v5461
        %5872 = vmatpush.bf16.msra.mxu0 %v5449
        %5873 = vmatpush.bf16.msra.mxu0 %v5437
        %5874 = vmatpush.bf16.msra.mxu0 %v5425
        %5875 = vmatpush.bf16.msra.mxu0 %v5413
        %5876 = vmatpush.bf16.msra.mxu0 %v5401
        %5877 = vmatpush.bf16.msra.mxu0 %v5389
        %5878 = vmatpush.bf16.msra.mxu0 %v5377
        %5879 = vmatmul.bf16.gmra.mxu0 %v4099
        %v5880 = vpop.f32.mrf.mxu0
        %v5881 = vadd.f32 %v5867, %v5880
        %v5882 = vpop.f32.mrf.mxu0
        %v5883 = vadd.f32 %v5869, %v5882
        %5884 = vdwg.mxu0
        %5885 = vmatpush.bf16.msra.mxu0 %v5557
        %5886 = vmatpush.bf16.msra.mxu0 %v5545
        %5887 = vmatpush.bf16.msra.mxu0 %v5533
        %5888 = vmatpush.bf16.msra.mxu0 %v5521
        %5889 = vmatpush.bf16.msra.mxu0 %v5509
        %5890 = vmatpush.bf16.msra.mxu0 %v5497
        %5891 = vmatpush.bf16.msra.mxu0 %v5485
        %5892 = vmatpush.bf16.msra.mxu0 %v5473
        %5893 = vmatmul.bf16.gmra.mxu0 %v4100
        %v5894 = vpop.f32.mrf.mxu0
        %v5895 = vadd.f32 %v5881, %v5894
        %v5896 = vpop.f32.mrf.mxu0
        %v5897 = vadd.f32 %v5883, %v5896
        %5898 = vdwg.mxu0
        %5899 = vmatpush.bf16.msra.mxu0 %v5366
        %5900 = vmatpush.bf16.msra.mxu0 %v5354
        %5901 = vmatpush.bf16.msra.mxu0 %v5342
        %5902 = vmatpush.bf16.msra.mxu0 %v5330
        %5903 = vmatpush.bf16.msra.mxu0 %v5318
        %5904 = vmatpush.bf16.msra.mxu0 %v5306
        %5905 = vmatpush.bf16.msra.mxu0 %v5294
        %5906 = vmatpush.bf16.msra.mxu0 %v5282
        %5907 = vmatmul.bf16.gmra.mxu0 %v4098
        %v5908 = vpop.f32.mrf.mxu0
        %v5909 = vadd.f32 %v4394, %v5908
        %v5910 = vpop.f32.mrf.mxu0
        %v5911 = vadd.f32 %v4394, %v5910
        %5912 = vdwg.mxu0
        %5913 = vmatpush.bf16.msra.mxu0 %v5462
        %5914 = vmatpush.bf16.msra.mxu0 %v5450
        %5915 = vmatpush.bf16.msra.mxu0 %v5438
        %5916 = vmatpush.bf16.msra.mxu0 %v5426
        %5917 = vmatpush.bf16.msra.mxu0 %v5414
        %5918 = vmatpush.bf16.msra.mxu0 %v5402
        %5919 = vmatpush.bf16.msra.mxu0 %v5390
        %5920 = vmatpush.bf16.msra.mxu0 %v5378
        %5921 = vmatmul.bf16.gmra.mxu0 %v4099
        %v5922 = vpop.f32.mrf.mxu0
        %v5923 = vadd.f32 %v5909, %v5922
        %v5924 = vpop.f32.mrf.mxu0
        %v5925 = vadd.f32 %v5911, %v5924
        %5926 = vdwg.mxu0
        %5927 = vmatpush.bf16.msra.mxu0 %v5558
        %5928 = vmatpush.bf16.msra.mxu0 %v5546
        %5929 = vmatpush.bf16.msra.mxu0 %v5534
        %5930 = vmatpush.bf16.msra.mxu0 %v5522
        %5931 = vmatpush.bf16.msra.mxu0 %v5510
        %5932 = vmatpush.bf16.msra.mxu0 %v5498
        %5933 = vmatpush.bf16.msra.mxu0 %v5486
        %5934 = vmatpush.bf16.msra.mxu0 %v5474
        %5935 = vmatmul.bf16.gmra.mxu0 %v4100
        %v5936 = vpop.f32.mrf.mxu0
        %v5937 = vadd.f32 %v5923, %v5936
        %v5938 = vpop.f32.mrf.mxu0
        %v5939 = vadd.f32 %v5925, %v5938
        %5940 = vdwg.mxu0
        %5941 = vmatpush.bf16.msra.mxu0 %v5367
        %5942 = vmatpush.bf16.msra.mxu0 %v5355
        %5943 = vmatpush.bf16.msra.mxu0 %v5343
        %5944 = vmatpush.bf16.msra.mxu0 %v5331
        %5945 = vmatpush.bf16.msra.mxu0 %v5319
        %5946 = vmatpush.bf16.msra.mxu0 %v5307
        %5947 = vmatpush.bf16.msra.mxu0 %v5295
        %5948 = vmatpush.bf16.msra.mxu0 %v5283
        %5949 = vmatmul.bf16.gmra.mxu0 %v4098
        %v5950 = vpop.f32.mrf.mxu0
        %v5951 = vadd.f32 %v4395, %v5950
        %v5952 = vpop.f32.mrf.mxu0
        %v5953 = vadd.f32 %v4395, %v5952
        %5954 = vdwg.mxu0
        %5955 = vmatpush.bf16.msra.mxu0 %v5463
        %5956 = vmatpush.bf16.msra.mxu0 %v5451
        %5957 = vmatpush.bf16.msra.mxu0 %v5439
        %5958 = vmatpush.bf16.msra.mxu0 %v5427
        %5959 = vmatpush.bf16.msra.mxu0 %v5415
        %5960 = vmatpush.bf16.msra.mxu0 %v5403
        %5961 = vmatpush.bf16.msra.mxu0 %v5391
        %5962 = vmatpush.bf16.msra.mxu0 %v5379
        %5963 = vmatmul.bf16.gmra.mxu0 %v4099
        %v5964 = vpop.f32.mrf.mxu0
        %v5965 = vadd.f32 %v5951, %v5964
        %v5966 = vpop.f32.mrf.mxu0
        %v5967 = vadd.f32 %v5953, %v5966
        %5968 = vdwg.mxu0
        %5969 = vmatpush.bf16.msra.mxu0 %v5559
        %5970 = vmatpush.bf16.msra.mxu0 %v5547
        %5971 = vmatpush.bf16.msra.mxu0 %v5535
        %5972 = vmatpush.bf16.msra.mxu0 %v5523
        %5973 = vmatpush.bf16.msra.mxu0 %v5511
        %5974 = vmatpush.bf16.msra.mxu0 %v5499
        %5975 = vmatpush.bf16.msra.mxu0 %v5487
        %5976 = vmatpush.bf16.msra.mxu0 %v5475
        %5977 = vmatmul.bf16.gmra.mxu0 %v4100
        %v5978 = vpop.f32.mrf.mxu0
        %v5979 = vadd.f32 %v5965, %v5978
        %v5980 = vpop.f32.mrf.mxu0
        %v5981 = vadd.f32 %v5967, %v5980
        %5982 = vdwg.mxu0
        %5983 = vmatpush.bf16.msra.mxu0 %v5368
        %5984 = vmatpush.bf16.msra.mxu0 %v5356
        %5985 = vmatpush.bf16.msra.mxu0 %v5344
        %5986 = vmatpush.bf16.msra.mxu0 %v5332
        %5987 = vmatpush.bf16.msra.mxu0 %v5320
        %5988 = vmatpush.bf16.msra.mxu0 %v5308
        %5989 = vmatpush.bf16.msra.mxu0 %v5296
        %5990 = vmatpush.bf16.msra.mxu0 %v5284
        %5991 = vmatmul.bf16.gmra.mxu0 %v4098
        %v5992 = vpop.f32.mrf.mxu0
        %v5993 = vadd.f32 %v4396, %v5992
        %v5994 = vpop.f32.mrf.mxu0
        %v5995 = vadd.f32 %v4396, %v5994
        %5996 = vdwg.mxu0
        %5997 = vmatpush.bf16.msra.mxu0 %v5464
        %5998 = vmatpush.bf16.msra.mxu0 %v5452
        %5999 = vmatpush.bf16.msra.mxu0 %v5440
        %6000 = vmatpush.bf16.msra.mxu0 %v5428
        %6001 = vmatpush.bf16.msra.mxu0 %v5416
        %6002 = vmatpush.bf16.msra.mxu0 %v5404
        %6003 = vmatpush.bf16.msra.mxu0 %v5392
        %6004 = vmatpush.bf16.msra.mxu0 %v5380
        %6005 = vmatmul.bf16.gmra.mxu0 %v4099
        %v6006 = vpop.f32.mrf.mxu0
        %v6007 = vadd.f32 %v5993, %v6006
        %v6008 = vpop.f32.mrf.mxu0
        %v6009 = vadd.f32 %v5995, %v6008
        %6010 = vdwg.mxu0
        %6011 = vmatpush.bf16.msra.mxu0 %v5560
        %6012 = vmatpush.bf16.msra.mxu0 %v5548
        %6013 = vmatpush.bf16.msra.mxu0 %v5536
        %6014 = vmatpush.bf16.msra.mxu0 %v5524
        %6015 = vmatpush.bf16.msra.mxu0 %v5512
        %6016 = vmatpush.bf16.msra.mxu0 %v5500
        %6017 = vmatpush.bf16.msra.mxu0 %v5488
        %6018 = vmatpush.bf16.msra.mxu0 %v5476
        %6019 = vmatmul.bf16.gmra.mxu0 %v4100
        %v6020 = vpop.f32.mrf.mxu0
        %v6021 = vadd.f32 %v6007, %v6020
        %v6022 = vpop.f32.mrf.mxu0
        %v6023 = vadd.f32 %v6009, %v6022
        %6024 = vdwg.mxu0
        %6025 = vmatpush.bf16.msra.mxu0 %v5369
        %6026 = vmatpush.bf16.msra.mxu0 %v5357
        %6027 = vmatpush.bf16.msra.mxu0 %v5345
        %6028 = vmatpush.bf16.msra.mxu0 %v5333
        %6029 = vmatpush.bf16.msra.mxu0 %v5321
        %6030 = vmatpush.bf16.msra.mxu0 %v5309
        %6031 = vmatpush.bf16.msra.mxu0 %v5297
        %6032 = vmatpush.bf16.msra.mxu0 %v5285
        %6033 = vmatmul.bf16.gmra.mxu0 %v4098
        %v6034 = vpop.f32.mrf.mxu0
        %v6035 = vadd.f32 %v4397, %v6034
        %v6036 = vpop.f32.mrf.mxu0
        %v6037 = vadd.f32 %v4397, %v6036
        %6038 = vdwg.mxu0
        %6039 = vmatpush.bf16.msra.mxu0 %v5465
        %6040 = vmatpush.bf16.msra.mxu0 %v5453
        %6041 = vmatpush.bf16.msra.mxu0 %v5441
        %6042 = vmatpush.bf16.msra.mxu0 %v5429
        %6043 = vmatpush.bf16.msra.mxu0 %v5417
        %6044 = vmatpush.bf16.msra.mxu0 %v5405
        %6045 = vmatpush.bf16.msra.mxu0 %v5393
        %6046 = vmatpush.bf16.msra.mxu0 %v5381
        %6047 = vmatmul.bf16.gmra.mxu0 %v4099
        %v6048 = vpop.f32.mrf.mxu0
        %v6049 = vadd.f32 %v6035, %v6048
        %v6050 = vpop.f32.mrf.mxu0
        %v6051 = vadd.f32 %v6037, %v6050
        %6052 = vdwg.mxu0
        %6053 = vmatpush.bf16.msra.mxu0 %v5561
        %6054 = vmatpush.bf16.msra.mxu0 %v5549
        %6055 = vmatpush.bf16.msra.mxu0 %v5537
        %6056 = vmatpush.bf16.msra.mxu0 %v5525
        %6057 = vmatpush.bf16.msra.mxu0 %v5513
        %6058 = vmatpush.bf16.msra.mxu0 %v5501
        %6059 = vmatpush.bf16.msra.mxu0 %v5489
        %6060 = vmatpush.bf16.msra.mxu0 %v5477
        %6061 = vmatmul.bf16.gmra.mxu0 %v4100
        %v6062 = vpop.f32.mrf.mxu0
        %v6063 = vadd.f32 %v6049, %v6062
        %v6064 = vpop.f32.mrf.mxu0
        %v6065 = vadd.f32 %v6051, %v6064
        %6066 = vdwg.mxu0
        %6067 = vmatpush.bf16.msra.mxu0 %v5370
        %6068 = vmatpush.bf16.msra.mxu0 %v5358
        %6069 = vmatpush.bf16.msra.mxu0 %v5346
        %6070 = vmatpush.bf16.msra.mxu0 %v5334
        %6071 = vmatpush.bf16.msra.mxu0 %v5322
        %6072 = vmatpush.bf16.msra.mxu0 %v5310
        %6073 = vmatpush.bf16.msra.mxu0 %v5298
        %6074 = vmatpush.bf16.msra.mxu0 %v5286
        %6075 = vmatmul.bf16.gmra.mxu0 %v4098
        %v6076 = vpop.f32.mrf.mxu0
        %v6077 = vadd.f32 %v4398, %v6076
        %v6078 = vpop.f32.mrf.mxu0
        %v6079 = vadd.f32 %v4398, %v6078
        %6080 = vdwg.mxu0
        %6081 = vmatpush.bf16.msra.mxu0 %v5466
        %6082 = vmatpush.bf16.msra.mxu0 %v5454
        %6083 = vmatpush.bf16.msra.mxu0 %v5442
        %6084 = vmatpush.bf16.msra.mxu0 %v5430
        %6085 = vmatpush.bf16.msra.mxu0 %v5418
        %6086 = vmatpush.bf16.msra.mxu0 %v5406
        %6087 = vmatpush.bf16.msra.mxu0 %v5394
        %6088 = vmatpush.bf16.msra.mxu0 %v5382
        %6089 = vmatmul.bf16.gmra.mxu0 %v4099
        %v6090 = vpop.f32.mrf.mxu0
        %v6091 = vadd.f32 %v6077, %v6090
        %v6092 = vpop.f32.mrf.mxu0
        %v6093 = vadd.f32 %v6079, %v6092
        %6094 = vdwg.mxu0
        %6095 = vmatpush.bf16.msra.mxu0 %v5562
        %6096 = vmatpush.bf16.msra.mxu0 %v5550
        %6097 = vmatpush.bf16.msra.mxu0 %v5538
        %6098 = vmatpush.bf16.msra.mxu0 %v5526
        %6099 = vmatpush.bf16.msra.mxu0 %v5514
        %6100 = vmatpush.bf16.msra.mxu0 %v5502
        %6101 = vmatpush.bf16.msra.mxu0 %v5490
        %6102 = vmatpush.bf16.msra.mxu0 %v5478
        %6103 = vmatmul.bf16.gmra.mxu0 %v4100
        %v6104 = vpop.f32.mrf.mxu0
        %v6105 = vadd.f32 %v6091, %v6104
        %v6106 = vpop.f32.mrf.mxu0
        %v6107 = vadd.f32 %v6093, %v6106
        %6108 = vdwg.mxu0
        %6109 = vmatpush.bf16.msra.mxu0 %v5371
        %6110 = vmatpush.bf16.msra.mxu0 %v5359
        %6111 = vmatpush.bf16.msra.mxu0 %v5347
        %6112 = vmatpush.bf16.msra.mxu0 %v5335
        %6113 = vmatpush.bf16.msra.mxu0 %v5323
        %6114 = vmatpush.bf16.msra.mxu0 %v5311
        %6115 = vmatpush.bf16.msra.mxu0 %v5299
        %6116 = vmatpush.bf16.msra.mxu0 %v5287
        %6117 = vmatmul.bf16.gmra.mxu0 %v4098
        %v6118 = vpop.f32.mrf.mxu0
        %v6119 = vadd.f32 %v4399, %v6118
        %v6120 = vpop.f32.mrf.mxu0
        %v6121 = vadd.f32 %v4399, %v6120
        %6122 = vdwg.mxu0
        %6123 = vmatpush.bf16.msra.mxu0 %v5467
        %6124 = vmatpush.bf16.msra.mxu0 %v5455
        %6125 = vmatpush.bf16.msra.mxu0 %v5443
        %6126 = vmatpush.bf16.msra.mxu0 %v5431
        %6127 = vmatpush.bf16.msra.mxu0 %v5419
        %6128 = vmatpush.bf16.msra.mxu0 %v5407
        %6129 = vmatpush.bf16.msra.mxu0 %v5395
        %6130 = vmatpush.bf16.msra.mxu0 %v5383
        %6131 = vmatmul.bf16.gmra.mxu0 %v4099
        %v6132 = vpop.f32.mrf.mxu0
        %v6133 = vadd.f32 %v6119, %v6132
        %v6134 = vpop.f32.mrf.mxu0
        %v6135 = vadd.f32 %v6121, %v6134
        %6136 = vdwg.mxu0
        %6137 = vmatpush.bf16.msra.mxu0 %v5563
        %6138 = vmatpush.bf16.msra.mxu0 %v5551
        %6139 = vmatpush.bf16.msra.mxu0 %v5539
        %6140 = vmatpush.bf16.msra.mxu0 %v5527
        %6141 = vmatpush.bf16.msra.mxu0 %v5515
        %6142 = vmatpush.bf16.msra.mxu0 %v5503
        %6143 = vmatpush.bf16.msra.mxu0 %v5491
        %6144 = vmatpush.bf16.msra.mxu0 %v5479
        %6145 = vmatmul.bf16.gmra.mxu0 %v4100
        %v6146 = vpop.f32.mrf.mxu0
        %v6147 = vadd.f32 %v6133, %v6146
        %v6148 = vpop.f32.mrf.mxu0
        %v6149 = vadd.f32 %v6135, %v6148
        %6150 = vdwg.mxu0
        %6151 = vmatpush.bf16.msra.mxu0 %v5372
        %6152 = vmatpush.bf16.msra.mxu0 %v5360
        %6153 = vmatpush.bf16.msra.mxu0 %v5348
        %6154 = vmatpush.bf16.msra.mxu0 %v5336
        %6155 = vmatpush.bf16.msra.mxu0 %v5324
        %6156 = vmatpush.bf16.msra.mxu0 %v5312
        %6157 = vmatpush.bf16.msra.mxu0 %v5300
        %6158 = vmatpush.bf16.msra.mxu0 %v5288
        %6159 = vmatmul.bf16.gmra.mxu0 %v4098
        %v6160 = vpop.f32.mrf.mxu0
        %v6161 = vadd.f32 %v4400, %v6160
        %v6162 = vpop.f32.mrf.mxu0
        %v6163 = vadd.f32 %v4400, %v6162
        %6164 = vdwg.mxu0
        %6165 = vmatpush.bf16.msra.mxu0 %v5468
        %6166 = vmatpush.bf16.msra.mxu0 %v5456
        %6167 = vmatpush.bf16.msra.mxu0 %v5444
        %6168 = vmatpush.bf16.msra.mxu0 %v5432
        %6169 = vmatpush.bf16.msra.mxu0 %v5420
        %6170 = vmatpush.bf16.msra.mxu0 %v5408
        %6171 = vmatpush.bf16.msra.mxu0 %v5396
        %6172 = vmatpush.bf16.msra.mxu0 %v5384
        %6173 = vmatmul.bf16.gmra.mxu0 %v4099
        %v6174 = vpop.f32.mrf.mxu0
        %v6175 = vadd.f32 %v6161, %v6174
        %v6176 = vpop.f32.mrf.mxu0
        %v6177 = vadd.f32 %v6163, %v6176
        %6178 = vdwg.mxu0
        %6179 = vmatpush.bf16.msra.mxu0 %v5564
        %6180 = vmatpush.bf16.msra.mxu0 %v5552
        %6181 = vmatpush.bf16.msra.mxu0 %v5540
        %6182 = vmatpush.bf16.msra.mxu0 %v5528
        %6183 = vmatpush.bf16.msra.mxu0 %v5516
        %6184 = vmatpush.bf16.msra.mxu0 %v5504
        %6185 = vmatpush.bf16.msra.mxu0 %v5492
        %6186 = vmatpush.bf16.msra.mxu0 %v5480
        %6187 = vmatmul.bf16.gmra.mxu0 %v4100
        %v6188 = vpop.f32.mrf.mxu0
        %v6189 = vadd.f32 %v6175, %v6188
        %v6190 = vpop.f32.mrf.mxu0
        %v6191 = vadd.f32 %v6177, %v6190
        %6192 = vdwg.mxu0
        %6193 = vmatpush.bf16.msra.mxu0 %v5373
        %6194 = vmatpush.bf16.msra.mxu0 %v5361
        %6195 = vmatpush.bf16.msra.mxu0 %v5349
        %6196 = vmatpush.bf16.msra.mxu0 %v5337
        %6197 = vmatpush.bf16.msra.mxu0 %v5325
        %6198 = vmatpush.bf16.msra.mxu0 %v5313
        %6199 = vmatpush.bf16.msra.mxu0 %v5301
        %6200 = vmatpush.bf16.msra.mxu0 %v5289
        %6201 = vmatmul.bf16.gmra.mxu0 %v4098
        %v6202 = vpop.f32.mrf.mxu0
        %v6203 = vadd.f32 %v4401, %v6202
        %v6204 = vpop.f32.mrf.mxu0
        %v6205 = vadd.f32 %v4401, %v6204
        %6206 = vdwg.mxu0
        %6207 = vmatpush.bf16.msra.mxu0 %v5469
        %6208 = vmatpush.bf16.msra.mxu0 %v5457
        %6209 = vmatpush.bf16.msra.mxu0 %v5445
        %6210 = vmatpush.bf16.msra.mxu0 %v5433
        %6211 = vmatpush.bf16.msra.mxu0 %v5421
        %6212 = vmatpush.bf16.msra.mxu0 %v5409
        %6213 = vmatpush.bf16.msra.mxu0 %v5397
        %6214 = vmatpush.bf16.msra.mxu0 %v5385
        %6215 = vmatmul.bf16.gmra.mxu0 %v4099
        %v6216 = vpop.f32.mrf.mxu0
        %v6217 = vadd.f32 %v6203, %v6216
        %v6218 = vpop.f32.mrf.mxu0
        %v6219 = vadd.f32 %v6205, %v6218
        %6220 = vdwg.mxu0
        %6221 = vmatpush.bf16.msra.mxu0 %v5565
        %6222 = vmatpush.bf16.msra.mxu0 %v5553
        %6223 = vmatpush.bf16.msra.mxu0 %v5541
        %6224 = vmatpush.bf16.msra.mxu0 %v5529
        %6225 = vmatpush.bf16.msra.mxu0 %v5517
        %6226 = vmatpush.bf16.msra.mxu0 %v5505
        %6227 = vmatpush.bf16.msra.mxu0 %v5493
        %6228 = vmatpush.bf16.msra.mxu0 %v5481
        %6229 = vmatmul.bf16.gmra.mxu0 %v4100
        %v6230 = vpop.f32.mrf.mxu0
        %v6231 = vadd.f32 %v6217, %v6230
        %v6232 = vpop.f32.mrf.mxu0
        %v6233 = vadd.f32 %v6219, %v6232
        %6234 = vdwg.mxu0
        %6235 = vmatpush.bf16.msra.mxu0 %v5374
        %6236 = vmatpush.bf16.msra.mxu0 %v5362
        %6237 = vmatpush.bf16.msra.mxu0 %v5350
        %6238 = vmatpush.bf16.msra.mxu0 %v5338
        %6239 = vmatpush.bf16.msra.mxu0 %v5326
        %6240 = vmatpush.bf16.msra.mxu0 %v5314
        %6241 = vmatpush.bf16.msra.mxu0 %v5302
        %6242 = vmatpush.bf16.msra.mxu0 %v5290
        %6243 = vmatmul.bf16.gmra.mxu0 %v4098
        %v6244 = vpop.f32.mrf.mxu0
        %v6245 = vadd.f32 %v4402, %v6244
        %v6246 = vpop.f32.mrf.mxu0
        %v6247 = vadd.f32 %v4402, %v6246
        %6248 = vdwg.mxu0
        %6249 = vmatpush.bf16.msra.mxu0 %v5470
        %6250 = vmatpush.bf16.msra.mxu0 %v5458
        %6251 = vmatpush.bf16.msra.mxu0 %v5446
        %6252 = vmatpush.bf16.msra.mxu0 %v5434
        %6253 = vmatpush.bf16.msra.mxu0 %v5422
        %6254 = vmatpush.bf16.msra.mxu0 %v5410
        %6255 = vmatpush.bf16.msra.mxu0 %v5398
        %6256 = vmatpush.bf16.msra.mxu0 %v5386
        %6257 = vmatmul.bf16.gmra.mxu0 %v4099
        %v6258 = vpop.f32.mrf.mxu0
        %v6259 = vadd.f32 %v6245, %v6258
        %v6260 = vpop.f32.mrf.mxu0
        %v6261 = vadd.f32 %v6247, %v6260
        %6262 = vdwg.mxu0
        %6263 = vmatpush.bf16.msra.mxu0 %v5566
        %6264 = vmatpush.bf16.msra.mxu0 %v5554
        %6265 = vmatpush.bf16.msra.mxu0 %v5542
        %6266 = vmatpush.bf16.msra.mxu0 %v5530
        %6267 = vmatpush.bf16.msra.mxu0 %v5518
        %6268 = vmatpush.bf16.msra.mxu0 %v5506
        %6269 = vmatpush.bf16.msra.mxu0 %v5494
        %6270 = vmatpush.bf16.msra.mxu0 %v5482
        %6271 = vmatmul.bf16.gmra.mxu0 %v4100
        %v6272 = vpop.f32.mrf.mxu0
        %v6273 = vadd.f32 %v6259, %v6272
        %v6274 = vpop.f32.mrf.mxu0
        %v6275 = vadd.f32 %v6261, %v6274
        %6276 = vdwg.mxu0
        %6277 = vmatpush.bf16.msra.mxu0 %v5375
        %6278 = vmatpush.bf16.msra.mxu0 %v5363
        %6279 = vmatpush.bf16.msra.mxu0 %v5351
        %6280 = vmatpush.bf16.msra.mxu0 %v5339
        %6281 = vmatpush.bf16.msra.mxu0 %v5327
        %6282 = vmatpush.bf16.msra.mxu0 %v5315
        %6283 = vmatpush.bf16.msra.mxu0 %v5303
        %6284 = vmatpush.bf16.msra.mxu0 %v5291
        %6285 = vmatmul.bf16.gmra.mxu0 %v4098
        %v6286 = vpop.f32.mrf.mxu0
        %v6287 = vadd.f32 %v4403, %v6286
        %v6288 = vpop.f32.mrf.mxu0
        %v6289 = vadd.f32 %v4403, %v6288
        %6290 = vdwg.mxu0
        %6291 = vmatpush.bf16.msra.mxu0 %v5471
        %6292 = vmatpush.bf16.msra.mxu0 %v5459
        %6293 = vmatpush.bf16.msra.mxu0 %v5447
        %6294 = vmatpush.bf16.msra.mxu0 %v5435
        %6295 = vmatpush.bf16.msra.mxu0 %v5423
        %6296 = vmatpush.bf16.msra.mxu0 %v5411
        %6297 = vmatpush.bf16.msra.mxu0 %v5399
        %6298 = vmatpush.bf16.msra.mxu0 %v5387
        %6299 = vmatmul.bf16.gmra.mxu0 %v4099
        %v6300 = vpop.f32.mrf.mxu0
        %v6301 = vadd.f32 %v6287, %v6300
        %v6302 = vpop.f32.mrf.mxu0
        %v6303 = vadd.f32 %v6289, %v6302
        %6304 = vdwg.mxu0
        %6305 = vmatpush.bf16.msra.mxu0 %v5567
        %6306 = vmatpush.bf16.msra.mxu0 %v5555
        %6307 = vmatpush.bf16.msra.mxu0 %v5543
        %6308 = vmatpush.bf16.msra.mxu0 %v5531
        %6309 = vmatpush.bf16.msra.mxu0 %v5519
        %6310 = vmatpush.bf16.msra.mxu0 %v5507
        %6311 = vmatpush.bf16.msra.mxu0 %v5495
        %6312 = vmatpush.bf16.msra.mxu0 %v5483
        %6313 = vmatmul.bf16.gmra.mxu0 %v4100
        %v6314 = vpop.f32.mrf.mxu0
        %v6315 = vadd.f32 %v6301, %v6314
        %v6316 = vpop.f32.mrf.mxu0
        %v6317 = vadd.f32 %v6303, %v6316
        %6318 = vdwg.mxu0
        %6319 = vmatpush.bf16.msra.mxu0 %v5376
        %6320 = vmatpush.bf16.msra.mxu0 %v5364
        %6321 = vmatpush.bf16.msra.mxu0 %v5352
        %6322 = vmatpush.bf16.msra.mxu0 %v5340
        %6323 = vmatpush.bf16.msra.mxu0 %v5328
        %6324 = vmatpush.bf16.msra.mxu0 %v5316
        %6325 = vmatpush.bf16.msra.mxu0 %v5304
        %6326 = vmatpush.bf16.msra.mxu0 %v5292
        %6327 = vmatmul.bf16.gmra.mxu0 %v4098
        %v6328 = vpop.f32.mrf.mxu0
        %v6329 = vadd.f32 %v4404, %v6328
        %v6330 = vpop.f32.mrf.mxu0
        %v6331 = vadd.f32 %v4404, %v6330
        %6332 = vdwg.mxu0
        %6333 = vmatpush.bf16.msra.mxu0 %v5472
        %6334 = vmatpush.bf16.msra.mxu0 %v5460
        %6335 = vmatpush.bf16.msra.mxu0 %v5448
        %6336 = vmatpush.bf16.msra.mxu0 %v5436
        %6337 = vmatpush.bf16.msra.mxu0 %v5424
        %6338 = vmatpush.bf16.msra.mxu0 %v5412
        %6339 = vmatpush.bf16.msra.mxu0 %v5400
        %6340 = vmatpush.bf16.msra.mxu0 %v5388
        %6341 = vmatmul.bf16.gmra.mxu0 %v4099
        %v6342 = vpop.f32.mrf.mxu0
        %v6343 = vadd.f32 %v6329, %v6342
        %v6344 = vpop.f32.mrf.mxu0
        %v6345 = vadd.f32 %v6331, %v6344
        %6346 = vdwg.mxu0
        %6347 = vmatpush.bf16.msra.mxu0 %v5568
        %6348 = vmatpush.bf16.msra.mxu0 %v5556
        %6349 = vmatpush.bf16.msra.mxu0 %v5544
        %6350 = vmatpush.bf16.msra.mxu0 %v5532
        %6351 = vmatpush.bf16.msra.mxu0 %v5520
        %6352 = vmatpush.bf16.msra.mxu0 %v5508
        %6353 = vmatpush.bf16.msra.mxu0 %v5496
        %6354 = vmatpush.bf16.msra.mxu0 %v5484
        %6355 = vmatmul.bf16.gmra.mxu0 %v4100
        %v6356 = vpop.f32.mrf.mxu0
        %v6357 = vadd.f32 %v6343, %v6356
        %v6358 = vpop.f32.mrf.mxu0
        %v6359 = vadd.f32 %v6345, %v6358
        %6360 = vdwg.mxu0
        %v6361 = vmul.f32 %v5895, 0.5
        %v6362 = vmul.f32 %v5937, 0.5
        %v6363 = vmul.f32 %v5979, 0.5
        %v6364 = vmul.f32 %v6021, 0.5
        %v6365 = vmul.f32 %v6063, 0.5
        %v6366 = vmul.f32 %v6105, 0.5
        %v6367 = vmul.f32 %v6147, 0.5
        %v6368 = vmul.f32 %v6189, 0.5
        %v6369 = vmul.f32 %v6231, 0.5
        %v6370 = vmul.f32 %v6273, 0.5
        %v6371 = vmul.f32 %v6315, 0.5
        %v6372 = vmul.f32 %v6357, 0.5
        %v6373 = vmul.f32 %v5897, 0.5
        %v6374 = vmul.f32 %v5939, 0.5
        %v6375 = vmul.f32 %v5981, 0.5
        %v6376 = vmul.f32 %v6023, 0.5
        %v6377 = vmul.f32 %v6065, 0.5
        %v6378 = vmul.f32 %v6107, 0.5
        %v6379 = vmul.f32 %v6149, 0.5
        %v6380 = vmul.f32 %v6191, 0.5
        %v6381 = vmul.f32 %v6233, 0.5
        %v6382 = vmul.f32 %v6275, 0.5
        %v6383 = vmul.f32 %v6317, 0.5
        %v6384 = vmul.f32 %v6359, 0.5
        %v6385 = vmul.f32 %v5895, 0.70710677
        %v6386 = vmul.f32 %v5937, 0.70710677
        %v6387 = vmul.f32 %v5979, 0.70710677
        %v6388 = vmul.f32 %v6021, 0.70710677
        %v6389 = vmul.f32 %v6063, 0.70710677
        %v6390 = vmul.f32 %v6105, 0.70710677
        %v6391 = vmul.f32 %v6147, 0.70710677
        %v6392 = vmul.f32 %v6189, 0.70710677
        %v6393 = vmul.f32 %v6231, 0.70710677
        %v6394 = vmul.f32 %v6273, 0.70710677
        %v6395 = vmul.f32 %v6315, 0.70710677
        %v6396 = vmul.f32 %v6357, 0.70710677
        %v6397 = vmul.f32 %v5897, 0.70710677
        %v6398 = vmul.f32 %v5939, 0.70710677
        %v6399 = vmul.f32 %v5981, 0.70710677
        %v6400 = vmul.f32 %v6023, 0.70710677
        %v6401 = vmul.f32 %v6065, 0.70710677
        %v6402 = vmul.f32 %v6107, 0.70710677
        %v6403 = vmul.f32 %v6149, 0.70710677
        %v6404 = vmul.f32 %v6191, 0.70710677
        %v6405 = vmul.f32 %v6233, 0.70710677
        %v6406 = vmul.f32 %v6275, 0.70710677
        %v6407 = vmul.f32 %v6317, 0.70710677
        %v6408 = vmul.f32 %v6359, 0.70710677
        %v6409 = vmul.f32 %v6385, %v6385
        %v6410 = vmin.f32 16.0, %v6409
        %v6411 = vmul.f32 %v6410, 2.1237322e-06
        %v6412 = vadd.f32 %v6411, 0.00028619796
        %v6413 = vmul.f32 %v6410, %v6412
        %v6414 = vadd.f32 %v6413, 0.0036580483
        %v6415 = vmul.f32 %v6410, %v6414
        %v6416 = vadd.f32 %v6415, 0.05243302
        %v6417 = vmul.f32 %v6410, %v6416
        %v6418 = vadd.f32 %v6417, 0.18741608
        %v6419 = vmul.f32 %v6410, %v6418
        %v6420 = vadd.f32 %v6419, 1.1283791
        %v6421 = vmul.f32 %v6385, %v6420
        %v6422 = vmul.f32 %v6410, 3.8918573e-05
        %v6423 = vadd.f32 %v6422, 0.001143296
        %v6424 = vmul.f32 %v6410, %v6423
        %v6425 = vadd.f32 %v6424, 0.014752088
        %v6426 = vmul.f32 %v6410, %v6425
        %v6427 = vadd.f32 %v6426, 0.112945676
        %v6428 = vmul.f32 %v6410, %v6427
        %v6429 = vadd.f32 %v6428, 0.4994258
        %v6430 = vmul.f32 %v6410, %v6429
        %v6431 = vadd.f32 %v6430, 1.0
        %v6432 = vrcp.pop %v6431
        %v6433 = vmul.f32 %v6431, %v6432
        %v6434 = vsub.f32 1.0, %v6433
        %v6435 = vmul.f32 %v6432, %v6434
        %v6436 = vadd.f32 %v6432, %v6435
        %vm6437 = vweird.f32 %v6431
        %vm6438 = vweird.f32 %v6432
        %vm6439 = vmor %vm6437, %vm6438
        %v6440 = vsel %vm6439, %v6432, %v6436
        %v6441 = vand.u32 2147483647, %v6431
        %vm6442 = vcmp.eq.f32.partialorder %v6441, 8.507059e+37
        %v6443 = vand.u32 %v6431, 2147483648
        %v6444 = vor.u32 1.1754944e-38, %v6443
        %v6445 = vsel %vm6442, %v6444, %v6440
        %v6446 = vmul.f32 %v6421, %v6445
        %v6447 = vmin.f32 %v6446, 1.0
        %v6448 = vmax.f32 %v6447, -1.0
        %v6449 = vmul.f32 %v6386, %v6386
        %v6450 = vmin.f32 16.0, %v6449
        %v6451 = vmul.f32 %v6450, 2.1237322e-06
        %v6452 = vadd.f32 %v6451, 0.00028619796
        %v6453 = vmul.f32 %v6450, %v6452
        %v6454 = vadd.f32 %v6453, 0.0036580483
        %v6455 = vmul.f32 %v6450, %v6454
        %v6456 = vadd.f32 %v6455, 0.05243302
        %v6457 = vmul.f32 %v6450, %v6456
        %v6458 = vadd.f32 %v6457, 0.18741608
        %v6459 = vmul.f32 %v6450, %v6458
        %v6460 = vadd.f32 %v6459, 1.1283791
        %v6461 = vmul.f32 %v6386, %v6460
        %v6462 = vmul.f32 %v6450, 3.8918573e-05
        %v6463 = vadd.f32 %v6462, 0.001143296
        %v6464 = vmul.f32 %v6450, %v6463
        %v6465 = vadd.f32 %v6464, 0.014752088
        %v6466 = vmul.f32 %v6450, %v6465
        %v6467 = vadd.f32 %v6466, 0.112945676
        %v6468 = vmul.f32 %v6450, %v6467
        %v6469 = vadd.f32 %v6468, 0.4994258
        %v6470 = vmul.f32 %v6450, %v6469
        %v6471 = vadd.f32 %v6470, 1.0
        %v6472 = vrcp.pop %v6471
        %v6473 = vmul.f32 %v6471, %v6472
        %v6474 = vsub.f32 1.0, %v6473
        %v6475 = vmul.f32 %v6472, %v6474
        %v6476 = vadd.f32 %v6472, %v6475
        %vm6477 = vweird.f32 %v6471
        %vm6478 = vweird.f32 %v6472
        %vm6479 = vmor %vm6477, %vm6478
        %v6480 = vsel %vm6479, %v6472, %v6476
        %v6481 = vand.u32 2147483647, %v6471
        %vm6482 = vcmp.eq.f32.partialorder %v6481, 8.507059e+37
        %v6483 = vand.u32 %v6471, 2147483648
        %v6484 = vor.u32 1.1754944e-38, %v6483
        %v6485 = vsel %vm6482, %v6484, %v6480
        %v6486 = vmul.f32 %v6461, %v6485
        %v6487 = vmin.f32 %v6486, 1.0
        %v6488 = vmax.f32 %v6487, -1.0
        %v6489 = vmul.f32 %v6387, %v6387
        %v6490 = vmin.f32 16.0, %v6489
        %v6491 = vmul.f32 %v6490, 2.1237322e-06
        %v6492 = vadd.f32 %v6491, 0.00028619796
        %v6493 = vmul.f32 %v6490, %v6492
        %v6494 = vadd.f32 %v6493, 0.0036580483
        %v6495 = vmul.f32 %v6490, %v6494
        %v6496 = vadd.f32 %v6495, 0.05243302
        %v6497 = vmul.f32 %v6490, %v6496
        %v6498 = vadd.f32 %v6497, 0.18741608
        %v6499 = vmul.f32 %v6490, %v6498
        %v6500 = vadd.f32 %v6499, 1.1283791
        %v6501 = vmul.f32 %v6387, %v6500
        %v6502 = vmul.f32 %v6490, 3.8918573e-05
        %v6503 = vadd.f32 %v6502, 0.001143296
        %v6504 = vmul.f32 %v6490, %v6503
        %v6505 = vadd.f32 %v6504, 0.014752088
        %v6506 = vmul.f32 %v6490, %v6505
        %v6507 = vadd.f32 %v6506, 0.112945676
        %v6508 = vmul.f32 %v6490, %v6507
        %v6509 = vadd.f32 %v6508, 0.4994258
        %v6510 = vmul.f32 %v6490, %v6509
        %v6511 = vadd.f32 %v6510, 1.0
        %v6512 = vrcp.pop %v6511
        %v6513 = vmul.f32 %v6511, %v6512
        %v6514 = vsub.f32 1.0, %v6513
        %v6515 = vmul.f32 %v6512, %v6514
        %v6516 = vadd.f32 %v6512, %v6515
        %vm6517 = vweird.f32 %v6511
        %vm6518 = vweird.f32 %v6512
        %vm6519 = vmor %vm6517, %vm6518
        %v6520 = vsel %vm6519, %v6512, %v6516
        %v6521 = vand.u32 2147483647, %v6511
        %vm6522 = vcmp.eq.f32.partialorder %v6521, 8.507059e+37
        %v6523 = vand.u32 %v6511, 2147483648
        %v6524 = vor.u32 1.1754944e-38, %v6523
        %v6525 = vsel %vm6522, %v6524, %v6520
        %v6526 = vmul.f32 %v6501, %v6525
        %v6527 = vmin.f32 %v6526, 1.0
        %v6528 = vmax.f32 %v6527, -1.0
        %v6529 = vmul.f32 %v6388, %v6388
        %v6530 = vmin.f32 16.0, %v6529
        %v6531 = vmul.f32 %v6530, 2.1237322e-06
        %v6532 = vadd.f32 %v6531, 0.00028619796
        %v6533 = vmul.f32 %v6530, %v6532
        %v6534 = vadd.f32 %v6533, 0.0036580483
        %v6535 = vmul.f32 %v6530, %v6534
        %v6536 = vadd.f32 %v6535, 0.05243302
        %v6537 = vmul.f32 %v6530, %v6536
        %v6538 = vadd.f32 %v6537, 0.18741608
        %v6539 = vmul.f32 %v6530, %v6538
        %v6540 = vadd.f32 %v6539, 1.1283791
        %v6541 = vmul.f32 %v6388, %v6540
        %v6542 = vmul.f32 %v6530, 3.8918573e-05
        %v6543 = vadd.f32 %v6542, 0.001143296
        %v6544 = vmul.f32 %v6530, %v6543
        %v6545 = vadd.f32 %v6544, 0.014752088
        %v6546 = vmul.f32 %v6530, %v6545
        %v6547 = vadd.f32 %v6546, 0.112945676
        %v6548 = vmul.f32 %v6530, %v6547
        %v6549 = vadd.f32 %v6548, 0.4994258
        %v6550 = vmul.f32 %v6530, %v6549
        %v6551 = vadd.f32 %v6550, 1.0
        %v6552 = vrcp.pop %v6551
        %v6553 = vmul.f32 %v6551, %v6552
        %v6554 = vsub.f32 1.0, %v6553
        %v6555 = vmul.f32 %v6552, %v6554
        %v6556 = vadd.f32 %v6552, %v6555
        %vm6557 = vweird.f32 %v6551
        %vm6558 = vweird.f32 %v6552
        %vm6559 = vmor %vm6557, %vm6558
        %v6560 = vsel %vm6559, %v6552, %v6556
        %v6561 = vand.u32 2147483647, %v6551
        %vm6562 = vcmp.eq.f32.partialorder %v6561, 8.507059e+37
        %v6563 = vand.u32 %v6551, 2147483648
        %v6564 = vor.u32 1.1754944e-38, %v6563
        %v6565 = vsel %vm6562, %v6564, %v6560
        %v6566 = vmul.f32 %v6541, %v6565
        %v6567 = vmin.f32 %v6566, 1.0
        %v6568 = vmax.f32 %v6567, -1.0
        %v6569 = vmul.f32 %v6389, %v6389
        %v6570 = vmin.f32 16.0, %v6569
        %v6571 = vmul.f32 %v6570, 2.1237322e-06
        %v6572 = vadd.f32 %v6571, 0.00028619796
        %v6573 = vmul.f32 %v6570, %v6572
        %v6574 = vadd.f32 %v6573, 0.0036580483
        %v6575 = vmul.f32 %v6570, %v6574
        %v6576 = vadd.f32 %v6575, 0.05243302
        %v6577 = vmul.f32 %v6570, %v6576
        %v6578 = vadd.f32 %v6577, 0.18741608
        %v6579 = vmul.f32 %v6570, %v6578
        %v6580 = vadd.f32 %v6579, 1.1283791
        %v6581 = vmul.f32 %v6389, %v6580
        %v6582 = vmul.f32 %v6570, 3.8918573e-05
        %v6583 = vadd.f32 %v6582, 0.001143296
        %v6584 = vmul.f32 %v6570, %v6583
        %v6585 = vadd.f32 %v6584, 0.014752088
        %v6586 = vmul.f32 %v6570, %v6585
        %v6587 = vadd.f32 %v6586, 0.112945676
        %v6588 = vmul.f32 %v6570, %v6587
        %v6589 = vadd.f32 %v6588, 0.4994258
        %v6590 = vmul.f32 %v6570, %v6589
        %v6591 = vadd.f32 %v6590, 1.0
        %v6592 = vrcp.pop %v6591
        %v6593 = vmul.f32 %v6591, %v6592
        %v6594 = vsub.f32 1.0, %v6593
        %v6595 = vmul.f32 %v6592, %v6594
        %v6596 = vadd.f32 %v6592, %v6595
        %vm6597 = vweird.f32 %v6591
        %vm6598 = vweird.f32 %v6592
        %vm6599 = vmor %vm6597, %vm6598
        %v6600 = vsel %vm6599, %v6592, %v6596
        %v6601 = vand.u32 2147483647, %v6591
        %vm6602 = vcmp.eq.f32.partialorder %v6601, 8.507059e+37
        %v6603 = vand.u32 %v6591, 2147483648
        %v6604 = vor.u32 1.1754944e-38, %v6603
        %v6605 = vsel %vm6602, %v6604, %v6600
        %v6606 = vmul.f32 %v6581, %v6605
        %v6607 = vmin.f32 %v6606, 1.0
        %v6608 = vmax.f32 %v6607, -1.0
        %v6609 = vmul.f32 %v6390, %v6390
        %v6610 = vmin.f32 16.0, %v6609
        %v6611 = vmul.f32 %v6610, 2.1237322e-06
        %v6612 = vadd.f32 %v6611, 0.00028619796
        %v6613 = vmul.f32 %v6610, %v6612
        %v6614 = vadd.f32 %v6613, 0.0036580483
        %v6615 = vmul.f32 %v6610, %v6614
        %v6616 = vadd.f32 %v6615, 0.05243302
        %v6617 = vmul.f32 %v6610, %v6616
        %v6618 = vadd.f32 %v6617, 0.18741608
        %v6619 = vmul.f32 %v6610, %v6618
        %v6620 = vadd.f32 %v6619, 1.1283791
        %v6621 = vmul.f32 %v6390, %v6620
        %v6622 = vmul.f32 %v6610, 3.8918573e-05
        %v6623 = vadd.f32 %v6622, 0.001143296
        %v6624 = vmul.f32 %v6610, %v6623
        %v6625 = vadd.f32 %v6624, 0.014752088
        %v6626 = vmul.f32 %v6610, %v6625
        %v6627 = vadd.f32 %v6626, 0.112945676
        %v6628 = vmul.f32 %v6610, %v6627
        %v6629 = vadd.f32 %v6628, 0.4994258
        %v6630 = vmul.f32 %v6610, %v6629
        %v6631 = vadd.f32 %v6630, 1.0
        %v6632 = vrcp.pop %v6631
        %v6633 = vmul.f32 %v6631, %v6632
        %v6634 = vsub.f32 1.0, %v6633
        %v6635 = vmul.f32 %v6632, %v6634
        %v6636 = vadd.f32 %v6632, %v6635
        %vm6637 = vweird.f32 %v6631
        %vm6638 = vweird.f32 %v6632
        %vm6639 = vmor %vm6637, %vm6638
        %v6640 = vsel %vm6639, %v6632, %v6636
        %v6641 = vand.u32 2147483647, %v6631
        %vm6642 = vcmp.eq.f32.partialorder %v6641, 8.507059e+37
        %v6643 = vand.u32 %v6631, 2147483648
        %v6644 = vor.u32 1.1754944e-38, %v6643
        %v6645 = vsel %vm6642, %v6644, %v6640
        %v6646 = vmul.f32 %v6621, %v6645
        %v6647 = vmin.f32 %v6646, 1.0
        %v6648 = vmax.f32 %v6647, -1.0
        %v6649 = vmul.f32 %v6391, %v6391
        %v6650 = vmin.f32 16.0, %v6649
        %v6651 = vmul.f32 %v6650, 2.1237322e-06
        %v6652 = vadd.f32 %v6651, 0.00028619796
        %v6653 = vmul.f32 %v6650, %v6652
        %v6654 = vadd.f32 %v6653, 0.0036580483
        %v6655 = vmul.f32 %v6650, %v6654
        %v6656 = vadd.f32 %v6655, 0.05243302
        %v6657 = vmul.f32 %v6650, %v6656
        %v6658 = vadd.f32 %v6657, 0.18741608
        %v6659 = vmul.f32 %v6650, %v6658
        %v6660 = vadd.f32 %v6659, 1.1283791
        %v6661 = vmul.f32 %v6391, %v6660
        %v6662 = vmul.f32 %v6650, 3.8918573e-05
        %v6663 = vadd.f32 %v6662, 0.001143296
        %v6664 = vmul.f32 %v6650, %v6663
        %v6665 = vadd.f32 %v6664, 0.014752088
        %v6666 = vmul.f32 %v6650, %v6665
        %v6667 = vadd.f32 %v6666, 0.112945676
        %v6668 = vmul.f32 %v6650, %v6667
        %v6669 = vadd.f32 %v6668, 0.4994258
        %v6670 = vmul.f32 %v6650, %v6669
        %v6671 = vadd.f32 %v6670, 1.0
        %v6672 = vrcp.pop %v6671
        %v6673 = vmul.f32 %v6671, %v6672
        %v6674 = vsub.f32 1.0, %v6673
        %v6675 = vmul.f32 %v6672, %v6674
        %v6676 = vadd.f32 %v6672, %v6675
        %vm6677 = vweird.f32 %v6671
        %vm6678 = vweird.f32 %v6672
        %vm6679 = vmor %vm6677, %vm6678
        %v6680 = vsel %vm6679, %v6672, %v6676
        %v6681 = vand.u32 2147483647, %v6671
        %vm6682 = vcmp.eq.f32.partialorder %v6681, 8.507059e+37
        %v6683 = vand.u32 %v6671, 2147483648
        %v6684 = vor.u32 1.1754944e-38, %v6683
        %v6685 = vsel %vm6682, %v6684, %v6680
        %v6686 = vmul.f32 %v6661, %v6685
        %v6687 = vmin.f32 %v6686, 1.0
        %v6688 = vmax.f32 %v6687, -1.0
        %v6689 = vmul.f32 %v6392, %v6392
        %v6690 = vmin.f32 16.0, %v6689
        %v6691 = vmul.f32 %v6690, 2.1237322e-06
        %v6692 = vadd.f32 %v6691, 0.00028619796
        %v6693 = vmul.f32 %v6690, %v6692
        %v6694 = vadd.f32 %v6693, 0.0036580483
        %v6695 = vmul.f32 %v6690, %v6694
        %v6696 = vadd.f32 %v6695, 0.05243302
        %v6697 = vmul.f32 %v6690, %v6696
        %v6698 = vadd.f32 %v6697, 0.18741608
        %v6699 = vmul.f32 %v6690, %v6698
        %v6700 = vadd.f32 %v6699, 1.1283791
        %v6701 = vmul.f32 %v6392, %v6700
        %v6702 = vmul.f32 %v6690, 3.8918573e-05
        %v6703 = vadd.f32 %v6702, 0.001143296
        %v6704 = vmul.f32 %v6690, %v6703
        %v6705 = vadd.f32 %v6704, 0.014752088
        %v6706 = vmul.f32 %v6690, %v6705
        %v6707 = vadd.f32 %v6706, 0.112945676
        %v6708 = vmul.f32 %v6690, %v6707
        %v6709 = vadd.f32 %v6708, 0.4994258
        %v6710 = vmul.f32 %v6690, %v6709
        %v6711 = vadd.f32 %v6710, 1.0
        %v6712 = vrcp.pop %v6711
        %v6713 = vmul.f32 %v6711, %v6712
        %v6714 = vsub.f32 1.0, %v6713
        %v6715 = vmul.f32 %v6712, %v6714
        %v6716 = vadd.f32 %v6712, %v6715
        %vm6717 = vweird.f32 %v6711
        %vm6718 = vweird.f32 %v6712
        %vm6719 = vmor %vm6717, %vm6718
        %v6720 = vsel %vm6719, %v6712, %v6716
        %v6721 = vand.u32 2147483647, %v6711
        %vm6722 = vcmp.eq.f32.partialorder %v6721, 8.507059e+37
        %v6723 = vand.u32 %v6711, 2147483648
        %v6724 = vor.u32 1.1754944e-38, %v6723
        %v6725 = vsel %vm6722, %v6724, %v6720
        %v6726 = vmul.f32 %v6701, %v6725
        %v6727 = vmin.f32 %v6726, 1.0
        %v6728 = vmax.f32 %v6727, -1.0
        %v6729 = vmul.f32 %v6393, %v6393
        %v6730 = vmin.f32 16.0, %v6729
        %v6731 = vmul.f32 %v6730, 2.1237322e-06
        %v6732 = vadd.f32 %v6731, 0.00028619796
        %v6733 = vmul.f32 %v6730, %v6732
        %v6734 = vadd.f32 %v6733, 0.0036580483
        %v6735 = vmul.f32 %v6730, %v6734
        %v6736 = vadd.f32 %v6735, 0.05243302
        %v6737 = vmul.f32 %v6730, %v6736
        %v6738 = vadd.f32 %v6737, 0.18741608
        %v6739 = vmul.f32 %v6730, %v6738
        %v6740 = vadd.f32 %v6739, 1.1283791
        %v6741 = vmul.f32 %v6393, %v6740
        %v6742 = vmul.f32 %v6730, 3.8918573e-05
        %v6743 = vadd.f32 %v6742, 0.001143296
        %v6744 = vmul.f32 %v6730, %v6743
        %v6745 = vadd.f32 %v6744, 0.014752088
        %v6746 = vmul.f32 %v6730, %v6745
        %v6747 = vadd.f32 %v6746, 0.112945676
        %v6748 = vmul.f32 %v6730, %v6747
        %v6749 = vadd.f32 %v6748, 0.4994258
        %v6750 = vmul.f32 %v6730, %v6749
        %v6751 = vadd.f32 %v6750, 1.0
        %v6752 = vrcp.pop %v6751
        %v6753 = vmul.f32 %v6751, %v6752
        %v6754 = vsub.f32 1.0, %v6753
        %v6755 = vmul.f32 %v6752, %v6754
        %v6756 = vadd.f32 %v6752, %v6755
        %vm6757 = vweird.f32 %v6751
        %vm6758 = vweird.f32 %v6752
        %vm6759 = vmor %vm6757, %vm6758
        %v6760 = vsel %vm6759, %v6752, %v6756
        %v6761 = vand.u32 2147483647, %v6751
        %vm6762 = vcmp.eq.f32.partialorder %v6761, 8.507059e+37
        %v6763 = vand.u32 %v6751, 2147483648
        %v6764 = vor.u32 1.1754944e-38, %v6763
        %v6765 = vsel %vm6762, %v6764, %v6760
        %v6766 = vmul.f32 %v6741, %v6765
        %v6767 = vmin.f32 %v6766, 1.0
        %v6768 = vmax.f32 %v6767, -1.0
        %v6769 = vmul.f32 %v6394, %v6394
        %v6770 = vmin.f32 16.0, %v6769
        %v6771 = vmul.f32 %v6770, 2.1237322e-06
        %v6772 = vadd.f32 %v6771, 0.00028619796
        %v6773 = vmul.f32 %v6770, %v6772
        %v6774 = vadd.f32 %v6773, 0.0036580483
        %v6775 = vmul.f32 %v6770, %v6774
        %v6776 = vadd.f32 %v6775, 0.05243302
        %v6777 = vmul.f32 %v6770, %v6776
        %v6778 = vadd.f32 %v6777, 0.18741608
        %v6779 = vmul.f32 %v6770, %v6778
        %v6780 = vadd.f32 %v6779, 1.1283791
        %v6781 = vmul.f32 %v6394, %v6780
        %v6782 = vmul.f32 %v6770, 3.8918573e-05
        %v6783 = vadd.f32 %v6782, 0.001143296
        %v6784 = vmul.f32 %v6770, %v6783
        %v6785 = vadd.f32 %v6784, 0.014752088
        %v6786 = vmul.f32 %v6770, %v6785
        %v6787 = vadd.f32 %v6786, 0.112945676
        %v6788 = vmul.f32 %v6770, %v6787
        %v6789 = vadd.f32 %v6788, 0.4994258
        %v6790 = vmul.f32 %v6770, %v6789
        %v6791 = vadd.f32 %v6790, 1.0
        %v6792 = vrcp.pop %v6791
        %v6793 = vmul.f32 %v6791, %v6792
        %v6794 = vsub.f32 1.0, %v6793
        %v6795 = vmul.f32 %v6792, %v6794
        %v6796 = vadd.f32 %v6792, %v6795
        %vm6797 = vweird.f32 %v6791
        %vm6798 = vweird.f32 %v6792
        %vm6799 = vmor %vm6797, %vm6798
        %v6800 = vsel %vm6799, %v6792, %v6796
        %v6801 = vand.u32 2147483647, %v6791
        %vm6802 = vcmp.eq.f32.partialorder %v6801, 8.507059e+37
        %v6803 = vand.u32 %v6791, 2147483648
        %v6804 = vor.u32 1.1754944e-38, %v6803
        %v6805 = vsel %vm6802, %v6804, %v6800
        %v6806 = vmul.f32 %v6781, %v6805
        %v6807 = vmin.f32 %v6806, 1.0
        %v6808 = vmax.f32 %v6807, -1.0
        %v6809 = vmul.f32 %v6395, %v6395
        %v6810 = vmin.f32 16.0, %v6809
        %v6811 = vmul.f32 %v6810, 2.1237322e-06
        %v6812 = vadd.f32 %v6811, 0.00028619796
        %v6813 = vmul.f32 %v6810, %v6812
        %v6814 = vadd.f32 %v6813, 0.0036580483
        %v6815 = vmul.f32 %v6810, %v6814
        %v6816 = vadd.f32 %v6815, 0.05243302
        %v6817 = vmul.f32 %v6810, %v6816
        %v6818 = vadd.f32 %v6817, 0.18741608
        %v6819 = vmul.f32 %v6810, %v6818
        %v6820 = vadd.f32 %v6819, 1.1283791
        %v6821 = vmul.f32 %v6395, %v6820
        %v6822 = vmul.f32 %v6810, 3.8918573e-05
        %v6823 = vadd.f32 %v6822, 0.001143296
        %v6824 = vmul.f32 %v6810, %v6823
        %v6825 = vadd.f32 %v6824, 0.014752088
        %v6826 = vmul.f32 %v6810, %v6825
        %v6827 = vadd.f32 %v6826, 0.112945676
        %v6828 = vmul.f32 %v6810, %v6827
        %v6829 = vadd.f32 %v6828, 0.4994258
        %v6830 = vmul.f32 %v6810, %v6829
        %v6831 = vadd.f32 %v6830, 1.0
        %v6832 = vrcp.pop %v6831
        %v6833 = vmul.f32 %v6831, %v6832
        %v6834 = vsub.f32 1.0, %v6833
        %v6835 = vmul.f32 %v6832, %v6834
        %v6836 = vadd.f32 %v6832, %v6835
        %vm6837 = vweird.f32 %v6831
        %vm6838 = vweird.f32 %v6832
        %vm6839 = vmor %vm6837, %vm6838
        %v6840 = vsel %vm6839, %v6832, %v6836
        %v6841 = vand.u32 2147483647, %v6831
        %vm6842 = vcmp.eq.f32.partialorder %v6841, 8.507059e+37
        %v6843 = vand.u32 %v6831, 2147483648
        %v6844 = vor.u32 1.1754944e-38, %v6843
        %v6845 = vsel %vm6842, %v6844, %v6840
        %v6846 = vmul.f32 %v6821, %v6845
        %v6847 = vmin.f32 %v6846, 1.0
        %v6848 = vmax.f32 %v6847, -1.0
        %v6849 = vmul.f32 %v6396, %v6396
        %v6850 = vmin.f32 16.0, %v6849
        %v6851 = vmul.f32 %v6850, 2.1237322e-06
        %v6852 = vadd.f32 %v6851, 0.00028619796
        %v6853 = vmul.f32 %v6850, %v6852
        %v6854 = vadd.f32 %v6853, 0.0036580483
        %v6855 = vmul.f32 %v6850, %v6854
        %v6856 = vadd.f32 %v6855, 0.05243302
        %v6857 = vmul.f32 %v6850, %v6856
        %v6858 = vadd.f32 %v6857, 0.18741608
        %v6859 = vmul.f32 %v6850, %v6858
        %v6860 = vadd.f32 %v6859, 1.1283791
        %v6861 = vmul.f32 %v6396, %v6860
        %v6862 = vmul.f32 %v6850, 3.8918573e-05
        %v6863 = vadd.f32 %v6862, 0.001143296
        %v6864 = vmul.f32 %v6850, %v6863
        %v6865 = vadd.f32 %v6864, 0.014752088
        %v6866 = vmul.f32 %v6850, %v6865
        %v6867 = vadd.f32 %v6866, 0.112945676
        %v6868 = vmul.f32 %v6850, %v6867
        %v6869 = vadd.f32 %v6868, 0.4994258
        %v6870 = vmul.f32 %v6850, %v6869
        %v6871 = vadd.f32 %v6870, 1.0
        %v6872 = vrcp.pop %v6871
        %v6873 = vmul.f32 %v6871, %v6872
        %v6874 = vsub.f32 1.0, %v6873
        %v6875 = vmul.f32 %v6872, %v6874
        %v6876 = vadd.f32 %v6872, %v6875
        %vm6877 = vweird.f32 %v6871
        %vm6878 = vweird.f32 %v6872
        %vm6879 = vmor %vm6877, %vm6878
        %v6880 = vsel %vm6879, %v6872, %v6876
        %v6881 = vand.u32 2147483647, %v6871
        %vm6882 = vcmp.eq.f32.partialorder %v6881, 8.507059e+37
        %v6883 = vand.u32 %v6871, 2147483648
        %v6884 = vor.u32 1.1754944e-38, %v6883
        %v6885 = vsel %vm6882, %v6884, %v6880
        %v6886 = vmul.f32 %v6861, %v6885
        %v6887 = vmin.f32 %v6886, 1.0
        %v6888 = vmax.f32 %v6887, -1.0
        %v6889 = vmul.f32 %v6397, %v6397
        %v6890 = vmin.f32 16.0, %v6889
        %v6891 = vmul.f32 %v6890, 2.1237322e-06
        %v6892 = vadd.f32 %v6891, 0.00028619796
        %v6893 = vmul.f32 %v6890, %v6892
        %v6894 = vadd.f32 %v6893, 0.0036580483
        %v6895 = vmul.f32 %v6890, %v6894
        %v6896 = vadd.f32 %v6895, 0.05243302
        %v6897 = vmul.f32 %v6890, %v6896
        %v6898 = vadd.f32 %v6897, 0.18741608
        %v6899 = vmul.f32 %v6890, %v6898
        %v6900 = vadd.f32 %v6899, 1.1283791
        %v6901 = vmul.f32 %v6397, %v6900
        %v6902 = vmul.f32 %v6890, 3.8918573e-05
        %v6903 = vadd.f32 %v6902, 0.001143296
        %v6904 = vmul.f32 %v6890, %v6903
        %v6905 = vadd.f32 %v6904, 0.014752088
        %v6906 = vmul.f32 %v6890, %v6905
        %v6907 = vadd.f32 %v6906, 0.112945676
        %v6908 = vmul.f32 %v6890, %v6907
        %v6909 = vadd.f32 %v6908, 0.4994258
        %v6910 = vmul.f32 %v6890, %v6909
        %v6911 = vadd.f32 %v6910, 1.0
        %v6912 = vrcp.pop %v6911
        %v6913 = vmul.f32 %v6911, %v6912
        %v6914 = vsub.f32 1.0, %v6913
        %v6915 = vmul.f32 %v6912, %v6914
        %v6916 = vadd.f32 %v6912, %v6915
        %vm6917 = vweird.f32 %v6911
        %vm6918 = vweird.f32 %v6912
        %vm6919 = vmor %vm6917, %vm6918
        %v6920 = vsel %vm6919, %v6912, %v6916
        %v6921 = vand.u32 2147483647, %v6911
        %vm6922 = vcmp.eq.f32.partialorder %v6921, 8.507059e+37
        %v6923 = vand.u32 %v6911, 2147483648
        %v6924 = vor.u32 1.1754944e-38, %v6923
        %v6925 = vsel %vm6922, %v6924, %v6920
        %v6926 = vmul.f32 %v6901, %v6925
        %v6927 = vmin.f32 %v6926, 1.0
        %v6928 = vmax.f32 %v6927, -1.0
        %v6929 = vmul.f32 %v6398, %v6398
        %v6930 = vmin.f32 16.0, %v6929
        %v6931 = vmul.f32 %v6930, 2.1237322e-06
        %v6932 = vadd.f32 %v6931, 0.00028619796
        %v6933 = vmul.f32 %v6930, %v6932
        %v6934 = vadd.f32 %v6933, 0.0036580483
        %v6935 = vmul.f32 %v6930, %v6934
        %v6936 = vadd.f32 %v6935, 0.05243302
        %v6937 = vmul.f32 %v6930, %v6936
        %v6938 = vadd.f32 %v6937, 0.18741608
        %v6939 = vmul.f32 %v6930, %v6938
        %v6940 = vadd.f32 %v6939, 1.1283791
        %v6941 = vmul.f32 %v6398, %v6940
        %v6942 = vmul.f32 %v6930, 3.8918573e-05
        %v6943 = vadd.f32 %v6942, 0.001143296
        %v6944 = vmul.f32 %v6930, %v6943
        %v6945 = vadd.f32 %v6944, 0.014752088
        %v6946 = vmul.f32 %v6930, %v6945
        %v6947 = vadd.f32 %v6946, 0.112945676
        %v6948 = vmul.f32 %v6930, %v6947
        %v6949 = vadd.f32 %v6948, 0.4994258
        %v6950 = vmul.f32 %v6930, %v6949
        %v6951 = vadd.f32 %v6950, 1.0
        %v6952 = vrcp.pop %v6951
        %v6953 = vmul.f32 %v6951, %v6952
        %v6954 = vsub.f32 1.0, %v6953
        %v6955 = vmul.f32 %v6952, %v6954
        %v6956 = vadd.f32 %v6952, %v6955
        %vm6957 = vweird.f32 %v6951
        %vm6958 = vweird.f32 %v6952
        %vm6959 = vmor %vm6957, %vm6958
        %v6960 = vsel %vm6959, %v6952, %v6956
        %v6961 = vand.u32 2147483647, %v6951
        %vm6962 = vcmp.eq.f32.partialorder %v6961, 8.507059e+37
        %v6963 = vand.u32 %v6951, 2147483648
        %v6964 = vor.u32 1.1754944e-38, %v6963
        %v6965 = vsel %vm6962, %v6964, %v6960
        %v6966 = vmul.f32 %v6941, %v6965
        %v6967 = vmin.f32 %v6966, 1.0
        %v6968 = vmax.f32 %v6967, -1.0
        %v6969 = vmul.f32 %v6399, %v6399
        %v6970 = vmin.f32 16.0, %v6969
        %v6971 = vmul.f32 %v6970, 2.1237322e-06
        %v6972 = vadd.f32 %v6971, 0.00028619796
        %v6973 = vmul.f32 %v6970, %v6972
        %v6974 = vadd.f32 %v6973, 0.0036580483
        %v6975 = vmul.f32 %v6970, %v6974
        %v6976 = vadd.f32 %v6975, 0.05243302
        %v6977 = vmul.f32 %v6970, %v6976
        %v6978 = vadd.f32 %v6977, 0.18741608
        %v6979 = vmul.f32 %v6970, %v6978
        %v6980 = vadd.f32 %v6979, 1.1283791
        %v6981 = vmul.f32 %v6399, %v6980
        %v6982 = vmul.f32 %v6970, 3.8918573e-05
        %v6983 = vadd.f32 %v6982, 0.001143296
        %v6984 = vmul.f32 %v6970, %v6983
        %v6985 = vadd.f32 %v6984, 0.014752088
        %v6986 = vmul.f32 %v6970, %v6985
        %v6987 = vadd.f32 %v6986, 0.112945676
        %v6988 = vmul.f32 %v6970, %v6987
        %v6989 = vadd.f32 %v6988, 0.4994258
        %v6990 = vmul.f32 %v6970, %v6989
        %v6991 = vadd.f32 %v6990, 1.0
        %v6992 = vrcp.pop %v6991
        %v6993 = vmul.f32 %v6991, %v6992
        %v6994 = vsub.f32 1.0, %v6993
        %v6995 = vmul.f32 %v6992, %v6994
        %v6996 = vadd.f32 %v6992, %v6995
        %vm6997 = vweird.f32 %v6991
        %vm6998 = vweird.f32 %v6992
        %vm6999 = vmor %vm6997, %vm6998
        %v7000 = vsel %vm6999, %v6992, %v6996
        %v7001 = vand.u32 2147483647, %v6991
        %vm7002 = vcmp.eq.f32.partialorder %v7001, 8.507059e+37
        %v7003 = vand.u32 %v6991, 2147483648
        %v7004 = vor.u32 1.1754944e-38, %v7003
        %v7005 = vsel %vm7002, %v7004, %v7000
        %v7006 = vmul.f32 %v6981, %v7005
        %v7007 = vmin.f32 %v7006, 1.0
        %v7008 = vmax.f32 %v7007, -1.0
        %v7009 = vmul.f32 %v6400, %v6400
        %v7010 = vmin.f32 16.0, %v7009
        %v7011 = vmul.f32 %v7010, 2.1237322e-06
        %v7012 = vadd.f32 %v7011, 0.00028619796
        %v7013 = vmul.f32 %v7010, %v7012
        %v7014 = vadd.f32 %v7013, 0.0036580483
        %v7015 = vmul.f32 %v7010, %v7014
        %v7016 = vadd.f32 %v7015, 0.05243302
        %v7017 = vmul.f32 %v7010, %v7016
        %v7018 = vadd.f32 %v7017, 0.18741608
        %v7019 = vmul.f32 %v7010, %v7018
        %v7020 = vadd.f32 %v7019, 1.1283791
        %v7021 = vmul.f32 %v6400, %v7020
        %v7022 = vmul.f32 %v7010, 3.8918573e-05
        %v7023 = vadd.f32 %v7022, 0.001143296
        %v7024 = vmul.f32 %v7010, %v7023
        %v7025 = vadd.f32 %v7024, 0.014752088
        %v7026 = vmul.f32 %v7010, %v7025
        %v7027 = vadd.f32 %v7026, 0.112945676
        %v7028 = vmul.f32 %v7010, %v7027
        %v7029 = vadd.f32 %v7028, 0.4994258
        %v7030 = vmul.f32 %v7010, %v7029
        %v7031 = vadd.f32 %v7030, 1.0
        %v7032 = vrcp.pop %v7031
        %v7033 = vmul.f32 %v7031, %v7032
        %v7034 = vsub.f32 1.0, %v7033
        %v7035 = vmul.f32 %v7032, %v7034
        %v7036 = vadd.f32 %v7032, %v7035
        %vm7037 = vweird.f32 %v7031
        %vm7038 = vweird.f32 %v7032
        %vm7039 = vmor %vm7037, %vm7038
        %v7040 = vsel %vm7039, %v7032, %v7036
        %v7041 = vand.u32 2147483647, %v7031
        %vm7042 = vcmp.eq.f32.partialorder %v7041, 8.507059e+37
        %v7043 = vand.u32 %v7031, 2147483648
        %v7044 = vor.u32 1.1754944e-38, %v7043
        %v7045 = vsel %vm7042, %v7044, %v7040
        %v7046 = vmul.f32 %v7021, %v7045
        %v7047 = vmin.f32 %v7046, 1.0
        %v7048 = vmax.f32 %v7047, -1.0
        %v7049 = vmul.f32 %v6401, %v6401
        %v7050 = vmin.f32 16.0, %v7049
        %v7051 = vmul.f32 %v7050, 2.1237322e-06
        %v7052 = vadd.f32 %v7051, 0.00028619796
        %v7053 = vmul.f32 %v7050, %v7052
        %v7054 = vadd.f32 %v7053, 0.0036580483
        %v7055 = vmul.f32 %v7050, %v7054
        %v7056 = vadd.f32 %v7055, 0.05243302
        %v7057 = vmul.f32 %v7050, %v7056
        %v7058 = vadd.f32 %v7057, 0.18741608
        %v7059 = vmul.f32 %v7050, %v7058
        %v7060 = vadd.f32 %v7059, 1.1283791
        %v7061 = vmul.f32 %v6401, %v7060
        %v7062 = vmul.f32 %v7050, 3.8918573e-05
        %v7063 = vadd.f32 %v7062, 0.001143296
        %v7064 = vmul.f32 %v7050, %v7063
        %v7065 = vadd.f32 %v7064, 0.014752088
        %v7066 = vmul.f32 %v7050, %v7065
        %v7067 = vadd.f32 %v7066, 0.112945676
        %v7068 = vmul.f32 %v7050, %v7067
        %v7069 = vadd.f32 %v7068, 0.4994258
        %v7070 = vmul.f32 %v7050, %v7069
        %v7071 = vadd.f32 %v7070, 1.0
        %v7072 = vrcp.pop %v7071
        %v7073 = vmul.f32 %v7071, %v7072
        %v7074 = vsub.f32 1.0, %v7073
        %v7075 = vmul.f32 %v7072, %v7074
        %v7076 = vadd.f32 %v7072, %v7075
        %vm7077 = vweird.f32 %v7071
        %vm7078 = vweird.f32 %v7072
        %vm7079 = vmor %vm7077, %vm7078
        %v7080 = vsel %vm7079, %v7072, %v7076
        %v7081 = vand.u32 2147483647, %v7071
        %vm7082 = vcmp.eq.f32.partialorder %v7081, 8.507059e+37
        %v7083 = vand.u32 %v7071, 2147483648
        %v7084 = vor.u32 1.1754944e-38, %v7083
        %v7085 = vsel %vm7082, %v7084, %v7080
        %v7086 = vmul.f32 %v7061, %v7085
        %v7087 = vmin.f32 %v7086, 1.0
        %v7088 = vmax.f32 %v7087, -1.0
        %v7089 = vmul.f32 %v6402, %v6402
        %v7090 = vmin.f32 16.0, %v7089
        %v7091 = vmul.f32 %v7090, 2.1237322e-06
        %v7092 = vadd.f32 %v7091, 0.00028619796
        %v7093 = vmul.f32 %v7090, %v7092
        %v7094 = vadd.f32 %v7093, 0.0036580483
        %v7095 = vmul.f32 %v7090, %v7094
        %v7096 = vadd.f32 %v7095, 0.05243302
        %v7097 = vmul.f32 %v7090, %v7096
        %v7098 = vadd.f32 %v7097, 0.18741608
        %v7099 = vmul.f32 %v7090, %v7098
        %v7100 = vadd.f32 %v7099, 1.1283791
        %v7101 = vmul.f32 %v6402, %v7100
        %v7102 = vmul.f32 %v7090, 3.8918573e-05
        %v7103 = vadd.f32 %v7102, 0.001143296
        %v7104 = vmul.f32 %v7090, %v7103
        %v7105 = vadd.f32 %v7104, 0.014752088
        %v7106 = vmul.f32 %v7090, %v7105
        %v7107 = vadd.f32 %v7106, 0.112945676
        %v7108 = vmul.f32 %v7090, %v7107
        %v7109 = vadd.f32 %v7108, 0.4994258
        %v7110 = vmul.f32 %v7090, %v7109
        %v7111 = vadd.f32 %v7110, 1.0
        %v7112 = vrcp.pop %v7111
        %v7113 = vmul.f32 %v7111, %v7112
        %v7114 = vsub.f32 1.0, %v7113
        %v7115 = vmul.f32 %v7112, %v7114
        %v7116 = vadd.f32 %v7112, %v7115
        %vm7117 = vweird.f32 %v7111
        %vm7118 = vweird.f32 %v7112
        %vm7119 = vmor %vm7117, %vm7118
        %v7120 = vsel %vm7119, %v7112, %v7116
        %v7121 = vand.u32 2147483647, %v7111
        %vm7122 = vcmp.eq.f32.partialorder %v7121, 8.507059e+37
        %v7123 = vand.u32 %v7111, 2147483648
        %v7124 = vor.u32 1.1754944e-38, %v7123
        %v7125 = vsel %vm7122, %v7124, %v7120
        %v7126 = vmul.f32 %v7101, %v7125
        %v7127 = vmin.f32 %v7126, 1.0
        %v7128 = vmax.f32 %v7127, -1.0
        %v7129 = vmul.f32 %v6403, %v6403
        %v7130 = vmin.f32 16.0, %v7129
        %v7131 = vmul.f32 %v7130, 2.1237322e-06
        %v7132 = vadd.f32 %v7131, 0.00028619796
        %v7133 = vmul.f32 %v7130, %v7132
        %v7134 = vadd.f32 %v7133, 0.0036580483
        %v7135 = vmul.f32 %v7130, %v7134
        %v7136 = vadd.f32 %v7135, 0.05243302
        %v7137 = vmul.f32 %v7130, %v7136
        %v7138 = vadd.f32 %v7137, 0.18741608
        %v7139 = vmul.f32 %v7130, %v7138
        %v7140 = vadd.f32 %v7139, 1.1283791
        %v7141 = vmul.f32 %v6403, %v7140
        %v7142 = vmul.f32 %v7130, 3.8918573e-05
        %v7143 = vadd.f32 %v7142, 0.001143296
        %v7144 = vmul.f32 %v7130, %v7143
        %v7145 = vadd.f32 %v7144, 0.014752088
        %v7146 = vmul.f32 %v7130, %v7145
        %v7147 = vadd.f32 %v7146, 0.112945676
        %v7148 = vmul.f32 %v7130, %v7147
        %v7149 = vadd.f32 %v7148, 0.4994258
        %v7150 = vmul.f32 %v7130, %v7149
        %v7151 = vadd.f32 %v7150, 1.0
        %v7152 = vrcp.pop %v7151
        %v7153 = vmul.f32 %v7151, %v7152
        %v7154 = vsub.f32 1.0, %v7153
        %v7155 = vmul.f32 %v7152, %v7154
        %v7156 = vadd.f32 %v7152, %v7155
        %vm7157 = vweird.f32 %v7151
        %vm7158 = vweird.f32 %v7152
        %vm7159 = vmor %vm7157, %vm7158
        %v7160 = vsel %vm7159, %v7152, %v7156
        %v7161 = vand.u32 2147483647, %v7151
        %vm7162 = vcmp.eq.f32.partialorder %v7161, 8.507059e+37
        %v7163 = vand.u32 %v7151, 2147483648
        %v7164 = vor.u32 1.1754944e-38, %v7163
        %v7165 = vsel %vm7162, %v7164, %v7160
        %v7166 = vmul.f32 %v7141, %v7165
        %v7167 = vmin.f32 %v7166, 1.0
        %v7168 = vmax.f32 %v7167, -1.0
        %v7169 = vmul.f32 %v6404, %v6404
        %v7170 = vmin.f32 16.0, %v7169
        %v7171 = vmul.f32 %v7170, 2.1237322e-06
        %v7172 = vadd.f32 %v7171, 0.00028619796
        %v7173 = vmul.f32 %v7170, %v7172
        %v7174 = vadd.f32 %v7173, 0.0036580483
        %v7175 = vmul.f32 %v7170, %v7174
        %v7176 = vadd.f32 %v7175, 0.05243302
        %v7177 = vmul.f32 %v7170, %v7176
        %v7178 = vadd.f32 %v7177, 0.18741608
        %v7179 = vmul.f32 %v7170, %v7178
        %v7180 = vadd.f32 %v7179, 1.1283791
        %v7181 = vmul.f32 %v6404, %v7180
        %v7182 = vmul.f32 %v7170, 3.8918573e-05
        %v7183 = vadd.f32 %v7182, 0.001143296
        %v7184 = vmul.f32 %v7170, %v7183
        %v7185 = vadd.f32 %v7184, 0.014752088
        %v7186 = vmul.f32 %v7170, %v7185
        %v7187 = vadd.f32 %v7186, 0.112945676
        %v7188 = vmul.f32 %v7170, %v7187
        %v7189 = vadd.f32 %v7188, 0.4994258
        %v7190 = vmul.f32 %v7170, %v7189
        %v7191 = vadd.f32 %v7190, 1.0
        %v7192 = vrcp.pop %v7191
        %v7193 = vmul.f32 %v7191, %v7192
        %v7194 = vsub.f32 1.0, %v7193
        %v7195 = vmul.f32 %v7192, %v7194
        %v7196 = vadd.f32 %v7192, %v7195
        %vm7197 = vweird.f32 %v7191
        %vm7198 = vweird.f32 %v7192
        %vm7199 = vmor %vm7197, %vm7198
        %v7200 = vsel %vm7199, %v7192, %v7196
        %v7201 = vand.u32 2147483647, %v7191
        %vm7202 = vcmp.eq.f32.partialorder %v7201, 8.507059e+37
        %v7203 = vand.u32 %v7191, 2147483648
        %v7204 = vor.u32 1.1754944e-38, %v7203
        %v7205 = vsel %vm7202, %v7204, %v7200
        %v7206 = vmul.f32 %v7181, %v7205
        %v7207 = vmin.f32 %v7206, 1.0
        %v7208 = vmax.f32 %v7207, -1.0
        %v7209 = vmul.f32 %v6405, %v6405
        %v7210 = vmin.f32 16.0, %v7209
        %v7211 = vmul.f32 %v7210, 2.1237322e-06
        %v7212 = vadd.f32 %v7211, 0.00028619796
        %v7213 = vmul.f32 %v7210, %v7212
        %v7214 = vadd.f32 %v7213, 0.0036580483
        %v7215 = vmul.f32 %v7210, %v7214
        %v7216 = vadd.f32 %v7215, 0.05243302
        %v7217 = vmul.f32 %v7210, %v7216
        %v7218 = vadd.f32 %v7217, 0.18741608
        %v7219 = vmul.f32 %v7210, %v7218
        %v7220 = vadd.f32 %v7219, 1.1283791
        %v7221 = vmul.f32 %v6405, %v7220
        %v7222 = vmul.f32 %v7210, 3.8918573e-05
        %v7223 = vadd.f32 %v7222, 0.001143296
        %v7224 = vmul.f32 %v7210, %v7223
        %v7225 = vadd.f32 %v7224, 0.014752088
        %v7226 = vmul.f32 %v7210, %v7225
        %v7227 = vadd.f32 %v7226, 0.112945676
        %v7228 = vmul.f32 %v7210, %v7227
        %v7229 = vadd.f32 %v7228, 0.4994258
        %v7230 = vmul.f32 %v7210, %v7229
        %v7231 = vadd.f32 %v7230, 1.0
        %v7232 = vrcp.pop %v7231
        %v7233 = vmul.f32 %v7231, %v7232
        %v7234 = vsub.f32 1.0, %v7233
        %v7235 = vmul.f32 %v7232, %v7234
        %v7236 = vadd.f32 %v7232, %v7235
        %vm7237 = vweird.f32 %v7231
        %vm7238 = vweird.f32 %v7232
        %vm7239 = vmor %vm7237, %vm7238
        %v7240 = vsel %vm7239, %v7232, %v7236
        %v7241 = vand.u32 2147483647, %v7231
        %vm7242 = vcmp.eq.f32.partialorder %v7241, 8.507059e+37
        %v7243 = vand.u32 %v7231, 2147483648
        %v7244 = vor.u32 1.1754944e-38, %v7243
        %v7245 = vsel %vm7242, %v7244, %v7240
        %v7246 = vmul.f32 %v7221, %v7245
        %v7247 = vmin.f32 %v7246, 1.0
        %v7248 = vmax.f32 %v7247, -1.0
        %v7249 = vmul.f32 %v6406, %v6406
        %v7250 = vmin.f32 16.0, %v7249
        %v7251 = vmul.f32 %v7250, 2.1237322e-06
        %v7252 = vadd.f32 %v7251, 0.00028619796
        %v7253 = vmul.f32 %v7250, %v7252
        %v7254 = vadd.f32 %v7253, 0.0036580483
        %v7255 = vmul.f32 %v7250, %v7254
        %v7256 = vadd.f32 %v7255, 0.05243302
        %v7257 = vmul.f32 %v7250, %v7256
        %v7258 = vadd.f32 %v7257, 0.18741608
        %v7259 = vmul.f32 %v7250, %v7258
        %v7260 = vadd.f32 %v7259, 1.1283791
        %v7261 = vmul.f32 %v6406, %v7260
        %v7262 = vmul.f32 %v7250, 3.8918573e-05
        %v7263 = vadd.f32 %v7262, 0.001143296
        %v7264 = vmul.f32 %v7250, %v7263
        %v7265 = vadd.f32 %v7264, 0.014752088
        %v7266 = vmul.f32 %v7250, %v7265
        %v7267 = vadd.f32 %v7266, 0.112945676
        %v7268 = vmul.f32 %v7250, %v7267
        %v7269 = vadd.f32 %v7268, 0.4994258
        %v7270 = vmul.f32 %v7250, %v7269
        %v7271 = vadd.f32 %v7270, 1.0
        %v7272 = vrcp.pop %v7271
        %v7273 = vmul.f32 %v7271, %v7272
        %v7274 = vsub.f32 1.0, %v7273
        %v7275 = vmul.f32 %v7272, %v7274
        %v7276 = vadd.f32 %v7272, %v7275
        %vm7277 = vweird.f32 %v7271
        %vm7278 = vweird.f32 %v7272
        %vm7279 = vmor %vm7277, %vm7278
        %v7280 = vsel %vm7279, %v7272, %v7276
        %v7281 = vand.u32 2147483647, %v7271
        %vm7282 = vcmp.eq.f32.partialorder %v7281, 8.507059e+37
        %v7283 = vand.u32 %v7271, 2147483648
        %v7284 = vor.u32 1.1754944e-38, %v7283
        %v7285 = vsel %vm7282, %v7284, %v7280
        %v7286 = vmul.f32 %v7261, %v7285
        %v7287 = vmin.f32 %v7286, 1.0
        %v7288 = vmax.f32 %v7287, -1.0
        %v7289 = vmul.f32 %v6407, %v6407
        %v7290 = vmin.f32 16.0, %v7289
        %v7291 = vmul.f32 %v7290, 2.1237322e-06
        %v7292 = vadd.f32 %v7291, 0.00028619796
        %v7293 = vmul.f32 %v7290, %v7292
        %v7294 = vadd.f32 %v7293, 0.0036580483
        %v7295 = vmul.f32 %v7290, %v7294
        %v7296 = vadd.f32 %v7295, 0.05243302
        %v7297 = vmul.f32 %v7290, %v7296
        %v7298 = vadd.f32 %v7297, 0.18741608
        %v7299 = vmul.f32 %v7290, %v7298
        %v7300 = vadd.f32 %v7299, 1.1283791
        %v7301 = vmul.f32 %v6407, %v7300
        %v7302 = vmul.f32 %v7290, 3.8918573e-05
        %v7303 = vadd.f32 %v7302, 0.001143296
        %v7304 = vmul.f32 %v7290, %v7303
        %v7305 = vadd.f32 %v7304, 0.014752088
        %v7306 = vmul.f32 %v7290, %v7305
        %v7307 = vadd.f32 %v7306, 0.112945676
        %v7308 = vmul.f32 %v7290, %v7307
        %v7309 = vadd.f32 %v7308, 0.4994258
        %v7310 = vmul.f32 %v7290, %v7309
        %v7311 = vadd.f32 %v7310, 1.0
        %v7312 = vrcp.pop %v7311
        %v7313 = vmul.f32 %v7311, %v7312
        %v7314 = vsub.f32 1.0, %v7313
        %v7315 = vmul.f32 %v7312, %v7314
        %v7316 = vadd.f32 %v7312, %v7315
        %vm7317 = vweird.f32 %v7311
        %vm7318 = vweird.f32 %v7312
        %vm7319 = vmor %vm7317, %vm7318
        %v7320 = vsel %vm7319, %v7312, %v7316
        %v7321 = vand.u32 2147483647, %v7311
        %vm7322 = vcmp.eq.f32.partialorder %v7321, 8.507059e+37
        %v7323 = vand.u32 %v7311, 2147483648
        %v7324 = vor.u32 1.1754944e-38, %v7323
        %v7325 = vsel %vm7322, %v7324, %v7320
        %v7326 = vmul.f32 %v7301, %v7325
        %v7327 = vmin.f32 %v7326, 1.0
        %v7328 = vmax.f32 %v7327, -1.0
        %v7329 = vmul.f32 %v6408, %v6408
        %v7330 = vmin.f32 16.0, %v7329
        %v7331 = vmul.f32 %v7330, 2.1237322e-06
        %v7332 = vadd.f32 %v7331, 0.00028619796
        %v7333 = vmul.f32 %v7330, %v7332
        %v7334 = vadd.f32 %v7333, 0.0036580483
        %v7335 = vmul.f32 %v7330, %v7334
        %v7336 = vadd.f32 %v7335, 0.05243302
        %v7337 = vmul.f32 %v7330, %v7336
        %v7338 = vadd.f32 %v7337, 0.18741608
        %v7339 = vmul.f32 %v7330, %v7338
        %v7340 = vadd.f32 %v7339, 1.1283791
        %v7341 = vmul.f32 %v6408, %v7340
        %v7342 = vmul.f32 %v7330, 3.8918573e-05
        %v7343 = vadd.f32 %v7342, 0.001143296
        %v7344 = vmul.f32 %v7330, %v7343
        %v7345 = vadd.f32 %v7344, 0.014752088
        %v7346 = vmul.f32 %v7330, %v7345
        %v7347 = vadd.f32 %v7346, 0.112945676
        %v7348 = vmul.f32 %v7330, %v7347
        %v7349 = vadd.f32 %v7348, 0.4994258
        %v7350 = vmul.f32 %v7330, %v7349
        %v7351 = vadd.f32 %v7350, 1.0
        %v7352 = vrcp.pop %v7351
        %v7353 = vmul.f32 %v7351, %v7352
        %v7354 = vsub.f32 1.0, %v7353
        %v7355 = vmul.f32 %v7352, %v7354
        %v7356 = vadd.f32 %v7352, %v7355
        %vm7357 = vweird.f32 %v7351
        %vm7358 = vweird.f32 %v7352
        %vm7359 = vmor %vm7357, %vm7358
        %v7360 = vsel %vm7359, %v7352, %v7356
        %v7361 = vand.u32 2147483647, %v7351
        %vm7362 = vcmp.eq.f32.partialorder %v7361, 8.507059e+37
        %v7363 = vand.u32 %v7351, 2147483648
        %v7364 = vor.u32 1.1754944e-38, %v7363
        %v7365 = vsel %vm7362, %v7364, %v7360
        %v7366 = vmul.f32 %v7341, %v7365
        %v7367 = vmin.f32 %v7366, 1.0
        %v7368 = vmax.f32 %v7367, -1.0
        %v7369 = vadd.f32 %v6448, 1.0
        %v7370 = vadd.f32 %v6488, 1.0
        %v7371 = vadd.f32 %v6528, 1.0
        %v7372 = vadd.f32 %v6568, 1.0
        %v7373 = vadd.f32 %v6608, 1.0
        %v7374 = vadd.f32 %v6648, 1.0
        %v7375 = vadd.f32 %v6688, 1.0
        %v7376 = vadd.f32 %v6728, 1.0
        %v7377 = vadd.f32 %v6768, 1.0
        %v7378 = vadd.f32 %v6808, 1.0
        %v7379 = vadd.f32 %v6848, 1.0
        %v7380 = vadd.f32 %v6888, 1.0
        %v7381 = vadd.f32 %v6928, 1.0
        %v7382 = vadd.f32 %v6968, 1.0
        %v7383 = vadd.f32 %v7008, 1.0
        %v7384 = vadd.f32 %v7048, 1.0
        %v7385 = vadd.f32 %v7088, 1.0
        %v7386 = vadd.f32 %v7128, 1.0
        %v7387 = vadd.f32 %v7168, 1.0
        %v7388 = vadd.f32 %v7208, 1.0
        %v7389 = vadd.f32 %v7248, 1.0
        %v7390 = vadd.f32 %v7288, 1.0
        %v7391 = vadd.f32 %v7328, 1.0
        %v7392 = vadd.f32 %v7368, 1.0
        %v7393 = vmul.f32 %v6361, %v7369
        %v7394 = vmul.f32 %v6362, %v7370
        %v7395 = vmul.f32 %v6363, %v7371
        %v7396 = vmul.f32 %v6364, %v7372
        %v7397 = vmul.f32 %v6365, %v7373
        %v7398 = vmul.f32 %v6366, %v7374
        %v7399 = vmul.f32 %v6367, %v7375
        %v7400 = vmul.f32 %v6368, %v7376
        %v7401 = vmul.f32 %v6369, %v7377
        %v7402 = vmul.f32 %v6370, %v7378
        %v7403 = vmul.f32 %v6371, %v7379
        %v7404 = vmul.f32 %v6372, %v7380
        %v7405 = vmul.f32 %v6373, %v7381
        %v7406 = vmul.f32 %v6374, %v7382
        %v7407 = vmul.f32 %v6375, %v7383
        %v7408 = vmul.f32 %v6376, %v7384
        %v7409 = vmul.f32 %v6377, %v7385
        %v7410 = vmul.f32 %v6378, %v7386
        %v7411 = vmul.f32 %v6379, %v7387
        %v7412 = vmul.f32 %v6380, %v7388
        %v7413 = vmul.f32 %v6381, %v7389
        %v7414 = vmul.f32 %v6382, %v7390
        %v7415 = vmul.f32 %v6383, %v7391
        %v7416 = vmul.f32 %v6384, %v7392
        %v7417 = vpack.c.bf16 %v7405, %v7393
        %v7418 = vpack.c.bf16 %v7406, %v7394
        %v7419 = vpack.c.bf16 %v7407, %v7395
        %v7420 = vpack.c.bf16 %v7408, %v7396
        %v7421 = vpack.c.bf16 %v7409, %v7397
        %v7422 = vpack.c.bf16 %v7410, %v7398
        %v7423 = vpack.c.bf16 %v7411, %v7399
        %v7424 = vpack.c.bf16 %v7412, %v7400
        %v7425 = vpack.c.bf16 %v7413, %v7401
        %v7426 = vpack.c.bf16 %v7414, %v7402
        %v7427 = vpack.c.bf16 %v7415, %v7403
        %v7428 = vpack.c.bf16 %v7416, %v7404
        %v7429 = vld [vmem:[%s888] sm:$0xff]
        %v7430 = vld [vmem:[%s888 + $0x8] sm:$0xf]
        %v7431 = vld [vmem:[%s888 + $0xc] sm:$0xff]
        %v7432 = vld [vmem:[%s888 + $0x14] sm:$0xf]
        %v7433 = vld [vmem:[%s888 + $0x18] sm:$0xff]
        %v7434 = vld [vmem:[%s888 + $0x20] sm:$0xf]
        %v7435 = vld [vmem:[%s888 + $0x24] sm:$0xff]
        %v7436 = vld [vmem:[%s888 + $0x2c] sm:$0xf]
        %v7437 = vld [vmem:[%s888 + $0x30] sm:$0xff]
        %v7438 = vld [vmem:[%s888 + $0x38] sm:$0xf]
        %v7439 = vld [vmem:[%s888 + $0x3c] sm:$0xff]
        %v7440 = vld [vmem:[%s888 + $0x44] sm:$0xf]
        %v7441 = vld [vmem:[%s888 + $0x48] sm:$0xff]
        %v7442 = vld [vmem:[%s888 + $0x50] sm:$0xf]
        %v7443 = vld [vmem:[%s888 + $0x54] sm:$0xff]
        %v7444 = vld [vmem:[%s888 + $0x5c] sm:$0xf]
        %v7445 = vld [vmem:[%s888 + $0x60] sm:$0xff]
        %v7446 = vld [vmem:[%s888 + $0x68] sm:$0xf]
        %v7447 = vld [vmem:[%s888 + $0x6c] sm:$0xff]
        %v7448 = vld [vmem:[%s888 + $0x74] sm:$0xf]
        %v7449 = vld [vmem:[%s888 + $0x78] sm:$0xff]
        %v7450 = vld [vmem:[%s888 + $0x80] sm:$0xf]
        %v7451 = vld [vmem:[%s888 + $0x84] sm:$0xff]
        %v7452 = vld [vmem:[%s888 + $0x8c] sm:$0xf]
        %v7453 = vld [vmem:[%s888 + $0x90] sm:$0xff]
        %v7454 = vld [vmem:[%s888 + $0x98] sm:$0xf]
        %v7455 = vld [vmem:[%s888 + $0x9c] sm:$0xff]
        %v7456 = vld [vmem:[%s888 + $0xa4] sm:$0xf]
        %v7457 = vld [vmem:[%s888 + $0xa8] sm:$0xff]
        %v7458 = vld [vmem:[%s888 + $0xb0] sm:$0xf]
        %v7459 = vld [vmem:[%s888 + $0xb4] sm:$0xff]
        %v7460 = vld [vmem:[%s888 + $0xbc] sm:$0xf]
        %v7461 = vld [vmem:[%s888 + $0xc0] sm:$0xff]
        %v7462 = vld [vmem:[%s888 + $0xc8] sm:$0xf]
        %v7463 = vld [vmem:[%s888 + $0xcc] sm:$0xff]
        %v7464 = vld [vmem:[%s888 + $0xd4] sm:$0xf]
        %v7465 = vld [vmem:[%s888 + $0xd8] sm:$0xff]
        %v7466 = vld [vmem:[%s888 + $0xe0] sm:$0xf]
        %v7467 = vld [vmem:[%s888 + $0xe4] sm:$0xff]
        %v7468 = vld [vmem:[%s888 + $0xec] sm:$0xf]
        %v7469 = vld [vmem:[%s888 + $0xf0] sm:$0xff]
        %v7470 = vld [vmem:[%s888 + $0xf8] sm:$0xf]
        %v7471 = vld [vmem:[%s888 + $0xfc] sm:$0xff]
        %v7472 = vld [vmem:[%s888 + $0x104] sm:$0xf]
        %v7473 = vld [vmem:[%s888 + $0x108] sm:$0xff]
        %v7474 = vld [vmem:[%s888 + $0x110] sm:$0xf]
        %v7475 = vld [vmem:[%s888 + $0x114] sm:$0xff]
        %v7476 = vld [vmem:[%s888 + $0x11c] sm:$0xf]
        %v7477 = vld [vmem:[%s888 + $0x120] sm:$0xff]
        %v7478 = vld [vmem:[%s888 + $0x128] sm:$0xf]
        %v7479 = vld [vmem:[%s888 + $0x12c] sm:$0xff]
        %v7480 = vld [vmem:[%s888 + $0x134] sm:$0xf]
        %v7481 = vld [vmem:[%s888 + $0x138] sm:$0xff]
        %v7482 = vld [vmem:[%s888 + $0x140] sm:$0xf]
        %v7483 = vld [vmem:[%s888 + $0x144] sm:$0xff]
        %v7484 = vld [vmem:[%s888 + $0x14c] sm:$0xf]
        %v7485 = vld [vmem:[%s888 + $0x150] sm:$0xff]
        %v7486 = vld [vmem:[%s888 + $0x158] sm:$0xf]
        %v7487 = vld [vmem:[%s888 + $0x15c] sm:$0xff]
        %v7488 = vld [vmem:[%s888 + $0x164] sm:$0xf]
        %v7489 = vld [vmem:[%s888 + $0x168] sm:$0xff]
        %v7490 = vld [vmem:[%s888 + $0x170] sm:$0xf]
        %v7491 = vld [vmem:[%s888 + $0x174] sm:$0xff]
        %v7492 = vld [vmem:[%s888 + $0x17c] sm:$0xf]
        %v7493 = vld [vmem:[%s888 + $0x180] sm:$0xff]
        %v7494 = vld [vmem:[%s888 + $0x188] sm:$0xf]
        %v7495 = vld [vmem:[%s888 + $0x18c] sm:$0xff]
        %v7496 = vld [vmem:[%s888 + $0x194] sm:$0xf]
        %v7497 = vld [vmem:[%s888 + $0x198] sm:$0xff]
        %v7498 = vld [vmem:[%s888 + $0x1a0] sm:$0xf]
        %v7499 = vld [vmem:[%s888 + $0x1a4] sm:$0xff]
        %v7500 = vld [vmem:[%s888 + $0x1ac] sm:$0xf]
        %v7501 = vld [vmem:[%s888 + $0x1b0] sm:$0xff]
        %v7502 = vld [vmem:[%s888 + $0x1b8] sm:$0xf]
        %v7503 = vld [vmem:[%s888 + $0x1bc] sm:$0xff]
        %v7504 = vld [vmem:[%s888 + $0x1c4] sm:$0xf]
        %v7505 = vld [vmem:[%s888 + $0x1c8] sm:$0xff]
        %v7506 = vld [vmem:[%s888 + $0x1d0] sm:$0xf]
        %v7507 = vld [vmem:[%s888 + $0x1d4] sm:$0xff]
        %v7508 = vld [vmem:[%s888 + $0x1dc] sm:$0xf]
        %v7509 = vld [vmem:[%s888 + $0x1e0] sm:$0xff]
        %v7510 = vld [vmem:[%s888 + $0x1e8] sm:$0xf]
        %v7511 = vld [vmem:[%s888 + $0x1ec] sm:$0xff]
        %v7512 = vld [vmem:[%s888 + $0x1f4] sm:$0xf]
        %v7513 = vld [vmem:[%s888 + $0x1f8] sm:$0xff]
        %v7514 = vld [vmem:[%s888 + $0x200] sm:$0xf]
        %v7515 = vld [vmem:[%s888 + $0x204] sm:$0xff]
        %v7516 = vld [vmem:[%s888 + $0x20c] sm:$0xf]
        %v7517 = vld [vmem:[%s888 + $0x210] sm:$0xff]
        %v7518 = vld [vmem:[%s888 + $0x218] sm:$0xf]
        %v7519 = vld [vmem:[%s888 + $0x21c] sm:$0xff]
        %v7520 = vld [vmem:[%s888 + $0x224] sm:$0xf]
        %v7521 = vld [vmem:[%s888 + $0x228] sm:$0xff]
        %v7522 = vld [vmem:[%s888 + $0x230] sm:$0xf]
        %v7523 = vld [vmem:[%s888 + $0x234] sm:$0xff]
        %v7524 = vld [vmem:[%s888 + $0x23c] sm:$0xf]
        %v7525 = vld [vmem:[%s888 + $0x240] sm:$0xff]
        %v7526 = vld [vmem:[%s888 + $0x248] sm:$0xf]
        %v7527 = vld [vmem:[%s888 + $0x24c] sm:$0xff]
        %v7528 = vld [vmem:[%s888 + $0x254] sm:$0xf]
        %v7529 = vld [vmem:[%s888 + $0x258] sm:$0xff]
        %v7530 = vld [vmem:[%s888 + $0x260] sm:$0xf]
        %v7531 = vld [vmem:[%s888 + $0x264] sm:$0xff]
        %v7532 = vld [vmem:[%s888 + $0x26c] sm:$0xf]
        %v7533 = vld [vmem:[%s888 + $0x270] sm:$0xff]
        %v7534 = vld [vmem:[%s888 + $0x278] sm:$0xf]
        %v7535 = vld [vmem:[%s888 + $0x27c] sm:$0xff]
        %v7536 = vld [vmem:[%s888 + $0x284] sm:$0xf]
        %v7537 = vld [vmem:[%s888 + $0x288] sm:$0xff]
        %v7538 = vld [vmem:[%s888 + $0x290] sm:$0xf]
        %v7539 = vld [vmem:[%s888 + $0x294] sm:$0xff]
        %v7540 = vld [vmem:[%s888 + $0x29c] sm:$0xf]
        %v7541 = vld [vmem:[%s888 + $0x2a0] sm:$0xff]
        %v7542 = vld [vmem:[%s888 + $0x2a8] sm:$0xf]
        %v7543 = vld [vmem:[%s888 + $0x2ac] sm:$0xff]
        %v7544 = vld [vmem:[%s888 + $0x2b4] sm:$0xf]
        %v7545 = vld [vmem:[%s888 + $0x2b8] sm:$0xff]
        %v7546 = vld [vmem:[%s888 + $0x2c0] sm:$0xf]
        %v7547 = vld [vmem:[%s888 + $0x2c4] sm:$0xff]
        %v7548 = vld [vmem:[%s888 + $0x2cc] sm:$0xf]
        %v7549 = vld [vmem:[%s888 + $0x2d0] sm:$0xff]
        %v7550 = vld [vmem:[%s888 + $0x2d8] sm:$0xf]
        %v7551 = vld [vmem:[%s888 + $0x2dc] sm:$0xff]
        %v7552 = vld [vmem:[%s888 + $0x2e4] sm:$0xf]
        %v7553 = vld [vmem:[%s888 + $0x2e8] sm:$0xff]
        %v7554 = vld [vmem:[%s888 + $0x2f0] sm:$0xf]
        %v7555 = vld [vmem:[%s888 + $0x2f4] sm:$0xff]
        %v7556 = vld [vmem:[%s888 + $0x2fc] sm:$0xf]
        %v7557 = vld [vmem:[%s888 + $0x300] sm:$0xff]
        %v7558 = vld [vmem:[%s888 + $0x308] sm:$0xf]
        %v7559 = vld [vmem:[%s888 + $0x30c] sm:$0xff]
        %v7560 = vld [vmem:[%s888 + $0x314] sm:$0xf]
        %v7561 = vld [vmem:[%s888 + $0x318] sm:$0xff]
        %v7562 = vld [vmem:[%s888 + $0x320] sm:$0xf]
        %v7563 = vld [vmem:[%s888 + $0x324] sm:$0xff]
        %v7564 = vld [vmem:[%s888 + $0x32c] sm:$0xf]
        %v7565 = vld [vmem:[%s888 + $0x330] sm:$0xff]
        %v7566 = vld [vmem:[%s888 + $0x338] sm:$0xf]
        %v7567 = vld [vmem:[%s888 + $0x33c] sm:$0xff]
        %v7568 = vld [vmem:[%s888 + $0x344] sm:$0xf]
        %v7569 = vld [vmem:[%s888 + $0x348] sm:$0xff]
        %v7570 = vld [vmem:[%s888 + $0x350] sm:$0xf]
        %v7571 = vld [vmem:[%s888 + $0x354] sm:$0xff]
        %v7572 = vld [vmem:[%s888 + $0x35c] sm:$0xf]
        %v7573 = vld [vmem:[%s888 + $0x360] sm:$0xff]
        %v7574 = vld [vmem:[%s888 + $0x368] sm:$0xf]
        %v7575 = vld [vmem:[%s888 + $0x36c] sm:$0xff]
        %v7576 = vld [vmem:[%s888 + $0x374] sm:$0xf]
        %v7577 = vld [vmem:[%s888 + $0x378] sm:$0xff]
        %v7578 = vld [vmem:[%s888 + $0x380] sm:$0xf]
        %v7579 = vld [vmem:[%s888 + $0x384] sm:$0xff]
        %v7580 = vld [vmem:[%s888 + $0x38c] sm:$0xf]
        %v7581 = vld [vmem:[%s888 + $0x390] sm:$0xff]
        %v7582 = vld [vmem:[%s888 + $0x398] sm:$0xf]
        %v7583 = vld [vmem:[%s888 + $0x39c] sm:$0xff]
        %v7584 = vld [vmem:[%s888 + $0x3a4] sm:$0xf]
        %v7585 = vld [vmem:[%s888 + $0x3a8] sm:$0xff]
        %v7586 = vld [vmem:[%s888 + $0x3b0] sm:$0xf]
        %v7587 = vld [vmem:[%s888 + $0x3b4] sm:$0xff]
        %v7588 = vld [vmem:[%s888 + $0x3bc] sm:$0xf]
        %v7589 = vld [vmem:[%s888 + $0x3c0] sm:$0xff]
        %v7590 = vld [vmem:[%s888 + $0x3c8] sm:$0xf]
        %v7591 = vld [vmem:[%s888 + $0x3cc] sm:$0xff]
        %v7592 = vld [vmem:[%s888 + $0x3d4] sm:$0xf]
        %v7593 = vld [vmem:[%s888 + $0x3d8] sm:$0xff]
        %v7594 = vld [vmem:[%s888 + $0x3e0] sm:$0xf]
        %v7595 = vld [vmem:[%s888 + $0x3e4] sm:$0xff]
        %v7596 = vld [vmem:[%s888 + $0x3ec] sm:$0xf]
        %v7597 = vld [vmem:[%s888 + $0x3f0] sm:$0xff]
        %v7598 = vld [vmem:[%s888 + $0x3f8] sm:$0xf]
        %v7599 = vld [vmem:[%s888 + $0x3fc] sm:$0xff]
        %v7600 = vld [vmem:[%s888 + $0x404] sm:$0xf]
        %v7601 = vld [vmem:[%s888 + $0x408] sm:$0xff]
        %v7602 = vld [vmem:[%s888 + $0x410] sm:$0xf]
        %v7603 = vld [vmem:[%s888 + $0x414] sm:$0xff]
        %v7604 = vld [vmem:[%s888 + $0x41c] sm:$0xf]
        %v7605 = vld [vmem:[%s888 + $0x420] sm:$0xff]
        %v7606 = vld [vmem:[%s888 + $0x428] sm:$0xf]
        %v7607 = vld [vmem:[%s888 + $0x42c] sm:$0xff]
        %v7608 = vld [vmem:[%s888 + $0x434] sm:$0xf]
        %v7609 = vld [vmem:[%s888 + $0x438] sm:$0xff]
        %v7610 = vld [vmem:[%s888 + $0x440] sm:$0xf]
        %v7611 = vld [vmem:[%s888 + $0x444] sm:$0xff]
        %v7612 = vld [vmem:[%s888 + $0x44c] sm:$0xf]
        %v7613 = vld [vmem:[%s888 + $0x450] sm:$0xff]
        %v7614 = vld [vmem:[%s888 + $0x458] sm:$0xf]
        %v7615 = vld [vmem:[%s888 + $0x45c] sm:$0xff]
        %v7616 = vld [vmem:[%s888 + $0x464] sm:$0xf]
        %v7617 = vld [vmem:[%s888 + $0x468] sm:$0xff]
        %v7618 = vld [vmem:[%s888 + $0x470] sm:$0xf]
        %v7619 = vld [vmem:[%s888 + $0x474] sm:$0xff]
        %v7620 = vld [vmem:[%s888 + $0x47c] sm:$0xf]
        %v7621 = vld [vmem:[%s888 + $0x480] sm:$0xff]
        %v7622 = vld [vmem:[%s888 + $0x488] sm:$0xf]
        %v7623 = vld [vmem:[%s888 + $0x48c] sm:$0xff]
        %v7624 = vld [vmem:[%s888 + $0x494] sm:$0xf]
        %v7625 = vld [vmem:[%s888 + $0x498] sm:$0xff]
        %v7626 = vld [vmem:[%s888 + $0x4a0] sm:$0xf]
        %v7627 = vld [vmem:[%s888 + $0x4a4] sm:$0xff]
        %v7628 = vld [vmem:[%s888 + $0x4ac] sm:$0xf]
        %v7629 = vld [vmem:[%s888 + $0x4b0] sm:$0xff]
        %v7630 = vld [vmem:[%s888 + $0x4b8] sm:$0xf]
        %v7631 = vld [vmem:[%s888 + $0x4bc] sm:$0xff]
        %v7632 = vld [vmem:[%s888 + $0x4c4] sm:$0xf]
        %v7633 = vld [vmem:[%s888 + $0x4c8] sm:$0xff]
        %v7634 = vld [vmem:[%s888 + $0x4d0] sm:$0xf]
        %v7635 = vld [vmem:[%s888 + $0x4d4] sm:$0xff]
        %v7636 = vld [vmem:[%s888 + $0x4dc] sm:$0xf]
        %v7637 = vld [vmem:[%s888 + $0x4e0] sm:$0xff]
        %v7638 = vld [vmem:[%s888 + $0x4e8] sm:$0xf]
        %v7639 = vld [vmem:[%s888 + $0x4ec] sm:$0xff]
        %v7640 = vld [vmem:[%s888 + $0x4f4] sm:$0xf]
        %v7641 = vld [vmem:[%s888 + $0x4f8] sm:$0xff]
        %v7642 = vld [vmem:[%s888 + $0x500] sm:$0xf]
        %v7643 = vld [vmem:[%s888 + $0x504] sm:$0xff]
        %v7644 = vld [vmem:[%s888 + $0x50c] sm:$0xf]
        %v7645 = vld [vmem:[%s888 + $0x510] sm:$0xff]
        %v7646 = vld [vmem:[%s888 + $0x518] sm:$0xf]
        %v7647 = vld [vmem:[%s888 + $0x51c] sm:$0xff]
        %v7648 = vld [vmem:[%s888 + $0x524] sm:$0xf]
        %v7649 = vld [vmem:[%s888 + $0x528] sm:$0xff]
        %v7650 = vld [vmem:[%s888 + $0x530] sm:$0xf]
        %v7651 = vld [vmem:[%s888 + $0x534] sm:$0xff]
        %v7652 = vld [vmem:[%s888 + $0x53c] sm:$0xf]
        %v7653 = vld [vmem:[%s888 + $0x540] sm:$0xff]
        %v7654 = vld [vmem:[%s888 + $0x548] sm:$0xf]
        %v7655 = vld [vmem:[%s888 + $0x54c] sm:$0xff]
        %v7656 = vld [vmem:[%s888 + $0x554] sm:$0xf]
        %v7657 = vld [vmem:[%s888 + $0x558] sm:$0xff]
        %v7658 = vld [vmem:[%s888 + $0x560] sm:$0xf]
        %v7659 = vld [vmem:[%s888 + $0x564] sm:$0xff]
        %v7660 = vld [vmem:[%s888 + $0x56c] sm:$0xf]
        %v7661 = vld [vmem:[%s888 + $0x570] sm:$0xff]
        %v7662 = vld [vmem:[%s888 + $0x578] sm:$0xf]
        %v7663 = vld [vmem:[%s888 + $0x57c] sm:$0xff]
        %v7664 = vld [vmem:[%s888 + $0x584] sm:$0xf]
        %v7665 = vld [vmem:[%s888 + $0x588] sm:$0xff]
        %v7666 = vld [vmem:[%s888 + $0x590] sm:$0xf]
        %v7667 = vld [vmem:[%s888 + $0x594] sm:$0xff]
        %v7668 = vld [vmem:[%s888 + $0x59c] sm:$0xf]
        %v7669 = vld [vmem:[%s888 + $0x5a0] sm:$0xff]
        %v7670 = vld [vmem:[%s888 + $0x5a8] sm:$0xf]
        %v7671 = vld [vmem:[%s888 + $0x5ac] sm:$0xff]
        %v7672 = vld [vmem:[%s888 + $0x5b4] sm:$0xf]
        %v7673 = vld [vmem:[%s888 + $0x5b8] sm:$0xff]
        %v7674 = vld [vmem:[%s888 + $0x5c0] sm:$0xf]
        %v7675 = vld [vmem:[%s888 + $0x5c4] sm:$0xff]
        %v7676 = vld [vmem:[%s888 + $0x5cc] sm:$0xf]
        %v7677 = vld [vmem:[%s888 + $0x5d0] sm:$0xff]
        %v7678 = vld [vmem:[%s888 + $0x5d8] sm:$0xf]
        %v7679 = vld [vmem:[%s888 + $0x5dc] sm:$0xff]
        %v7680 = vld [vmem:[%s888 + $0x5e4] sm:$0xf]
        %v7681 = vld [vmem:[%s888 + $0x5e8] sm:$0xff]
        %v7682 = vld [vmem:[%s888 + $0x5f0] sm:$0xf]
        %v7683 = vld [vmem:[%s888 + $0x5f4] sm:$0xff]
        %v7684 = vld [vmem:[%s888 + $0x5fc] sm:$0xf]
        %v7685 = vld [vmem:[%s888 + $0x600] sm:$0xff]
        %v7686 = vld [vmem:[%s888 + $0x608] sm:$0xf]
        %v7687 = vld [vmem:[%s888 + $0x60c] sm:$0xff]
        %v7688 = vld [vmem:[%s888 + $0x614] sm:$0xf]
        %v7689 = vld [vmem:[%s888 + $0x618] sm:$0xff]
        %v7690 = vld [vmem:[%s888 + $0x620] sm:$0xf]
        %v7691 = vld [vmem:[%s888 + $0x624] sm:$0xff]
        %v7692 = vld [vmem:[%s888 + $0x62c] sm:$0xf]
        %v7693 = vld [vmem:[%s888 + $0x630] sm:$0xff]
        %v7694 = vld [vmem:[%s888 + $0x638] sm:$0xf]
        %v7695 = vld [vmem:[%s888 + $0x63c] sm:$0xff]
        %v7696 = vld [vmem:[%s888 + $0x644] sm:$0xf]
        %v7697 = vld [vmem:[%s888 + $0x648] sm:$0xff]
        %v7698 = vld [vmem:[%s888 + $0x650] sm:$0xf]
        %v7699 = vld [vmem:[%s888 + $0x654] sm:$0xff]
        %v7700 = vld [vmem:[%s888 + $0x65c] sm:$0xf]
        %v7701 = vld [vmem:[%s888 + $0x660] sm:$0xff]
        %v7702 = vld [vmem:[%s888 + $0x668] sm:$0xf]
        %v7703 = vld [vmem:[%s888 + $0x66c] sm:$0xff]
        %v7704 = vld [vmem:[%s888 + $0x674] sm:$0xf]
        %v7705 = vld [vmem:[%s888 + $0x678] sm:$0xff]
        %v7706 = vld [vmem:[%s888 + $0x680] sm:$0xf]
        %v7707 = vld [vmem:[%s888 + $0x684] sm:$0xff]
        %v7708 = vld [vmem:[%s888 + $0x68c] sm:$0xf]
        %v7709 = vld [vmem:[%s888 + $0x690] sm:$0xff]
        %v7710 = vld [vmem:[%s888 + $0x698] sm:$0xf]
        %v7711 = vld [vmem:[%s888 + $0x69c] sm:$0xff]
        %v7712 = vld [vmem:[%s888 + $0x6a4] sm:$0xf]
        %v7713 = vld [vmem:[%s888 + $0x6a8] sm:$0xff]
        %v7714 = vld [vmem:[%s888 + $0x6b0] sm:$0xf]
        %v7715 = vld [vmem:[%s888 + $0x6b4] sm:$0xff]
        %v7716 = vld [vmem:[%s888 + $0x6bc] sm:$0xf]
        %v7717 = vld [vmem:[%s888 + $0x6c0] sm:$0xff]
        %v7718 = vld [vmem:[%s888 + $0x6c8] sm:$0xf]
        %v7719 = vld [vmem:[%s888 + $0x6cc] sm:$0xff]
        %v7720 = vld [vmem:[%s888 + $0x6d4] sm:$0xf]
        %v7721 = vld [vmem:[%s888 + $0x6d8] sm:$0xff]
        %v7722 = vld [vmem:[%s888 + $0x6e0] sm:$0xf]
        %v7723 = vld [vmem:[%s888 + $0x6e4] sm:$0xff]
        %v7724 = vld [vmem:[%s888 + $0x6ec] sm:$0xf]
        %v7725 = vld [vmem:[%s888 + $0x6f0] sm:$0xff]
        %v7726 = vld [vmem:[%s888 + $0x6f8] sm:$0xf]
        %v7727 = vld [vmem:[%s888 + $0x6fc] sm:$0xff]
        %v7728 = vld [vmem:[%s888 + $0x704] sm:$0xf]
        %v7729 = vld [vmem:[%s888 + $0x708] sm:$0xff]
        %v7730 = vld [vmem:[%s888 + $0x710] sm:$0xf]
        %v7731 = vld [vmem:[%s888 + $0x714] sm:$0xff]
        %v7732 = vld [vmem:[%s888 + $0x71c] sm:$0xf]
        %v7733 = vld [vmem:[%s888 + $0x720] sm:$0xff]
        %v7734 = vld [vmem:[%s888 + $0x728] sm:$0xf]
        %v7735 = vld [vmem:[%s888 + $0x72c] sm:$0xff]
        %v7736 = vld [vmem:[%s888 + $0x734] sm:$0xf]
        %v7737 = vld [vmem:[%s888 + $0x738] sm:$0xff]
        %v7738 = vld [vmem:[%s888 + $0x740] sm:$0xf]
        %v7739 = vld [vmem:[%s888 + $0x744] sm:$0xff]
        %v7740 = vld [vmem:[%s888 + $0x74c] sm:$0xf]
        %v7741 = vld [vmem:[%s888 + $0x750] sm:$0xff]
        %v7742 = vld [vmem:[%s888 + $0x758] sm:$0xf]
        %v7743 = vld [vmem:[%s888 + $0x75c] sm:$0xff]
        %v7744 = vld [vmem:[%s888 + $0x764] sm:$0xf]
        %v7745 = vld [vmem:[%s888 + $0x768] sm:$0xff]
        %v7746 = vld [vmem:[%s888 + $0x770] sm:$0xf]
        %v7747 = vld [vmem:[%s888 + $0x774] sm:$0xff]
        %v7748 = vld [vmem:[%s888 + $0x77c] sm:$0xf]
        %v7749 = vld [vmem:[%s888 + $0x780] sm:$0xff]
        %v7750 = vld [vmem:[%s888 + $0x788] sm:$0xf]
        %v7751 = vld [vmem:[%s888 + $0x78c] sm:$0xff]
        %v7752 = vld [vmem:[%s888 + $0x794] sm:$0xf]
        %v7753 = vld [vmem:[%s888 + $0x798] sm:$0xff]
        %v7754 = vld [vmem:[%s888 + $0x7a0] sm:$0xf]
        %v7755 = vld [vmem:[%s888 + $0x7a4] sm:$0xff]
        %v7756 = vld [vmem:[%s888 + $0x7ac] sm:$0xf]
        %v7757 = vld [vmem:[%s888 + $0x7b0] sm:$0xff]
        %v7758 = vld [vmem:[%s888 + $0x7b8] sm:$0xf]
        %v7759 = vld [vmem:[%s888 + $0x7bc] sm:$0xff]
        %v7760 = vld [vmem:[%s888 + $0x7c4] sm:$0xf]
        %v7761 = vld [vmem:[%s888 + $0x7c8] sm:$0xff]
        %v7762 = vld [vmem:[%s888 + $0x7d0] sm:$0xf]
        %v7763 = vld [vmem:[%s888 + $0x7d4] sm:$0xff]
        %v7764 = vld [vmem:[%s888 + $0x7dc] sm:$0xf]
        %v7765 = vld [vmem:[%s888 + $0x7e0] sm:$0xff]
        %v7766 = vld [vmem:[%s888 + $0x7e8] sm:$0xf]
        %v7767 = vld [vmem:[%s888 + $0x7ec] sm:$0xff]
        %v7768 = vld [vmem:[%s888 + $0x7f4] sm:$0xf]
        %v7769 = vld [vmem:[%s888 + $0x7f8] sm:$0xff]
        %v7770 = vld [vmem:[%s888 + $0x800] sm:$0xf]
        %v7771 = vld [vmem:[%s888 + $0x804] sm:$0xff]
        %v7772 = vld [vmem:[%s888 + $0x80c] sm:$0xf]
        %v7773 = vld [vmem:[%s888 + $0x810] sm:$0xff]
        %v7774 = vld [vmem:[%s888 + $0x818] sm:$0xf]
        %v7775 = vld [vmem:[%s888 + $0x81c] sm:$0xff]
        %v7776 = vld [vmem:[%s888 + $0x824] sm:$0xf]
        %v7777 = vld [vmem:[%s888 + $0x828] sm:$0xff]
        %v7778 = vld [vmem:[%s888 + $0x830] sm:$0xf]
        %v7779 = vld [vmem:[%s888 + $0x834] sm:$0xff]
        %v7780 = vld [vmem:[%s888 + $0x83c] sm:$0xf]
        %v7781 = vld [vmem:[%s888 + $0x840] sm:$0xff]
        %v7782 = vld [vmem:[%s888 + $0x848] sm:$0xf]
        %v7783 = vld [vmem:[%s888 + $0x84c] sm:$0xff]
        %v7784 = vld [vmem:[%s888 + $0x854] sm:$0xf]
        %v7785 = vld [vmem:[%s888 + $0x858] sm:$0xff]
        %v7786 = vld [vmem:[%s888 + $0x860] sm:$0xf]
        %v7787 = vld [vmem:[%s888 + $0x864] sm:$0xff]
        %v7788 = vld [vmem:[%s888 + $0x86c] sm:$0xf]
        %v7789 = vld [vmem:[%s888 + $0x870] sm:$0xff]
        %v7790 = vld [vmem:[%s888 + $0x878] sm:$0xf]
        %v7791 = vld [vmem:[%s888 + $0x87c] sm:$0xff]
        %v7792 = vld [vmem:[%s888 + $0x884] sm:$0xf]
        %v7793 = vld [vmem:[%s888 + $0x888] sm:$0xff]
        %v7794 = vld [vmem:[%s888 + $0x890] sm:$0xf]
        %v7795 = vld [vmem:[%s888 + $0x894] sm:$0xff]
        %v7796 = vld [vmem:[%s888 + $0x89c] sm:$0xf]
        %v7797 = vld [vmem:[%s888 + $0x8a0] sm:$0xff]
        %v7798 = vld [vmem:[%s888 + $0x8a8] sm:$0xf]
        %v7799 = vld [vmem:[%s888 + $0x8ac] sm:$0xff]
        %v7800 = vld [vmem:[%s888 + $0x8b4] sm:$0xf]
        %v7801 = vld [vmem:[%s888 + $0x8b8] sm:$0xff]
        %v7802 = vld [vmem:[%s888 + $0x8c0] sm:$0xf]
        %v7803 = vld [vmem:[%s888 + $0x8c4] sm:$0xff]
        %v7804 = vld [vmem:[%s888 + $0x8cc] sm:$0xf]
        %v7805 = vld [vmem:[%s888 + $0x8d0] sm:$0xff]
        %v7806 = vld [vmem:[%s888 + $0x8d8] sm:$0xf]
        %v7807 = vld [vmem:[%s888 + $0x8dc] sm:$0xff]
        %v7808 = vld [vmem:[%s888 + $0x8e4] sm:$0xf]
        %v7809 = vld [vmem:[%s888 + $0x8e8] sm:$0xff]
        %v7810 = vld [vmem:[%s888 + $0x8f0] sm:$0xf]
        %v7811 = vld [vmem:[%s888 + $0x8f4] sm:$0xff]
        %v7812 = vld [vmem:[%s888 + $0x8fc] sm:$0xf]
        %v7813 = vld [vmem:[%s898] sm:$0x7]
        %v7815 = vperm.slane %v7813, 0
        %v7816 = vperm.slane %v7813, 1
        %v7817 = vperm.slane %v7813, 2
        %v8205 = vunpack.c.l.b16 %v7429
        %v8206 = vunpack.c.h.b16 %v7429
        %v8207 = vunpack.c.l.b16 %v7430
        %v8208 = vunpack.c.l.b16 %v7431
        %v8209 = vunpack.c.h.b16 %v7431
        %v8210 = vunpack.c.l.b16 %v7432
        %v8211 = vunpack.c.l.b16 %v7433
        %v8212 = vunpack.c.h.b16 %v7433
        %v8213 = vunpack.c.l.b16 %v7434
        %v8214 = vunpack.c.l.b16 %v7435
        %v8215 = vunpack.c.h.b16 %v7435
        %v8216 = vunpack.c.l.b16 %v7436
        %v8217 = vunpack.c.l.b16 %v7437
        %v8218 = vunpack.c.h.b16 %v7437
        %v8219 = vunpack.c.l.b16 %v7438
        %v8220 = vunpack.c.l.b16 %v7439
        %v8221 = vunpack.c.h.b16 %v7439
        %v8222 = vunpack.c.l.b16 %v7440
        %v8223 = vunpack.c.l.b16 %v7441
        %v8224 = vunpack.c.h.b16 %v7441
        %v8225 = vunpack.c.l.b16 %v7442
        %v8226 = vunpack.c.l.b16 %v7443
        %v8227 = vunpack.c.h.b16 %v7443
        %v8228 = vunpack.c.l.b16 %v7444
        %v8229 = vunpack.c.l.b16 %v7445
        %v8230 = vunpack.c.h.b16 %v7445
        %v8231 = vunpack.c.l.b16 %v7446
        %v8232 = vunpack.c.l.b16 %v7447
        %v8233 = vunpack.c.h.b16 %v7447
        %v8234 = vunpack.c.l.b16 %v7448
        %v8235 = vunpack.c.l.b16 %v7449
        %v8236 = vunpack.c.h.b16 %v7449
        %v8237 = vunpack.c.l.b16 %v7450
        %v8238 = vunpack.c.l.b16 %v7451
        %v8239 = vunpack.c.h.b16 %v7451
        %v8240 = vunpack.c.l.b16 %v7452
        %v8241 = vunpack.c.l.b16 %v7453
        %v8242 = vunpack.c.h.b16 %v7453
        %v8243 = vunpack.c.l.b16 %v7454
        %v8244 = vunpack.c.l.b16 %v7455
        %v8245 = vunpack.c.h.b16 %v7455
        %v8246 = vunpack.c.l.b16 %v7456
        %v8247 = vunpack.c.l.b16 %v7457
        %v8248 = vunpack.c.h.b16 %v7457
        %v8249 = vunpack.c.l.b16 %v7458
        %v8250 = vunpack.c.l.b16 %v7459
        %v8251 = vunpack.c.h.b16 %v7459
        %v8252 = vunpack.c.l.b16 %v7460
        %v8253 = vunpack.c.l.b16 %v7461
        %v8254 = vunpack.c.h.b16 %v7461
        %v8255 = vunpack.c.l.b16 %v7462
        %v8256 = vunpack.c.l.b16 %v7463
        %v8257 = vunpack.c.h.b16 %v7463
        %v8258 = vunpack.c.l.b16 %v7464
        %v8259 = vunpack.c.l.b16 %v7465
        %v8260 = vunpack.c.h.b16 %v7465
        %v8261 = vunpack.c.l.b16 %v7466
        %v8262 = vunpack.c.l.b16 %v7467
        %v8263 = vunpack.c.h.b16 %v7467
        %v8264 = vunpack.c.l.b16 %v7468
        %v8265 = vunpack.c.l.b16 %v7469
        %v8266 = vunpack.c.h.b16 %v7469
        %v8267 = vunpack.c.l.b16 %v7470
        %v8268 = vunpack.c.l.b16 %v7471
        %v8269 = vunpack.c.h.b16 %v7471
        %v8270 = vunpack.c.l.b16 %v7472
        %v8271 = vunpack.c.l.b16 %v7473
        %v8272 = vunpack.c.h.b16 %v7473
        %v8273 = vunpack.c.l.b16 %v7474
        %v8274 = vunpack.c.l.b16 %v7475
        %v8275 = vunpack.c.h.b16 %v7475
        %v8276 = vunpack.c.l.b16 %v7476
        %v8277 = vunpack.c.l.b16 %v7477
        %v8278 = vunpack.c.h.b16 %v7477
        %v8279 = vunpack.c.l.b16 %v7478
        %v8280 = vunpack.c.l.b16 %v7479
        %v8281 = vunpack.c.h.b16 %v7479
        %v8282 = vunpack.c.l.b16 %v7480
        %v8283 = vunpack.c.l.b16 %v7481
        %v8284 = vunpack.c.h.b16 %v7481
        %v8285 = vunpack.c.l.b16 %v7482
        %v8286 = vunpack.c.l.b16 %v7483
        %v8287 = vunpack.c.h.b16 %v7483
        %v8288 = vunpack.c.l.b16 %v7484
        %v8289 = vunpack.c.l.b16 %v7485
        %v8290 = vunpack.c.h.b16 %v7485
        %v8291 = vunpack.c.l.b16 %v7486
        %v8292 = vunpack.c.l.b16 %v7487
        %v8293 = vunpack.c.h.b16 %v7487
        %v8294 = vunpack.c.l.b16 %v7488
        %v8295 = vunpack.c.l.b16 %v7489
        %v8296 = vunpack.c.h.b16 %v7489
        %v8297 = vunpack.c.l.b16 %v7490
        %v8298 = vunpack.c.l.b16 %v7491
        %v8299 = vunpack.c.h.b16 %v7491
        %v8300 = vunpack.c.l.b16 %v7492
        %v8301 = vunpack.c.l.b16 %v7493
        %v8302 = vunpack.c.h.b16 %v7493
        %v8303 = vunpack.c.l.b16 %v7494
        %v8304 = vunpack.c.l.b16 %v7495
        %v8305 = vunpack.c.h.b16 %v7495
        %v8306 = vunpack.c.l.b16 %v7496
        %v8307 = vunpack.c.l.b16 %v7497
        %v8308 = vunpack.c.h.b16 %v7497
        %v8309 = vunpack.c.l.b16 %v7498
        %v8310 = vunpack.c.l.b16 %v7499
        %v8311 = vunpack.c.h.b16 %v7499
        %v8312 = vunpack.c.l.b16 %v7500
        %v8313 = vunpack.c.l.b16 %v7501
        %v8314 = vunpack.c.h.b16 %v7501
        %v8315 = vunpack.c.l.b16 %v7502
        %v8316 = vunpack.c.l.b16 %v7503
        %v8317 = vunpack.c.h.b16 %v7503
        %v8318 = vunpack.c.l.b16 %v7504
        %v8319 = vunpack.c.l.b16 %v7505
        %v8320 = vunpack.c.h.b16 %v7505
        %v8321 = vunpack.c.l.b16 %v7506
        %v8322 = vunpack.c.l.b16 %v7507
        %v8323 = vunpack.c.h.b16 %v7507
        %v8324 = vunpack.c.l.b16 %v7508
        %v8325 = vunpack.c.l.b16 %v7509
        %v8326 = vunpack.c.h.b16 %v7509
        %v8327 = vunpack.c.l.b16 %v7510
        %v8328 = vunpack.c.l.b16 %v7511
        %v8329 = vunpack.c.h.b16 %v7511
        %v8330 = vunpack.c.l.b16 %v7512
        %v8331 = vunpack.c.l.b16 %v7513
        %v8332 = vunpack.c.h.b16 %v7513
        %v8333 = vunpack.c.l.b16 %v7514
        %v8334 = vunpack.c.l.b16 %v7515
        %v8335 = vunpack.c.h.b16 %v7515
        %v8336 = vunpack.c.l.b16 %v7516
        %v8337 = vunpack.c.l.b16 %v7517
        %v8338 = vunpack.c.h.b16 %v7517
        %v8339 = vunpack.c.l.b16 %v7518
        %v8340 = vunpack.c.l.b16 %v7519
        %v8341 = vunpack.c.h.b16 %v7519
        %v8342 = vunpack.c.l.b16 %v7520
        %v8343 = vunpack.c.l.b16 %v7521
        %v8344 = vunpack.c.h.b16 %v7521
        %v8345 = vunpack.c.l.b16 %v7522
        %v8346 = vunpack.c.l.b16 %v7523
        %v8347 = vunpack.c.h.b16 %v7523
        %v8348 = vunpack.c.l.b16 %v7524
        %v8349 = vunpack.c.l.b16 %v7525
        %v8350 = vunpack.c.h.b16 %v7525
        %v8351 = vunpack.c.l.b16 %v7526
        %v8352 = vunpack.c.l.b16 %v7527
        %v8353 = vunpack.c.h.b16 %v7527
        %v8354 = vunpack.c.l.b16 %v7528
        %v8355 = vunpack.c.l.b16 %v7529
        %v8356 = vunpack.c.h.b16 %v7529
        %v8357 = vunpack.c.l.b16 %v7530
        %v8358 = vunpack.c.l.b16 %v7531
        %v8359 = vunpack.c.h.b16 %v7531
        %v8360 = vunpack.c.l.b16 %v7532
        %v8361 = vunpack.c.l.b16 %v7533
        %v8362 = vunpack.c.h.b16 %v7533
        %v8363 = vunpack.c.l.b16 %v7534
        %v8364 = vunpack.c.l.b16 %v7535
        %v8365 = vunpack.c.h.b16 %v7535
        %v8366 = vunpack.c.l.b16 %v7536
        %v8367 = vunpack.c.l.b16 %v7537
        %v8368 = vunpack.c.h.b16 %v7537
        %v8369 = vunpack.c.l.b16 %v7538
        %v8370 = vunpack.c.l.b16 %v7539
        %v8371 = vunpack.c.h.b16 %v7539
        %v8372 = vunpack.c.l.b16 %v7540
        %v8373 = vunpack.c.l.b16 %v7541
        %v8374 = vunpack.c.h.b16 %v7541
        %v8375 = vunpack.c.l.b16 %v7542
        %v8376 = vunpack.c.l.b16 %v7543
        %v8377 = vunpack.c.h.b16 %v7543
        %v8378 = vunpack.c.l.b16 %v7544
        %v8379 = vunpack.c.l.b16 %v7545
        %v8380 = vunpack.c.h.b16 %v7545
        %v8381 = vunpack.c.l.b16 %v7546
        %v8382 = vunpack.c.l.b16 %v7547
        %v8383 = vunpack.c.h.b16 %v7547
        %v8384 = vunpack.c.l.b16 %v7548
        %v8385 = vunpack.c.l.b16 %v7549
        %v8386 = vunpack.c.h.b16 %v7549
        %v8387 = vunpack.c.l.b16 %v7550
        %v8388 = vunpack.c.l.b16 %v7551
        %v8389 = vunpack.c.h.b16 %v7551
        %v8390 = vunpack.c.l.b16 %v7552
        %v8391 = vunpack.c.l.b16 %v7553
        %v8392 = vunpack.c.h.b16 %v7553
        %v8393 = vunpack.c.l.b16 %v7554
        %v8394 = vunpack.c.l.b16 %v7555
        %v8395 = vunpack.c.h.b16 %v7555
        %v8396 = vunpack.c.l.b16 %v7556
        %v8397 = vunpack.c.l.b16 %v7557
        %v8398 = vunpack.c.h.b16 %v7557
        %v8399 = vunpack.c.l.b16 %v7558
        %v8400 = vunpack.c.l.b16 %v7559
        %v8401 = vunpack.c.h.b16 %v7559
        %v8402 = vunpack.c.l.b16 %v7560
        %v8403 = vunpack.c.l.b16 %v7561
        %v8404 = vunpack.c.h.b16 %v7561
        %v8405 = vunpack.c.l.b16 %v7562
        %v8406 = vunpack.c.l.b16 %v7563
        %v8407 = vunpack.c.h.b16 %v7563
        %v8408 = vunpack.c.l.b16 %v7564
        %v8409 = vunpack.c.l.b16 %v7565
        %v8410 = vunpack.c.h.b16 %v7565
        %v8411 = vunpack.c.l.b16 %v7566
        %v8412 = vunpack.c.l.b16 %v7567
        %v8413 = vunpack.c.h.b16 %v7567
        %v8414 = vunpack.c.l.b16 %v7568
        %v8415 = vunpack.c.l.b16 %v7569
        %v8416 = vunpack.c.h.b16 %v7569
        %v8417 = vunpack.c.l.b16 %v7570
        %v8418 = vunpack.c.l.b16 %v7571
        %v8419 = vunpack.c.h.b16 %v7571
        %v8420 = vunpack.c.l.b16 %v7572
        %v8421 = vunpack.c.l.b16 %v7573
        %v8422 = vunpack.c.h.b16 %v7573
        %v8423 = vunpack.c.l.b16 %v7574
        %v8424 = vunpack.c.l.b16 %v7575
        %v8425 = vunpack.c.h.b16 %v7575
        %v8426 = vunpack.c.l.b16 %v7576
        %v8427 = vunpack.c.l.b16 %v7577
        %v8428 = vunpack.c.h.b16 %v7577
        %v8429 = vunpack.c.l.b16 %v7578
        %v8430 = vunpack.c.l.b16 %v7579
        %v8431 = vunpack.c.h.b16 %v7579
        %v8432 = vunpack.c.l.b16 %v7580
        %v8433 = vunpack.c.l.b16 %v7581
        %v8434 = vunpack.c.h.b16 %v7581
        %v8435 = vunpack.c.l.b16 %v7582
        %v8436 = vunpack.c.l.b16 %v7583
        %v8437 = vunpack.c.h.b16 %v7583
        %v8438 = vunpack.c.l.b16 %v7584
        %v8439 = vunpack.c.l.b16 %v7585
        %v8440 = vunpack.c.h.b16 %v7585
        %v8441 = vunpack.c.l.b16 %v7586
        %v8442 = vunpack.c.l.b16 %v7587
        %v8443 = vunpack.c.h.b16 %v7587
        %v8444 = vunpack.c.l.b16 %v7588
        %v8445 = vunpack.c.l.b16 %v7589
        %v8446 = vunpack.c.h.b16 %v7589
        %v8447 = vunpack.c.l.b16 %v7590
        %v8448 = vunpack.c.l.b16 %v7591
        %v8449 = vunpack.c.h.b16 %v7591
        %v8450 = vunpack.c.l.b16 %v7592
        %v8451 = vunpack.c.l.b16 %v7593
        %v8452 = vunpack.c.h.b16 %v7593
        %v8453 = vunpack.c.l.b16 %v7594
        %v8454 = vunpack.c.l.b16 %v7595
        %v8455 = vunpack.c.h.b16 %v7595
        %v8456 = vunpack.c.l.b16 %v7596
        %v8457 = vunpack.c.l.b16 %v7597
        %v8458 = vunpack.c.h.b16 %v7597
        %v8459 = vunpack.c.l.b16 %v7598
        %v8460 = vunpack.c.l.b16 %v7599
        %v8461 = vunpack.c.h.b16 %v7599
        %v8462 = vunpack.c.l.b16 %v7600
        %v8463 = vunpack.c.l.b16 %v7601
        %v8464 = vunpack.c.h.b16 %v7601
        %v8465 = vunpack.c.l.b16 %v7602
        %v8466 = vunpack.c.l.b16 %v7603
        %v8467 = vunpack.c.h.b16 %v7603
        %v8468 = vunpack.c.l.b16 %v7604
        %v8469 = vunpack.c.l.b16 %v7605
        %v8470 = vunpack.c.h.b16 %v7605
        %v8471 = vunpack.c.l.b16 %v7606
        %v8472 = vunpack.c.l.b16 %v7607
        %v8473 = vunpack.c.h.b16 %v7607
        %v8474 = vunpack.c.l.b16 %v7608
        %v8475 = vunpack.c.l.b16 %v7609
        %v8476 = vunpack.c.h.b16 %v7609
        %v8477 = vunpack.c.l.b16 %v7610
        %v8478 = vunpack.c.l.b16 %v7611
        %v8479 = vunpack.c.h.b16 %v7611
        %v8480 = vunpack.c.l.b16 %v7612
        %v8481 = vunpack.c.l.b16 %v7613
        %v8482 = vunpack.c.h.b16 %v7613
        %v8483 = vunpack.c.l.b16 %v7614
        %v8484 = vunpack.c.l.b16 %v7615
        %v8485 = vunpack.c.h.b16 %v7615
        %v8486 = vunpack.c.l.b16 %v7616
        %v8487 = vunpack.c.l.b16 %v7617
        %v8488 = vunpack.c.h.b16 %v7617
        %v8489 = vunpack.c.l.b16 %v7618
        %v8490 = vunpack.c.l.b16 %v7619
        %v8491 = vunpack.c.h.b16 %v7619
        %v8492 = vunpack.c.l.b16 %v7620
        %v8493 = vunpack.c.l.b16 %v7621
        %v8494 = vunpack.c.h.b16 %v7621
        %v8495 = vunpack.c.l.b16 %v7622
        %v8496 = vunpack.c.l.b16 %v7623
        %v8497 = vunpack.c.h.b16 %v7623
        %v8498 = vunpack.c.l.b16 %v7624
        %v8499 = vunpack.c.l.b16 %v7625
        %v8500 = vunpack.c.h.b16 %v7625
        %v8501 = vunpack.c.l.b16 %v7626
        %v8502 = vunpack.c.l.b16 %v7627
        %v8503 = vunpack.c.h.b16 %v7627
        %v8504 = vunpack.c.l.b16 %v7628
        %v8505 = vunpack.c.l.b16 %v7629
        %v8506 = vunpack.c.h.b16 %v7629
        %v8507 = vunpack.c.l.b16 %v7630
        %v8508 = vunpack.c.l.b16 %v7631
        %v8509 = vunpack.c.h.b16 %v7631
        %v8510 = vunpack.c.l.b16 %v7632
        %v8511 = vunpack.c.l.b16 %v7633
        %v8512 = vunpack.c.h.b16 %v7633
        %v8513 = vunpack.c.l.b16 %v7634
        %v8514 = vunpack.c.l.b16 %v7635
        %v8515 = vunpack.c.h.b16 %v7635
        %v8516 = vunpack.c.l.b16 %v7636
        %v8517 = vunpack.c.l.b16 %v7637
        %v8518 = vunpack.c.h.b16 %v7637
        %v8519 = vunpack.c.l.b16 %v7638
        %v8520 = vunpack.c.l.b16 %v7639
        %v8521 = vunpack.c.h.b16 %v7639
        %v8522 = vunpack.c.l.b16 %v7640
        %v8523 = vunpack.c.l.b16 %v7641
        %v8524 = vunpack.c.h.b16 %v7641
        %v8525 = vunpack.c.l.b16 %v7642
        %v8526 = vunpack.c.l.b16 %v7643
        %v8527 = vunpack.c.h.b16 %v7643
        %v8528 = vunpack.c.l.b16 %v7644
        %v8529 = vunpack.c.l.b16 %v7645
        %v8530 = vunpack.c.h.b16 %v7645
        %v8531 = vunpack.c.l.b16 %v7646
        %v8532 = vunpack.c.l.b16 %v7647
        %v8533 = vunpack.c.h.b16 %v7647
        %v8534 = vunpack.c.l.b16 %v7648
        %v8535 = vunpack.c.l.b16 %v7649
        %v8536 = vunpack.c.h.b16 %v7649
        %v8537 = vunpack.c.l.b16 %v7650
        %v8538 = vunpack.c.l.b16 %v7651
        %v8539 = vunpack.c.h.b16 %v7651
        %v8540 = vunpack.c.l.b16 %v7652
        %v8541 = vunpack.c.l.b16 %v7653
        %v8542 = vunpack.c.h.b16 %v7653
        %v8543 = vunpack.c.l.b16 %v7654
        %v8544 = vunpack.c.l.b16 %v7655
        %v8545 = vunpack.c.h.b16 %v7655
        %v8546 = vunpack.c.l.b16 %v7656
        %v8547 = vunpack.c.l.b16 %v7657
        %v8548 = vunpack.c.h.b16 %v7657
        %v8549 = vunpack.c.l.b16 %v7658
        %v8550 = vunpack.c.l.b16 %v7659
        %v8551 = vunpack.c.h.b16 %v7659
        %v8552 = vunpack.c.l.b16 %v7660
        %v8553 = vunpack.c.l.b16 %v7661
        %v8554 = vunpack.c.h.b16 %v7661
        %v8555 = vunpack.c.l.b16 %v7662
        %v8556 = vunpack.c.l.b16 %v7663
        %v8557 = vunpack.c.h.b16 %v7663
        %v8558 = vunpack.c.l.b16 %v7664
        %v8559 = vunpack.c.l.b16 %v7665
        %v8560 = vunpack.c.h.b16 %v7665
        %v8561 = vunpack.c.l.b16 %v7666
        %v8562 = vunpack.c.l.b16 %v7667
        %v8563 = vunpack.c.h.b16 %v7667
        %v8564 = vunpack.c.l.b16 %v7668
        %v8565 = vunpack.c.l.b16 %v7669
        %v8566 = vunpack.c.h.b16 %v7669
        %v8567 = vunpack.c.l.b16 %v7670
        %v8568 = vunpack.c.l.b16 %v7671
        %v8569 = vunpack.c.h.b16 %v7671
        %v8570 = vunpack.c.l.b16 %v7672
        %v8571 = vunpack.c.l.b16 %v7673
        %v8572 = vunpack.c.h.b16 %v7673
        %v8573 = vunpack.c.l.b16 %v7674
        %v8574 = vunpack.c.l.b16 %v7675
        %v8575 = vunpack.c.h.b16 %v7675
        %v8576 = vunpack.c.l.b16 %v7676
        %v8577 = vunpack.c.l.b16 %v7677
        %v8578 = vunpack.c.h.b16 %v7677
        %v8579 = vunpack.c.l.b16 %v7678
        %v8580 = vunpack.c.l.b16 %v7679
        %v8581 = vunpack.c.h.b16 %v7679
        %v8582 = vunpack.c.l.b16 %v7680
        %v8583 = vunpack.c.l.b16 %v7681
        %v8584 = vunpack.c.h.b16 %v7681
        %v8585 = vunpack.c.l.b16 %v7682
        %v8586 = vunpack.c.l.b16 %v7683
        %v8587 = vunpack.c.h.b16 %v7683
        %v8588 = vunpack.c.l.b16 %v7684
        %v8589 = vunpack.c.l.b16 %v7685
        %v8590 = vunpack.c.h.b16 %v7685
        %v8591 = vunpack.c.l.b16 %v7686
        %v8592 = vunpack.c.l.b16 %v7687
        %v8593 = vunpack.c.h.b16 %v7687
        %v8594 = vunpack.c.l.b16 %v7688
        %v8595 = vunpack.c.l.b16 %v7689
        %v8596 = vunpack.c.h.b16 %v7689
        %v8597 = vunpack.c.l.b16 %v7690
        %v8598 = vunpack.c.l.b16 %v7691
        %v8599 = vunpack.c.h.b16 %v7691
        %v8600 = vunpack.c.l.b16 %v7692
        %v8601 = vunpack.c.l.b16 %v7693
        %v8602 = vunpack.c.h.b16 %v7693
        %v8603 = vunpack.c.l.b16 %v7694
        %v8604 = vunpack.c.l.b16 %v7695
        %v8605 = vunpack.c.h.b16 %v7695
        %v8606 = vunpack.c.l.b16 %v7696
        %v8607 = vunpack.c.l.b16 %v7697
        %v8608 = vunpack.c.h.b16 %v7697
        %v8609 = vunpack.c.l.b16 %v7698
        %v8610 = vunpack.c.l.b16 %v7699
        %v8611 = vunpack.c.h.b16 %v7699
        %v8612 = vunpack.c.l.b16 %v7700
        %v8613 = vunpack.c.l.b16 %v7701
        %v8614 = vunpack.c.h.b16 %v7701
        %v8615 = vunpack.c.l.b16 %v7702
        %v8616 = vunpack.c.l.b16 %v7703
        %v8617 = vunpack.c.h.b16 %v7703
        %v8618 = vunpack.c.l.b16 %v7704
        %v8619 = vunpack.c.l.b16 %v7705
        %v8620 = vunpack.c.h.b16 %v7705
        %v8621 = vunpack.c.l.b16 %v7706
        %v8622 = vunpack.c.l.b16 %v7707
        %v8623 = vunpack.c.h.b16 %v7707
        %v8624 = vunpack.c.l.b16 %v7708
        %v8625 = vunpack.c.l.b16 %v7709
        %v8626 = vunpack.c.h.b16 %v7709
        %v8627 = vunpack.c.l.b16 %v7710
        %v8628 = vunpack.c.l.b16 %v7711
        %v8629 = vunpack.c.h.b16 %v7711
        %v8630 = vunpack.c.l.b16 %v7712
        %v8631 = vunpack.c.l.b16 %v7713
        %v8632 = vunpack.c.h.b16 %v7713
        %v8633 = vunpack.c.l.b16 %v7714
        %v8634 = vunpack.c.l.b16 %v7715
        %v8635 = vunpack.c.h.b16 %v7715
        %v8636 = vunpack.c.l.b16 %v7716
        %v8637 = vunpack.c.l.b16 %v7717
        %v8638 = vunpack.c.h.b16 %v7717
        %v8639 = vunpack.c.l.b16 %v7718
        %v8640 = vunpack.c.l.b16 %v7719
        %v8641 = vunpack.c.h.b16 %v7719
        %v8642 = vunpack.c.l.b16 %v7720
        %v8643 = vunpack.c.l.b16 %v7721
        %v8644 = vunpack.c.h.b16 %v7721
        %v8645 = vunpack.c.l.b16 %v7722
        %v8646 = vunpack.c.l.b16 %v7723
        %v8647 = vunpack.c.h.b16 %v7723
        %v8648 = vunpack.c.l.b16 %v7724
        %v8649 = vunpack.c.l.b16 %v7725
        %v8650 = vunpack.c.h.b16 %v7725
        %v8651 = vunpack.c.l.b16 %v7726
        %v8652 = vunpack.c.l.b16 %v7727
        %v8653 = vunpack.c.h.b16 %v7727
        %v8654 = vunpack.c.l.b16 %v7728
        %v8655 = vunpack.c.l.b16 %v7729
        %v8656 = vunpack.c.h.b16 %v7729
        %v8657 = vunpack.c.l.b16 %v7730
        %v8658 = vunpack.c.l.b16 %v7731
        %v8659 = vunpack.c.h.b16 %v7731
        %v8660 = vunpack.c.l.b16 %v7732
        %v8661 = vunpack.c.l.b16 %v7733
        %v8662 = vunpack.c.h.b16 %v7733
        %v8663 = vunpack.c.l.b16 %v7734
        %v8664 = vunpack.c.l.b16 %v7735
        %v8665 = vunpack.c.h.b16 %v7735
        %v8666 = vunpack.c.l.b16 %v7736
        %v8667 = vunpack.c.l.b16 %v7737
        %v8668 = vunpack.c.h.b16 %v7737
        %v8669 = vunpack.c.l.b16 %v7738
        %v8670 = vunpack.c.l.b16 %v7739
        %v8671 = vunpack.c.h.b16 %v7739
        %v8672 = vunpack.c.l.b16 %v7740
        %v8673 = vunpack.c.l.b16 %v7741
        %v8674 = vunpack.c.h.b16 %v7741
        %v8675 = vunpack.c.l.b16 %v7742
        %v8676 = vunpack.c.l.b16 %v7743
        %v8677 = vunpack.c.h.b16 %v7743
        %v8678 = vunpack.c.l.b16 %v7744
        %v8679 = vunpack.c.l.b16 %v7745
        %v8680 = vunpack.c.h.b16 %v7745
        %v8681 = vunpack.c.l.b16 %v7746
        %v8682 = vunpack.c.l.b16 %v7747
        %v8683 = vunpack.c.h.b16 %v7747
        %v8684 = vunpack.c.l.b16 %v7748
        %v8685 = vunpack.c.l.b16 %v7749
        %v8686 = vunpack.c.h.b16 %v7749
        %v8687 = vunpack.c.l.b16 %v7750
        %v8688 = vunpack.c.l.b16 %v7751
        %v8689 = vunpack.c.h.b16 %v7751
        %v8690 = vunpack.c.l.b16 %v7752
        %v8691 = vunpack.c.l.b16 %v7753
        %v8692 = vunpack.c.h.b16 %v7753
        %v8693 = vunpack.c.l.b16 %v7754
        %v8694 = vunpack.c.l.b16 %v7755
        %v8695 = vunpack.c.h.b16 %v7755
        %v8696 = vunpack.c.l.b16 %v7756
        %v8697 = vunpack.c.l.b16 %v7757
        %v8698 = vunpack.c.h.b16 %v7757
        %v8699 = vunpack.c.l.b16 %v7758
        %v8700 = vunpack.c.l.b16 %v7759
        %v8701 = vunpack.c.h.b16 %v7759
        %v8702 = vunpack.c.l.b16 %v7760
        %v8703 = vunpack.c.l.b16 %v7761
        %v8704 = vunpack.c.h.b16 %v7761
        %v8705 = vunpack.c.l.b16 %v7762
        %v8706 = vunpack.c.l.b16 %v7763
        %v8707 = vunpack.c.h.b16 %v7763
        %v8708 = vunpack.c.l.b16 %v7764
        %v8709 = vunpack.c.l.b16 %v7765
        %v8710 = vunpack.c.h.b16 %v7765
        %v8711 = vunpack.c.l.b16 %v7766
        %v8712 = vunpack.c.l.b16 %v7767
        %v8713 = vunpack.c.h.b16 %v7767
        %v8714 = vunpack.c.l.b16 %v7768
        %v8715 = vunpack.c.l.b16 %v7769
        %v8716 = vunpack.c.h.b16 %v7769
        %v8717 = vunpack.c.l.b16 %v7770
        %v8718 = vunpack.c.l.b16 %v7771
        %v8719 = vunpack.c.h.b16 %v7771
        %v8720 = vunpack.c.l.b16 %v7772
        %v8721 = vunpack.c.l.b16 %v7773
        %v8722 = vunpack.c.h.b16 %v7773
        %v8723 = vunpack.c.l.b16 %v7774
        %v8724 = vunpack.c.l.b16 %v7775
        %v8725 = vunpack.c.h.b16 %v7775
        %v8726 = vunpack.c.l.b16 %v7776
        %v8727 = vunpack.c.l.b16 %v7777
        %v8728 = vunpack.c.h.b16 %v7777
        %v8729 = vunpack.c.l.b16 %v7778
        %v8730 = vunpack.c.l.b16 %v7779
        %v8731 = vunpack.c.h.b16 %v7779
        %v8732 = vunpack.c.l.b16 %v7780
        %v8733 = vunpack.c.l.b16 %v7781
        %v8734 = vunpack.c.h.b16 %v7781
        %v8735 = vunpack.c.l.b16 %v7782
        %v8736 = vunpack.c.l.b16 %v7783
        %v8737 = vunpack.c.h.b16 %v7783
        %v8738 = vunpack.c.l.b16 %v7784
        %v8739 = vunpack.c.l.b16 %v7785
        %v8740 = vunpack.c.h.b16 %v7785
        %v8741 = vunpack.c.l.b16 %v7786
        %v8742 = vunpack.c.l.b16 %v7787
        %v8743 = vunpack.c.h.b16 %v7787
        %v8744 = vunpack.c.l.b16 %v7788
        %v8745 = vunpack.c.l.b16 %v7789
        %v8746 = vunpack.c.h.b16 %v7789
        %v8747 = vunpack.c.l.b16 %v7790
        %v8748 = vunpack.c.l.b16 %v7791
        %v8749 = vunpack.c.h.b16 %v7791
        %v8750 = vunpack.c.l.b16 %v7792
        %v8751 = vunpack.c.l.b16 %v7793
        %v8752 = vunpack.c.h.b16 %v7793
        %v8753 = vunpack.c.l.b16 %v7794
        %v8754 = vunpack.c.l.b16 %v7795
        %v8755 = vunpack.c.h.b16 %v7795
        %v8756 = vunpack.c.l.b16 %v7796
        %v8757 = vunpack.c.l.b16 %v7797
        %v8758 = vunpack.c.h.b16 %v7797
        %v8759 = vunpack.c.l.b16 %v7798
        %v8760 = vunpack.c.l.b16 %v7799
        %v8761 = vunpack.c.h.b16 %v7799
        %v8762 = vunpack.c.l.b16 %v7800
        %v8763 = vunpack.c.l.b16 %v7801
        %v8764 = vunpack.c.h.b16 %v7801
        %v8765 = vunpack.c.l.b16 %v7802
        %v8766 = vunpack.c.l.b16 %v7803
        %v8767 = vunpack.c.h.b16 %v7803
        %v8768 = vunpack.c.l.b16 %v7804
        %v8769 = vunpack.c.l.b16 %v7805
        %v8770 = vunpack.c.h.b16 %v7805
        %v8771 = vunpack.c.l.b16 %v7806
        %v8772 = vunpack.c.l.b16 %v7807
        %v8773 = vunpack.c.h.b16 %v7807
        %v8774 = vunpack.c.l.b16 %v7808
        %v8775 = vunpack.c.l.b16 %v7809
        %v8776 = vunpack.c.h.b16 %v7809
        %v8777 = vunpack.c.l.b16 %v7810
        %v8778 = vunpack.c.l.b16 %v7811
        %v8779 = vunpack.c.h.b16 %v7811
        %v8780 = vunpack.c.l.b16 %v7812
        %v8781 = vpack.c.b16 %v8208, %v8205
        %v8782 = vpack.c.b16 %v8209, %v8206
        %v8783 = vpack.c.b16 %v8210, %v8207
        %v8784 = vpack.c.b16 %v8214, %v8211
        %v8785 = vpack.c.b16 %v8215, %v8212
        %v8786 = vpack.c.b16 %v8216, %v8213
        %v8787 = vpack.c.b16 %v8220, %v8217
        %v8788 = vpack.c.b16 %v8221, %v8218
        %v8789 = vpack.c.b16 %v8222, %v8219
        %v8790 = vpack.c.b16 %v8226, %v8223
        %v8791 = vpack.c.b16 %v8227, %v8224
        %v8792 = vpack.c.b16 %v8228, %v8225
        %v8793 = vpack.c.b16 %v8232, %v8229
        %v8794 = vpack.c.b16 %v8233, %v8230
        %v8795 = vpack.c.b16 %v8234, %v8231
        %v8796 = vpack.c.b16 %v8238, %v8235
        %v8797 = vpack.c.b16 %v8239, %v8236
        %v8798 = vpack.c.b16 %v8240, %v8237
        %v8799 = vpack.c.b16 %v8244, %v8241
        %v8800 = vpack.c.b16 %v8245, %v8242
        %v8801 = vpack.c.b16 %v8246, %v8243
        %v8802 = vpack.c.b16 %v8250, %v8247
        %v8803 = vpack.c.b16 %v8251, %v8248
        %v8804 = vpack.c.b16 %v8252, %v8249
        %v8805 = vpack.c.b16 %v8256, %v8253
        %v8806 = vpack.c.b16 %v8257, %v8254
        %v8807 = vpack.c.b16 %v8258, %v8255
        %v8808 = vpack.c.b16 %v8262, %v8259
        %v8809 = vpack.c.b16 %v8263, %v8260
        %v8810 = vpack.c.b16 %v8264, %v8261
        %v8811 = vpack.c.b16 %v8268, %v8265
        %v8812 = vpack.c.b16 %v8269, %v8266
        %v8813 = vpack.c.b16 %v8270, %v8267
        %v8814 = vpack.c.b16 %v8274, %v8271
        %v8815 = vpack.c.b16 %v8275, %v8272
        %v8816 = vpack.c.b16 %v8276, %v8273
        %v8817 = vpack.c.b16 %v8280, %v8277
        %v8818 = vpack.c.b16 %v8281, %v8278
        %v8819 = vpack.c.b16 %v8282, %v8279
        %v8820 = vpack.c.b16 %v8286, %v8283
        %v8821 = vpack.c.b16 %v8287, %v8284
        %v8822 = vpack.c.b16 %v8288, %v8285
        %v8823 = vpack.c.b16 %v8292, %v8289
        %v8824 = vpack.c.b16 %v8293, %v8290
        %v8825 = vpack.c.b16 %v8294, %v8291
        %v8826 = vpack.c.b16 %v8298, %v8295
        %v8827 = vpack.c.b16 %v8299, %v8296
        %v8828 = vpack.c.b16 %v8300, %v8297
        %v8829 = vpack.c.b16 %v8304, %v8301
        %v8830 = vpack.c.b16 %v8305, %v8302
        %v8831 = vpack.c.b16 %v8306, %v8303
        %v8832 = vpack.c.b16 %v8310, %v8307
        %v8833 = vpack.c.b16 %v8311, %v8308
        %v8834 = vpack.c.b16 %v8312, %v8309
        %v8835 = vpack.c.b16 %v8316, %v8313
        %v8836 = vpack.c.b16 %v8317, %v8314
        %v8837 = vpack.c.b16 %v8318, %v8315
        %v8838 = vpack.c.b16 %v8322, %v8319
        %v8839 = vpack.c.b16 %v8323, %v8320
        %v8840 = vpack.c.b16 %v8324, %v8321
        %v8841 = vpack.c.b16 %v8328, %v8325
        %v8842 = vpack.c.b16 %v8329, %v8326
        %v8843 = vpack.c.b16 %v8330, %v8327
        %v8844 = vpack.c.b16 %v8334, %v8331
        %v8845 = vpack.c.b16 %v8335, %v8332
        %v8846 = vpack.c.b16 %v8336, %v8333
        %v8847 = vpack.c.b16 %v8340, %v8337
        %v8848 = vpack.c.b16 %v8341, %v8338
        %v8849 = vpack.c.b16 %v8342, %v8339
        %v8850 = vpack.c.b16 %v8346, %v8343
        %v8851 = vpack.c.b16 %v8347, %v8344
        %v8852 = vpack.c.b16 %v8348, %v8345
        %v8853 = vpack.c.b16 %v8352, %v8349
        %v8854 = vpack.c.b16 %v8353, %v8350
        %v8855 = vpack.c.b16 %v8354, %v8351
        %v8856 = vpack.c.b16 %v8358, %v8355
        %v8857 = vpack.c.b16 %v8359, %v8356
        %v8858 = vpack.c.b16 %v8360, %v8357
        %v8859 = vpack.c.b16 %v8364, %v8361
        %v8860 = vpack.c.b16 %v8365, %v8362
        %v8861 = vpack.c.b16 %v8366, %v8363
        %v8862 = vpack.c.b16 %v8370, %v8367
        %v8863 = vpack.c.b16 %v8371, %v8368
        %v8864 = vpack.c.b16 %v8372, %v8369
        %v8865 = vpack.c.b16 %v8376, %v8373
        %v8866 = vpack.c.b16 %v8377, %v8374
        %v8867 = vpack.c.b16 %v8378, %v8375
        %v8868 = vpack.c.b16 %v8382, %v8379
        %v8869 = vpack.c.b16 %v8383, %v8380
        %v8870 = vpack.c.b16 %v8384, %v8381
        %v8871 = vpack.c.b16 %v8388, %v8385
        %v8872 = vpack.c.b16 %v8389, %v8386
        %v8873 = vpack.c.b16 %v8390, %v8387
        %v8874 = vpack.c.b16 %v8394, %v8391
        %v8875 = vpack.c.b16 %v8395, %v8392
        %v8876 = vpack.c.b16 %v8396, %v8393
        %v8877 = vpack.c.b16 %v8400, %v8397
        %v8878 = vpack.c.b16 %v8401, %v8398
        %v8879 = vpack.c.b16 %v8402, %v8399
        %v8880 = vpack.c.b16 %v8406, %v8403
        %v8881 = vpack.c.b16 %v8407, %v8404
        %v8882 = vpack.c.b16 %v8408, %v8405
        %v8883 = vpack.c.b16 %v8412, %v8409
        %v8884 = vpack.c.b16 %v8413, %v8410
        %v8885 = vpack.c.b16 %v8414, %v8411
        %v8886 = vpack.c.b16 %v8418, %v8415
        %v8887 = vpack.c.b16 %v8419, %v8416
        %v8888 = vpack.c.b16 %v8420, %v8417
        %v8889 = vpack.c.b16 %v8424, %v8421
        %v8890 = vpack.c.b16 %v8425, %v8422
        %v8891 = vpack.c.b16 %v8426, %v8423
        %v8892 = vpack.c.b16 %v8430, %v8427
        %v8893 = vpack.c.b16 %v8431, %v8428
        %v8894 = vpack.c.b16 %v8432, %v8429
        %v8895 = vpack.c.b16 %v8436, %v8433
        %v8896 = vpack.c.b16 %v8437, %v8434
        %v8897 = vpack.c.b16 %v8438, %v8435
        %v8898 = vpack.c.b16 %v8442, %v8439
        %v8899 = vpack.c.b16 %v8443, %v8440
        %v8900 = vpack.c.b16 %v8444, %v8441
        %v8901 = vpack.c.b16 %v8448, %v8445
        %v8902 = vpack.c.b16 %v8449, %v8446
        %v8903 = vpack.c.b16 %v8450, %v8447
        %v8904 = vpack.c.b16 %v8454, %v8451
        %v8905 = vpack.c.b16 %v8455, %v8452
        %v8906 = vpack.c.b16 %v8456, %v8453
        %v8907 = vpack.c.b16 %v8460, %v8457
        %v8908 = vpack.c.b16 %v8461, %v8458
        %v8909 = vpack.c.b16 %v8462, %v8459
        %v8910 = vpack.c.b16 %v8466, %v8463
        %v8911 = vpack.c.b16 %v8467, %v8464
        %v8912 = vpack.c.b16 %v8468, %v8465
        %v8913 = vpack.c.b16 %v8472, %v8469
        %v8914 = vpack.c.b16 %v8473, %v8470
        %v8915 = vpack.c.b16 %v8474, %v8471
        %v8916 = vpack.c.b16 %v8478, %v8475
        %v8917 = vpack.c.b16 %v8479, %v8476
        %v8918 = vpack.c.b16 %v8480, %v8477
        %v8919 = vpack.c.b16 %v8484, %v8481
        %v8920 = vpack.c.b16 %v8485, %v8482
        %v8921 = vpack.c.b16 %v8486, %v8483
        %v8922 = vpack.c.b16 %v8490, %v8487
        %v8923 = vpack.c.b16 %v8491, %v8488
        %v8924 = vpack.c.b16 %v8492, %v8489
        %v8925 = vpack.c.b16 %v8496, %v8493
        %v8926 = vpack.c.b16 %v8497, %v8494
        %v8927 = vpack.c.b16 %v8498, %v8495
        %v8928 = vpack.c.b16 %v8502, %v8499
        %v8929 = vpack.c.b16 %v8503, %v8500
        %v8930 = vpack.c.b16 %v8504, %v8501
        %v8931 = vpack.c.b16 %v8508, %v8505
        %v8932 = vpack.c.b16 %v8509, %v8506
        %v8933 = vpack.c.b16 %v8510, %v8507
        %v8934 = vpack.c.b16 %v8514, %v8511
        %v8935 = vpack.c.b16 %v8515, %v8512
        %v8936 = vpack.c.b16 %v8516, %v8513
        %v8937 = vpack.c.b16 %v8520, %v8517
        %v8938 = vpack.c.b16 %v8521, %v8518
        %v8939 = vpack.c.b16 %v8522, %v8519
        %v8940 = vpack.c.b16 %v8526, %v8523
        %v8941 = vpack.c.b16 %v8527, %v8524
        %v8942 = vpack.c.b16 %v8528, %v8525
        %v8943 = vpack.c.b16 %v8532, %v8529
        %v8944 = vpack.c.b16 %v8533, %v8530
        %v8945 = vpack.c.b16 %v8534, %v8531
        %v8946 = vpack.c.b16 %v8538, %v8535
        %v8947 = vpack.c.b16 %v8539, %v8536
        %v8948 = vpack.c.b16 %v8540, %v8537
        %v8949 = vpack.c.b16 %v8544, %v8541
        %v8950 = vpack.c.b16 %v8545, %v8542
        %v8951 = vpack.c.b16 %v8546, %v8543
        %v8952 = vpack.c.b16 %v8550, %v8547
        %v8953 = vpack.c.b16 %v8551, %v8548
        %v8954 = vpack.c.b16 %v8552, %v8549
        %v8955 = vpack.c.b16 %v8556, %v8553
        %v8956 = vpack.c.b16 %v8557, %v8554
        %v8957 = vpack.c.b16 %v8558, %v8555
        %v8958 = vpack.c.b16 %v8562, %v8559
        %v8959 = vpack.c.b16 %v8563, %v8560
        %v8960 = vpack.c.b16 %v8564, %v8561
        %v8961 = vpack.c.b16 %v8568, %v8565
        %v8962 = vpack.c.b16 %v8569, %v8566
        %v8963 = vpack.c.b16 %v8570, %v8567
        %v8964 = vpack.c.b16 %v8574, %v8571
        %v8965 = vpack.c.b16 %v8575, %v8572
        %v8966 = vpack.c.b16 %v8576, %v8573
        %v8967 = vpack.c.b16 %v8580, %v8577
        %v8968 = vpack.c.b16 %v8581, %v8578
        %v8969 = vpack.c.b16 %v8582, %v8579
        %v8970 = vpack.c.b16 %v8586, %v8583
        %v8971 = vpack.c.b16 %v8587, %v8584
        %v8972 = vpack.c.b16 %v8588, %v8585
        %v8973 = vpack.c.b16 %v8592, %v8589
        %v8974 = vpack.c.b16 %v8593, %v8590
        %v8975 = vpack.c.b16 %v8594, %v8591
        %v8976 = vpack.c.b16 %v8598, %v8595
        %v8977 = vpack.c.b16 %v8599, %v8596
        %v8978 = vpack.c.b16 %v8600, %v8597
        %v8979 = vpack.c.b16 %v8604, %v8601
        %v8980 = vpack.c.b16 %v8605, %v8602
        %v8981 = vpack.c.b16 %v8606, %v8603
        %v8982 = vpack.c.b16 %v8610, %v8607
        %v8983 = vpack.c.b16 %v8611, %v8608
        %v8984 = vpack.c.b16 %v8612, %v8609
        %v8985 = vpack.c.b16 %v8616, %v8613
        %v8986 = vpack.c.b16 %v8617, %v8614
        %v8987 = vpack.c.b16 %v8618, %v8615
        %v8988 = vpack.c.b16 %v8622, %v8619
        %v8989 = vpack.c.b16 %v8623, %v8620
        %v8990 = vpack.c.b16 %v8624, %v8621
        %v8991 = vpack.c.b16 %v8628, %v8625
        %v8992 = vpack.c.b16 %v8629, %v8626
        %v8993 = vpack.c.b16 %v8630, %v8627
        %v8994 = vpack.c.b16 %v8634, %v8631
        %v8995 = vpack.c.b16 %v8635, %v8632
        %v8996 = vpack.c.b16 %v8636, %v8633
        %v8997 = vpack.c.b16 %v8640, %v8637
        %v8998 = vpack.c.b16 %v8641, %v8638
        %v8999 = vpack.c.b16 %v8642, %v8639
        %v9000 = vpack.c.b16 %v8646, %v8643
        %v9001 = vpack.c.b16 %v8647, %v8644
        %v9002 = vpack.c.b16 %v8648, %v8645
        %v9003 = vpack.c.b16 %v8652, %v8649
        %v9004 = vpack.c.b16 %v8653, %v8650
        %v9005 = vpack.c.b16 %v8654, %v8651
        %v9006 = vpack.c.b16 %v8658, %v8655
        %v9007 = vpack.c.b16 %v8659, %v8656
        %v9008 = vpack.c.b16 %v8660, %v8657
        %v9009 = vpack.c.b16 %v8664, %v8661
        %v9010 = vpack.c.b16 %v8665, %v8662
        %v9011 = vpack.c.b16 %v8666, %v8663
        %v9012 = vpack.c.b16 %v8670, %v8667
        %v9013 = vpack.c.b16 %v8671, %v8668
        %v9014 = vpack.c.b16 %v8672, %v8669
        %v9015 = vpack.c.b16 %v8676, %v8673
        %v9016 = vpack.c.b16 %v8677, %v8674
        %v9017 = vpack.c.b16 %v8678, %v8675
        %v9018 = vpack.c.b16 %v8682, %v8679
        %v9019 = vpack.c.b16 %v8683, %v8680
        %v9020 = vpack.c.b16 %v8684, %v8681
        %v9021 = vpack.c.b16 %v8688, %v8685
        %v9022 = vpack.c.b16 %v8689, %v8686
        %v9023 = vpack.c.b16 %v8690, %v8687
        %v9024 = vpack.c.b16 %v8694, %v8691
        %v9025 = vpack.c.b16 %v8695, %v8692
        %v9026 = vpack.c.b16 %v8696, %v8693
        %v9027 = vpack.c.b16 %v8700, %v8697
        %v9028 = vpack.c.b16 %v8701, %v8698
        %v9029 = vpack.c.b16 %v8702, %v8699
        %v9030 = vpack.c.b16 %v8706, %v8703
        %v9031 = vpack.c.b16 %v8707, %v8704
        %v9032 = vpack.c.b16 %v8708, %v8705
        %v9033 = vpack.c.b16 %v8712, %v8709
        %v9034 = vpack.c.b16 %v8713, %v8710
        %v9035 = vpack.c.b16 %v8714, %v8711
        %v9036 = vpack.c.b16 %v8718, %v8715
        %v9037 = vpack.c.b16 %v8719, %v8716
        %v9038 = vpack.c.b16 %v8720, %v8717
        %v9039 = vpack.c.b16 %v8724, %v8721
        %v9040 = vpack.c.b16 %v8725, %v8722
        %v9041 = vpack.c.b16 %v8726, %v8723
        %v9042 = vpack.c.b16 %v8730, %v8727
        %v9043 = vpack.c.b16 %v8731, %v8728
        %v9044 = vpack.c.b16 %v8732, %v8729
        %v9045 = vpack.c.b16 %v8736, %v8733
        %v9046 = vpack.c.b16 %v8737, %v8734
        %v9047 = vpack.c.b16 %v8738, %v8735
        %v9048 = vpack.c.b16 %v8742, %v8739
        %v9049 = vpack.c.b16 %v8743, %v8740
        %v9050 = vpack.c.b16 %v8744, %v8741
        %v9051 = vpack.c.b16 %v8748, %v8745
        %v9052 = vpack.c.b16 %v8749, %v8746
        %v9053 = vpack.c.b16 %v8750, %v8747
        %v9054 = vpack.c.b16 %v8754, %v8751
        %v9055 = vpack.c.b16 %v8755, %v8752
        %v9056 = vpack.c.b16 %v8756, %v8753
        %v9057 = vpack.c.b16 %v8760, %v8757
        %v9058 = vpack.c.b16 %v8761, %v8758
        %v9059 = vpack.c.b16 %v8762, %v8759
        %v9060 = vpack.c.b16 %v8766, %v8763
        %v9061 = vpack.c.b16 %v8767, %v8764
        %v9062 = vpack.c.b16 %v8768, %v8765
        %v9063 = vpack.c.b16 %v8772, %v8769
        %v9064 = vpack.c.b16 %v8773, %v8770
        %v9065 = vpack.c.b16 %v8774, %v8771
        %v9066 = vpack.c.b16 %v8778, %v8775
        %v9067 = vpack.c.b16 %v8779, %v8776
        %v9068 = vpack.c.b16 %v8780, %v8777
        %9357 = vmatpush.bf16.msra.mxu0 %v8802
        %9358 = vmatpush.bf16.msra.mxu0 %v8799
        %9359 = vmatpush.bf16.msra.mxu0 %v8796
        %9360 = vmatpush.bf16.msra.mxu0 %v8793
        %9361 = vmatpush.bf16.msra.mxu0 %v8790
        %9362 = vmatpush.bf16.msra.mxu0 %v8787
        %9363 = vmatpush.bf16.msra.mxu0 %v8784
        %9364 = vmatpush.bf16.msra.mxu0 %v8781
        %9365 = vmatmul.bf16.gmra.mxu0 %v7417
        %v9366 = vpop.f32.mrf.mxu0
        %v9367 = vadd.f32 %v7815, %v9366
        %v9368 = vpop.f32.mrf.mxu0
        %v9369 = vadd.f32 %v7815, %v9368
        %9370 = vdwg.mxu0
        %9371 = vmatpush.bf16.msra.mxu0 %v8826
        %9372 = vmatpush.bf16.msra.mxu0 %v8823
        %9373 = vmatpush.bf16.msra.mxu0 %v8820
        %9374 = vmatpush.bf16.msra.mxu0 %v8817
        %9375 = vmatpush.bf16.msra.mxu0 %v8814
        %9376 = vmatpush.bf16.msra.mxu0 %v8811
        %9377 = vmatpush.bf16.msra.mxu0 %v8808
        %9378 = vmatpush.bf16.msra.mxu0 %v8805
        %9379 = vmatmul.bf16.gmra.mxu0 %v7418
        %v9380 = vpop.f32.mrf.mxu0
        %v9381 = vadd.f32 %v9367, %v9380
        %v9382 = vpop.f32.mrf.mxu0
        %v9383 = vadd.f32 %v9369, %v9382
        %9384 = vdwg.mxu0
        %9385 = vmatpush.bf16.msra.mxu0 %v8850
        %9386 = vmatpush.bf16.msra.mxu0 %v8847
        %9387 = vmatpush.bf16.msra.mxu0 %v8844
        %9388 = vmatpush.bf16.msra.mxu0 %v8841
        %9389 = vmatpush.bf16.msra.mxu0 %v8838
        %9390 = vmatpush.bf16.msra.mxu0 %v8835
        %9391 = vmatpush.bf16.msra.mxu0 %v8832
        %9392 = vmatpush.bf16.msra.mxu0 %v8829
        %9393 = vmatmul.bf16.gmra.mxu0 %v7419
        %v9394 = vpop.f32.mrf.mxu0
        %v9395 = vadd.f32 %v9381, %v9394
        %v9396 = vpop.f32.mrf.mxu0
        %v9397 = vadd.f32 %v9383, %v9396
        %9398 = vdwg.mxu0
        %9399 = vmatpush.bf16.msra.mxu0 %v8874
        %9400 = vmatpush.bf16.msra.mxu0 %v8871
        %9401 = vmatpush.bf16.msra.mxu0 %v8868
        %9402 = vmatpush.bf16.msra.mxu0 %v8865
        %9403 = vmatpush.bf16.msra.mxu0 %v8862
        %9404 = vmatpush.bf16.msra.mxu0 %v8859
        %9405 = vmatpush.bf16.msra.mxu0 %v8856
        %9406 = vmatpush.bf16.msra.mxu0 %v8853
        %9407 = vmatmul.bf16.gmra.mxu0 %v7420
        %v9408 = vpop.f32.mrf.mxu0
        %v9409 = vadd.f32 %v9395, %v9408
        %v9410 = vpop.f32.mrf.mxu0
        %v9411 = vadd.f32 %v9397, %v9410
        %9412 = vdwg.mxu0
        %9413 = vmatpush.bf16.msra.mxu0 %v8898
        %9414 = vmatpush.bf16.msra.mxu0 %v8895
        %9415 = vmatpush.bf16.msra.mxu0 %v8892
        %9416 = vmatpush.bf16.msra.mxu0 %v8889
        %9417 = vmatpush.bf16.msra.mxu0 %v8886
        %9418 = vmatpush.bf16.msra.mxu0 %v8883
        %9419 = vmatpush.bf16.msra.mxu0 %v8880
        %9420 = vmatpush.bf16.msra.mxu0 %v8877
        %9421 = vmatmul.bf16.gmra.mxu0 %v7421
        %v9422 = vpop.f32.mrf.mxu0
        %v9423 = vadd.f32 %v9409, %v9422
        %v9424 = vpop.f32.mrf.mxu0
        %v9425 = vadd.f32 %v9411, %v9424
        %9426 = vdwg.mxu0
        %9427 = vmatpush.bf16.msra.mxu0 %v8922
        %9428 = vmatpush.bf16.msra.mxu0 %v8919
        %9429 = vmatpush.bf16.msra.mxu0 %v8916
        %9430 = vmatpush.bf16.msra.mxu0 %v8913
        %9431 = vmatpush.bf16.msra.mxu0 %v8910
        %9432 = vmatpush.bf16.msra.mxu0 %v8907
        %9433 = vmatpush.bf16.msra.mxu0 %v8904
        %9434 = vmatpush.bf16.msra.mxu0 %v8901
        %9435 = vmatmul.bf16.gmra.mxu0 %v7422
        %v9436 = vpop.f32.mrf.mxu0
        %v9437 = vadd.f32 %v9423, %v9436
        %v9438 = vpop.f32.mrf.mxu0
        %v9439 = vadd.f32 %v9425, %v9438
        %9440 = vdwg.mxu0
        %9441 = vmatpush.bf16.msra.mxu0 %v8946
        %9442 = vmatpush.bf16.msra.mxu0 %v8943
        %9443 = vmatpush.bf16.msra.mxu0 %v8940
        %9444 = vmatpush.bf16.msra.mxu0 %v8937
        %9445 = vmatpush.bf16.msra.mxu0 %v8934
        %9446 = vmatpush.bf16.msra.mxu0 %v8931
        %9447 = vmatpush.bf16.msra.mxu0 %v8928
        %9448 = vmatpush.bf16.msra.mxu0 %v8925
        %9449 = vmatmul.bf16.gmra.mxu0 %v7423
        %v9450 = vpop.f32.mrf.mxu0
        %v9451 = vadd.f32 %v9437, %v9450
        %v9452 = vpop.f32.mrf.mxu0
        %v9453 = vadd.f32 %v9439, %v9452
        %9454 = vdwg.mxu0
        %9455 = vmatpush.bf16.msra.mxu0 %v8970
        %9456 = vmatpush.bf16.msra.mxu0 %v8967
        %9457 = vmatpush.bf16.msra.mxu0 %v8964
        %9458 = vmatpush.bf16.msra.mxu0 %v8961
        %9459 = vmatpush.bf16.msra.mxu0 %v8958
        %9460 = vmatpush.bf16.msra.mxu0 %v8955
        %9461 = vmatpush.bf16.msra.mxu0 %v8952
        %9462 = vmatpush.bf16.msra.mxu0 %v8949
        %9463 = vmatmul.bf16.gmra.mxu0 %v7424
        %v9464 = vpop.f32.mrf.mxu0
        %v9465 = vadd.f32 %v9451, %v9464
        %v9466 = vpop.f32.mrf.mxu0
        %v9467 = vadd.f32 %v9453, %v9466
        %9468 = vdwg.mxu0
        %9469 = vmatpush.bf16.msra.mxu0 %v8994
        %9470 = vmatpush.bf16.msra.mxu0 %v8991
        %9471 = vmatpush.bf16.msra.mxu0 %v8988
        %9472 = vmatpush.bf16.msra.mxu0 %v8985
        %9473 = vmatpush.bf16.msra.mxu0 %v8982
        %9474 = vmatpush.bf16.msra.mxu0 %v8979
        %9475 = vmatpush.bf16.msra.mxu0 %v8976
        %9476 = vmatpush.bf16.msra.mxu0 %v8973
        %9477 = vmatmul.bf16.gmra.mxu0 %v7425
        %v9478 = vpop.f32.mrf.mxu0
        %v9479 = vadd.f32 %v9465, %v9478
        %v9480 = vpop.f32.mrf.mxu0
        %v9481 = vadd.f32 %v9467, %v9480
        %9482 = vdwg.mxu0
        %9483 = vmatpush.bf16.msra.mxu0 %v9018
        %9484 = vmatpush.bf16.msra.mxu0 %v9015
        %9485 = vmatpush.bf16.msra.mxu0 %v9012
        %9486 = vmatpush.bf16.msra.mxu0 %v9009
        %9487 = vmatpush.bf16.msra.mxu0 %v9006
        %9488 = vmatpush.bf16.msra.mxu0 %v9003
        %9489 = vmatpush.bf16.msra.mxu0 %v9000
        %9490 = vmatpush.bf16.msra.mxu0 %v8997
        %9491 = vmatmul.bf16.gmra.mxu0 %v7426
        %v9492 = vpop.f32.mrf.mxu0
        %v9493 = vadd.f32 %v9479, %v9492
        %v9494 = vpop.f32.mrf.mxu0
        %v9495 = vadd.f32 %v9481, %v9494
        %9496 = vdwg.mxu0
        %9497 = vmatpush.bf16.msra.mxu0 %v9042
        %9498 = vmatpush.bf16.msra.mxu0 %v9039
        %9499 = vmatpush.bf16.msra.mxu0 %v9036
        %9500 = vmatpush.bf16.msra.mxu0 %v9033
        %9501 = vmatpush.bf16.msra.mxu0 %v9030
        %9502 = vmatpush.bf16.msra.mxu0 %v9027
        %9503 = vmatpush.bf16.msra.mxu0 %v9024
        %9504 = vmatpush.bf16.msra.mxu0 %v9021
        %9505 = vmatmul.bf16.gmra.mxu0 %v7427
        %v9506 = vpop.f32.mrf.mxu0
        %v9507 = vadd.f32 %v9493, %v9506
        %v9508 = vpop.f32.mrf.mxu0
        %v9509 = vadd.f32 %v9495, %v9508
        %9510 = vdwg.mxu0
        %9511 = vmatpush.bf16.msra.mxu0 %v9066
        %9512 = vmatpush.bf16.msra.mxu0 %v9063
        %9513 = vmatpush.bf16.msra.mxu0 %v9060
        %9514 = vmatpush.bf16.msra.mxu0 %v9057
        %9515 = vmatpush.bf16.msra.mxu0 %v9054
        %9516 = vmatpush.bf16.msra.mxu0 %v9051
        %9517 = vmatpush.bf16.msra.mxu0 %v9048
        %9518 = vmatpush.bf16.msra.mxu0 %v9045
        %9519 = vmatmul.bf16.gmra.mxu0 %v7428
        %v9520 = vpop.f32.mrf.mxu0
        %v9521 = vadd.f32 %v9507, %v9520
        %v9522 = vpop.f32.mrf.mxu0
        %v9523 = vadd.f32 %v9509, %v9522
        %9524 = vdwg.mxu0
        %9525 = vmatpush.bf16.msra.mxu0 %v8803
        %9526 = vmatpush.bf16.msra.mxu0 %v8800
        %9527 = vmatpush.bf16.msra.mxu0 %v8797
        %9528 = vmatpush.bf16.msra.mxu0 %v8794
        %9529 = vmatpush.bf16.msra.mxu0 %v8791
        %9530 = vmatpush.bf16.msra.mxu0 %v8788
        %9531 = vmatpush.bf16.msra.mxu0 %v8785
        %9532 = vmatpush.bf16.msra.mxu0 %v8782
        %9533 = vmatmul.bf16.gmra.mxu0 %v7417
        %v9534 = vpop.f32.mrf.mxu0
        %v9535 = vadd.f32 %v7816, %v9534
        %v9536 = vpop.f32.mrf.mxu0
        %v9537 = vadd.f32 %v7816, %v9536
        %9538 = vdwg.mxu0
        %9539 = vmatpush.bf16.msra.mxu0 %v8827
        %9540 = vmatpush.bf16.msra.mxu0 %v8824
        %9541 = vmatpush.bf16.msra.mxu0 %v8821
        %9542 = vmatpush.bf16.msra.mxu0 %v8818
        %9543 = vmatpush.bf16.msra.mxu0 %v8815
        %9544 = vmatpush.bf16.msra.mxu0 %v8812
        %9545 = vmatpush.bf16.msra.mxu0 %v8809
        %9546 = vmatpush.bf16.msra.mxu0 %v8806
        %9547 = vmatmul.bf16.gmra.mxu0 %v7418
        %v9548 = vpop.f32.mrf.mxu0
        %v9549 = vadd.f32 %v9535, %v9548
        %v9550 = vpop.f32.mrf.mxu0
        %v9551 = vadd.f32 %v9537, %v9550
        %9552 = vdwg.mxu0
        %9553 = vmatpush.bf16.msra.mxu0 %v8851
        %9554 = vmatpush.bf16.msra.mxu0 %v8848
        %9555 = vmatpush.bf16.msra.mxu0 %v8845
        %9556 = vmatpush.bf16.msra.mxu0 %v8842
        %9557 = vmatpush.bf16.msra.mxu0 %v8839
        %9558 = vmatpush.bf16.msra.mxu0 %v8836
        %9559 = vmatpush.bf16.msra.mxu0 %v8833
        %9560 = vmatpush.bf16.msra.mxu0 %v8830
        %9561 = vmatmul.bf16.gmra.mxu0 %v7419
        %v9562 = vpop.f32.mrf.mxu0
        %v9563 = vadd.f32 %v9549, %v9562
        %v9564 = vpop.f32.mrf.mxu0
        %v9565 = vadd.f32 %v9551, %v9564
        %9566 = vdwg.mxu0
        %9567 = vmatpush.bf16.msra.mxu0 %v8875
        %9568 = vmatpush.bf16.msra.mxu0 %v8872
        %9569 = vmatpush.bf16.msra.mxu0 %v8869
        %9570 = vmatpush.bf16.msra.mxu0 %v8866
        %9571 = vmatpush.bf16.msra.mxu0 %v8863
        %9572 = vmatpush.bf16.msra.mxu0 %v8860
        %9573 = vmatpush.bf16.msra.mxu0 %v8857
        %9574 = vmatpush.bf16.msra.mxu0 %v8854
        %9575 = vmatmul.bf16.gmra.mxu0 %v7420
        %v9576 = vpop.f32.mrf.mxu0
        %v9577 = vadd.f32 %v9563, %v9576
        %v9578 = vpop.f32.mrf.mxu0
        %v9579 = vadd.f32 %v9565, %v9578
        %9580 = vdwg.mxu0
        %9581 = vmatpush.bf16.msra.mxu0 %v8899
        %9582 = vmatpush.bf16.msra.mxu0 %v8896
        %9583 = vmatpush.bf16.msra.mxu0 %v8893
        %9584 = vmatpush.bf16.msra.mxu0 %v8890
        %9585 = vmatpush.bf16.msra.mxu0 %v8887
        %9586 = vmatpush.bf16.msra.mxu0 %v8884
        %9587 = vmatpush.bf16.msra.mxu0 %v8881
        %9588 = vmatpush.bf16.msra.mxu0 %v8878
        %9589 = vmatmul.bf16.gmra.mxu0 %v7421
        %v9590 = vpop.f32.mrf.mxu0
        %v9591 = vadd.f32 %v9577, %v9590
        %v9592 = vpop.f32.mrf.mxu0
        %v9593 = vadd.f32 %v9579, %v9592
        %9594 = vdwg.mxu0
        %9595 = vmatpush.bf16.msra.mxu0 %v8923
        %9596 = vmatpush.bf16.msra.mxu0 %v8920
        %9597 = vmatpush.bf16.msra.mxu0 %v8917
        %9598 = vmatpush.bf16.msra.mxu0 %v8914
        %9599 = vmatpush.bf16.msra.mxu0 %v8911
        %9600 = vmatpush.bf16.msra.mxu0 %v8908
        %9601 = vmatpush.bf16.msra.mxu0 %v8905
        %9602 = vmatpush.bf16.msra.mxu0 %v8902
        %9603 = vmatmul.bf16.gmra.mxu0 %v7422
        %v9604 = vpop.f32.mrf.mxu0
        %v9605 = vadd.f32 %v9591, %v9604
        %v9606 = vpop.f32.mrf.mxu0
        %v9607 = vadd.f32 %v9593, %v9606
        %9608 = vdwg.mxu0
        %9609 = vmatpush.bf16.msra.mxu0 %v8947
        %9610 = vmatpush.bf16.msra.mxu0 %v8944
        %9611 = vmatpush.bf16.msra.mxu0 %v8941
        %9612 = vmatpush.bf16.msra.mxu0 %v8938
        %9613 = vmatpush.bf16.msra.mxu0 %v8935
        %9614 = vmatpush.bf16.msra.mxu0 %v8932
        %9615 = vmatpush.bf16.msra.mxu0 %v8929
        %9616 = vmatpush.bf16.msra.mxu0 %v8926
        %9617 = vmatmul.bf16.gmra.mxu0 %v7423
        %v9618 = vpop.f32.mrf.mxu0
        %v9619 = vadd.f32 %v9605, %v9618
        %v9620 = vpop.f32.mrf.mxu0
        %v9621 = vadd.f32 %v9607, %v9620
        %9622 = vdwg.mxu0
        %9623 = vmatpush.bf16.msra.mxu0 %v8971
        %9624 = vmatpush.bf16.msra.mxu0 %v8968
        %9625 = vmatpush.bf16.msra.mxu0 %v8965
        %9626 = vmatpush.bf16.msra.mxu0 %v8962
        %9627 = vmatpush.bf16.msra.mxu0 %v8959
        %9628 = vmatpush.bf16.msra.mxu0 %v8956
        %9629 = vmatpush.bf16.msra.mxu0 %v8953
        %9630 = vmatpush.bf16.msra.mxu0 %v8950
        %9631 = vmatmul.bf16.gmra.mxu0 %v7424
        %v9632 = vpop.f32.mrf.mxu0
        %v9633 = vadd.f32 %v9619, %v9632
        %v9634 = vpop.f32.mrf.mxu0
        %v9635 = vadd.f32 %v9621, %v9634
        %9636 = vdwg.mxu0
        %9637 = vmatpush.bf16.msra.mxu0 %v8995
        %9638 = vmatpush.bf16.msra.mxu0 %v8992
        %9639 = vmatpush.bf16.msra.mxu0 %v8989
        %9640 = vmatpush.bf16.msra.mxu0 %v8986
        %9641 = vmatpush.bf16.msra.mxu0 %v8983
        %9642 = vmatpush.bf16.msra.mxu0 %v8980
        %9643 = vmatpush.bf16.msra.mxu0 %v8977
        %9644 = vmatpush.bf16.msra.mxu0 %v8974
        %9645 = vmatmul.bf16.gmra.mxu0 %v7425
        %v9646 = vpop.f32.mrf.mxu0
        %v9647 = vadd.f32 %v9633, %v9646
        %v9648 = vpop.f32.mrf.mxu0
        %v9649 = vadd.f32 %v9635, %v9648
        %9650 = vdwg.mxu0
        %9651 = vmatpush.bf16.msra.mxu0 %v9019
        %9652 = vmatpush.bf16.msra.mxu0 %v9016
        %9653 = vmatpush.bf16.msra.mxu0 %v9013
        %9654 = vmatpush.bf16.msra.mxu0 %v9010
        %9655 = vmatpush.bf16.msra.mxu0 %v9007
        %9656 = vmatpush.bf16.msra.mxu0 %v9004
        %9657 = vmatpush.bf16.msra.mxu0 %v9001
        %9658 = vmatpush.bf16.msra.mxu0 %v8998
        %9659 = vmatmul.bf16.gmra.mxu0 %v7426
        %v9660 = vpop.f32.mrf.mxu0
        %v9661 = vadd.f32 %v9647, %v9660
        %v9662 = vpop.f32.mrf.mxu0
        %v9663 = vadd.f32 %v9649, %v9662
        %9664 = vdwg.mxu0
        %9665 = vmatpush.bf16.msra.mxu0 %v9043
        %9666 = vmatpush.bf16.msra.mxu0 %v9040
        %9667 = vmatpush.bf16.msra.mxu0 %v9037
        %9668 = vmatpush.bf16.msra.mxu0 %v9034
        %9669 = vmatpush.bf16.msra.mxu0 %v9031
        %9670 = vmatpush.bf16.msra.mxu0 %v9028
        %9671 = vmatpush.bf16.msra.mxu0 %v9025
        %9672 = vmatpush.bf16.msra.mxu0 %v9022
        %9673 = vmatmul.bf16.gmra.mxu0 %v7427
        %v9674 = vpop.f32.mrf.mxu0
        %v9675 = vadd.f32 %v9661, %v9674
        %v9676 = vpop.f32.mrf.mxu0
        %v9677 = vadd.f32 %v9663, %v9676
        %9678 = vdwg.mxu0
        %9679 = vmatpush.bf16.msra.mxu0 %v9067
        %9680 = vmatpush.bf16.msra.mxu0 %v9064
        %9681 = vmatpush.bf16.msra.mxu0 %v9061
        %9682 = vmatpush.bf16.msra.mxu0 %v9058
        %9683 = vmatpush.bf16.msra.mxu0 %v9055
        %9684 = vmatpush.bf16.msra.mxu0 %v9052
        %9685 = vmatpush.bf16.msra.mxu0 %v9049
        %9686 = vmatpush.bf16.msra.mxu0 %v9046
        %9687 = vmatmul.bf16.gmra.mxu0 %v7428
        %v9688 = vpop.f32.mrf.mxu0
        %v9689 = vadd.f32 %v9675, %v9688
        %v9690 = vpop.f32.mrf.mxu0
        %v9691 = vadd.f32 %v9677, %v9690
        %9692 = vdwg.mxu0
        %9693 = vmatpush.bf16.msra.mxu0 %v8804
        %9694 = vmatpush.bf16.msra.mxu0 %v8801
        %9695 = vmatpush.bf16.msra.mxu0 %v8798
        %9696 = vmatpush.bf16.msra.mxu0 %v8795
        %9697 = vmatpush.bf16.msra.mxu0 %v8792
        %9698 = vmatpush.bf16.msra.mxu0 %v8789
        %9699 = vmatpush.bf16.msra.mxu0 %v8786
        %9700 = vmatpush.bf16.msra.mxu0 %v8783
        %9701 = vmatmul.bf16.gmra.mxu0 %v7417
        %v9702 = vpop.f32.mrf.mxu0
        %v9703 = vadd.f32 %v7817, %v9702
        %v9704 = vpop.f32.mrf.mxu0
        %v9705 = vadd.f32 %v7817, %v9704
        %9706 = vdwg.mxu0
        %9707 = vmatpush.bf16.msra.mxu0 %v8828
        %9708 = vmatpush.bf16.msra.mxu0 %v8825
        %9709 = vmatpush.bf16.msra.mxu0 %v8822
        %9710 = vmatpush.bf16.msra.mxu0 %v8819
        %9711 = vmatpush.bf16.msra.mxu0 %v8816
        %9712 = vmatpush.bf16.msra.mxu0 %v8813
        %9713 = vmatpush.bf16.msra.mxu0 %v8810
        %9714 = vmatpush.bf16.msra.mxu0 %v8807
        %9715 = vmatmul.bf16.gmra.mxu0 %v7418
        %v9716 = vpop.f32.mrf.mxu0
        %v9717 = vadd.f32 %v9703, %v9716
        %v9718 = vpop.f32.mrf.mxu0
        %v9719 = vadd.f32 %v9705, %v9718
        %9720 = vdwg.mxu0
        %9721 = vmatpush.bf16.msra.mxu0 %v8852
        %9722 = vmatpush.bf16.msra.mxu0 %v8849
        %9723 = vmatpush.bf16.msra.mxu0 %v8846
        %9724 = vmatpush.bf16.msra.mxu0 %v8843
        %9725 = vmatpush.bf16.msra.mxu0 %v8840
        %9726 = vmatpush.bf16.msra.mxu0 %v8837
        %9727 = vmatpush.bf16.msra.mxu0 %v8834
        %9728 = vmatpush.bf16.msra.mxu0 %v8831
        %9729 = vmatmul.bf16.gmra.mxu0 %v7419
        %v9730 = vpop.f32.mrf.mxu0
        %v9731 = vadd.f32 %v9717, %v9730
        %v9732 = vpop.f32.mrf.mxu0
        %v9733 = vadd.f32 %v9719, %v9732
        %9734 = vdwg.mxu0
        %9735 = vmatpush.bf16.msra.mxu0 %v8876
        %9736 = vmatpush.bf16.msra.mxu0 %v8873
        %9737 = vmatpush.bf16.msra.mxu0 %v8870
        %9738 = vmatpush.bf16.msra.mxu0 %v8867
        %9739 = vmatpush.bf16.msra.mxu0 %v8864
        %9740 = vmatpush.bf16.msra.mxu0 %v8861
        %9741 = vmatpush.bf16.msra.mxu0 %v8858
        %9742 = vmatpush.bf16.msra.mxu0 %v8855
        %9743 = vmatmul.bf16.gmra.mxu0 %v7420
        %v9744 = vpop.f32.mrf.mxu0
        %v9745 = vadd.f32 %v9731, %v9744
        %v9746 = vpop.f32.mrf.mxu0
        %v9747 = vadd.f32 %v9733, %v9746
        %9748 = vdwg.mxu0
        %9749 = vmatpush.bf16.msra.mxu0 %v8900
        %9750 = vmatpush.bf16.msra.mxu0 %v8897
        %9751 = vmatpush.bf16.msra.mxu0 %v8894
        %9752 = vmatpush.bf16.msra.mxu0 %v8891
        %9753 = vmatpush.bf16.msra.mxu0 %v8888
        %9754 = vmatpush.bf16.msra.mxu0 %v8885
        %9755 = vmatpush.bf16.msra.mxu0 %v8882
        %9756 = vmatpush.bf16.msra.mxu0 %v8879
        %9757 = vmatmul.bf16.gmra.mxu0 %v7421
        %v9758 = vpop.f32.mrf.mxu0
        %v9759 = vadd.f32 %v9745, %v9758
        %v9760 = vpop.f32.mrf.mxu0
        %v9761 = vadd.f32 %v9747, %v9760
        %9762 = vdwg.mxu0
        %9763 = vmatpush.bf16.msra.mxu0 %v8924
        %9764 = vmatpush.bf16.msra.mxu0 %v8921
        %9765 = vmatpush.bf16.msra.mxu0 %v8918
        %9766 = vmatpush.bf16.msra.mxu0 %v8915
        %9767 = vmatpush.bf16.msra.mxu0 %v8912
        %9768 = vmatpush.bf16.msra.mxu0 %v8909
        %9769 = vmatpush.bf16.msra.mxu0 %v8906
        %9770 = vmatpush.bf16.msra.mxu0 %v8903
        %9771 = vmatmul.bf16.gmra.mxu0 %v7422
        %v9772 = vpop.f32.mrf.mxu0
        %v9773 = vadd.f32 %v9759, %v9772
        %v9774 = vpop.f32.mrf.mxu0
        %v9775 = vadd.f32 %v9761, %v9774
        %9776 = vdwg.mxu0
        %9777 = vmatpush.bf16.msra.mxu0 %v8948
        %9778 = vmatpush.bf16.msra.mxu0 %v8945
        %9779 = vmatpush.bf16.msra.mxu0 %v8942
        %9780 = vmatpush.bf16.msra.mxu0 %v8939
        %9781 = vmatpush.bf16.msra.mxu0 %v8936
        %9782 = vmatpush.bf16.msra.mxu0 %v8933
        %9783 = vmatpush.bf16.msra.mxu0 %v8930
        %9784 = vmatpush.bf16.msra.mxu0 %v8927
        %9785 = vmatmul.bf16.gmra.mxu0 %v7423
        %v9786 = vpop.f32.mrf.mxu0
        %v9787 = vadd.f32 %v9773, %v9786
        %v9788 = vpop.f32.mrf.mxu0
        %v9789 = vadd.f32 %v9775, %v9788
        %9790 = vdwg.mxu0
        %9791 = vmatpush.bf16.msra.mxu0 %v8972
        %9792 = vmatpush.bf16.msra.mxu0 %v8969
        %9793 = vmatpush.bf16.msra.mxu0 %v8966
        %9794 = vmatpush.bf16.msra.mxu0 %v8963
        %9795 = vmatpush.bf16.msra.mxu0 %v8960
        %9796 = vmatpush.bf16.msra.mxu0 %v8957
        %9797 = vmatpush.bf16.msra.mxu0 %v8954
        %9798 = vmatpush.bf16.msra.mxu0 %v8951
        %9799 = vmatmul.bf16.gmra.mxu0 %v7424
        %v9800 = vpop.f32.mrf.mxu0
        %v9801 = vadd.f32 %v9787, %v9800
        %v9802 = vpop.f32.mrf.mxu0
        %v9803 = vadd.f32 %v9789, %v9802
        %9804 = vdwg.mxu0
        %9805 = vmatpush.bf16.msra.mxu0 %v8996
        %9806 = vmatpush.bf16.msra.mxu0 %v8993
        %9807 = vmatpush.bf16.msra.mxu0 %v8990
        %9808 = vmatpush.bf16.msra.mxu0 %v8987
        %9809 = vmatpush.bf16.msra.mxu0 %v8984
        %9810 = vmatpush.bf16.msra.mxu0 %v8981
        %9811 = vmatpush.bf16.msra.mxu0 %v8978
        %9812 = vmatpush.bf16.msra.mxu0 %v8975
        %9813 = vmatmul.bf16.gmra.mxu0 %v7425
        %v9814 = vpop.f32.mrf.mxu0
        %v9815 = vadd.f32 %v9801, %v9814
        %v9816 = vpop.f32.mrf.mxu0
        %v9817 = vadd.f32 %v9803, %v9816
        %9818 = vdwg.mxu0
        %9819 = vmatpush.bf16.msra.mxu0 %v9020
        %9820 = vmatpush.bf16.msra.mxu0 %v9017
        %9821 = vmatpush.bf16.msra.mxu0 %v9014
        %9822 = vmatpush.bf16.msra.mxu0 %v9011
        %9823 = vmatpush.bf16.msra.mxu0 %v9008
        %9824 = vmatpush.bf16.msra.mxu0 %v9005
        %9825 = vmatpush.bf16.msra.mxu0 %v9002
        %9826 = vmatpush.bf16.msra.mxu0 %v8999
        %9827 = vmatmul.bf16.gmra.mxu0 %v7426
        %v9828 = vpop.f32.mrf.mxu0
        %v9829 = vadd.f32 %v9815, %v9828
        %v9830 = vpop.f32.mrf.mxu0
        %v9831 = vadd.f32 %v9817, %v9830
        %9832 = vdwg.mxu0
        %9833 = vmatpush.bf16.msra.mxu0 %v9044
        %9834 = vmatpush.bf16.msra.mxu0 %v9041
        %9835 = vmatpush.bf16.msra.mxu0 %v9038
        %9836 = vmatpush.bf16.msra.mxu0 %v9035
        %9837 = vmatpush.bf16.msra.mxu0 %v9032
        %9838 = vmatpush.bf16.msra.mxu0 %v9029
        %9839 = vmatpush.bf16.msra.mxu0 %v9026
        %9840 = vmatpush.bf16.msra.mxu0 %v9023
        %9841 = vmatmul.bf16.gmra.mxu0 %v7427
        %v9842 = vpop.f32.mrf.mxu0
        %v9843 = vadd.f32 %v9829, %v9842
        %v9844 = vpop.f32.mrf.mxu0
        %v9845 = vadd.f32 %v9831, %v9844
        %9846 = vdwg.mxu0
        %9847 = vmatpush.bf16.msra.mxu0 %v9068
        %9848 = vmatpush.bf16.msra.mxu0 %v9065
        %9849 = vmatpush.bf16.msra.mxu0 %v9062
        %9850 = vmatpush.bf16.msra.mxu0 %v9059
        %9851 = vmatpush.bf16.msra.mxu0 %v9056
        %9852 = vmatpush.bf16.msra.mxu0 %v9053
        %9853 = vmatpush.bf16.msra.mxu0 %v9050
        %9854 = vmatpush.bf16.msra.mxu0 %v9047
        %9855 = vmatmul.bf16.gmra.mxu0 %v7428
        %v9856 = vpop.f32.mrf.mxu0
        %v9857 = vadd.f32 %v9843, %v9856
        %v9858 = vpop.f32.mrf.mxu0
        %v9859 = vadd.f32 %v9845, %v9858
        %9860 = vdwg.mxu0
        %v9861 = vadd.f32 %v4004, %v9521
        %v9862 = vadd.f32 %v4005, %v9689
        %v9863 = vadd.f32 %v4006, %v9857
        %v9864 = vadd.f32 %v4007, %v9523
        %v9865 = vadd.f32 %v4008, %v9691
        %v9866 = vadd.f32 %v4009, %v9859
        %p9867 = scmp.lt.s32.totalorder %s54, 11
        // Predicated region
        $region145: #{dinov2_forward.3} parent=83 // pred_check
          %p9868 = pneg %p9867
        $region146: #{dinov2_forward.3} parent=83 // pred_check_branch
          %9870 = sbr.rel (%p9868) target = $region148
        $region147: #{dinov2_forward.3} parent=83 // pred_region
          %9871 = vst [vmem:[%s1027] sm:$0xff] %v9861
          %9872 = vst [vmem:[%s1027 + $0x8] sm:$0xff] %v9862
          %9873 = vst [vmem:[%s1027 + $0x10] sm:$0xff] %v9863
          %9874 = vst [vmem:[%s1027 + $0x18] sm:$0xff] %v9864
          %9875 = vst [vmem:[%s1027 + $0x20] sm:$0xff] %v9865
          %9876 = vst [vmem:[%s1027 + $0x28] sm:$0xff] %v9866
        $region148: #{dinov2_forward.3} parent=83 // pred_fallthru
          _
        %p9877 = scmp.eq.s32.totalorder %s54, 11
        // Predicated region
        $region149: #{dinov2_forward.3} parent=83 // pred_check
          %p9878 = pneg %p9877
        $region150: #{dinov2_forward.3} parent=83 // pred_check_branch
          %9880 = sbr.rel (%p9878) target = $region152
        $region151: #{dinov2_forward.3} parent=83 // pred_region
          %v9881 = vld [vmem:[#allocation21] sm:$0x7]
          %v9882 = vld [vmem:[#allocation22] sm:$0x7]
          %v9883 = vadd.f32 %v9861, %v9862
          %v9884 = vadd.f32 %v9883, %v9863
          %9885 = vadd.xlane.f32.xlu0 %v9884
          %v9886 = vpop.xlane.xlu0 %9885
          %v9887 = vadd.f32 %v9864, %v9865
          %v9888 = vadd.f32 %v9887, %v9866
          %9889 = vadd.xlane.f32.xlu0 %v9888
          %v9890 = vpop.xlane.xlu0 %9889
          %v9891 = vmul.f32 %v9886, %v1067
          %v9892 = vmul.f32 %v9890, %v1067
          %v9893 = vsub.f32 %v9861, %v9891
          %v9894 = vsub.f32 %v9862, %v9891
          %v9895 = vsub.f32 %v9863, %v9891
          %v9896 = vsub.f32 %v9864, %v9892
          %v9897 = vsub.f32 %v9865, %v9892
          %v9898 = vsub.f32 %v9866, %v9892
          %v9899 = vmul.f32 %v9893, %v9893
          %v9900 = vmul.f32 %v9894, %v9894
          %v9901 = vmul.f32 %v9895, %v9895
          %v9902 = vmul.f32 %v9896, %v9896
          %v9903 = vmul.f32 %v9897, %v9897
          %v9904 = vmul.f32 %v9898, %v9898
          %v9905 = vadd.f32 %v9899, %v9900
          %v9906 = vadd.f32 %v9905, %v9901
          %9907 = vadd.xlane.f32.xlu0 %v9906
          %v9908 = vpop.xlane.xlu0 %9907
          %v9909 = vadd.f32 %v9902, %v9903
          %v9910 = vadd.f32 %v9909, %v9904
          %9911 = vadd.xlane.f32.xlu0 %v9910
          %v9912 = vpop.xlane.xlu0 %9911
          %v9913 = vmul.f32 %v9908, %v1067
          %v9914 = vmul.f32 %v9912, %v1067
          %v9915 = vadd.f32 %v9913, 1e-06
          %v9916 = vadd.f32 %v9914, 1e-06
          %v9917 = vrsqrt.pop %v9915
          %v9918 = vmul.f32 %v9917, %v9915
          %v9919 = vmul.f32 %v9918, %v9917
          %v9920 = vmul.f32 0.5, %v9919
          %v9921 = vsub.f32 1.5, %v9920
          %v9922 = vmul.f32 %v9917, %v9921
          %vm9923 = vweird.f32 %v9915
          %vm9924 = vweird.f32 %v9917
          %vm9925 = vmor %vm9923, %vm9924
          %v9926 = vsel %vm9925, %v9917, %v9922
          %v9927 = vrsqrt.pop %v9916
          %v9928 = vmul.f32 %v9927, %v9916
          %v9929 = vmul.f32 %v9928, %v9927
          %v9930 = vmul.f32 0.5, %v9929
          %v9931 = vsub.f32 1.5, %v9930
          %v9932 = vmul.f32 %v9927, %v9931
          %vm9933 = vweird.f32 %v9916
          %vm9934 = vweird.f32 %v9927
          %vm9935 = vmor %vm9933, %vm9934
          %v9936 = vsel %vm9935, %v9927, %v9932
          %v9937 = vmul.f32 %v9893, %v9926
          %v9938 = vmul.f32 %v9894, %v9926
          %v9939 = vmul.f32 %v9895, %v9926
          %v9940 = vmul.f32 %v9896, %v9936
          %v9941 = vmul.f32 %v9897, %v9936
          %v9942 = vmul.f32 %v9898, %v9936
          %v9944 = vperm.slane %v9881, 0
          %v9945 = vperm.slane %v9881, 1
          %v9946 = vperm.slane %v9881, 2
          %v9950 = vmul.f32 %v9937, %v9944
          %v9951 = vmul.f32 %v9938, %v9945
          %v9952 = vmul.f32 %v9939, %v9946
          %v9953 = vmul.f32 %v9940, %v9944
          %v9954 = vmul.f32 %v9941, %v9945
          %v9955 = vmul.f32 %v9942, %v9946
          %v9957 = vperm.slane %v9882, 0
          %v9958 = vperm.slane %v9882, 1
          %v9959 = vperm.slane %v9882, 2
          %v9963 = vadd.f32 %v9950, %v9957
          %v9964 = vadd.f32 %v9951, %v9958
          %v9965 = vadd.f32 %v9952, %v9959
          %v9966 = vadd.f32 %v9953, %v9957
          %v9967 = vadd.f32 %v9954, %v9958
          %v9968 = vadd.f32 %v9955, %v9959
          %9969 = vst [vmem:[%s1027] sm:$0xff] %v9963
          %9970 = vst [vmem:[%s1027 + $0x8] sm:$0xff] %v9964
          %9971 = vst [vmem:[%s1027 + $0x10] sm:$0xff] %v9965
          %9972 = vst [vmem:[%s1027 + $0x18] sm:$0xff] %v9966
          %9973 = vst [vmem:[%s1027 + $0x20] sm:$0xff] %v9967
          %9974 = vst [vmem:[%s1027 + $0x28] sm:$0xff] %v9968
        $region152: #{dinov2_forward.3} parent=83 // pred_fallthru
          _
        %p9975 = scmp.lt.s32.totalorder %s53, 1
        %s9976 = scalar_select %p9975, %s53, 1
        %s9977 = smul.addr %s9976, 6
        %s9978 = smul.addr %s9977, 8
        %s9979 = scalar_lea.vmem %s16, %s9978
        // Predicated region
        $region153: #{dinov2_forward.3} parent=83 // pred_check
          %p9980 = pneg %p480
        $region154: #{dinov2_forward.3} parent=83 // pred_check_branch
          %9982 = sbr.rel (%p9980) target = $region156
        $region155: #{dinov2_forward.3} parent=83 // pred_region
          _
        $region156: #{dinov2_forward.3} parent=83 // pred_fallthru
          _
      $region84: #{dinov2_forward.3} parent=5 // pred_fallthru
        _
      %p9983 = scmp.le.s32.totalorder 2, %s44
      // Predicated region
      $region157: #{dinov2_forward.3} parent=5 // pred_check
        %p9984 = pneg %p9983
      $region158: #{dinov2_forward.3} parent=5 // pred_check_branch
        %9986 = sbr.rel (%p9984) target = $region160
      $region159: #{dinov2_forward.3} parent=5 // pred_region
        %s9987 = ssub.s32 %s44, 2
        // Predicated region
        $region161: #{dinov2_forward.3} parent=159 // pred_check
          %p9988 = pneg %p486
        $region162: #{dinov2_forward.3} parent=159 // pred_check_branch
          %9990 = sbr.rel (%p9988) target = $region164
        $region163: #{dinov2_forward.3} parent=159 // pred_region
          %p9991 = scmp.lt.s32.totalorder %s55, 1
          %s9992 = scalar_select %p9991, %s55, 1
          %s9993 = smul.addr %s9992, 6
          %s9994 = smul.addr %s9993, 8
          %s9995 = scalar_lea.vmem %s16, %s9994
        $region164: #{dinov2_forward.3} parent=159 // pred_fallthru
          _
      $region160: #{dinov2_forward.3} parent=5 // pred_fallthru
        _
    $region6: #{dinov2_forward.3} parent=1 // loop_footer
      %s48 = sadd.s32 1, %s44
    $region7: #{dinov2_forward.3} parent=1 // loop_footer_branch
      %43 = sbr.rel target = $region3
    $region8: #{dinov2_forward.3} parent=1 // loop_exit
      _
    %9996 = vsyncpa [#allocation3], 1
    %s9997 = scalar_lea.sflag [#allocation3], 1
    %9998 = vsyncpa %s9997, 1
    %9999 = vsyncpa [#allocation5], 1
    %s10000 = scalar_lea.sflag [#allocation5], 1
    %10001 = vsyncpa %s10000, 1
    %10002 = vsyncpa [#allocation8], 1
    %s10003 = scalar_lea.sflag [#allocation8], 1
    %10004 = vsyncpa %s10003, 1
    %10005 = vsyncpa [#allocation11], 1
    %s10006 = scalar_lea.sflag [#allocation11], 1
    %10007 = vsyncpa %s10006, 1
    %10008 = vsyncpa [#allocation14], 1
    %s10009 = scalar_lea.sflag [#allocation14], 1
    %10010 = vsyncpa %s10009, 1
    %10011 = vsyncpa [#allocation17], 1
    %s10012 = scalar_lea.sflag [#allocation17], 1
    %10013 = vsyncpa %s10012, 1
    %10014 = vsyncpa [#allocation20], 1
    %s10015 = scalar_lea.sflag [#allocation20], 1
    %10016 = vsyncpa %s10015, 1
    %10017 = vsyncpa [#allocation23], 1

</llo_original>
